<compile_context>
chip_gen: v6e
topology: v6e:2x2x1
jax: 0.10.0
libtpu: 0.0.40
codegen_flags: <defaults>
</compile_context>

<pallas_src>
import jax
import jax.numpy as jnp
from jax.experimental import pallas as pl
from jax.experimental.pallas import tpu as pltpu

# ------------------------- configuration (small shapes) -------------------------
IMG_SIZE = 16
PATCH = 4
IN_CH = 3
D_MODEL = 128
N_HEADS = 4
HEAD_DIM = D_MODEL // N_HEADS
NUM_LAYERS = 2
MLP_DIM = 256
N_CLASSES = 10
BATCH = 2
N_PATCHES = (IMG_SIZE // PATCH) ** 2          # 16
SEQ = N_PATCHES + 1                           # 17 (cls token + patches)
SEQ_PAD = 32                                  # padded sequence (sublane friendly)
PATCH_DIM = IN_CH * PATCH * PATCH             # 48
K_PAD = 128                                   # padded patch-embed contraction dim
N_PAD = 128                                   # padded (lane-dense) classifier output
EPS = 1e-5


# ------------------------- fused ViT kernel -------------------------
def vit_kernel(x_ref, wemb_ref, pos_ref,
               ln_ref, wqkv_ref, bqkv_ref, wo_ref, bo_ref,
               w1_ref, b1_ref, w2_ref, b2_ref,
               wh_ref, bh_ref, o_ref):
    f32 = jnp.float32
    bf16 = jnp.bfloat16

    # ---- patch embed + cls token + patch bias (folded into one padded matmul) ----
    x_in = x_ref[0]                                              # [S_PAD, K_PAD] f32
    x = jnp.dot(x_in.astype(bf16), wemb_ref[...],
                preferred_element_type=f32)                      # [S_PAD, D]
    x = x + pos_ref[0]                                           # positional embedding

    # additive key mask: pad key columns (>= SEQ) -> -inf-ish
    col = jax.lax.broadcasted_iota(jnp.int32, (1, 1, SEQ_PAD), 2)
    mask = jnp.where(col < SEQ, f32(0.0), f32(-1e30))            # [1, 1, S_PAD]

    scale = f32(1.0 / (HEAD_DIM ** 0.5))

    for l in range(NUM_LAYERS):        # static unroll; weights stay VMEM resident
        ln = ln_ref[l]                 # [4, D]: ln1_g, ln1_b, ln2_g, ln2_b

        # ---- LayerNorm 1 (f32) ----
        mu = jnp.mean(x, axis=-1, keepdims=True)
        var = jnp.mean((x - mu) ** 2, axis=-1, keepdims=True)
        xn = (x - mu) * jax.lax.rsqrt(var + EPS)
        xn = xn * ln[0:1, :] + ln[1:2, :]

        # ---- fused QKV projection: one [S,D] x [D,3D] matmul ----
        qkv = jnp.dot(xn.astype(bf16), wqkv_ref[l],
                      preferred_element_type=f32) + bqkv_ref[l]  # [S, 3D]
        q = qkv[:, 0 * D_MODEL:1 * D_MODEL].reshape(SEQ_PAD, N_HEADS, HEAD_DIM)
        k = qkv[:, 1 * D_MODEL:2 * D_MODEL].reshape(SEQ_PAD, N_HEADS, HEAD_DIM)
        v = qkv[:, 2 * D_MODEL:3 * D_MODEL].reshape(SEQ_PAD, N_HEADS, HEAD_DIM)
        qh = jnp.transpose(q, (1, 0, 2)).astype(bf16)            # [H, S, hd]
        kh = jnp.transpose(k, (1, 0, 2)).astype(bf16)
        vh = jnp.transpose(v, (1, 0, 2)).astype(bf16)

        # ---- head-batched attention (heads as batch dim, no per-head loop) ----
        s = jnp.einsum('hqd,hkd->hqk', qh, kh,
                       preferred_element_type=f32) * scale + mask
        s = s - jnp.max(s, axis=-1, keepdims=True)
        p = jnp.exp(s)
        p = p * pl.reciprocal(jnp.sum(p, axis=-1, keepdims=True), approx=True)
        ctx = jnp.einsum('hqk,hkd->hqd', p.astype(bf16), vh,
                         preferred_element_type=f32)             # [H, S, hd]
        attn = jnp.transpose(ctx, (1, 0, 2)).reshape(SEQ_PAD, D_MODEL)
        attn = jnp.dot(attn.astype(bf16), wo_ref[l],
                       preferred_element_type=f32) + bo_ref[l]
        x = x + attn                                             # residual 1

        # ---- LayerNorm 2 + MLP ----
        mu2 = jnp.mean(x, axis=-1, keepdims=True)
        var2 = jnp.mean((x - mu2) ** 2, axis=-1, keepdims=True)
        xn2 = (x - mu2) * jax.lax.rsqrt(var2 + EPS)
        xn2 = xn2 * ln[2:3, :] + ln[3:4, :]
        h = jnp.dot(xn2.astype(bf16), w1_ref[l],
                    preferred_element_type=f32) + b1_ref[l]
        # TODO(synk): tanh-approx GELU (EUP slot) deviates slightly from exact erf GELU.
        h = jax.nn.gelu(h, approximate=True)
        h = jnp.dot(h.astype(bf16), w2_ref[l],
                    preferred_element_type=f32) + b2_ref[l]
        x = x + h                                                # residual 2

    # ---- classification head on the cls token (lane-dense padded output) ----
    cls = x[0:1, :]                                              # [1, D]
    logits = jnp.dot(cls.astype(bf16), wh_ref[...],
                     preferred_element_type=f32) + bh_ref[...]   # [1, N_PAD]
    o_ref[0] = logits.astype(o_ref.dtype)


# ------------------------- glue: patch extraction -------------------------
def extract_patches(x):
    # x: [B, C, H, W] -> [B, N, C*p*p]  (matches Conv2d(stride=p) + flatten(2).T)
    B, C, H, W = x.shape
    p = PATCH
    x = x.reshape(B, C, H // p, p, W // p, p)
    x = x.transpose(0, 2, 4, 1, 3, 5)
    return x.reshape(B, (H // p) * (W // p), C * p * p)


# ------------------------- parameter initialization -------------------------
def init_params(key):
    std = 0.02
    ks = jax.random.split(key, 4 + NUM_LAYERS)
    conv_w = jax.random.normal(ks[0], (D_MODEL, IN_CH, PATCH, PATCH), jnp.float32) * std
    params = {
        "w_patch": conv_w.reshape(D_MODEL, PATCH_DIM).T,          # [48, D]
        "b_patch": jnp.zeros((D_MODEL,), jnp.float32),
        "cls_token": jax.random.normal(ks[1], (D_MODEL,), jnp.float32),
        "pos_emb": jax.random.normal(ks[2], (SEQ, D_MODEL), jnp.float32),
        "w_head": jax.random.normal(ks[3], (D_MODEL, N_CLASSES), jnp.float32) * std,
        "b_head": jnp.zeros((N_CLASSES,), jnp.float32),
        "layers": [],
    }
    for li in range(NUM_LAYERS):
        lk = jax.random.split(ks[4 + li], 6)
        layer = dict(
            ln1_g=jnp.ones((D_MODEL,), jnp.float32),
            ln1_b=jnp.zeros((D_MODEL,), jnp.float32),
            wq=jax.random.normal(lk[0], (D_MODEL, D_MODEL), jnp.float32) * std,
            wk=jax.random.normal(lk[1], (D_MODEL, D_MODEL), jnp.float32) * std,
            wv=jax.random.normal(lk[2], (D_MODEL, D_MODEL), jnp.float32) * std,
            bq=jnp.zeros((D_MODEL,), jnp.float32),
            bk=jnp.zeros((D_MODEL,), jnp.float32),
            bv=jnp.zeros((D_MODEL,), jnp.float32),
            wo=jax.random.normal(lk[3], (D_MODEL, D_MODEL), jnp.float32) * std,
            bo=jnp.zeros((D_MODEL,), jnp.float32),
            ln2_g=jnp.ones((D_MODEL,), jnp.float32),
            ln2_b=jnp.zeros((D_MODEL,), jnp.float32),
            w1=jax.random.normal(lk[4], (D_MODEL, MLP_DIM), jnp.float32) * std,
            b1=jnp.zeros((MLP_DIM,), jnp.float32),
            w2=jax.random.normal(lk[5], (MLP_DIM, D_MODEL), jnp.float32) * std,
            b2=jnp.zeros((D_MODEL,), jnp.float32),
        )
        params["layers"].append(layer)
    return params


def pack_params(p):
    """Pad / stack / bf16-cast parameters for the fused Pallas kernel."""
    f32, bf16 = jnp.float32, jnp.bfloat16

    # fused embedding matrix: rows 0..47 = patch projection, row 48 = cls token,
    # row 49 = patch bias (selected by indicator columns in the kernel input).
    w_emb = jnp.zeros((K_PAD, D_MODEL), f32)
    w_emb = w_emb.at[:PATCH_DIM].set(p["w_patch"])
    w_emb = w_emb.at[PATCH_DIM].set(p["cls_token"])
    w_emb = w_emb.at[PATCH_DIM + 1].set(p["b_patch"])

    pos = jnp.zeros((1, SEQ_PAD, D_MODEL), f32).at[0, :SEQ].set(p["pos_emb"])

    w_head = jnp.zeros((D_MODEL, N_PAD), f32).at[:, :N_CLASSES].set(p["w_head"])
    b_head = jnp.zeros((1, N_PAD), f32).at[0, :N_CLASSES].set(p["b_head"])

    ln = jnp.stack([jnp.stack([L["ln1_g"], L["ln1_b"], L["ln2_g"], L["ln2_b"]])
                    for L in p["layers"]])                                    # [L,4,D]
    wqkv = jnp.stack([jnp.concatenate([L["wq"], L["wk"], L["wv"]], axis=1)
                      for L in p["layers"]])                                  # [L,D,3D]
    bqkv = jnp.stack([jnp.concatenate([L["bq"], L["bk"], L["bv"]])[None]
                      for L in p["layers"]])                                  # [L,1,3D]
    wo = jnp.stack([L["wo"] for L in p["layers"]])                            # [L,D,D]
    bo = jnp.stack([L["bo"][None] for L in p["layers"]])                      # [L,1,D]
    w1 = jnp.stack([L["w1"] for L in p["layers"]])                            # [L,D,MLP]
    b1 = jnp.stack([L["b1"][None] for L in p["layers"]])                      # [L,1,MLP]
    w2 = jnp.stack([L["w2"] for L in p["layers"]])                            # [L,MLP,D]
    b2 = jnp.stack([L["b2"][None] for L in p["layers"]])                      # [L,1,D]

    return (w_emb.astype(bf16), pos,
            ln, wqkv.astype(bf16), bqkv, wo.astype(bf16), bo,
            w1.astype(bf16), b1, w2.astype(bf16), b2,
            w_head.astype(bf16), b_head)


# ------------------------- full forward pass -------------------------
def _bcast_spec(shape):
    nd = len(shape)
    return pl.BlockSpec(shape, lambda b, _nd=nd: (0,) * _nd)


@jax.jit
def vit_forward(x, weights):
    B = x.shape[0]
    patches = extract_patches(x)                                  # [B, 16, 48]
    # padded kernel input: patch pixels + cls / bias indicator columns.
    x_in = jnp.zeros((B, SEQ_PAD, K_PAD), jnp.float32)
    x_in = x_in.at[:, 1:1 + N_PATCHES, :PATCH_DIM].set(patches)
    x_in = x_in.at[:, 0, PATCH_DIM].set(1.0)                      # cls-token indicator
    x_in = x_in.at[:, 1:1 + N_PATCHES, PATCH_DIM + 1].set(1.0)    # patch-bias indicator

    in_specs = ([pl.BlockSpec((1, SEQ_PAD, K_PAD), lambda b: (b, 0, 0))]
                + [_bcast_spec(w.shape) for w in weights])

    out = pl.pallas_call(
        vit_kernel,
        out_shape=jax.ShapeDtypeStruct((B, 1, N_PAD), jnp.float32),
        grid=(B,),
        in_specs=in_specs,
        out_specs=pl.BlockSpec((1, 1, N_PAD), lambda b: (b, 0, 0)),
        compiler_params=pltpu.CompilerParams(
            dimension_semantics=("parallel",)),
    )(x_in, *weights)

    return out.reshape(B, N_PAD)[:, :N_CLASSES]


if __name__ == "__main__":
    key = jax.random.PRNGKey(0)
    k_x, k_p = jax.random.split(key)
    x = jax.random.normal(k_x, (BATCH, IN_CH, IMG_SIZE, IMG_SIZE), jnp.float32)
    params = init_params(k_p)
    weights = pack_params(params)

    logits = vit_forward(x, weights)
    jax.block_until_ready(logits)
    assert logits.shape == (BATCH, N_CLASSES)
    print("KERNEL_OK")
</pallas_src>

<mosaic_0001>
module attributes {stable_mosaic.version = 11 : i64} {
  func.func @vit_kernel(%arg0: i32, %arg1: memref<1x32x128xf32, #tpu.memory_space<vmem>>, %arg2: memref<128x128xbf16, #tpu.memory_space<vmem>>, %arg3: memref<1x32x128xf32, #tpu.memory_space<vmem>>, %arg4: memref<2x4x128xf32, #tpu.memory_space<vmem>>, %arg5: memref<2x128x384xbf16, #tpu.memory_space<vmem>>, %arg6: memref<2x1x384xf32, #tpu.memory_space<vmem>>, %arg7: memref<2x128x128xbf16, #tpu.memory_space<vmem>>, %arg8: memref<2x1x128xf32, #tpu.memory_space<vmem>>, %arg9: memref<2x128x256xbf16, #tpu.memory_space<vmem>>, %arg10: memref<2x1x256xf32, #tpu.memory_space<vmem>>, %arg11: memref<2x256x128xbf16, #tpu.memory_space<vmem>>, %arg12: memref<2x1x128xf32, #tpu.memory_space<vmem>>, %arg13: memref<128x128xbf16, #tpu.memory_space<vmem>>, %arg14: memref<1x128xf32, #tpu.memory_space<vmem>>, %arg15: memref<1x1x128xf32, #tpu.memory_space<vmem>>) attributes {dimension_semantics = [#tpu.dimension_semantics<parallel>], iteration_bounds = array<i64: 2>, scalar_prefetch = 0 : i64, scratch_operands = 0 : i64, tpu.core_type = #tpu.core_type<tc>, window_params = [{transform_indices = @transform_0, window_bounds = array<i64: 1, 32, 128>}, {pipeline_mode = #tpu.pipeline_mode<synchronous>, transform_indices = @transform_1, window_bounds = array<i64: 128, 128>}, {pipeline_mode = #tpu.pipeline_mode<synchronous>, transform_indices = @transform_2, window_bounds = array<i64: 1, 32, 128>}, {pipeline_mode = #tpu.pipeline_mode<synchronous>, transform_indices = @transform_3, window_bounds = array<i64: 2, 4, 128>}, {pipeline_mode = #tpu.pipeline_mode<synchronous>, transform_indices = @transform_4, window_bounds = array<i64: 2, 128, 384>}, {pipeline_mode = #tpu.pipeline_mode<synchronous>, transform_indices = @transform_5, window_bounds = array<i64: 2, 1, 384>}, {pipeline_mode = #tpu.pipeline_mode<synchronous>, transform_indices = @transform_6, window_bounds = array<i64: 2, 128, 128>}, {pipeline_mode = #tpu.pipeline_mode<synchronous>, transform_indices = @transform_7, window_bounds = array<i64: 2, 1, 128>}, {pipeline_mode = #tpu.pipeline_mode<synchronous>, transform_indices = @transform_8, window_bounds = array<i64: 2, 128, 256>}, {pipeline_mode = #tpu.pipeline_mode<synchronous>, transform_indices = @transform_9, window_bounds = array<i64: 2, 1, 256>}, {pipeline_mode = #tpu.pipeline_mode<synchronous>, transform_indices = @transform_10, window_bounds = array<i64: 2, 256, 128>}, {pipeline_mode = #tpu.pipeline_mode<synchronous>, transform_indices = @transform_11, window_bounds = array<i64: 2, 1, 128>}, {pipeline_mode = #tpu.pipeline_mode<synchronous>, transform_indices = @transform_12, window_bounds = array<i64: 128, 128>}, {pipeline_mode = #tpu.pipeline_mode<synchronous>, transform_indices = @transform_13, window_bounds = array<i64: 1, 128>}, {transform_indices = @transform_14, window_bounds = array<i64: 1, 1, 128>}]} {
    %c0 = arith.constant 0 : index
    %c0_0 = arith.constant 0 : index
    %c0_1 = arith.constant 0 : index
    %0 = vector.load %arg1[%c0, %c0_0, %c0_1] : memref<1x32x128xf32, #tpu.memory_space<vmem>>, vector<1x32x128xf32>
    %1 = vector.shape_cast %0 : vector<1x32x128xf32> to vector<32x128xf32>
    %2 = arith.truncf %1 : vector<32x128xf32> to vector<32x128xbf16>
    %c0_2 = arith.constant 0 : index
    %c0_3 = arith.constant 0 : index
    %3 = vector.load %arg2[%c0_2, %c0_3] : memref<128x128xbf16, #tpu.memory_space<vmem>>, vector<128x128xbf16>
    %cst = arith.constant dense<0.000000e+00> : vector<32x128xf32>
    %4 = tpu.matmul %2, %3, %cst {dimension_numbers = #tpu.dot_dimension_numbers<[1], [0], [0], [1], [0, 0, 1, 1], [], []>} : vector<32x128xbf16>, vector<128x128xbf16>, vector<32x128xf32> -> vector<32x128xf32>
    %c0_4 = arith.constant 0 : index
    %c0_5 = arith.constant 0 : index
    %c0_6 = arith.constant 0 : index
    %5 = vector.load %arg3[%c0_4, %c0_5, %c0_6] : memref<1x32x128xf32, #tpu.memory_space<vmem>>, vector<1x32x128xf32>
    %6 = vector.shape_cast %5 : vector<1x32x128xf32> to vector<32x128xf32>
    %7 = arith.addf %4, %6 : vector<32x128xf32>
    %8 = tpu.iota {dimensions = array<i32: 2>} : vector<1x1x32xi32>
    %c17_i32 = arith.constant 17 : i32
    %9 = vector.broadcast %c17_i32 : i32 to vector<1x1x32xi32>
    %10 = arith.cmpi slt, %8, %9 : vector<1x1x32xi32>
    %cst_7 = arith.constant 0.000000e+00 : f32
    %cst_8 = arith.constant -1.000000e+30 : f32
    %11 = vector.broadcast %cst_7 : f32 to vector<1x1x32xf32>
    %12 = vector.broadcast %cst_8 : f32 to vector<1x1x32xf32>
    %13 = arith.select %10, %11, %12 : vector<1x1x32xi1>, vector<1x1x32xf32>
    %c0_9 = arith.constant 0 : index
    %c0_10 = arith.constant 0 : index
    %c0_11 = arith.constant 0 : index
    %14 = vector.load %arg4[%c0_9, %c0_10, %c0_11] : memref<2x4x128xf32, #tpu.memory_space<vmem>>, vector<1x4x128xf32>
    %15 = vector.shape_cast %14 : vector<1x4x128xf32> to vector<4x128xf32>
    %cst_12 = arith.constant dense<0.000000e+00> : vector<32xf32>
    %16 = vector.multi_reduction <add>, %7, %cst_12 [1] : vector<32x128xf32> to vector<32xf32>
    %17 = vector.shape_cast %16 : vector<32xf32> to vector<32x1xf32>
    %cst_13 = arith.constant 1.280000e+02 : f32
    %18 = vector.broadcast %cst_13 : f32 to vector<32x1xf32>
    %19 = arith.divf %17, %18 : vector<32x1xf32>
    %20 = vector.broadcast %19 : vector<32x1xf32> to vector<32x128xf32>
    %21 = arith.subf %7, %20 : vector<32x128xf32>
    %22 = arith.mulf %21, %21 : vector<32x128xf32>
    %cst_14 = arith.constant dense<0.000000e+00> : vector<32xf32>
    %23 = vector.multi_reduction <add>, %22, %cst_14 [1] : vector<32x128xf32> to vector<32xf32>
    %24 = vector.shape_cast %23 : vector<32xf32> to vector<32x1xf32>
    %cst_15 = arith.constant 1.280000e+02 : f32
    %25 = vector.broadcast %cst_15 : f32 to vector<32x1xf32>
    %26 = arith.divf %24, %25 : vector<32x1xf32>
    %27 = vector.broadcast %19 : vector<32x1xf32> to vector<32x128xf32>
    %28 = arith.subf %7, %27 : vector<32x128xf32>
    %cst_16 = arith.constant 9.99999974E-6 : f32
    %29 = vector.broadcast %cst_16 : f32 to vector<32x1xf32>
    %30 = arith.addf %26, %29 : vector<32x1xf32>
    %31 = math.rsqrt %30 : vector<32x1xf32>
    %32 = vector.broadcast %31 : vector<32x1xf32> to vector<32x128xf32>
    %33 = arith.mulf %28, %32 : vector<32x128xf32>
    %34 = vector.extract_strided_slice %15 {offsets = [0, 0], sizes = [1, 128], strides = [1, 1]} : vector<4x128xf32> to vector<1x128xf32>
    %35 = vector.broadcast %34 : vector<1x128xf32> to vector<32x128xf32>
    %36 = arith.mulf %33, %35 : vector<32x128xf32>
    %37 = vector.extract_strided_slice %15 {offsets = [1, 0], sizes = [1, 128], strides = [1, 1]} : vector<4x128xf32> to vector<1x128xf32>
    %38 = vector.broadcast %37 : vector<1x128xf32> to vector<32x128xf32>
    %39 = arith.addf %36, %38 : vector<32x128xf32>
    %40 = arith.truncf %39 : vector<32x128xf32> to vector<32x128xbf16>
    %c0_17 = arith.constant 0 : index
    %c0_18 = arith.constant 0 : index
    %c0_19 = arith.constant 0 : index
    %41 = vector.load %arg5[%c0_17, %c0_18, %c0_19] : memref<2x128x384xbf16, #tpu.memory_space<vmem>>, vector<1x128x384xbf16>
    %42 = vector.shape_cast %41 : vector<1x128x384xbf16> to vector<128x384xbf16>
    %cst_20 = arith.constant dense<0.000000e+00> : vector<32x384xf32>
    %43 = tpu.matmul %40, %42, %cst_20 {dimension_numbers = #tpu.dot_dimension_numbers<[1], [0], [0], [1], [0, 0, 1, 1], [], []>} : vector<32x128xbf16>, vector<128x384xbf16>, vector<32x384xf32> -> vector<32x384xf32>
    %c0_21 = arith.constant 0 : index
    %c0_22 = arith.constant 0 : index
    %c0_23 = arith.constant 0 : index
    %44 = vector.load %arg6[%c0_21, %c0_22, %c0_23] : memref<2x1x384xf32, #tpu.memory_space<vmem>>, vector<1x1x384xf32>
    %45 = vector.shape_cast %44 : vector<1x1x384xf32> to vector<1x384xf32>
    %46 = vector.broadcast %45 : vector<1x384xf32> to vector<32x384xf32>
    %47 = arith.addf %43, %46 : vector<32x384xf32>
    %48 = vector.extract_strided_slice %47 {offsets = [0, 0], sizes = [32, 128], strides = [1, 1]} : vector<32x384xf32> to vector<32x128xf32>
    %49 = vector.shape_cast %48 : vector<32x128xf32> to vector<32x4x32xf32>
    %50 = vector.extract_strided_slice %47 {offsets = [0, 128], sizes = [32, 128], strides = [1, 1]} : vector<32x384xf32> to vector<32x128xf32>
    %51 = vector.shape_cast %50 : vector<32x128xf32> to vector<32x4x32xf32>
    %52 = vector.extract_strided_slice %47 {offsets = [0, 256], sizes = [32, 128], strides = [1, 1]} : vector<32x384xf32> to vector<32x128xf32>
    %53 = vector.shape_cast %52 : vector<32x128xf32> to vector<32x4x32xf32>
    %54 = tpu.transpose %49, [1, 0, 2] : vector<32x4x32xf32> -> vector<4x32x32xf32>
    %55 = arith.truncf %54 : vector<4x32x32xf32> to vector<4x32x32xbf16>
    %56 = tpu.transpose %51, [1, 0, 2] : vector<32x4x32xf32> -> vector<4x32x32xf32>
    %57 = arith.truncf %56 : vector<4x32x32xf32> to vector<4x32x32xbf16>
    %58 = tpu.transpose %53, [1, 0, 2] : vector<32x4x32xf32> -> vector<4x32x32xf32>
    %59 = arith.truncf %58 : vector<4x32x32xf32> to vector<4x32x32xbf16>
    "tpu.trace_start"() <{level = 10 : i32, message = "hqd,hkd->hqk"}> : () -> ()
    %cst_24 = arith.constant dense<0.000000e+00> : vector<4x32x32xf32>
    %60 = tpu.matmul %55, %57, %cst_24 {dimension_numbers = #tpu.dot_dimension_numbers<[2], [2], [1], [1], [0, 0, 0, 1, 1, 1], [0], [0]>} : vector<4x32x32xbf16>, vector<4x32x32xbf16>, vector<4x32x32xf32> -> vector<4x32x32xf32>
    "tpu.trace_stop"() : () -> ()
    %cst_25 = arith.constant 0.176776692 : f32
    %61 = vector.broadcast %cst_25 : f32 to vector<4x32x32xf32>
    %62 = arith.mulf %60, %61 : vector<4x32x32xf32>
    %63 = vector.broadcast %13 : vector<1x1x32xf32> to vector<4x32x32xf32>
    %64 = arith.addf %62, %63 : vector<4x32x32xf32>
    %cst_26 = arith.constant dense<0xFF800000> : vector<4x32xf32>
    %65 = vector.multi_reduction <maximumf>, %64, %cst_26 [2] : vector<4x32x32xf32> to vector<4x32xf32>
    %66 = vector.shape_cast %65 : vector<4x32xf32> to vector<4x32x1xf32>
    %67 = vector.broadcast %66 : vector<4x32x1xf32> to vector<4x32x32xf32>
    %68 = arith.subf %64, %67 : vector<4x32x32xf32>
    %69 = math.exp %68 : vector<4x32x32xf32>
    %cst_27 = arith.constant dense<0.000000e+00> : vector<4x32xf32>
    %70 = vector.multi_reduction <add>, %69, %cst_27 [2] : vector<4x32x32xf32> to vector<4x32xf32>
    %71 = vector.shape_cast %70 : vector<4x32xf32> to vector<4x32x1xf32>
    %72 = tpu.reciprocal %71 {approx = true} : vector<4x32x1xf32> -> vector<4x32x1xf32>
    %73 = vector.broadcast %72 : vector<4x32x1xf32> to vector<4x32x32xf32>
    %74 = arith.mulf %69, %73 : vector<4x32x32xf32>
    %75 = arith.truncf %74 : vector<4x32x32xf32> to vector<4x32x32xbf16>
    "tpu.trace_start"() <{level = 10 : i32, message = "hqk,hkd->hqd"}> : () -> ()
    %cst_28 = arith.constant dense<0.000000e+00> : vector<4x32x32xf32>
    %76 = tpu.matmul %75, %59, %cst_28 {dimension_numbers = #tpu.dot_dimension_numbers<[2], [1], [1], [2], [0, 0, 0, 1, 1, 2], [0], [0]>} : vector<4x32x32xbf16>, vector<4x32x32xbf16>, vector<4x32x32xf32> -> vector<4x32x32xf32>
    "tpu.trace_stop"() : () -> ()
    %77 = tpu.transpose %76, [1, 0, 2] : vector<4x32x32xf32> -> vector<32x4x32xf32>
    %78 = vector.shape_cast %77 : vector<32x4x32xf32> to vector<32x128xf32>
    %79 = arith.truncf %78 : vector<32x128xf32> to vector<32x128xbf16>
    %c0_29 = arith.constant 0 : index
    %c0_30 = arith.constant 0 : index
    %c0_31 = arith.constant 0 : index
    %80 = vector.load %arg7[%c0_29, %c0_30, %c0_31] : memref<2x128x128xbf16, #tpu.memory_space<vmem>>, vector<1x128x128xbf16>
    %81 = vector.shape_cast %80 : vector<1x128x128xbf16> to vector<128x128xbf16>
    %cst_32 = arith.constant dense<0.000000e+00> : vector<32x128xf32>
    %82 = tpu.matmul %79, %81, %cst_32 {dimension_numbers = #tpu.dot_dimension_numbers<[1], [0], [0], [1], [0, 0, 1, 1], [], []>} : vector<32x128xbf16>, vector<128x128xbf16>, vector<32x128xf32> -> vector<32x128xf32>
    %c0_33 = arith.constant 0 : index
    %c0_34 = arith.constant 0 : index
    %c0_35 = arith.constant 0 : index
    %83 = vector.load %arg8[%c0_33, %c0_34, %c0_35] : memref<2x1x128xf32, #tpu.memory_space<vmem>>, vector<1x1x128xf32>
    %84 = vector.shape_cast %83 : vector<1x1x128xf32> to vector<1x128xf32>
    %85 = vector.broadcast %84 : vector<1x128xf32> to vector<32x128xf32>
    %86 = arith.addf %82, %85 : vector<32x128xf32>
    %87 = arith.addf %7, %86 : vector<32x128xf32>
    %cst_36 = arith.constant dense<0.000000e+00> : vector<32xf32>
    %88 = vector.multi_reduction <add>, %87, %cst_36 [1] : vector<32x128xf32> to vector<32xf32>
    %89 = vector.shape_cast %88 : vector<32xf32> to vector<32x1xf32>
    %cst_37 = arith.constant 1.280000e+02 : f32
    %90 = vector.broadcast %cst_37 : f32 to vector<32x1xf32>
    %91 = arith.divf %89, %90 : vector<32x1xf32>
    %92 = vector.broadcast %91 : vector<32x1xf32> to vector<32x128xf32>
    %93 = arith.subf %87, %92 : vector<32x128xf32>
    %94 = arith.mulf %93, %93 : vector<32x128xf32>
    %cst_38 = arith.constant dense<0.000000e+00> : vector<32xf32>
    %95 = vector.multi_reduction <add>, %94, %cst_38 [1] : vector<32x128xf32> to vector<32xf32>
    %96 = vector.shape_cast %95 : vector<32xf32> to vector<32x1xf32>
    %cst_39 = arith.constant 1.280000e+02 : f32
    %97 = vector.broadcast %cst_39 : f32 to vector<32x1xf32>
    %98 = arith.divf %96, %97 : vector<32x1xf32>
    %99 = vector.broadcast %91 : vector<32x1xf32> to vector<32x128xf32>
    %100 = arith.subf %87, %99 : vector<32x128xf32>
    %cst_40 = arith.constant 9.99999974E-6 : f32
    %101 = vector.broadcast %cst_40 : f32 to vector<32x1xf32>
    %102 = arith.addf %98, %101 : vector<32x1xf32>
    %103 = math.rsqrt %102 : vector<32x1xf32>
    %104 = vector.broadcast %103 : vector<32x1xf32> to vector<32x128xf32>
    %105 = arith.mulf %100, %104 : vector<32x128xf32>
    %106 = vector.extract_strided_slice %15 {offsets = [2, 0], sizes = [1, 128], strides = [1, 1]} : vector<4x128xf32> to vector<1x128xf32>
    %107 = vector.broadcast %106 : vector<1x128xf32> to vector<32x128xf32>
    %108 = arith.mulf %105, %107 : vector<32x128xf32>
    %109 = vector.extract_strided_slice %15 {offsets = [3, 0], sizes = [1, 128], strides = [1, 1]} : vector<4x128xf32> to vector<1x128xf32>
    %110 = vector.broadcast %109 : vector<1x128xf32> to vector<32x128xf32>
    %111 = arith.addf %108, %110 : vector<32x128xf32>
    %112 = arith.truncf %111 : vector<32x128xf32> to vector<32x128xbf16>
    %c0_41 = arith.constant 0 : index
    %c0_42 = arith.constant 0 : index
    %c0_43 = arith.constant 0 : index
    %113 = vector.load %arg9[%c0_41, %c0_42, %c0_43] : memref<2x128x256xbf16, #tpu.memory_space<vmem>>, vector<1x128x256xbf16>
    %114 = vector.shape_cast %113 : vector<1x128x256xbf16> to vector<128x256xbf16>
    %cst_44 = arith.constant dense<0.000000e+00> : vector<32x256xf32>
    %115 = tpu.matmul %112, %114, %cst_44 {dimension_numbers = #tpu.dot_dimension_numbers<[1], [0], [0], [1], [0, 0, 1, 1], [], []>} : vector<32x128xbf16>, vector<128x256xbf16>, vector<32x256xf32> -> vector<32x256xf32>
    %c0_45 = arith.constant 0 : index
    %c0_46 = arith.constant 0 : index
    %c0_47 = arith.constant 0 : index
    %116 = vector.load %arg10[%c0_45, %c0_46, %c0_47] : memref<2x1x256xf32, #tpu.memory_space<vmem>>, vector<1x1x256xf32>
    %117 = vector.shape_cast %116 : vector<1x1x256xf32> to vector<1x256xf32>
    %118 = vector.broadcast %117 : vector<1x256xf32> to vector<32x256xf32>
    %119 = arith.addf %115, %118 : vector<32x256xf32>
    %120 = arith.mulf %119, %119 : vector<32x256xf32>
    %121 = arith.mulf %119, %120 : vector<32x256xf32>
    %cst_48 = arith.constant 4.471500e-02 : f32
    %122 = vector.broadcast %cst_48 : f32 to vector<32x256xf32>
    %123 = arith.mulf %122, %121 : vector<32x256xf32>
    %124 = arith.addf %119, %123 : vector<32x256xf32>
    %cst_49 = arith.constant 0.797884583 : f32
    %125 = vector.broadcast %cst_49 : f32 to vector<32x256xf32>
    %126 = arith.mulf %125, %124 : vector<32x256xf32>
    %127 = math.tanh %126 : vector<32x256xf32>
    %cst_50 = arith.constant 1.000000e+00 : f32
    %128 = vector.broadcast %cst_50 : f32 to vector<32x256xf32>
    %129 = arith.addf %128, %127 : vector<32x256xf32>
    %cst_51 = arith.constant 5.000000e-01 : f32
    %130 = vector.broadcast %cst_51 : f32 to vector<32x256xf32>
    %131 = arith.mulf %130, %129 : vector<32x256xf32>
    %132 = arith.mulf %119, %131 : vector<32x256xf32>
    %133 = arith.truncf %132 : vector<32x256xf32> to vector<32x256xbf16>
    %c0_52 = arith.constant 0 : index
    %c0_53 = arith.constant 0 : index
    %c0_54 = arith.constant 0 : index
    %134 = vector.load %arg11[%c0_52, %c0_53, %c0_54] : memref<2x256x128xbf16, #tpu.memory_space<vmem>>, vector<1x256x128xbf16>
    %135 = vector.shape_cast %134 : vector<1x256x128xbf16> to vector<256x128xbf16>
    %cst_55 = arith.constant dense<0.000000e+00> : vector<32x128xf32>
    %136 = tpu.matmul %133, %135, %cst_55 {dimension_numbers = #tpu.dot_dimension_numbers<[1], [0], [0], [1], [0, 0, 1, 1], [], []>} : vector<32x256xbf16>, vector<256x128xbf16>, vector<32x128xf32> -> vector<32x128xf32>
    %c0_56 = arith.constant 0 : index
    %c0_57 = arith.constant 0 : index
    %c0_58 = arith.constant 0 : index
    %137 = vector.load %arg12[%c0_56, %c0_57, %c0_58] : memref<2x1x128xf32, #tpu.memory_space<vmem>>, vector<1x1x128xf32>
    %138 = vector.shape_cast %137 : vector<1x1x128xf32> to vector<1x128xf32>
    %139 = vector.broadcast %138 : vector<1x128xf32> to vector<32x128xf32>
    %140 = arith.addf %136, %139 : vector<32x128xf32>
    %141 = arith.addf %87, %140 : vector<32x128xf32>
    %c1 = arith.constant 1 : index
    %c0_59 = arith.constant 0 : index
    %c0_60 = arith.constant 0 : index
    %142 = vector.load %arg4[%c1, %c0_59, %c0_60] : memref<2x4x128xf32, #tpu.memory_space<vmem>>, vector<1x4x128xf32>
    %143 = vector.shape_cast %142 : vector<1x4x128xf32> to vector<4x128xf32>
    %cst_61 = arith.constant dense<0.000000e+00> : vector<32xf32>
    %144 = vector.multi_reduction <add>, %141, %cst_61 [1] : vector<32x128xf32> to vector<32xf32>
    %145 = vector.shape_cast %144 : vector<32xf32> to vector<32x1xf32>
    %cst_62 = arith.constant 1.280000e+02 : f32
    %146 = vector.broadcast %cst_62 : f32 to vector<32x1xf32>
    %147 = arith.divf %145, %146 : vector<32x1xf32>
    %148 = vector.broadcast %147 : vector<32x1xf32> to vector<32x128xf32>
    %149 = arith.subf %141, %148 : vector<32x128xf32>
    %150 = arith.mulf %149, %149 : vector<32x128xf32>
    %cst_63 = arith.constant dense<0.000000e+00> : vector<32xf32>
    %151 = vector.multi_reduction <add>, %150, %cst_63 [1] : vector<32x128xf32> to vector<32xf32>
    %152 = vector.shape_cast %151 : vector<32xf32> to vector<32x1xf32>
    %cst_64 = arith.constant 1.280000e+02 : f32
    %153 = vector.broadcast %cst_64 : f32 to vector<32x1xf32>
    %154 = arith.divf %152, %153 : vector<32x1xf32>
    %155 = vector.broadcast %147 : vector<32x1xf32> to vector<32x128xf32>
    %156 = arith.subf %141, %155 : vector<32x128xf32>
    %cst_65 = arith.constant 9.99999974E-6 : f32
    %157 = vector.broadcast %cst_65 : f32 to vector<32x1xf32>
    %158 = arith.addf %154, %157 : vector<32x1xf32>
    %159 = math.rsqrt %158 : vector<32x1xf32>
    %160 = vector.broadcast %159 : vector<32x1xf32> to vector<32x128xf32>
    %161 = arith.mulf %156, %160 : vector<32x128xf32>
    %162 = vector.extract_strided_slice %143 {offsets = [0, 0], sizes = [1, 128], strides = [1, 1]} : vector<4x128xf32> to vector<1x128xf32>
    %163 = vector.broadcast %162 : vector<1x128xf32> to vector<32x128xf32>
    %164 = arith.mulf %161, %163 : vector<32x128xf32>
    %165 = vector.extract_strided_slice %143 {offsets = [1, 0], sizes = [1, 128], strides = [1, 1]} : vector<4x128xf32> to vector<1x128xf32>
    %166 = vector.broadcast %165 : vector<1x128xf32> to vector<32x128xf32>
    %167 = arith.addf %164, %166 : vector<32x128xf32>
    %168 = arith.truncf %167 : vector<32x128xf32> to vector<32x128xbf16>
    %c1_66 = arith.constant 1 : index
    %c0_67 = arith.constant 0 : index
    %c0_68 = arith.constant 0 : index
    %169 = vector.load %arg5[%c1_66, %c0_67, %c0_68] : memref<2x128x384xbf16, #tpu.memory_space<vmem>>, vector<1x128x384xbf16>
    %170 = vector.shape_cast %169 : vector<1x128x384xbf16> to vector<128x384xbf16>
    %cst_69 = arith.constant dense<0.000000e+00> : vector<32x384xf32>
    %171 = tpu.matmul %168, %170, %cst_69 {dimension_numbers = #tpu.dot_dimension_numbers<[1], [0], [0], [1], [0, 0, 1, 1], [], []>} : vector<32x128xbf16>, vector<128x384xbf16>, vector<32x384xf32> -> vector<32x384xf32>
    %c1_70 = arith.constant 1 : index
    %c0_71 = arith.constant 0 : index
    %c0_72 = arith.constant 0 : index
    %172 = vector.load %arg6[%c1_70, %c0_71, %c0_72] : memref<2x1x384xf32, #tpu.memory_space<vmem>>, vector<1x1x384xf32>
    %173 = vector.shape_cast %172 : vector<1x1x384xf32> to vector<1x384xf32>
    %174 = vector.broadcast %173 : vector<1x384xf32> to vector<32x384xf32>
    %175 = arith.addf %171, %174 : vector<32x384xf32>
    %176 = vector.extract_strided_slice %175 {offsets = [0, 0], sizes = [32, 128], strides = [1, 1]} : vector<32x384xf32> to vector<32x128xf32>
    %177 = vector.shape_cast %176 : vector<32x128xf32> to vector<32x4x32xf32>
    %178 = vector.extract_strided_slice %175 {offsets = [0, 128], sizes = [32, 128], strides = [1, 1]} : vector<32x384xf32> to vector<32x128xf32>
    %179 = vector.shape_cast %178 : vector<32x128xf32> to vector<32x4x32xf32>
    %180 = vector.extract_strided_slice %175 {offsets = [0, 256], sizes = [32, 128], strides = [1, 1]} : vector<32x384xf32> to vector<32x128xf32>
    %181 = vector.shape_cast %180 : vector<32x128xf32> to vector<32x4x32xf32>
    %182 = tpu.transpose %177, [1, 0, 2] : vector<32x4x32xf32> -> vector<4x32x32xf32>
    %183 = arith.truncf %182 : vector<4x32x32xf32> to vector<4x32x32xbf16>
    %184 = tpu.transpose %179, [1, 0, 2] : vector<32x4x32xf32> -> vector<4x32x32xf32>
    %185 = arith.truncf %184 : vector<4x32x32xf32> to vector<4x32x32xbf16>
    %186 = tpu.transpose %181, [1, 0, 2] : vector<32x4x32xf32> -> vector<4x32x32xf32>
    %187 = arith.truncf %186 : vector<4x32x32xf32> to vector<4x32x32xbf16>
    "tpu.trace_start"() <{level = 10 : i32, message = "hqd,hkd->hqk"}> : () -> ()
    %cst_73 = arith.constant dense<0.000000e+00> : vector<4x32x32xf32>
    %188 = tpu.matmul %183, %185, %cst_73 {dimension_numbers = #tpu.dot_dimension_numbers<[2], [2], [1], [1], [0, 0, 0, 1, 1, 1], [0], [0]>} : vector<4x32x32xbf16>, vector<4x32x32xbf16>, vector<4x32x32xf32> -> vector<4x32x32xf32>
    "tpu.trace_stop"() : () -> ()
    %cst_74 = arith.constant 0.176776692 : f32
    %189 = vector.broadcast %cst_74 : f32 to vector<4x32x32xf32>
    %190 = arith.mulf %188, %189 : vector<4x32x32xf32>
    %191 = vector.broadcast %13 : vector<1x1x32xf32> to vector<4x32x32xf32>
    %192 = arith.addf %190, %191 : vector<4x32x32xf32>
    %cst_75 = arith.constant dense<0xFF800000> : vector<4x32xf32>
    %193 = vector.multi_reduction <maximumf>, %192, %cst_75 [2] : vector<4x32x32xf32> to vector<4x32xf32>
    %194 = vector.shape_cast %193 : vector<4x32xf32> to vector<4x32x1xf32>
    %195 = vector.broadcast %194 : vector<4x32x1xf32> to vector<4x32x32xf32>
    %196 = arith.subf %192, %195 : vector<4x32x32xf32>
    %197 = math.exp %196 : vector<4x32x32xf32>
    %cst_76 = arith.constant dense<0.000000e+00> : vector<4x32xf32>
    %198 = vector.multi_reduction <add>, %197, %cst_76 [2] : vector<4x32x32xf32> to vector<4x32xf32>
    %199 = vector.shape_cast %198 : vector<4x32xf32> to vector<4x32x1xf32>
    %200 = tpu.reciprocal %199 {approx = true} : vector<4x32x1xf32> -> vector<4x32x1xf32>
    %201 = vector.broadcast %200 : vector<4x32x1xf32> to vector<4x32x32xf32>
    %202 = arith.mulf %197, %201 : vector<4x32x32xf32>
    %203 = arith.truncf %202 : vector<4x32x32xf32> to vector<4x32x32xbf16>
    "tpu.trace_start"() <{level = 10 : i32, message = "hqk,hkd->hqd"}> : () -> ()
    %cst_77 = arith.constant dense<0.000000e+00> : vector<4x32x32xf32>
    %204 = tpu.matmul %203, %187, %cst_77 {dimension_numbers = #tpu.dot_dimension_numbers<[2], [1], [1], [2], [0, 0, 0, 1, 1, 2], [0], [0]>} : vector<4x32x32xbf16>, vector<4x32x32xbf16>, vector<4x32x32xf32> -> vector<4x32x32xf32>
    "tpu.trace_stop"() : () -> ()
    %205 = tpu.transpose %204, [1, 0, 2] : vector<4x32x32xf32> -> vector<32x4x32xf32>
    %206 = vector.shape_cast %205 : vector<32x4x32xf32> to vector<32x128xf32>
    %207 = arith.truncf %206 : vector<32x128xf32> to vector<32x128xbf16>
    %c1_78 = arith.constant 1 : index
    %c0_79 = arith.constant 0 : index
    %c0_80 = arith.constant 0 : index
    %208 = vector.load %arg7[%c1_78, %c0_79, %c0_80] : memref<2x128x128xbf16, #tpu.memory_space<vmem>>, vector<1x128x128xbf16>
    %209 = vector.shape_cast %208 : vector<1x128x128xbf16> to vector<128x128xbf16>
    %cst_81 = arith.constant dense<0.000000e+00> : vector<32x128xf32>
    %210 = tpu.matmul %207, %209, %cst_81 {dimension_numbers = #tpu.dot_dimension_numbers<[1], [0], [0], [1], [0, 0, 1, 1], [], []>} : vector<32x128xbf16>, vector<128x128xbf16>, vector<32x128xf32> -> vector<32x128xf32>
    %c1_82 = arith.constant 1 : index
    %c0_83 = arith.constant 0 : index
    %c0_84 = arith.constant 0 : index
    %211 = vector.load %arg8[%c1_82, %c0_83, %c0_84] : memref<2x1x128xf32, #tpu.memory_space<vmem>>, vector<1x1x128xf32>
    %212 = vector.shape_cast %211 : vector<1x1x128xf32> to vector<1x128xf32>
    %213 = vector.broadcast %212 : vector<1x128xf32> to vector<32x128xf32>
    %214 = arith.addf %210, %213 : vector<32x128xf32>
    %215 = arith.addf %141, %214 : vector<32x128xf32>
    %cst_85 = arith.constant dense<0.000000e+00> : vector<32xf32>
    %216 = vector.multi_reduction <add>, %215, %cst_85 [1] : vector<32x128xf32> to vector<32xf32>
    %217 = vector.shape_cast %216 : vector<32xf32> to vector<32x1xf32>
    %cst_86 = arith.constant 1.280000e+02 : f32
    %218 = vector.broadcast %cst_86 : f32 to vector<32x1xf32>
    %219 = arith.divf %217, %218 : vector<32x1xf32>
    %220 = vector.broadcast %219 : vector<32x1xf32> to vector<32x128xf32>
    %221 = arith.subf %215, %220 : vector<32x128xf32>
    %222 = arith.mulf %221, %221 : vector<32x128xf32>
    %cst_87 = arith.constant dense<0.000000e+00> : vector<32xf32>
    %223 = vector.multi_reduction <add>, %222, %cst_87 [1] : vector<32x128xf32> to vector<32xf32>
    %224 = vector.shape_cast %223 : vector<32xf32> to vector<32x1xf32>
    %cst_88 = arith.constant 1.280000e+02 : f32
    %225 = vector.broadcast %cst_88 : f32 to vector<32x1xf32>
    %226 = arith.divf %224, %225 : vector<32x1xf32>
    %227 = vector.broadcast %219 : vector<32x1xf32> to vector<32x128xf32>
    %228 = arith.subf %215, %227 : vector<32x128xf32>
    %cst_89 = arith.constant 9.99999974E-6 : f32
    %229 = vector.broadcast %cst_89 : f32 to vector<32x1xf32>
    %230 = arith.addf %226, %229 : vector<32x1xf32>
    %231 = math.rsqrt %230 : vector<32x1xf32>
    %232 = vector.broadcast %231 : vector<32x1xf32> to vector<32x128xf32>
    %233 = arith.mulf %228, %232 : vector<32x128xf32>
    %234 = vector.extract_strided_slice %143 {offsets = [2, 0], sizes = [1, 128], strides = [1, 1]} : vector<4x128xf32> to vector<1x128xf32>
    %235 = vector.broadcast %234 : vector<1x128xf32> to vector<32x128xf32>
    %236 = arith.mulf %233, %235 : vector<32x128xf32>
    %237 = vector.extract_strided_slice %143 {offsets = [3, 0], sizes = [1, 128], strides = [1, 1]} : vector<4x128xf32> to vector<1x128xf32>
    %238 = vector.broadcast %237 : vector<1x128xf32> to vector<32x128xf32>
    %239 = arith.addf %236, %238 : vector<32x128xf32>
    %240 = arith.truncf %239 : vector<32x128xf32> to vector<32x128xbf16>
    %c1_90 = arith.constant 1 : index
    %c0_91 = arith.constant 0 : index
    %c0_92 = arith.constant 0 : index
    %241 = vector.load %arg9[%c1_90, %c0_91, %c0_92] : memref<2x128x256xbf16, #tpu.memory_space<vmem>>, vector<1x128x256xbf16>
    %242 = vector.shape_cast %241 : vector<1x128x256xbf16> to vector<128x256xbf16>
    %cst_93 = arith.constant dense<0.000000e+00> : vector<32x256xf32>
    %243 = tpu.matmul %240, %242, %cst_93 {dimension_numbers = #tpu.dot_dimension_numbers<[1], [0], [0], [1], [0, 0, 1, 1], [], []>} : vector<32x128xbf16>, vector<128x256xbf16>, vector<32x256xf32> -> vector<32x256xf32>
    %c1_94 = arith.constant 1 : index
    %c0_95 = arith.constant 0 : index
    %c0_96 = arith.constant 0 : index
    %244 = vector.load %arg10[%c1_94, %c0_95, %c0_96] : memref<2x1x256xf32, #tpu.memory_space<vmem>>, vector<1x1x256xf32>
    %245 = vector.shape_cast %244 : vector<1x1x256xf32> to vector<1x256xf32>
    %246 = vector.broadcast %245 : vector<1x256xf32> to vector<32x256xf32>
    %247 = arith.addf %243, %246 : vector<32x256xf32>
    %248 = arith.mulf %247, %247 : vector<32x256xf32>
    %249 = arith.mulf %247, %248 : vector<32x256xf32>
    %cst_97 = arith.constant 4.471500e-02 : f32
    %250 = vector.broadcast %cst_97 : f32 to vector<32x256xf32>
    %251 = arith.mulf %250, %249 : vector<32x256xf32>
    %252 = arith.addf %247, %251 : vector<32x256xf32>
    %cst_98 = arith.constant 0.797884583 : f32
    %253 = vector.broadcast %cst_98 : f32 to vector<32x256xf32>
    %254 = arith.mulf %253, %252 : vector<32x256xf32>
    %255 = math.tanh %254 : vector<32x256xf32>
    %cst_99 = arith.constant 1.000000e+00 : f32
    %256 = vector.broadcast %cst_99 : f32 to vector<32x256xf32>
    %257 = arith.addf %256, %255 : vector<32x256xf32>
    %cst_100 = arith.constant 5.000000e-01 : f32
    %258 = vector.broadcast %cst_100 : f32 to vector<32x256xf32>
    %259 = arith.mulf %258, %257 : vector<32x256xf32>
    %260 = arith.mulf %247, %259 : vector<32x256xf32>
    %261 = arith.truncf %260 : vector<32x256xf32> to vector<32x256xbf16>
    %c1_101 = arith.constant 1 : index
    %c0_102 = arith.constant 0 : index
    %c0_103 = arith.constant 0 : index
    %262 = vector.load %arg11[%c1_101, %c0_102, %c0_103] : memref<2x256x128xbf16, #tpu.memory_space<vmem>>, vector<1x256x128xbf16>
    %263 = vector.shape_cast %262 : vector<1x256x128xbf16> to vector<256x128xbf16>
    %cst_104 = arith.constant dense<0.000000e+00> : vector<32x128xf32>
    %264 = tpu.matmul %261, %263, %cst_104 {dimension_numbers = #tpu.dot_dimension_numbers<[1], [0], [0], [1], [0, 0, 1, 1], [], []>} : vector<32x256xbf16>, vector<256x128xbf16>, vector<32x128xf32> -> vector<32x128xf32>
    %c1_105 = arith.constant 1 : index
    %c0_106 = arith.constant 0 : index
    %c0_107 = arith.constant 0 : index
    %265 = vector.load %arg12[%c1_105, %c0_106, %c0_107] : memref<2x1x128xf32, #tpu.memory_space<vmem>>, vector<1x1x128xf32>
    %266 = vector.shape_cast %265 : vector<1x1x128xf32> to vector<1x128xf32>
    %267 = vector.broadcast %266 : vector<1x128xf32> to vector<32x128xf32>
    %268 = arith.addf %264, %267 : vector<32x128xf32>
    %269 = arith.addf %215, %268 : vector<32x128xf32>
    %270 = vector.extract_strided_slice %269 {offsets = [0, 0], sizes = [1, 128], strides = [1, 1]} : vector<32x128xf32> to vector<1x128xf32>
    %271 = arith.truncf %270 : vector<1x128xf32> to vector<1x128xbf16>
    %c0_108 = arith.constant 0 : index
    %c0_109 = arith.constant 0 : index
    %272 = vector.load %arg13[%c0_108, %c0_109] : memref<128x128xbf16, #tpu.memory_space<vmem>>, vector<128x128xbf16>
    %cst_110 = arith.constant dense<0.000000e+00> : vector<1x128xf32>
    %273 = tpu.matmul %271, %272, %cst_110 {dimension_numbers = #tpu.dot_dimension_numbers<[1], [0], [0], [1], [0, 0, 1, 1], [], []>} : vector<1x128xbf16>, vector<128x128xbf16>, vector<1x128xf32> -> vector<1x128xf32>
    %c0_111 = arith.constant 0 : index
    %c0_112 = arith.constant 0 : index
    %274 = vector.load %arg14[%c0_111, %c0_112] : memref<1x128xf32, #tpu.memory_space<vmem>>, vector<1x128xf32>
    %275 = arith.addf %273, %274 : vector<1x128xf32>
    %c0_113 = arith.constant 0 : index
    %c0_114 = arith.constant 0 : index
    %c0_115 = arith.constant 0 : index
    %276 = vector.load %arg15[%c0_113, %c0_114, %c0_115] : memref<1x1x128xf32, #tpu.memory_space<vmem>>, vector<1x1x128xf32>
    %277 = vector.shape_cast %276 : vector<1x1x128xf32> to vector<1x128xf32>
    %278 = vector.shape_cast %275 : vector<1x128xf32> to vector<1x1x128xf32>
    tpu.vector_store %arg15[%c0_113, %c0_114, %c0_115], %278 {strides = array<i32>} : memref<1x1x128xf32, #tpu.memory_space<vmem>>, vector<1x1x128xf32>,
    return
  }
  func.func @transform_0(%arg0: i32) -> (i32, i32, i32) {
    %c0_i32 = arith.constant 0 : i32
    %c0_i32_0 = arith.constant 0 : i32
    %c0_i32_1 = arith.constant 0 : i32
    return %arg0, %c0_i32, %c0_i32_0 : i32, i32, i32
  }
  func.func @transform_1(%arg0: i32) -> (i32, i32) {
    %c0_i32 = arith.constant 0 : i32
    %c0_i32_0 = arith.constant 0 : i32
    %c0_i32_1 = arith.constant 0 : i32
    return %c0_i32, %c0_i32_0 : i32, i32
  }
  func.func @transform_2(%arg0: i32) -> (i32, i32, i32) {
    %c0_i32 = arith.constant 0 : i32
    %c0_i32_0 = arith.constant 0 : i32
    %c0_i32_1 = arith.constant 0 : i32
    %c0_i32_2 = arith.constant 0 : i32
    return %c0_i32, %c0_i32_0, %c0_i32_1 : i32, i32, i32
  }
  func.func @transform_3(%arg0: i32) -> (i32, i32, i32) {
    %c0_i32 = arith.constant 0 : i32
    %c0_i32_0 = arith.constant 0 : i32
    %c0_i32_1 = arith.constant 0 : i32
    %c0_i32_2 = arith.constant 0 : i32
    return %c0_i32, %c0_i32_0, %c0_i32_1 : i32, i32, i32
  }
  func.func @transform_4(%arg0: i32) -> (i32, i32, i32) {
    %c0_i32 = arith.constant 0 : i32
    %c0_i32_0 = arith.constant 0 : i32
    %c0_i32_1 = arith.constant 0 : i32
    %c0_i32_2 = arith.constant 0 : i32
    return %c0_i32, %c0_i32_0, %c0_i32_1 : i32, i32, i32
  }
  func.func @transform_5(%arg0: i32) -> (i32, i32, i32) {
    %c0_i32 = arith.constant 0 : i32
    %c0_i32_0 = arith.constant 0 : i32
    %c0_i32_1 = arith.constant 0 : i32
    %c0_i32_2 = arith.constant 0 : i32
    return %c0_i32, %c0_i32_0, %c0_i32_1 : i32, i32, i32
  }
  func.func @transform_6(%arg0: i32) -> (i32, i32, i32) {
    %c0_i32 = arith.constant 0 : i32
    %c0_i32_0 = arith.constant 0 : i32
    %c0_i32_1 = arith.constant 0 : i32
    %c0_i32_2 = arith.constant 0 : i32
    return %c0_i32, %c0_i32_0, %c0_i32_1 : i32, i32, i32
  }
  func.func @transform_7(%arg0: i32) -> (i32, i32, i32) {
    %c0_i32 = arith.constant 0 : i32
    %c0_i32_0 = arith.constant 0 : i32
    %c0_i32_1 = arith.constant 0 : i32
    %c0_i32_2 = arith.constant 0 : i32
    return %c0_i32, %c0_i32_0, %c0_i32_1 : i32, i32, i32
  }
  func.func @transform_8(%arg0: i32) -> (i32, i32, i32) {
    %c0_i32 = arith.constant 0 : i32
    %c0_i32_0 = arith.constant 0 : i32
    %c0_i32_1 = arith.constant 0 : i32
    %c0_i32_2 = arith.constant 0 : i32
    return %c0_i32, %c0_i32_0, %c0_i32_1 : i32, i32, i32
  }
  func.func @transform_9(%arg0: i32) -> (i32, i32, i32) {
    %c0_i32 = arith.constant 0 : i32
    %c0_i32_0 = arith.constant 0 : i32
    %c0_i32_1 = arith.constant 0 : i32
    %c0_i32_2 = arith.constant 0 : i32
    return %c0_i32, %c0_i32_0, %c0_i32_1 : i32, i32, i32
  }
  func.func @transform_10(%arg0: i32) -> (i32, i32, i32) {
    %c0_i32 = arith.constant 0 : i32
    %c0_i32_0 = arith.constant 0 : i32
    %c0_i32_1 = arith.constant 0 : i32
    %c0_i32_2 = arith.constant 0 : i32
    return %c0_i32, %c0_i32_0, %c0_i32_1 : i32, i32, i32
  }
  func.func @transform_11(%arg0: i32) -> (i32, i32, i32) {
    %c0_i32 = arith.constant 0 : i32
    %c0_i32_0 = arith.constant 0 : i32
    %c0_i32_1 = arith.constant 0 : i32
    %c0_i32_2 = arith.constant 0 : i32
    return %c0_i32, %c0_i32_0, %c0_i32_1 : i32, i32, i32
  }
  func.func @transform_12(%arg0: i32) -> (i32, i32) {
    %c0_i32 = arith.constant 0 : i32
    %c0_i32_0 = arith.constant 0 : i32
    %c0_i32_1 = arith.constant 0 : i32
    return %c0_i32, %c0_i32_0 : i32, i32
  }
  func.func @transform_13(%arg0: i32) -> (i32, i32) {
    %c0_i32 = arith.constant 0 : i32
    %c0_i32_0 = arith.constant 0 : i32
    %c0_i32_1 = arith.constant 0 : i32
    return %c0_i32, %c0_i32_0 : i32, i32
  }
  func.func @transform_14(%arg0: i32) -> (i32, i32, i32) {
    %c0_i32 = arith.constant 0 : i32
    %c0_i32_0 = arith.constant 0 : i32
    %c0_i32_1 = arith.constant 0 : i32
    return %arg0, %c0_i32, %c0_i32_0 : i32, i32, i32
  }
}

</mosaic_0001>

<llo_original>
// kernel: vit_forward.1
$region0: #{vit_forward.1}
  #allocation0 [shape = 'u32[]', space=smem, size = 0x4, offset = 0x4, fixed_abs, tag = 'smem constant byte address 0x4 - core index']
  #allocation1 [shape = 'u32[144,128]{1,0:T(1,128)}', space=vmem, size = 0x12000, scoped, tag = 'internal scratch']
  %s0 = inlined_call_operand.vmem [shape: f32[2,32,128], index: 0, kind: input, shape index: {}]
  %s1 = inlined_call_operand.vmem [shape: bf16[128,128], index: 1, kind: input, shape index: {}]
  %s2 = inlined_call_operand.vmem [shape: f32[1,32,128], index: 2, kind: input, shape index: {}]
  %s3 = inlined_call_operand.vmem [shape: f32[2,4,128], index: 3, kind: input, shape index: {}]
  %s4 = inlined_call_operand.vmem [shape: bf16[2,128,384], index: 4, kind: input, shape index: {}]
  %s5 = inlined_call_operand.vmem [shape: f32[2,1,384], index: 5, kind: input, shape index: {}]
  %s6 = inlined_call_operand.vmem [shape: bf16[2,128,128], index: 6, kind: input, shape index: {}]
  %s7 = inlined_call_operand.vmem [shape: f32[2,1,128], index: 7, kind: input, shape index: {}]
  %s8 = inlined_call_operand.vmem [shape: bf16[2,128,256], index: 8, kind: input, shape index: {}]
  %s9 = inlined_call_operand.vmem [shape: f32[2,1,256], index: 9, kind: input, shape index: {}]
  %s10 = inlined_call_operand.vmem [shape: bf16[2,256,128], index: 10, kind: input, shape index: {}]
  %s11 = inlined_call_operand.vmem [shape: f32[2,1,128], index: 11, kind: input, shape index: {}]
  %s12 = inlined_call_operand.vmem [shape: bf16[128,128], index: 12, kind: input, shape index: {}]
  %s13 = inlined_call_operand.vmem [shape: f32[1,128], index: 13, kind: input, shape index: {}]
  %s14 = inlined_call_operand.hbm [shape: f32[2,1,128], index: 14, kind: output, shape index: {}]
  %s15 = sld [smem:[#allocation0]]
  $region89: #{vit_forward.1} parent=0
    _
  %s17 = ssub.s32 1, %s15
  %s18 = scalar_select 0, %s17, %s15
  $region1: #{vit_forward.1} parent=0
    #allocation2 [shape = 'u8[1024]{0}', space=vmem, size = 0x400, scoped, tag = 'output window, operand 0']
    #allocation3 [shape = 's32[2]{0}', space=sflag, size = 0x8, scoped, tag = 'scoped memory for vit_forward.1']
    %19 = vsyncpa [#allocation3], 0
    %s20 = scalar_lea.sflag [#allocation3], 1
    %21 = vsyncpa %s20, 0
    loop: start=0, step=1, limit=4
    $region2: #{vit_forward.1} parent=1 // loop_pre_header
      _
    $region3: #{vit_forward.1} parent=1 // loop_header
      %s23 = sphi 0, %s27
      %p24 = scmp.ge.s32.totalorder %s23, 4
      %s33 = sphi 0, %s35
      %s36 = sphi 0, %s33
      %s37 = sphi 0, %s36
      %s53 = sphi 0, %s37
      %s57 = sphi 0, %s57
      %s59 = sphi 0, %s57
      %s60 = sphi 0, %s59
      %s74 = sphi 0, %s60
      %s78 = sphi 0, %s78
      %s80 = sphi 0, %s78
      %s81 = sphi 0, %s80
      %s95 = sphi 0, %s81
      %s99 = sphi 0, %s99
      %s101 = sphi 0, %s99
      %s102 = sphi 0, %s101
      %s116 = sphi 0, %s102
      %s120 = sphi 0, %s120
      %s122 = sphi 0, %s120
      %s123 = sphi 0, %s122
      %s137 = sphi 0, %s123
      %s141 = sphi 0, %s141
      %s143 = sphi 0, %s141
      %s144 = sphi 0, %s143
      %s158 = sphi 0, %s144
      %s162 = sphi 0, %s162
      %s164 = sphi 0, %s162
      %s165 = sphi 0, %s164
      %s179 = sphi 0, %s165
      %s183 = sphi 0, %s183
      %s185 = sphi 0, %s183
      %s186 = sphi 0, %s185
      %s200 = sphi 0, %s186
      %s204 = sphi 0, %s204
      %s206 = sphi 0, %s204
      %s207 = sphi 0, %s206
      %s221 = sphi 0, %s207
      %s225 = sphi 0, %s225
      %s227 = sphi 0, %s225
      %s228 = sphi 0, %s227
      %s242 = sphi 0, %s228
      %s246 = sphi 0, %s246
      %s248 = sphi 0, %s246
      %s249 = sphi 0, %s248
      %s263 = sphi 0, %s249
      %s267 = sphi 0, %s267
      %s269 = sphi 0, %s267
      %s270 = sphi 0, %s269
      %s284 = sphi 0, %s270
      %s288 = sphi 0, %s288
      %s290 = sphi 0, %s288
      %s291 = sphi 0, %s290
      %s305 = sphi 0, %s291
      %s309 = sphi 0, %s309
      %s311 = sphi 0, %s309
      %s312 = sphi 0, %s311
      %s326 = sphi 0, %s312
      %s332 = sphi 0, %s334
      %s335 = sphi 0, %s332
      %s336 = sphi 0, %s335
      %s352 = sphi 0, %s336
    $region4: #{vit_forward.1} parent=1 // loop_header_branch
      %26 = sbr.rel (%p24) target = $region8
    $region5: #{vit_forward.1} parent=1 // loop_body
      %s28 = ssub.s32 %s23, 1
      %s29 = ssub.s32 %s23, 2
      %s30 = sadd.s32 %s23, 1
      %s31 = ssub.s32 %s23, %s30
      %p32 = scmp.eq.s32.totalorder %s31, 0
      %s34 = sadd.s32 %s33, 1
      %s35 = scalar_select %p32, %s33, %s34
      %p38 = pneg %p32
      %p39 = scmp.eq.s32.totalorder %s23, 1
      %p40 = por %p38, %p39
      %p41 = scmp.ne.s32.totalorder %s33, %s36
      %p42 = scmp.eq.s32.totalorder %s23, 0
      %p43 = por %p41, %p42
      %p44 = scmp.ne.s32.totalorder %s33, %s36
      %p45 = scmp.eq.s32.totalorder %s28, 1
      %p46 = por %p44, %p45
      %p47 = scmp.ne.s32.totalorder %s36, %s37
      %p48 = scmp.eq.s32.totalorder %s28, 0
      %p49 = por %p47, %p48
      %p50 = scmp.ne.s32.totalorder %s36, %s37
      %p51 = scmp.eq.s32.totalorder %s29, 1
      %p52 = por %p50, %p51
      %p54 = scmp.ne.s32.totalorder %s37, %s53
      %p55 = scmp.eq.s32.totalorder %s29, 0
      %p56 = por %p54, %p55
      %s58 = sadd.s32 %s57, 1
      %p61 = scmp.eq.s32.totalorder %s23, 1
      %p62 = scmp.ne.s32.totalorder %s57, %s59
      %p63 = scmp.eq.s32.totalorder %s23, 0
      %p64 = por %p62, %p63
      %p65 = scmp.ne.s32.totalorder %s57, %s59
      %p66 = scmp.eq.s32.totalorder %s28, 1
      %p67 = por %p65, %p66
      %p68 = scmp.ne.s32.totalorder %s59, %s60
      %p69 = scmp.eq.s32.totalorder %s28, 0
      %p70 = por %p68, %p69
      %p71 = scmp.ne.s32.totalorder %s59, %s60
      %p72 = scmp.eq.s32.totalorder %s29, 1
      %p73 = por %p71, %p72
      %p75 = scmp.ne.s32.totalorder %s60, %s74
      %p76 = scmp.eq.s32.totalorder %s29, 0
      %p77 = por %p75, %p76
      %s79 = sadd.s32 %s78, 1
      %p82 = scmp.eq.s32.totalorder %s23, 1
      %p83 = scmp.ne.s32.totalorder %s78, %s80
      %p84 = scmp.eq.s32.totalorder %s23, 0
      %p85 = por %p83, %p84
      %p86 = scmp.ne.s32.totalorder %s78, %s80
      %p87 = scmp.eq.s32.totalorder %s28, 1
      %p88 = por %p86, %p87
      %p89 = scmp.ne.s32.totalorder %s80, %s81
      %p90 = scmp.eq.s32.totalorder %s28, 0
      %p91 = por %p89, %p90
      %p92 = scmp.ne.s32.totalorder %s80, %s81
      %p93 = scmp.eq.s32.totalorder %s29, 1
      %p94 = por %p92, %p93
      %p96 = scmp.ne.s32.totalorder %s81, %s95
      %p97 = scmp.eq.s32.totalorder %s29, 0
      %p98 = por %p96, %p97
      %s100 = sadd.s32 %s99, 1
      %p103 = scmp.eq.s32.totalorder %s23, 1
      %p104 = scmp.ne.s32.totalorder %s99, %s101
      %p105 = scmp.eq.s32.totalorder %s23, 0
      %p106 = por %p104, %p105
      %p107 = scmp.ne.s32.totalorder %s99, %s101
      %p108 = scmp.eq.s32.totalorder %s28, 1
      %p109 = por %p107, %p108
      %p110 = scmp.ne.s32.totalorder %s101, %s102
      %p111 = scmp.eq.s32.totalorder %s28, 0
      %p112 = por %p110, %p111
      %p113 = scmp.ne.s32.totalorder %s101, %s102
      %p114 = scmp.eq.s32.totalorder %s29, 1
      %p115 = por %p113, %p114
      %p117 = scmp.ne.s32.totalorder %s102, %s116
      %p118 = scmp.eq.s32.totalorder %s29, 0
      %p119 = por %p117, %p118
      %s121 = sadd.s32 %s120, 1
      %p124 = scmp.eq.s32.totalorder %s23, 1
      %p125 = scmp.ne.s32.totalorder %s120, %s122
      %p126 = scmp.eq.s32.totalorder %s23, 0
      %p127 = por %p125, %p126
      %p128 = scmp.ne.s32.totalorder %s120, %s122
      %p129 = scmp.eq.s32.totalorder %s28, 1
      %p130 = por %p128, %p129
      %p131 = scmp.ne.s32.totalorder %s122, %s123
      %p132 = scmp.eq.s32.totalorder %s28, 0
      %p133 = por %p131, %p132
      %p134 = scmp.ne.s32.totalorder %s122, %s123
      %p135 = scmp.eq.s32.totalorder %s29, 1
      %p136 = por %p134, %p135
      %p138 = scmp.ne.s32.totalorder %s123, %s137
      %p139 = scmp.eq.s32.totalorder %s29, 0
      %p140 = por %p138, %p139
      %s142 = sadd.s32 %s141, 1
      %p145 = scmp.eq.s32.totalorder %s23, 1
      %p146 = scmp.ne.s32.totalorder %s141, %s143
      %p147 = scmp.eq.s32.totalorder %s23, 0
      %p148 = por %p146, %p147
      %p149 = scmp.ne.s32.totalorder %s141, %s143
      %p150 = scmp.eq.s32.totalorder %s28, 1
      %p151 = por %p149, %p150
      %p152 = scmp.ne.s32.totalorder %s143, %s144
      %p153 = scmp.eq.s32.totalorder %s28, 0
      %p154 = por %p152, %p153
      %p155 = scmp.ne.s32.totalorder %s143, %s144
      %p156 = scmp.eq.s32.totalorder %s29, 1
      %p157 = por %p155, %p156
      %p159 = scmp.ne.s32.totalorder %s144, %s158
      %p160 = scmp.eq.s32.totalorder %s29, 0
      %p161 = por %p159, %p160
      %s163 = sadd.s32 %s162, 1
      %p166 = scmp.eq.s32.totalorder %s23, 1
      %p167 = scmp.ne.s32.totalorder %s162, %s164
      %p168 = scmp.eq.s32.totalorder %s23, 0
      %p169 = por %p167, %p168
      %p170 = scmp.ne.s32.totalorder %s162, %s164
      %p171 = scmp.eq.s32.totalorder %s28, 1
      %p172 = por %p170, %p171
      %p173 = scmp.ne.s32.totalorder %s164, %s165
      %p174 = scmp.eq.s32.totalorder %s28, 0
      %p175 = por %p173, %p174
      %p176 = scmp.ne.s32.totalorder %s164, %s165
      %p177 = scmp.eq.s32.totalorder %s29, 1
      %p178 = por %p176, %p177
      %p180 = scmp.ne.s32.totalorder %s165, %s179
      %p181 = scmp.eq.s32.totalorder %s29, 0
      %p182 = por %p180, %p181
      %s184 = sadd.s32 %s183, 1
      %p187 = scmp.eq.s32.totalorder %s23, 1
      %p188 = scmp.ne.s32.totalorder %s183, %s185
      %p189 = scmp.eq.s32.totalorder %s23, 0
      %p190 = por %p188, %p189
      %p191 = scmp.ne.s32.totalorder %s183, %s185
      %p192 = scmp.eq.s32.totalorder %s28, 1
      %p193 = por %p191, %p192
      %p194 = scmp.ne.s32.totalorder %s185, %s186
      %p195 = scmp.eq.s32.totalorder %s28, 0
      %p196 = por %p194, %p195
      %p197 = scmp.ne.s32.totalorder %s185, %s186
      %p198 = scmp.eq.s32.totalorder %s29, 1
      %p199 = por %p197, %p198
      %p201 = scmp.ne.s32.totalorder %s186, %s200
      %p202 = scmp.eq.s32.totalorder %s29, 0
      %p203 = por %p201, %p202
      %s205 = sadd.s32 %s204, 1
      %p208 = scmp.eq.s32.totalorder %s23, 1
      %p209 = scmp.ne.s32.totalorder %s204, %s206
      %p210 = scmp.eq.s32.totalorder %s23, 0
      %p211 = por %p209, %p210
      %p212 = scmp.ne.s32.totalorder %s204, %s206
      %p213 = scmp.eq.s32.totalorder %s28, 1
      %p214 = por %p212, %p213
      %p215 = scmp.ne.s32.totalorder %s206, %s207
      %p216 = scmp.eq.s32.totalorder %s28, 0
      %p217 = por %p215, %p216
      %p218 = scmp.ne.s32.totalorder %s206, %s207
      %p219 = scmp.eq.s32.totalorder %s29, 1
      %p220 = por %p218, %p219
      %p222 = scmp.ne.s32.totalorder %s207, %s221
      %p223 = scmp.eq.s32.totalorder %s29, 0
      %p224 = por %p222, %p223
      %s226 = sadd.s32 %s225, 1
      %p229 = scmp.eq.s32.totalorder %s23, 1
      %p230 = scmp.ne.s32.totalorder %s225, %s227
      %p231 = scmp.eq.s32.totalorder %s23, 0
      %p232 = por %p230, %p231
      %p233 = scmp.ne.s32.totalorder %s225, %s227
      %p234 = scmp.eq.s32.totalorder %s28, 1
      %p235 = por %p233, %p234
      %p236 = scmp.ne.s32.totalorder %s227, %s228
      %p237 = scmp.eq.s32.totalorder %s28, 0
      %p238 = por %p236, %p237
      %p239 = scmp.ne.s32.totalorder %s227, %s228
      %p240 = scmp.eq.s32.totalorder %s29, 1
      %p241 = por %p239, %p240
      %p243 = scmp.ne.s32.totalorder %s228, %s242
      %p244 = scmp.eq.s32.totalorder %s29, 0
      %p245 = por %p243, %p244
      %s247 = sadd.s32 %s246, 1
      %p250 = scmp.eq.s32.totalorder %s23, 1
      %p251 = scmp.ne.s32.totalorder %s246, %s248
      %p252 = scmp.eq.s32.totalorder %s23, 0
      %p253 = por %p251, %p252
      %p254 = scmp.ne.s32.totalorder %s246, %s248
      %p255 = scmp.eq.s32.totalorder %s28, 1
      %p256 = por %p254, %p255
      %p257 = scmp.ne.s32.totalorder %s248, %s249
      %p258 = scmp.eq.s32.totalorder %s28, 0
      %p259 = por %p257, %p258
      %p260 = scmp.ne.s32.totalorder %s248, %s249
      %p261 = scmp.eq.s32.totalorder %s29, 1
      %p262 = por %p260, %p261
      %p264 = scmp.ne.s32.totalorder %s249, %s263
      %p265 = scmp.eq.s32.totalorder %s29, 0
      %p266 = por %p264, %p265
      %s268 = sadd.s32 %s267, 1
      %p271 = scmp.eq.s32.totalorder %s23, 1
      %p272 = scmp.ne.s32.totalorder %s267, %s269
      %p273 = scmp.eq.s32.totalorder %s23, 0
      %p274 = por %p272, %p273
      %p275 = scmp.ne.s32.totalorder %s267, %s269
      %p276 = scmp.eq.s32.totalorder %s28, 1
      %p277 = por %p275, %p276
      %p278 = scmp.ne.s32.totalorder %s269, %s270
      %p279 = scmp.eq.s32.totalorder %s28, 0
      %p280 = por %p278, %p279
      %p281 = scmp.ne.s32.totalorder %s269, %s270
      %p282 = scmp.eq.s32.totalorder %s29, 1
      %p283 = por %p281, %p282
      %p285 = scmp.ne.s32.totalorder %s270, %s284
      %p286 = scmp.eq.s32.totalorder %s29, 0
      %p287 = por %p285, %p286
      %s289 = sadd.s32 %s288, 1
      %p292 = scmp.eq.s32.totalorder %s23, 1
      %p293 = scmp.ne.s32.totalorder %s288, %s290
      %p294 = scmp.eq.s32.totalorder %s23, 0
      %p295 = por %p293, %p294
      %p296 = scmp.ne.s32.totalorder %s288, %s290
      %p297 = scmp.eq.s32.totalorder %s28, 1
      %p298 = por %p296, %p297
      %p299 = scmp.ne.s32.totalorder %s290, %s291
      %p300 = scmp.eq.s32.totalorder %s28, 0
      %p301 = por %p299, %p300
      %p302 = scmp.ne.s32.totalorder %s290, %s291
      %p303 = scmp.eq.s32.totalorder %s29, 1
      %p304 = por %p302, %p303
      %p306 = scmp.ne.s32.totalorder %s291, %s305
      %p307 = scmp.eq.s32.totalorder %s29, 0
      %p308 = por %p306, %p307
      %s310 = sadd.s32 %s309, 1
      %p313 = scmp.eq.s32.totalorder %s23, 1
      %p314 = scmp.ne.s32.totalorder %s309, %s311
      %p315 = scmp.eq.s32.totalorder %s23, 0
      %p316 = por %p314, %p315
      %p317 = scmp.ne.s32.totalorder %s309, %s311
      %p318 = scmp.eq.s32.totalorder %s28, 1
      %p319 = por %p317, %p318
      %p320 = scmp.ne.s32.totalorder %s311, %s312
      %p321 = scmp.eq.s32.totalorder %s28, 0
      %p322 = por %p320, %p321
      %p323 = scmp.ne.s32.totalorder %s311, %s312
      %p324 = scmp.eq.s32.totalorder %s29, 1
      %p325 = por %p323, %p324
      %p327 = scmp.ne.s32.totalorder %s312, %s326
      %p328 = scmp.eq.s32.totalorder %s29, 0
      %p329 = por %p327, %p328
      %s330 = ssub.s32 %s23, %s30
      %p331 = scmp.eq.s32.totalorder %s330, 0
      %s333 = sadd.s32 %s332, 1
      %s334 = scalar_select %p331, %s332, %s333
      %p337 = pneg %p331
      %p338 = scmp.eq.s32.totalorder %s23, 1
      %p339 = por %p337, %p338
      %p340 = scmp.ne.s32.totalorder %s332, %s335
      %p341 = scmp.eq.s32.totalorder %s23, 0
      %p342 = por %p340, %p341
      %p343 = scmp.ne.s32.totalorder %s332, %s335
      %p344 = scmp.eq.s32.totalorder %s28, 1
      %p345 = por %p343, %p344
      %p346 = scmp.ne.s32.totalorder %s335, %s336
      %p347 = scmp.eq.s32.totalorder %s28, 0
      %p348 = por %p346, %p347
      %p349 = scmp.ne.s32.totalorder %s335, %s336
      %p350 = scmp.eq.s32.totalorder %s29, 1
      %p351 = por %p349, %p350
      %p353 = scmp.ne.s32.totalorder %s336, %s352
      %p354 = scmp.eq.s32.totalorder %s29, 0
      %p355 = por %p353, %p354
      %p356 = scmp.le.s32.totalorder 1, %s23
      %p357 = scmp.lt.s32.totalorder %s23, 3
      %p358 = pnand %p356, %p357
      %p359 = pneg %p358
      // Predicated region
      $region9: #{vit_forward.1} parent=5 // pred_check
        _
      $region10: #{vit_forward.1} parent=5 // pred_check_branch
        %361 = sbr.rel (%p358) target = $region12
      $region11: #{vit_forward.1} parent=5 // pred_region
        %s362 = ssub.s32 %s23, 1
        // Predicated region
        $region13: #{vit_forward.1} parent=11 // pred_check
          %p363 = pneg %p70
        $region14: #{vit_forward.1} parent=11 // pred_check_branch
          %365 = sbr.rel (%p363) target = $region16
        $region15: #{vit_forward.1} parent=11 // pred_region
          _
        $region16: #{vit_forward.1} parent=11 // pred_fallthru
          _
        // Predicated region
        $region17: #{vit_forward.1} parent=11 // pred_check
          %p366 = pneg %p91
        $region18: #{vit_forward.1} parent=11 // pred_check_branch
          %368 = sbr.rel (%p366) target = $region20
        $region19: #{vit_forward.1} parent=11 // pred_region
          _
        $region20: #{vit_forward.1} parent=11 // pred_fallthru
          _
        // Predicated region
        $region21: #{vit_forward.1} parent=11 // pred_check
          %p369 = pneg %p112
        $region22: #{vit_forward.1} parent=11 // pred_check_branch
          %371 = sbr.rel (%p369) target = $region24
        $region23: #{vit_forward.1} parent=11 // pred_region
          _
        $region24: #{vit_forward.1} parent=11 // pred_fallthru
          _
        // Predicated region
        $region25: #{vit_forward.1} parent=11 // pred_check
          %p372 = pneg %p133
        $region26: #{vit_forward.1} parent=11 // pred_check_branch
          %374 = sbr.rel (%p372) target = $region28
        $region27: #{vit_forward.1} parent=11 // pred_region
          _
        $region28: #{vit_forward.1} parent=11 // pred_fallthru
          _
        // Predicated region
        $region29: #{vit_forward.1} parent=11 // pred_check
          %p375 = pneg %p154
        $region30: #{vit_forward.1} parent=11 // pred_check_branch
          %377 = sbr.rel (%p375) target = $region32
        $region31: #{vit_forward.1} parent=11 // pred_region
          _
        $region32: #{vit_forward.1} parent=11 // pred_fallthru
          _
        // Predicated region
        $region33: #{vit_forward.1} parent=11 // pred_check
          %p378 = pneg %p175
        $region34: #{vit_forward.1} parent=11 // pred_check_branch
          %380 = sbr.rel (%p378) target = $region36
        $region35: #{vit_forward.1} parent=11 // pred_region
          _
        $region36: #{vit_forward.1} parent=11 // pred_fallthru
          _
        // Predicated region
        $region37: #{vit_forward.1} parent=11 // pred_check
          %p381 = pneg %p196
        $region38: #{vit_forward.1} parent=11 // pred_check_branch
          %383 = sbr.rel (%p381) target = $region40
        $region39: #{vit_forward.1} parent=11 // pred_region
          _
        $region40: #{vit_forward.1} parent=11 // pred_fallthru
          _
        // Predicated region
        $region41: #{vit_forward.1} parent=11 // pred_check
          %p384 = pneg %p217
        $region42: #{vit_forward.1} parent=11 // pred_check_branch
          %386 = sbr.rel (%p384) target = $region44
        $region43: #{vit_forward.1} parent=11 // pred_region
          _
        $region44: #{vit_forward.1} parent=11 // pred_fallthru
          _
        // Predicated region
        $region45: #{vit_forward.1} parent=11 // pred_check
          %p387 = pneg %p238
        $region46: #{vit_forward.1} parent=11 // pred_check_branch
          %389 = sbr.rel (%p387) target = $region48
        $region47: #{vit_forward.1} parent=11 // pred_region
          _
        $region48: #{vit_forward.1} parent=11 // pred_fallthru
          _
        // Predicated region
        $region49: #{vit_forward.1} parent=11 // pred_check
          %p390 = pneg %p259
        $region50: #{vit_forward.1} parent=11 // pred_check_branch
          %392 = sbr.rel (%p390) target = $region52
        $region51: #{vit_forward.1} parent=11 // pred_region
          _
        $region52: #{vit_forward.1} parent=11 // pred_fallthru
          _
        // Predicated region
        $region53: #{vit_forward.1} parent=11 // pred_check
          %p393 = pneg %p280
        $region54: #{vit_forward.1} parent=11 // pred_check_branch
          %395 = sbr.rel (%p393) target = $region56
        $region55: #{vit_forward.1} parent=11 // pred_region
          _
        $region56: #{vit_forward.1} parent=11 // pred_fallthru
          _
        // Predicated region
        $region57: #{vit_forward.1} parent=11 // pred_check
          %p396 = pneg %p301
        $region58: #{vit_forward.1} parent=11 // pred_check_branch
          %398 = sbr.rel (%p396) target = $region60
        $region59: #{vit_forward.1} parent=11 // pred_region
          _
        $region60: #{vit_forward.1} parent=11 // pred_fallthru
          _
        // Predicated region
        $region61: #{vit_forward.1} parent=11 // pred_check
          %p399 = pneg %p322
        $region62: #{vit_forward.1} parent=11 // pred_check_branch
          %401 = sbr.rel (%p399) target = $region64
        $region63: #{vit_forward.1} parent=11 // pred_region
          _
        $region64: #{vit_forward.1} parent=11 // pred_fallthru
          _
      $region12: #{vit_forward.1} parent=5 // pred_fallthru
        _
      %p402 = scmp.lt.s32.totalorder %s23, 2
      // Predicated region
      $region65: #{vit_forward.1} parent=5 // pred_check
        %p403 = pneg %p402
      $region66: #{vit_forward.1} parent=5 // pred_check_branch
        %405 = sbr.rel (%p403) target = $region68
      $region67: #{vit_forward.1} parent=5 // pred_region
        // Predicated region
        $region69: #{vit_forward.1} parent=67 // pred_check
          %p406 = pneg %p43
        $region70: #{vit_forward.1} parent=67 // pred_check_branch
          %408 = sbr.rel (%p406) target = $region72
        $region71: #{vit_forward.1} parent=67 // pred_region
          %p409 = scmp.lt.s32.totalorder %s23, 1
          %s410 = scalar_select %p409, %s23, 1
          %s411 = smul.addr %s410, 4
          %s412 = smul.addr %s411, 8
          %s413 = scalar_lea.vmem %s0, %s412
        $region72: #{vit_forward.1} parent=67 // pred_fallthru
          _
      $region68: #{vit_forward.1} parent=5 // pred_fallthru
        _
      %p414 = scmp.le.s32.totalorder 1, %s23
      %p415 = scmp.lt.s32.totalorder %s23, 3
      %p416 = pnand %p414, %p415
      %p417 = pneg %p416
      // Predicated region
      $region73: #{vit_forward.1} parent=5 // pred_check
        _
      $region74: #{vit_forward.1} parent=5 // pred_check_branch
        %419 = sbr.rel (%p416) target = $region76
      $region75: #{vit_forward.1} parent=5 // pred_region
        %s420 = ssub.s32 %s23, 1
        %p421 = scmp.lt.s32.totalorder %s28, 1
        %s422 = scalar_select %p421, %s28, 1
        %s423 = smul.addr %s422, 4
        %s424 = smul.addr %s423, 8
        %s425 = scalar_lea.vmem %s0, %s424
        %p426 = pneg %p49
        %p427 = pneg %p46
        %p428 = pneg %p70
        %p429 = pneg %p67
        %p430 = pneg %p91
        %p431 = pneg %p88
        %p432 = pneg %p112
        %p433 = pneg %p109
        %p434 = pneg %p133
        %p435 = pneg %p130
        %p436 = pneg %p154
        %p437 = pneg %p151
        %p438 = pneg %p175
        %p439 = pneg %p172
        %p440 = pneg %p196
        %p441 = pneg %p193
        %p442 = pneg %p217
        %p443 = pneg %p214
        %p444 = pneg %p238
        %p445 = pneg %p235
        %p446 = pneg %p259
        %p447 = pneg %p256
        %p448 = pneg %p280
        %p449 = pneg %p277
        %p450 = pneg %p301
        %p451 = pneg %p298
        %p452 = pneg %p322
        %p453 = pneg %p319
        %p454 = pneg %p348
        %p455 = pneg %p345
        %s456 = sand.u32 %s335, 1
        %s457 = scalar_lea.sflag [#allocation3], %s456
        %s458 = sand.u32 %s335, 1
        %s459 = scalar_lea.vmem [#allocation2], %s458
        %p460 = scmp.lt.s32.totalorder %s28, 1
        %s461 = scalar_select %p460, %s28, 1
        %s462 = smul.addr %s461, 4
        %s463 = smul.addr %s462, 8
        %s464 = scalar_lea.vmem %s0, %s463
        %v466 = vld [vmem:[%s464] sm:$0xff]
        %v467 = vld [vmem:[%s464 + $0x8] sm:$0xff]
        %v468 = vld [vmem:[%s464 + $0x10] sm:$0xff]
        %v469 = vld [vmem:[%s464 + $0x18] sm:$0xff]
        %v470 = vpack.c.bf16 %v467, %v466
        %v471 = vpack.c.bf16 %v469, %v468
        %v472 = vld [vmem:[%s1] sm:$0xf]
        %v473 = vld [vmem:[%s1 + $0x4] sm:$0xf]
        %v474 = vld [vmem:[%s1 + $0x8] sm:$0xf]
        %v475 = vld [vmem:[%s1 + $0xc] sm:$0xf]
        %v476 = vld [vmem:[%s1 + $0x10] sm:$0xf]
        %v477 = vld [vmem:[%s1 + $0x14] sm:$0xf]
        %v478 = vld [vmem:[%s1 + $0x18] sm:$0xf]
        %v479 = vld [vmem:[%s1 + $0x1c] sm:$0xf]
        %v480 = vld [vmem:[%s1 + $0x20] sm:$0xf]
        %v481 = vld [vmem:[%s1 + $0x24] sm:$0xf]
        %v482 = vld [vmem:[%s1 + $0x28] sm:$0xf]
        %v483 = vld [vmem:[%s1 + $0x2c] sm:$0xf]
        %v484 = vld [vmem:[%s1 + $0x30] sm:$0xf]
        %v485 = vld [vmem:[%s1 + $0x34] sm:$0xf]
        %v486 = vld [vmem:[%s1 + $0x38] sm:$0xf]
        %v487 = vld [vmem:[%s1 + $0x3c] sm:$0xf]
        %v488 = vld [vmem:[%s2] sm:$0xff]
        %v489 = vld [vmem:[%s2 + $0x8] sm:$0xff]
        %v490 = vld [vmem:[%s2 + $0x10] sm:$0xff]
        %v491 = vld [vmem:[%s2 + $0x18] sm:$0xff]
        %v508 = vunpack.c.l.b16 %v472
        %v509 = vunpack.c.l.b16 %v473
        %v510 = vunpack.c.l.b16 %v474
        %v511 = vunpack.c.l.b16 %v475
        %v512 = vunpack.c.l.b16 %v476
        %v513 = vunpack.c.l.b16 %v477
        %v514 = vunpack.c.l.b16 %v478
        %v515 = vunpack.c.l.b16 %v479
        %v516 = vunpack.c.l.b16 %v480
        %v517 = vunpack.c.l.b16 %v481
        %v518 = vunpack.c.l.b16 %v482
        %v519 = vunpack.c.l.b16 %v483
        %v520 = vunpack.c.l.b16 %v484
        %v521 = vunpack.c.l.b16 %v485
        %v522 = vunpack.c.l.b16 %v486
        %v523 = vunpack.c.l.b16 %v487
        %v524 = vpack.c.b16 %v509, %v508
        %v525 = vpack.c.b16 %v511, %v510
        %v526 = vpack.c.b16 %v513, %v512
        %v527 = vpack.c.b16 %v515, %v514
        %v528 = vpack.c.b16 %v517, %v516
        %v529 = vpack.c.b16 %v519, %v518
        %v530 = vpack.c.b16 %v521, %v520
        %v531 = vpack.c.b16 %v523, %v522
        %540 = vmatprep.subr.bf16.mxu0 0
        %541 = vmatpush1.bf16.msra.mxu0 %v531
        %542 = vmatprep.subr.bf16.mxu0 0
        %543 = vmatpush1.bf16.msra.mxu0 %v530
        %544 = vmatprep.subr.bf16.mxu0 0
        %545 = vmatpush1.bf16.msra.mxu0 %v529
        %546 = vmatprep.subr.bf16.mxu0 0
        %547 = vmatpush1.bf16.msra.mxu0 %v528
        %548 = vmatprep.subr.bf16.mxu0 0
        %549 = vmatpush1.bf16.msra.mxu0 %v527
        %550 = vmatprep.subr.bf16.mxu0 0
        %551 = vmatpush1.bf16.msra.mxu0 %v526
        %552 = vmatprep.subr.bf16.mxu0 0
        %553 = vmatpush1.bf16.msra.mxu0 %v525
        %554 = vmatprep.subr.bf16.mxu0 0
        %555 = vmatpush1.bf16.msra.mxu0 %v524
        %556 = vmatprep.subr.bf16.mxu0 0
        %557 = vmatpush2.bf16.msra.mxu0 0
        %558 = vmatprep.subr.bf16.mxu0 0
        %559 = vmatpush2.bf16.msra.mxu0 0
        %560 = vmatprep.subr.bf16.mxu0 0
        %561 = vmatpush2.bf16.msra.mxu0 0
        %562 = vmatprep.subr.bf16.mxu0 0
        %563 = vmatpush2.bf16.msra.mxu0 0
        %564 = vmatprep.subr.bf16.mxu0 0
        %565 = vmatpush2.bf16.msra.mxu0 0
        %566 = vmatprep.subr.bf16.mxu0 0
        %567 = vmatpush2.bf16.msra.mxu0 0
        %568 = vmatprep.subr.bf16.mxu0 0
        %569 = vmatpush2.bf16.msra.mxu0 0
        %570 = vmatprep.subr.bf16.mxu0 0
        %571 = vmatpush2.bf16.msra.mxu0 0
        %572 = vmatprep.mubr.bf16.mxu0 0
        %573 = vmatmul.mubr.bf16.gmra.mxu0 %v470
        %v574 = vpop.f32.mrf.mxu0
        %v575 = vadd.f32 %v488, %v574
        %v576 = vpop.f32.mrf.mxu0
        %v577 = vpop.f32.mrf.mxu0
        %v578 = vadd.f32 %v489, %v577
        %v579 = vpop.f32.mrf.mxu0
        %580 = vmatprep.mubr.bf16.mxu0 0
        %581 = vmatmul.mubr.bf16.gmra.mxu0 %v471
        %v582 = vpop.f32.mrf.mxu0
        %v583 = vadd.f32 %v490, %v582
        %v584 = vpop.f32.mrf.mxu0
        %v585 = vpop.f32.mrf.mxu0
        %v586 = vadd.f32 %v491, %v585
        %v587 = vpop.f32.mrf.mxu0
        %588 = vdwg.mxu0
        %v589 = vlaneseq
        %v590 = vand.u32 %v589, 127
        %vm591 = vcmp.lt.s32.totalorder %v590, 17
        %v592 = vsel %vm591, 0.0, -1e+30
        %v593 = vld [vmem:[%s3] sm:$0xf]
        %594 = vadd.xlane.f32.xlu0 %v575
        %v595 = vpop.xlane.xlu0 %594
        %596 = vadd.xlane.f32.xlu0 %v578
        %v597 = vpop.xlane.xlu0 %596
        %598 = vadd.xlane.f32.xlu0 %v583
        %v599 = vpop.xlane.xlu0 %598
        %600 = vadd.xlane.f32.xlu0 %v586
        %v601 = vpop.xlane.xlu0 %600
        %v602 = vrcp.pop 128.0
        %v603 = vmul.f32 %v595, %v602
        %v604 = vmul.f32 %v597, %v602
        %v605 = vmul.f32 %v599, %v602
        %v606 = vmul.f32 %v601, %v602
        %v607 = vsub.f32 %v575, %v603
        %v608 = vsub.f32 %v578, %v604
        %v609 = vsub.f32 %v583, %v605
        %v610 = vsub.f32 %v586, %v606
        %v611 = vmul.f32 %v607, %v607
        %v612 = vmul.f32 %v608, %v608
        %v613 = vmul.f32 %v609, %v609
        %v614 = vmul.f32 %v610, %v610
        %615 = vadd.xlane.f32.xlu0 %v611
        %v616 = vpop.xlane.xlu0 %615
        %617 = vadd.xlane.f32.xlu0 %v612
        %v618 = vpop.xlane.xlu0 %617
        %619 = vadd.xlane.f32.xlu0 %v613
        %v620 = vpop.xlane.xlu0 %619
        %621 = vadd.xlane.f32.xlu0 %v614
        %v622 = vpop.xlane.xlu0 %621
        %v623 = vmul.f32 %v616, %v602
        %v624 = vmul.f32 %v618, %v602
        %v625 = vmul.f32 %v620, %v602
        %v626 = vmul.f32 %v622, %v602
        %v627 = vadd.f32 %v623, 1e-05
        %v628 = vadd.f32 %v624, 1e-05
        %v629 = vadd.f32 %v625, 1e-05
        %v630 = vadd.f32 %v626, 1e-05
        %v631 = vrsqrt.pop %v627
        %v632 = vrsqrt.pop %v628
        %v633 = vrsqrt.pop %v629
        %v634 = vrsqrt.pop %v630
        %v635 = vmul.f32 %v607, %v631
        %v636 = vmul.f32 %v608, %v632
        %v637 = vmul.f32 %v609, %v633
        %v638 = vmul.f32 %v610, %v634
        %v639 = vlaneseq
        %v640 = vshrl.u32 %v639, 7
        %v641 = vsub.s32 0, %v640
        %v642 = vrot.slane %v593, %v641
        %v643 = vmul.f32 %v635, %v642
        %v644 = vmul.f32 %v636, %v642
        %v645 = vmul.f32 %v637, %v642
        %v646 = vmul.f32 %v638, %v642
        %v647 = vlaneseq
        %v648 = vshrl.u32 %v647, 7
        %v649 = vsub.s32 1, %v648
        %v650 = vrot.slane %v593, %v649
        %v651 = vadd.f32 %v643, %v650
        %v652 = vadd.f32 %v644, %v650
        %v653 = vadd.f32 %v645, %v650
        %v654 = vadd.f32 %v646, %v650
        %v655 = vpack.c.bf16 %v652, %v651
        %v656 = vpack.c.bf16 %v654, %v653
        %v657 = vld [vmem:[%s4] sm:$0xff]
        %v658 = vld [vmem:[%s4 + $0x8] sm:$0xf]
        %v659 = vld [vmem:[%s4 + $0xc] sm:$0xff]
        %v660 = vld [vmem:[%s4 + $0x14] sm:$0xf]
        %v661 = vld [vmem:[%s4 + $0x18] sm:$0xff]
        %v662 = vld [vmem:[%s4 + $0x20] sm:$0xf]
        %v663 = vld [vmem:[%s4 + $0x24] sm:$0xff]
        %v664 = vld [vmem:[%s4 + $0x2c] sm:$0xf]
        %v665 = vld [vmem:[%s4 + $0x30] sm:$0xff]
        %v666 = vld [vmem:[%s4 + $0x38] sm:$0xf]
        %v667 = vld [vmem:[%s4 + $0x3c] sm:$0xff]
        %v668 = vld [vmem:[%s4 + $0x44] sm:$0xf]
        %v669 = vld [vmem:[%s4 + $0x48] sm:$0xff]
        %v670 = vld [vmem:[%s4 + $0x50] sm:$0xf]
        %v671 = vld [vmem:[%s4 + $0x54] sm:$0xff]
        %v672 = vld [vmem:[%s4 + $0x5c] sm:$0xf]
        %v673 = vld [vmem:[%s4 + $0x60] sm:$0xff]
        %v674 = vld [vmem:[%s4 + $0x68] sm:$0xf]
        %v675 = vld [vmem:[%s4 + $0x6c] sm:$0xff]
        %v676 = vld [vmem:[%s4 + $0x74] sm:$0xf]
        %v677 = vld [vmem:[%s4 + $0x78] sm:$0xff]
        %v678 = vld [vmem:[%s4 + $0x80] sm:$0xf]
        %v679 = vld [vmem:[%s4 + $0x84] sm:$0xff]
        %v680 = vld [vmem:[%s4 + $0x8c] sm:$0xf]
        %v681 = vld [vmem:[%s4 + $0x90] sm:$0xff]
        %v682 = vld [vmem:[%s4 + $0x98] sm:$0xf]
        %v683 = vld [vmem:[%s4 + $0x9c] sm:$0xff]
        %v684 = vld [vmem:[%s4 + $0xa4] sm:$0xf]
        %v685 = vld [vmem:[%s4 + $0xa8] sm:$0xff]
        %v686 = vld [vmem:[%s4 + $0xb0] sm:$0xf]
        %v687 = vld [vmem:[%s4 + $0xb4] sm:$0xff]
        %v688 = vld [vmem:[%s4 + $0xbc] sm:$0xf]
        %v689 = vld [vmem:[%s5] sm:$0x7]
        %v691 = vlaneseq
        %v692 = vshrl.u32 %v691, 7
        %v693 = vsub.s32 0, %v692
        %v694 = vrot.slane %v689, %v693
        %v695 = vlaneseq
        %v696 = vshrl.u32 %v695, 7
        %v697 = vsub.s32 1, %v696
        %v698 = vrot.slane %v689, %v697
        %v699 = vlaneseq
        %v700 = vshrl.u32 %v699, 7
        %v701 = vsub.s32 2, %v700
        %v702 = vrot.slane %v689, %v701
        %v738 = vunpack.c.l.b16 %v657
        %v739 = vunpack.c.h.b16 %v657
        %v740 = vunpack.c.l.b16 %v658
        %v741 = vunpack.c.l.b16 %v659
        %v742 = vunpack.c.h.b16 %v659
        %v743 = vunpack.c.l.b16 %v660
        %v744 = vunpack.c.l.b16 %v661
        %v745 = vunpack.c.h.b16 %v661
        %v746 = vunpack.c.l.b16 %v662
        %v747 = vunpack.c.l.b16 %v663
        %v748 = vunpack.c.h.b16 %v663
        %v749 = vunpack.c.l.b16 %v664
        %v750 = vunpack.c.l.b16 %v665
        %v751 = vunpack.c.h.b16 %v665
        %v752 = vunpack.c.l.b16 %v666
        %v753 = vunpack.c.l.b16 %v667
        %v754 = vunpack.c.h.b16 %v667
        %v755 = vunpack.c.l.b16 %v668
        %v756 = vunpack.c.l.b16 %v669
        %v757 = vunpack.c.h.b16 %v669
        %v758 = vunpack.c.l.b16 %v670
        %v759 = vunpack.c.l.b16 %v671
        %v760 = vunpack.c.h.b16 %v671
        %v761 = vunpack.c.l.b16 %v672
        %v762 = vunpack.c.l.b16 %v673
        %v763 = vunpack.c.h.b16 %v673
        %v764 = vunpack.c.l.b16 %v674
        %v765 = vunpack.c.l.b16 %v675
        %v766 = vunpack.c.h.b16 %v675
        %v767 = vunpack.c.l.b16 %v676
        %v768 = vunpack.c.l.b16 %v677
        %v769 = vunpack.c.h.b16 %v677
        %v770 = vunpack.c.l.b16 %v678
        %v771 = vunpack.c.l.b16 %v679
        %v772 = vunpack.c.h.b16 %v679
        %v773 = vunpack.c.l.b16 %v680
        %v774 = vunpack.c.l.b16 %v681
        %v775 = vunpack.c.h.b16 %v681
        %v776 = vunpack.c.l.b16 %v682
        %v777 = vunpack.c.l.b16 %v683
        %v778 = vunpack.c.h.b16 %v683
        %v779 = vunpack.c.l.b16 %v684
        %v780 = vunpack.c.l.b16 %v685
        %v781 = vunpack.c.h.b16 %v685
        %v782 = vunpack.c.l.b16 %v686
        %v783 = vunpack.c.l.b16 %v687
        %v784 = vunpack.c.h.b16 %v687
        %v785 = vunpack.c.l.b16 %v688
        %v786 = vpack.c.b16 %v741, %v738
        %v787 = vpack.c.b16 %v742, %v739
        %v788 = vpack.c.b16 %v743, %v740
        %v789 = vpack.c.b16 %v747, %v744
        %v790 = vpack.c.b16 %v748, %v745
        %v791 = vpack.c.b16 %v749, %v746
        %v792 = vpack.c.b16 %v753, %v750
        %v793 = vpack.c.b16 %v754, %v751
        %v794 = vpack.c.b16 %v755, %v752
        %v795 = vpack.c.b16 %v759, %v756
        %v796 = vpack.c.b16 %v760, %v757
        %v797 = vpack.c.b16 %v761, %v758
        %v798 = vpack.c.b16 %v765, %v762
        %v799 = vpack.c.b16 %v766, %v763
        %v800 = vpack.c.b16 %v767, %v764
        %v801 = vpack.c.b16 %v771, %v768
        %v802 = vpack.c.b16 %v772, %v769
        %v803 = vpack.c.b16 %v773, %v770
        %v804 = vpack.c.b16 %v777, %v774
        %v805 = vpack.c.b16 %v778, %v775
        %v806 = vpack.c.b16 %v779, %v776
        %v807 = vpack.c.b16 %v783, %v780
        %v808 = vpack.c.b16 %v784, %v781
        %v809 = vpack.c.b16 %v785, %v782
        %834 = vmatprep.subr.bf16.mxu0 %v808
        %835 = vmatpush1.bf16.msra.mxu0 %v807
        %836 = vmatprep.subr.bf16.mxu0 %v805
        %837 = vmatpush1.bf16.msra.mxu0 %v804
        %838 = vmatprep.subr.bf16.mxu0 %v802
        %839 = vmatpush1.bf16.msra.mxu0 %v801
        %840 = vmatprep.subr.bf16.mxu0 %v799
        %841 = vmatpush1.bf16.msra.mxu0 %v798
        %842 = vmatprep.subr.bf16.mxu0 %v796
        %843 = vmatpush1.bf16.msra.mxu0 %v795
        %844 = vmatprep.subr.bf16.mxu0 %v793
        %845 = vmatpush1.bf16.msra.mxu0 %v792
        %846 = vmatprep.subr.bf16.mxu0 %v790
        %847 = vmatpush1.bf16.msra.mxu0 %v789
        %848 = vmatprep.subr.bf16.mxu0 %v787
        %849 = vmatpush1.bf16.msra.mxu0 %v786
        %850 = vmatprep.subr.bf16.mxu0 0
        %851 = vmatpush2.bf16.msra.mxu0 0
        %852 = vmatprep.subr.bf16.mxu0 0
        %853 = vmatpush2.bf16.msra.mxu0 0
        %854 = vmatprep.subr.bf16.mxu0 0
        %855 = vmatpush2.bf16.msra.mxu0 0
        %856 = vmatprep.subr.bf16.mxu0 0
        %857 = vmatpush2.bf16.msra.mxu0 0
        %858 = vmatprep.subr.bf16.mxu0 0
        %859 = vmatpush2.bf16.msra.mxu0 0
        %860 = vmatprep.subr.bf16.mxu0 0
        %861 = vmatpush2.bf16.msra.mxu0 0
        %862 = vmatprep.subr.bf16.mxu0 0
        %863 = vmatpush2.bf16.msra.mxu0 0
        %864 = vmatprep.subr.bf16.mxu0 0
        %865 = vmatpush2.bf16.msra.mxu0 0
        %866 = vmatprep.mubr.bf16.mxu0 0
        %867 = vmatmul.mubr.bf16.gmra.mxu0 %v655
        %v868 = vpop.f32.mrf.mxu0
        %v869 = vadd.f32 %v694, %v868
        %v870 = vpop.f32.mrf.mxu0
        %v871 = vadd.f32 %v698, %v870
        %v872 = vpop.f32.mrf.mxu0
        %v873 = vadd.f32 %v694, %v872
        %v874 = vpop.f32.mrf.mxu0
        %v875 = vadd.f32 %v698, %v874
        %876 = vmatprep.mubr.bf16.mxu0 0
        %877 = vmatmul.mubr.bf16.gmra.mxu0 %v656
        %v878 = vpop.f32.mrf.mxu0
        %v879 = vadd.f32 %v694, %v878
        %v880 = vpop.f32.mrf.mxu0
        %v881 = vadd.f32 %v698, %v880
        %v882 = vpop.f32.mrf.mxu0
        %v883 = vadd.f32 %v694, %v882
        %v884 = vpop.f32.mrf.mxu0
        %v885 = vadd.f32 %v698, %v884
        %886 = vdwg.mxu0
        %887 = vmatprep.subr.bf16.mxu0 0
        %888 = vmatpush1.bf16.msra.mxu0 %v809
        %889 = vmatprep.subr.bf16.mxu0 0
        %890 = vmatpush1.bf16.msra.mxu0 %v806
        %891 = vmatprep.subr.bf16.mxu0 0
        %892 = vmatpush1.bf16.msra.mxu0 %v803
        %893 = vmatprep.subr.bf16.mxu0 0
        %894 = vmatpush1.bf16.msra.mxu0 %v800
        %895 = vmatprep.subr.bf16.mxu0 0
        %896 = vmatpush1.bf16.msra.mxu0 %v797
        %897 = vmatprep.subr.bf16.mxu0 0
        %898 = vmatpush1.bf16.msra.mxu0 %v794
        %899 = vmatprep.subr.bf16.mxu0 0
        %900 = vmatpush1.bf16.msra.mxu0 %v791
        %901 = vmatprep.subr.bf16.mxu0 0
        %902 = vmatpush1.bf16.msra.mxu0 %v788
        %903 = vmatprep.subr.bf16.mxu0 0
        %904 = vmatpush2.bf16.msra.mxu0 0
        %905 = vmatprep.subr.bf16.mxu0 0
        %906 = vmatpush2.bf16.msra.mxu0 0
        %907 = vmatprep.subr.bf16.mxu0 0
        %908 = vmatpush2.bf16.msra.mxu0 0
        %909 = vmatprep.subr.bf16.mxu0 0
        %910 = vmatpush2.bf16.msra.mxu0 0
        %911 = vmatprep.subr.bf16.mxu0 0
        %912 = vmatpush2.bf16.msra.mxu0 0
        %913 = vmatprep.subr.bf16.mxu0 0
        %914 = vmatpush2.bf16.msra.mxu0 0
        %915 = vmatprep.subr.bf16.mxu0 0
        %916 = vmatpush2.bf16.msra.mxu0 0
        %917 = vmatprep.subr.bf16.mxu0 0
        %918 = vmatpush2.bf16.msra.mxu0 0
        %919 = vmatprep.mubr.bf16.mxu0 0
        %920 = vmatmul.mubr.bf16.gmra.mxu0 %v655
        %v921 = vpop.f32.mrf.mxu0
        %v922 = vadd.f32 %v702, %v921
        %v923 = vpop.f32.mrf.mxu0
        %v924 = vpop.f32.mrf.mxu0
        %v925 = vadd.f32 %v702, %v924
        %v926 = vpop.f32.mrf.mxu0
        %927 = vmatprep.mubr.bf16.mxu0 0
        %928 = vmatmul.mubr.bf16.gmra.mxu0 %v656
        %v929 = vpop.f32.mrf.mxu0
        %v930 = vadd.f32 %v702, %v929
        %v931 = vpop.f32.mrf.mxu0
        %v932 = vpop.f32.mrf.mxu0
        %v933 = vadd.f32 %v702, %v932
        %v934 = vpop.f32.mrf.mxu0
        %935 = vdwg.mxu0
        %940 = vrot.lane.b32.xlu0 %v869, 96
        %v941 = vpop.permute.xlu0 %940
        %942 = vrot.lane.b32.xlu0 %v873, 96
        %v943 = vpop.permute.xlu0 %942
        %944 = vrot.lane.b32.xlu0 %v879, 96
        %v945 = vpop.permute.xlu0 %944
        %946 = vrot.lane.b32.xlu0 %v883, 96
        %v947 = vpop.permute.xlu0 %946
        %952 = vrot.lane.b32.xlu0 %v869, 64
        %v953 = vpop.permute.xlu0 %952
        %954 = vrot.lane.b32.xlu0 %v873, 64
        %v955 = vpop.permute.xlu0 %954
        %956 = vrot.lane.b32.xlu0 %v879, 64
        %v957 = vpop.permute.xlu0 %956
        %958 = vrot.lane.b32.xlu0 %v883, 64
        %v959 = vpop.permute.xlu0 %958
        %964 = vrot.lane.b32.xlu0 %v869, 32
        %v965 = vpop.permute.xlu0 %964
        %966 = vrot.lane.b32.xlu0 %v873, 32
        %v967 = vpop.permute.xlu0 %966
        %968 = vrot.lane.b32.xlu0 %v879, 32
        %v969 = vpop.permute.xlu0 %968
        %970 = vrot.lane.b32.xlu0 %v883, 32
        %v971 = vpop.permute.xlu0 %970
        %v976 = vcombine.low %v869, %v953
        %v977 = vcombine.high %v869, %v953
        %v979 = vunpack.c.l.s4 1983009808
        %v980 = vunpack.c.0.s8 %v979
        %v981 = vlaneseq
        %v982 = vshrl.u32 %v981, 7
        %v983 = vsub.s32 %v980, %v982
        %v984 = vrot.slane %v976, %v983
        %v986 = vunpack.c.l.s4 1983009808
        %v987 = vunpack.c.0.s8 %v986
        %v988 = vlaneseq
        %v989 = vshrl.u32 %v988, 7
        %v990 = vsub.s32 %v987, %v989
        %v991 = vrot.slane %v977, %v990
        %v992 = vcombine.low %v941, %v965
        %v993 = vcombine.high %v941, %v965
        %v995 = vunpack.c.l.s4 1983009808
        %v996 = vunpack.c.0.s8 %v995
        %v997 = vlaneseq
        %v998 = vshrl.u32 %v997, 7
        %v999 = vsub.s32 %v996, %v998
        %v1000 = vrot.slane %v992, %v999
        %v1002 = vunpack.c.l.s4 1983009808
        %v1003 = vunpack.c.0.s8 %v1002
        %v1004 = vlaneseq
        %v1005 = vshrl.u32 %v1004, 7
        %v1006 = vsub.s32 %v1003, %v1005
        %v1007 = vrot.slane %v993, %v1006
        %v1008 = vcombine.low %v984, %v1000
        %v1009 = vcombine.high %v984, %v1000
        %v1011 = vunpack.c.l.s4 1934713408
        %v1012 = vunpack.c.0.s8 %v1011
        %v1013 = vlaneseq
        %v1014 = vshrl.u32 %v1013, 7
        %v1015 = vsub.s32 %v1012, %v1014
        %v1016 = vrot.slane %v1008, %v1015
        %v1018 = vunpack.c.l.s4 1934713408
        %v1019 = vunpack.c.0.s8 %v1018
        %v1020 = vlaneseq
        %v1021 = vshrl.u32 %v1020, 7
        %v1022 = vsub.s32 %v1019, %v1021
        %v1023 = vrot.slane %v1009, %v1022
        %v1024 = vcombine.low %v991, %v1007
        %v1025 = vcombine.high %v991, %v1007
        %v1027 = vunpack.c.l.s4 1934713408
        %v1028 = vunpack.c.0.s8 %v1027
        %v1029 = vlaneseq
        %v1030 = vshrl.u32 %v1029, 7
        %v1031 = vsub.s32 %v1028, %v1030
        %v1032 = vrot.slane %v1024, %v1031
        %v1034 = vunpack.c.l.s4 1934713408
        %v1035 = vunpack.c.0.s8 %v1034
        %v1036 = vlaneseq
        %v1037 = vshrl.u32 %v1036, 7
        %v1038 = vsub.s32 %v1035, %v1037
        %v1039 = vrot.slane %v1025, %v1038
        %v1040 = vcombine.high %v1016, 0.0
        %v1041 = vcombine.high %v1023, 0.0
        %v1042 = vcombine.high %v1032, 0.0
        %v1043 = vcombine.high %v1039, 0.0
        %v1044 = vcombine.low %v873, %v955
        %v1045 = vcombine.high %v873, %v955
        %v1047 = vunpack.c.l.s4 1983009808
        %v1048 = vunpack.c.0.s8 %v1047
        %v1049 = vlaneseq
        %v1050 = vshrl.u32 %v1049, 7
        %v1051 = vsub.s32 %v1048, %v1050
        %v1052 = vrot.slane %v1044, %v1051
        %v1054 = vunpack.c.l.s4 1983009808
        %v1055 = vunpack.c.0.s8 %v1054
        %v1056 = vlaneseq
        %v1057 = vshrl.u32 %v1056, 7
        %v1058 = vsub.s32 %v1055, %v1057
        %v1059 = vrot.slane %v1045, %v1058
        %v1060 = vcombine.low %v943, %v967
        %v1061 = vcombine.high %v943, %v967
        %v1063 = vunpack.c.l.s4 1983009808
        %v1064 = vunpack.c.0.s8 %v1063
        %v1065 = vlaneseq
        %v1066 = vshrl.u32 %v1065, 7
        %v1067 = vsub.s32 %v1064, %v1066
        %v1068 = vrot.slane %v1060, %v1067
        %v1070 = vunpack.c.l.s4 1983009808
        %v1071 = vunpack.c.0.s8 %v1070
        %v1072 = vlaneseq
        %v1073 = vshrl.u32 %v1072, 7
        %v1074 = vsub.s32 %v1071, %v1073
        %v1075 = vrot.slane %v1061, %v1074
        %v1076 = vcombine.low %v1052, %v1068
        %v1077 = vcombine.high %v1052, %v1068
        %v1079 = vunpack.c.l.s4 1934713408
        %v1080 = vunpack.c.0.s8 %v1079
        %v1081 = vlaneseq
        %v1082 = vshrl.u32 %v1081, 7
        %v1083 = vsub.s32 %v1080, %v1082
        %v1084 = vrot.slane %v1076, %v1083
        %v1086 = vunpack.c.l.s4 1934713408
        %v1087 = vunpack.c.0.s8 %v1086
        %v1088 = vlaneseq
        %v1089 = vshrl.u32 %v1088, 7
        %v1090 = vsub.s32 %v1087, %v1089
        %v1091 = vrot.slane %v1077, %v1090
        %v1092 = vcombine.low %v1059, %v1075
        %v1093 = vcombine.high %v1059, %v1075
        %v1095 = vunpack.c.l.s4 1934713408
        %v1096 = vunpack.c.0.s8 %v1095
        %v1097 = vlaneseq
        %v1098 = vshrl.u32 %v1097, 7
        %v1099 = vsub.s32 %v1096, %v1098
        %v1100 = vrot.slane %v1092, %v1099
        %v1102 = vunpack.c.l.s4 1934713408
        %v1103 = vunpack.c.0.s8 %v1102
        %v1104 = vlaneseq
        %v1105 = vshrl.u32 %v1104, 7
        %v1106 = vsub.s32 %v1103, %v1105
        %v1107 = vrot.slane %v1093, %v1106
        %v1108 = vcombine.high %v1084, 0.0
        %v1109 = vcombine.high %v1091, 0.0
        %v1110 = vcombine.high %v1100, 0.0
        %v1111 = vcombine.high %v1107, 0.0
        %v1112 = vcombine.low %v879, %v957
        %v1113 = vcombine.high %v879, %v957
        %v1115 = vunpack.c.l.s4 1983009808
        %v1116 = vunpack.c.0.s8 %v1115
        %v1117 = vlaneseq
        %v1118 = vshrl.u32 %v1117, 7
        %v1119 = vsub.s32 %v1116, %v1118
        %v1120 = vrot.slane %v1112, %v1119
        %v1122 = vunpack.c.l.s4 1983009808
        %v1123 = vunpack.c.0.s8 %v1122
        %v1124 = vlaneseq
        %v1125 = vshrl.u32 %v1124, 7
        %v1126 = vsub.s32 %v1123, %v1125
        %v1127 = vrot.slane %v1113, %v1126
        %v1128 = vcombine.low %v945, %v969
        %v1129 = vcombine.high %v945, %v969
        %v1131 = vunpack.c.l.s4 1983009808
        %v1132 = vunpack.c.0.s8 %v1131
        %v1133 = vlaneseq
        %v1134 = vshrl.u32 %v1133, 7
        %v1135 = vsub.s32 %v1132, %v1134
        %v1136 = vrot.slane %v1128, %v1135
        %v1138 = vunpack.c.l.s4 1983009808
        %v1139 = vunpack.c.0.s8 %v1138
        %v1140 = vlaneseq
        %v1141 = vshrl.u32 %v1140, 7
        %v1142 = vsub.s32 %v1139, %v1141
        %v1143 = vrot.slane %v1129, %v1142
        %v1144 = vcombine.low %v1120, %v1136
        %v1145 = vcombine.high %v1120, %v1136
        %v1147 = vunpack.c.l.s4 1934713408
        %v1148 = vunpack.c.0.s8 %v1147
        %v1149 = vlaneseq
        %v1150 = vshrl.u32 %v1149, 7
        %v1151 = vsub.s32 %v1148, %v1150
        %v1152 = vrot.slane %v1144, %v1151
        %v1154 = vunpack.c.l.s4 1934713408
        %v1155 = vunpack.c.0.s8 %v1154
        %v1156 = vlaneseq
        %v1157 = vshrl.u32 %v1156, 7
        %v1158 = vsub.s32 %v1155, %v1157
        %v1159 = vrot.slane %v1145, %v1158
        %v1160 = vcombine.low %v1127, %v1143
        %v1161 = vcombine.high %v1127, %v1143
        %v1163 = vunpack.c.l.s4 1934713408
        %v1164 = vunpack.c.0.s8 %v1163
        %v1165 = vlaneseq
        %v1166 = vshrl.u32 %v1165, 7
        %v1167 = vsub.s32 %v1164, %v1166
        %v1168 = vrot.slane %v1160, %v1167
        %v1170 = vunpack.c.l.s4 1934713408
        %v1171 = vunpack.c.0.s8 %v1170
        %v1172 = vlaneseq
        %v1173 = vshrl.u32 %v1172, 7
        %v1174 = vsub.s32 %v1171, %v1173
        %v1175 = vrot.slane %v1161, %v1174
        %v1176 = vcombine.high %v1152, 0.0
        %v1177 = vcombine.high %v1159, 0.0
        %v1178 = vcombine.high %v1168, 0.0
        %v1179 = vcombine.high %v1175, 0.0
        %v1180 = vcombine.low %v883, %v959
        %v1181 = vcombine.high %v883, %v959
        %v1183 = vunpack.c.l.s4 1983009808
        %v1184 = vunpack.c.0.s8 %v1183
        %v1185 = vlaneseq
        %v1186 = vshrl.u32 %v1185, 7
        %v1187 = vsub.s32 %v1184, %v1186
        %v1188 = vrot.slane %v1180, %v1187
        %v1190 = vunpack.c.l.s4 1983009808
        %v1191 = vunpack.c.0.s8 %v1190
        %v1192 = vlaneseq
        %v1193 = vshrl.u32 %v1192, 7
        %v1194 = vsub.s32 %v1191, %v1193
        %v1195 = vrot.slane %v1181, %v1194
        %v1196 = vcombine.low %v947, %v971
        %v1197 = vcombine.high %v947, %v971
        %v1199 = vunpack.c.l.s4 1983009808
        %v1200 = vunpack.c.0.s8 %v1199
        %v1201 = vlaneseq
        %v1202 = vshrl.u32 %v1201, 7
        %v1203 = vsub.s32 %v1200, %v1202
        %v1204 = vrot.slane %v1196, %v1203
        %v1206 = vunpack.c.l.s4 1983009808
        %v1207 = vunpack.c.0.s8 %v1206
        %v1208 = vlaneseq
        %v1209 = vshrl.u32 %v1208, 7
        %v1210 = vsub.s32 %v1207, %v1209
        %v1211 = vrot.slane %v1197, %v1210
        %v1212 = vcombine.low %v1188, %v1204
        %v1213 = vcombine.high %v1188, %v1204
        %v1215 = vunpack.c.l.s4 1934713408
        %v1216 = vunpack.c.0.s8 %v1215
        %v1217 = vlaneseq
        %v1218 = vshrl.u32 %v1217, 7
        %v1219 = vsub.s32 %v1216, %v1218
        %v1220 = vrot.slane %v1212, %v1219
        %v1222 = vunpack.c.l.s4 1934713408
        %v1223 = vunpack.c.0.s8 %v1222
        %v1224 = vlaneseq
        %v1225 = vshrl.u32 %v1224, 7
        %v1226 = vsub.s32 %v1223, %v1225
        %v1227 = vrot.slane %v1213, %v1226
        %v1228 = vcombine.low %v1195, %v1211
        %v1229 = vcombine.high %v1195, %v1211
        %v1231 = vunpack.c.l.s4 1934713408
        %v1232 = vunpack.c.0.s8 %v1231
        %v1233 = vlaneseq
        %v1234 = vshrl.u32 %v1233, 7
        %v1235 = vsub.s32 %v1232, %v1234
        %v1236 = vrot.slane %v1228, %v1235
        %v1238 = vunpack.c.l.s4 1934713408
        %v1239 = vunpack.c.0.s8 %v1238
        %v1240 = vlaneseq
        %v1241 = vshrl.u32 %v1240, 7
        %v1242 = vsub.s32 %v1239, %v1241
        %v1243 = vrot.slane %v1229, %v1242
        %v1244 = vcombine.high %v1220, 0.0
        %v1245 = vcombine.high %v1227, 0.0
        %v1246 = vcombine.high %v1236, 0.0
        %v1247 = vcombine.high %v1243, 0.0
        %1252 = vrot.lane.b32.xlu0 %v871, 96
        %v1253 = vpop.permute.xlu0 %1252
        %1254 = vrot.lane.b32.xlu0 %v875, 96
        %v1255 = vpop.permute.xlu0 %1254
        %1256 = vrot.lane.b32.xlu0 %v881, 96
        %v1257 = vpop.permute.xlu0 %1256
        %1258 = vrot.lane.b32.xlu0 %v885, 96
        %v1259 = vpop.permute.xlu0 %1258
        %1264 = vrot.lane.b32.xlu0 %v871, 64
        %v1265 = vpop.permute.xlu0 %1264
        %1266 = vrot.lane.b32.xlu0 %v875, 64
        %v1267 = vpop.permute.xlu0 %1266
        %1268 = vrot.lane.b32.xlu0 %v881, 64
        %v1269 = vpop.permute.xlu0 %1268
        %1270 = vrot.lane.b32.xlu0 %v885, 64
        %v1271 = vpop.permute.xlu0 %1270
        %1276 = vrot.lane.b32.xlu0 %v871, 32
        %v1277 = vpop.permute.xlu0 %1276
        %1278 = vrot.lane.b32.xlu0 %v875, 32
        %v1279 = vpop.permute.xlu0 %1278
        %1280 = vrot.lane.b32.xlu0 %v881, 32
        %v1281 = vpop.permute.xlu0 %1280
        %1282 = vrot.lane.b32.xlu0 %v885, 32
        %v1283 = vpop.permute.xlu0 %1282
        %v1288 = vcombine.low %v871, %v1265
        %v1289 = vcombine.high %v871, %v1265
        %v1291 = vunpack.c.l.s4 1983009808
        %v1292 = vunpack.c.0.s8 %v1291
        %v1293 = vlaneseq
        %v1294 = vshrl.u32 %v1293, 7
        %v1295 = vsub.s32 %v1292, %v1294
        %v1296 = vrot.slane %v1288, %v1295
        %v1298 = vunpack.c.l.s4 1983009808
        %v1299 = vunpack.c.0.s8 %v1298
        %v1300 = vlaneseq
        %v1301 = vshrl.u32 %v1300, 7
        %v1302 = vsub.s32 %v1299, %v1301
        %v1303 = vrot.slane %v1289, %v1302
        %v1304 = vcombine.low %v1253, %v1277
        %v1305 = vcombine.high %v1253, %v1277
        %v1307 = vunpack.c.l.s4 1983009808
        %v1308 = vunpack.c.0.s8 %v1307
        %v1309 = vlaneseq
        %v1310 = vshrl.u32 %v1309, 7
        %v1311 = vsub.s32 %v1308, %v1310
        %v1312 = vrot.slane %v1304, %v1311
        %v1314 = vunpack.c.l.s4 1983009808
        %v1315 = vunpack.c.0.s8 %v1314
        %v1316 = vlaneseq
        %v1317 = vshrl.u32 %v1316, 7
        %v1318 = vsub.s32 %v1315, %v1317
        %v1319 = vrot.slane %v1305, %v1318
        %v1320 = vcombine.low %v1296, %v1312
        %v1321 = vcombine.high %v1296, %v1312
        %v1323 = vunpack.c.l.s4 1934713408
        %v1324 = vunpack.c.0.s8 %v1323
        %v1325 = vlaneseq
        %v1326 = vshrl.u32 %v1325, 7
        %v1327 = vsub.s32 %v1324, %v1326
        %v1328 = vrot.slane %v1320, %v1327
        %v1330 = vunpack.c.l.s4 1934713408
        %v1331 = vunpack.c.0.s8 %v1330
        %v1332 = vlaneseq
        %v1333 = vshrl.u32 %v1332, 7
        %v1334 = vsub.s32 %v1331, %v1333
        %v1335 = vrot.slane %v1321, %v1334
        %v1336 = vcombine.low %v1303, %v1319
        %v1337 = vcombine.high %v1303, %v1319
        %v1339 = vunpack.c.l.s4 1934713408
        %v1340 = vunpack.c.0.s8 %v1339
        %v1341 = vlaneseq
        %v1342 = vshrl.u32 %v1341, 7
        %v1343 = vsub.s32 %v1340, %v1342
        %v1344 = vrot.slane %v1336, %v1343
        %v1346 = vunpack.c.l.s4 1934713408
        %v1347 = vunpack.c.0.s8 %v1346
        %v1348 = vlaneseq
        %v1349 = vshrl.u32 %v1348, 7
        %v1350 = vsub.s32 %v1347, %v1349
        %v1351 = vrot.slane %v1337, %v1350
        %v1352 = vcombine.high %v1328, 0.0
        %v1353 = vcombine.high %v1335, 0.0
        %v1354 = vcombine.high %v1344, 0.0
        %v1355 = vcombine.high %v1351, 0.0
        %v1356 = vcombine.low %v875, %v1267
        %v1357 = vcombine.high %v875, %v1267
        %v1359 = vunpack.c.l.s4 1983009808
        %v1360 = vunpack.c.0.s8 %v1359
        %v1361 = vlaneseq
        %v1362 = vshrl.u32 %v1361, 7
        %v1363 = vsub.s32 %v1360, %v1362
        %v1364 = vrot.slane %v1356, %v1363
        %v1366 = vunpack.c.l.s4 1983009808
        %v1367 = vunpack.c.0.s8 %v1366
        %v1368 = vlaneseq
        %v1369 = vshrl.u32 %v1368, 7
        %v1370 = vsub.s32 %v1367, %v1369
        %v1371 = vrot.slane %v1357, %v1370
        %v1372 = vcombine.low %v1255, %v1279
        %v1373 = vcombine.high %v1255, %v1279
        %v1375 = vunpack.c.l.s4 1983009808
        %v1376 = vunpack.c.0.s8 %v1375
        %v1377 = vlaneseq
        %v1378 = vshrl.u32 %v1377, 7
        %v1379 = vsub.s32 %v1376, %v1378
        %v1380 = vrot.slane %v1372, %v1379
        %v1382 = vunpack.c.l.s4 1983009808
        %v1383 = vunpack.c.0.s8 %v1382
        %v1384 = vlaneseq
        %v1385 = vshrl.u32 %v1384, 7
        %v1386 = vsub.s32 %v1383, %v1385
        %v1387 = vrot.slane %v1373, %v1386
        %v1388 = vcombine.low %v1364, %v1380
        %v1389 = vcombine.high %v1364, %v1380
        %v1391 = vunpack.c.l.s4 1934713408
        %v1392 = vunpack.c.0.s8 %v1391
        %v1393 = vlaneseq
        %v1394 = vshrl.u32 %v1393, 7
        %v1395 = vsub.s32 %v1392, %v1394
        %v1396 = vrot.slane %v1388, %v1395
        %v1398 = vunpack.c.l.s4 1934713408
        %v1399 = vunpack.c.0.s8 %v1398
        %v1400 = vlaneseq
        %v1401 = vshrl.u32 %v1400, 7
        %v1402 = vsub.s32 %v1399, %v1401
        %v1403 = vrot.slane %v1389, %v1402
        %v1404 = vcombine.low %v1371, %v1387
        %v1405 = vcombine.high %v1371, %v1387
        %v1407 = vunpack.c.l.s4 1934713408
        %v1408 = vunpack.c.0.s8 %v1407
        %v1409 = vlaneseq
        %v1410 = vshrl.u32 %v1409, 7
        %v1411 = vsub.s32 %v1408, %v1410
        %v1412 = vrot.slane %v1404, %v1411
        %v1414 = vunpack.c.l.s4 1934713408
        %v1415 = vunpack.c.0.s8 %v1414
        %v1416 = vlaneseq
        %v1417 = vshrl.u32 %v1416, 7
        %v1418 = vsub.s32 %v1415, %v1417
        %v1419 = vrot.slane %v1405, %v1418
        %v1420 = vcombine.high %v1396, 0.0
        %v1421 = vcombine.high %v1403, 0.0
        %v1422 = vcombine.high %v1412, 0.0
        %v1423 = vcombine.high %v1419, 0.0
        %v1424 = vcombine.low %v881, %v1269
        %v1425 = vcombine.high %v881, %v1269
        %v1427 = vunpack.c.l.s4 1983009808
        %v1428 = vunpack.c.0.s8 %v1427
        %v1429 = vlaneseq
        %v1430 = vshrl.u32 %v1429, 7
        %v1431 = vsub.s32 %v1428, %v1430
        %v1432 = vrot.slane %v1424, %v1431
        %v1434 = vunpack.c.l.s4 1983009808
        %v1435 = vunpack.c.0.s8 %v1434
        %v1436 = vlaneseq
        %v1437 = vshrl.u32 %v1436, 7
        %v1438 = vsub.s32 %v1435, %v1437
        %v1439 = vrot.slane %v1425, %v1438
        %v1440 = vcombine.low %v1257, %v1281
        %v1441 = vcombine.high %v1257, %v1281
        %v1443 = vunpack.c.l.s4 1983009808
        %v1444 = vunpack.c.0.s8 %v1443
        %v1445 = vlaneseq
        %v1446 = vshrl.u32 %v1445, 7
        %v1447 = vsub.s32 %v1444, %v1446
        %v1448 = vrot.slane %v1440, %v1447
        %v1450 = vunpack.c.l.s4 1983009808
        %v1451 = vunpack.c.0.s8 %v1450
        %v1452 = vlaneseq
        %v1453 = vshrl.u32 %v1452, 7
        %v1454 = vsub.s32 %v1451, %v1453
        %v1455 = vrot.slane %v1441, %v1454
        %v1456 = vcombine.low %v1432, %v1448
        %v1457 = vcombine.high %v1432, %v1448
        %v1459 = vunpack.c.l.s4 1934713408
        %v1460 = vunpack.c.0.s8 %v1459
        %v1461 = vlaneseq
        %v1462 = vshrl.u32 %v1461, 7
        %v1463 = vsub.s32 %v1460, %v1462
        %v1464 = vrot.slane %v1456, %v1463
        %v1466 = vunpack.c.l.s4 1934713408
        %v1467 = vunpack.c.0.s8 %v1466
        %v1468 = vlaneseq
        %v1469 = vshrl.u32 %v1468, 7
        %v1470 = vsub.s32 %v1467, %v1469
        %v1471 = vrot.slane %v1457, %v1470
        %v1472 = vcombine.low %v1439, %v1455
        %v1473 = vcombine.high %v1439, %v1455
        %v1475 = vunpack.c.l.s4 1934713408
        %v1476 = vunpack.c.0.s8 %v1475
        %v1477 = vlaneseq
        %v1478 = vshrl.u32 %v1477, 7
        %v1479 = vsub.s32 %v1476, %v1478
        %v1480 = vrot.slane %v1472, %v1479
        %v1482 = vunpack.c.l.s4 1934713408
        %v1483 = vunpack.c.0.s8 %v1482
        %v1484 = vlaneseq
        %v1485 = vshrl.u32 %v1484, 7
        %v1486 = vsub.s32 %v1483, %v1485
        %v1487 = vrot.slane %v1473, %v1486
        %v1488 = vcombine.high %v1464, 0.0
        %v1489 = vcombine.high %v1471, 0.0
        %v1490 = vcombine.high %v1480, 0.0
        %v1491 = vcombine.high %v1487, 0.0
        %v1492 = vcombine.low %v885, %v1271
        %v1493 = vcombine.high %v885, %v1271
        %v1495 = vunpack.c.l.s4 1983009808
        %v1496 = vunpack.c.0.s8 %v1495
        %v1497 = vlaneseq
        %v1498 = vshrl.u32 %v1497, 7
        %v1499 = vsub.s32 %v1496, %v1498
        %v1500 = vrot.slane %v1492, %v1499
        %v1502 = vunpack.c.l.s4 1983009808
        %v1503 = vunpack.c.0.s8 %v1502
        %v1504 = vlaneseq
        %v1505 = vshrl.u32 %v1504, 7
        %v1506 = vsub.s32 %v1503, %v1505
        %v1507 = vrot.slane %v1493, %v1506
        %v1508 = vcombine.low %v1259, %v1283
        %v1509 = vcombine.high %v1259, %v1283
        %v1511 = vunpack.c.l.s4 1983009808
        %v1512 = vunpack.c.0.s8 %v1511
        %v1513 = vlaneseq
        %v1514 = vshrl.u32 %v1513, 7
        %v1515 = vsub.s32 %v1512, %v1514
        %v1516 = vrot.slane %v1508, %v1515
        %v1518 = vunpack.c.l.s4 1983009808
        %v1519 = vunpack.c.0.s8 %v1518
        %v1520 = vlaneseq
        %v1521 = vshrl.u32 %v1520, 7
        %v1522 = vsub.s32 %v1519, %v1521
        %v1523 = vrot.slane %v1509, %v1522
        %v1524 = vcombine.low %v1500, %v1516
        %v1525 = vcombine.high %v1500, %v1516
        %v1527 = vunpack.c.l.s4 1934713408
        %v1528 = vunpack.c.0.s8 %v1527
        %v1529 = vlaneseq
        %v1530 = vshrl.u32 %v1529, 7
        %v1531 = vsub.s32 %v1528, %v1530
        %v1532 = vrot.slane %v1524, %v1531
        %v1534 = vunpack.c.l.s4 1934713408
        %v1535 = vunpack.c.0.s8 %v1534
        %v1536 = vlaneseq
        %v1537 = vshrl.u32 %v1536, 7
        %v1538 = vsub.s32 %v1535, %v1537
        %v1539 = vrot.slane %v1525, %v1538
        %v1540 = vcombine.low %v1507, %v1523
        %v1541 = vcombine.high %v1507, %v1523
        %v1543 = vunpack.c.l.s4 1934713408
        %v1544 = vunpack.c.0.s8 %v1543
        %v1545 = vlaneseq
        %v1546 = vshrl.u32 %v1545, 7
        %v1547 = vsub.s32 %v1544, %v1546
        %v1548 = vrot.slane %v1540, %v1547
        %v1550 = vunpack.c.l.s4 1934713408
        %v1551 = vunpack.c.0.s8 %v1550
        %v1552 = vlaneseq
        %v1553 = vshrl.u32 %v1552, 7
        %v1554 = vsub.s32 %v1551, %v1553
        %v1555 = vrot.slane %v1541, %v1554
        %v1556 = vcombine.high %v1532, 0.0
        %v1557 = vcombine.high %v1539, 0.0
        %v1558 = vcombine.high %v1548, 0.0
        %v1559 = vcombine.high %v1555, 0.0
        %1564 = vrot.lane.b32.xlu0 %v922, 96
        %v1565 = vpop.permute.xlu0 %1564
        %1566 = vrot.lane.b32.xlu0 %v925, 96
        %v1567 = vpop.permute.xlu0 %1566
        %1568 = vrot.lane.b32.xlu0 %v930, 96
        %v1569 = vpop.permute.xlu0 %1568
        %1570 = vrot.lane.b32.xlu0 %v933, 96
        %v1571 = vpop.permute.xlu0 %1570
        %1576 = vrot.lane.b32.xlu0 %v922, 64
        %v1577 = vpop.permute.xlu0 %1576
        %1578 = vrot.lane.b32.xlu0 %v925, 64
        %v1579 = vpop.permute.xlu0 %1578
        %1580 = vrot.lane.b32.xlu0 %v930, 64
        %v1581 = vpop.permute.xlu0 %1580
        %1582 = vrot.lane.b32.xlu0 %v933, 64
        %v1583 = vpop.permute.xlu0 %1582
        %1588 = vrot.lane.b32.xlu0 %v922, 32
        %v1589 = vpop.permute.xlu0 %1588
        %1590 = vrot.lane.b32.xlu0 %v925, 32
        %v1591 = vpop.permute.xlu0 %1590
        %1592 = vrot.lane.b32.xlu0 %v930, 32
        %v1593 = vpop.permute.xlu0 %1592
        %1594 = vrot.lane.b32.xlu0 %v933, 32
        %v1595 = vpop.permute.xlu0 %1594
        %v1600 = vcombine.low %v922, %v1577
        %v1601 = vcombine.high %v922, %v1577
        %v1603 = vunpack.c.l.s4 1983009808
        %v1604 = vunpack.c.0.s8 %v1603
        %v1605 = vlaneseq
        %v1606 = vshrl.u32 %v1605, 7
        %v1607 = vsub.s32 %v1604, %v1606
        %v1608 = vrot.slane %v1600, %v1607
        %v1610 = vunpack.c.l.s4 1983009808
        %v1611 = vunpack.c.0.s8 %v1610
        %v1612 = vlaneseq
        %v1613 = vshrl.u32 %v1612, 7
        %v1614 = vsub.s32 %v1611, %v1613
        %v1615 = vrot.slane %v1601, %v1614
        %v1616 = vcombine.low %v1565, %v1589
        %v1617 = vcombine.high %v1565, %v1589
        %v1619 = vunpack.c.l.s4 1983009808
        %v1620 = vunpack.c.0.s8 %v1619
        %v1621 = vlaneseq
        %v1622 = vshrl.u32 %v1621, 7
        %v1623 = vsub.s32 %v1620, %v1622
        %v1624 = vrot.slane %v1616, %v1623
        %v1626 = vunpack.c.l.s4 1983009808
        %v1627 = vunpack.c.0.s8 %v1626
        %v1628 = vlaneseq
        %v1629 = vshrl.u32 %v1628, 7
        %v1630 = vsub.s32 %v1627, %v1629
        %v1631 = vrot.slane %v1617, %v1630
        %v1632 = vcombine.low %v1608, %v1624
        %v1633 = vcombine.high %v1608, %v1624
        %v1635 = vunpack.c.l.s4 1934713408
        %v1636 = vunpack.c.0.s8 %v1635
        %v1637 = vlaneseq
        %v1638 = vshrl.u32 %v1637, 7
        %v1639 = vsub.s32 %v1636, %v1638
        %v1640 = vrot.slane %v1632, %v1639
        %v1642 = vunpack.c.l.s4 1934713408
        %v1643 = vunpack.c.0.s8 %v1642
        %v1644 = vlaneseq
        %v1645 = vshrl.u32 %v1644, 7
        %v1646 = vsub.s32 %v1643, %v1645
        %v1647 = vrot.slane %v1633, %v1646
        %v1648 = vcombine.low %v1615, %v1631
        %v1649 = vcombine.high %v1615, %v1631
        %v1651 = vunpack.c.l.s4 1934713408
        %v1652 = vunpack.c.0.s8 %v1651
        %v1653 = vlaneseq
        %v1654 = vshrl.u32 %v1653, 7
        %v1655 = vsub.s32 %v1652, %v1654
        %v1656 = vrot.slane %v1648, %v1655
        %v1658 = vunpack.c.l.s4 1934713408
        %v1659 = vunpack.c.0.s8 %v1658
        %v1660 = vlaneseq
        %v1661 = vshrl.u32 %v1660, 7
        %v1662 = vsub.s32 %v1659, %v1661
        %v1663 = vrot.slane %v1649, %v1662
        %v1664 = vcombine.high %v1640, 0.0
        %v1665 = vcombine.high %v1647, 0.0
        %v1666 = vcombine.high %v1656, 0.0
        %v1667 = vcombine.high %v1663, 0.0
        %v1668 = vcombine.low %v925, %v1579
        %v1669 = vcombine.high %v925, %v1579
        %v1671 = vunpack.c.l.s4 1983009808
        %v1672 = vunpack.c.0.s8 %v1671
        %v1673 = vlaneseq
        %v1674 = vshrl.u32 %v1673, 7
        %v1675 = vsub.s32 %v1672, %v1674
        %v1676 = vrot.slane %v1668, %v1675
        %v1678 = vunpack.c.l.s4 1983009808
        %v1679 = vunpack.c.0.s8 %v1678
        %v1680 = vlaneseq
        %v1681 = vshrl.u32 %v1680, 7
        %v1682 = vsub.s32 %v1679, %v1681
        %v1683 = vrot.slane %v1669, %v1682
        %v1684 = vcombine.low %v1567, %v1591
        %v1685 = vcombine.high %v1567, %v1591
        %v1687 = vunpack.c.l.s4 1983009808
        %v1688 = vunpack.c.0.s8 %v1687
        %v1689 = vlaneseq
        %v1690 = vshrl.u32 %v1689, 7
        %v1691 = vsub.s32 %v1688, %v1690
        %v1692 = vrot.slane %v1684, %v1691
        %v1694 = vunpack.c.l.s4 1983009808
        %v1695 = vunpack.c.0.s8 %v1694
        %v1696 = vlaneseq
        %v1697 = vshrl.u32 %v1696, 7
        %v1698 = vsub.s32 %v1695, %v1697
        %v1699 = vrot.slane %v1685, %v1698
        %v1700 = vcombine.low %v1676, %v1692
        %v1701 = vcombine.high %v1676, %v1692
        %v1703 = vunpack.c.l.s4 1934713408
        %v1704 = vunpack.c.0.s8 %v1703
        %v1705 = vlaneseq
        %v1706 = vshrl.u32 %v1705, 7
        %v1707 = vsub.s32 %v1704, %v1706
        %v1708 = vrot.slane %v1700, %v1707
        %v1710 = vunpack.c.l.s4 1934713408
        %v1711 = vunpack.c.0.s8 %v1710
        %v1712 = vlaneseq
        %v1713 = vshrl.u32 %v1712, 7
        %v1714 = vsub.s32 %v1711, %v1713
        %v1715 = vrot.slane %v1701, %v1714
        %v1716 = vcombine.low %v1683, %v1699
        %v1717 = vcombine.high %v1683, %v1699
        %v1719 = vunpack.c.l.s4 1934713408
        %v1720 = vunpack.c.0.s8 %v1719
        %v1721 = vlaneseq
        %v1722 = vshrl.u32 %v1721, 7
        %v1723 = vsub.s32 %v1720, %v1722
        %v1724 = vrot.slane %v1716, %v1723
        %v1726 = vunpack.c.l.s4 1934713408
        %v1727 = vunpack.c.0.s8 %v1726
        %v1728 = vlaneseq
        %v1729 = vshrl.u32 %v1728, 7
        %v1730 = vsub.s32 %v1727, %v1729
        %v1731 = vrot.slane %v1717, %v1730
        %v1732 = vcombine.high %v1708, 0.0
        %v1733 = vcombine.high %v1715, 0.0
        %v1734 = vcombine.high %v1724, 0.0
        %v1735 = vcombine.high %v1731, 0.0
        %v1736 = vcombine.low %v930, %v1581
        %v1737 = vcombine.high %v930, %v1581
        %v1739 = vunpack.c.l.s4 1983009808
        %v1740 = vunpack.c.0.s8 %v1739
        %v1741 = vlaneseq
        %v1742 = vshrl.u32 %v1741, 7
        %v1743 = vsub.s32 %v1740, %v1742
        %v1744 = vrot.slane %v1736, %v1743
        %v1746 = vunpack.c.l.s4 1983009808
        %v1747 = vunpack.c.0.s8 %v1746
        %v1748 = vlaneseq
        %v1749 = vshrl.u32 %v1748, 7
        %v1750 = vsub.s32 %v1747, %v1749
        %v1751 = vrot.slane %v1737, %v1750
        %v1752 = vcombine.low %v1569, %v1593
        %v1753 = vcombine.high %v1569, %v1593
        %v1755 = vunpack.c.l.s4 1983009808
        %v1756 = vunpack.c.0.s8 %v1755
        %v1757 = vlaneseq
        %v1758 = vshrl.u32 %v1757, 7
        %v1759 = vsub.s32 %v1756, %v1758
        %v1760 = vrot.slane %v1752, %v1759
        %v1762 = vunpack.c.l.s4 1983009808
        %v1763 = vunpack.c.0.s8 %v1762
        %v1764 = vlaneseq
        %v1765 = vshrl.u32 %v1764, 7
        %v1766 = vsub.s32 %v1763, %v1765
        %v1767 = vrot.slane %v1753, %v1766
        %v1768 = vcombine.low %v1744, %v1760
        %v1769 = vcombine.high %v1744, %v1760
        %v1771 = vunpack.c.l.s4 1934713408
        %v1772 = vunpack.c.0.s8 %v1771
        %v1773 = vlaneseq
        %v1774 = vshrl.u32 %v1773, 7
        %v1775 = vsub.s32 %v1772, %v1774
        %v1776 = vrot.slane %v1768, %v1775
        %v1778 = vunpack.c.l.s4 1934713408
        %v1779 = vunpack.c.0.s8 %v1778
        %v1780 = vlaneseq
        %v1781 = vshrl.u32 %v1780, 7
        %v1782 = vsub.s32 %v1779, %v1781
        %v1783 = vrot.slane %v1769, %v1782
        %v1784 = vcombine.low %v1751, %v1767
        %v1785 = vcombine.high %v1751, %v1767
        %v1787 = vunpack.c.l.s4 1934713408
        %v1788 = vunpack.c.0.s8 %v1787
        %v1789 = vlaneseq
        %v1790 = vshrl.u32 %v1789, 7
        %v1791 = vsub.s32 %v1788, %v1790
        %v1792 = vrot.slane %v1784, %v1791
        %v1794 = vunpack.c.l.s4 1934713408
        %v1795 = vunpack.c.0.s8 %v1794
        %v1796 = vlaneseq
        %v1797 = vshrl.u32 %v1796, 7
        %v1798 = vsub.s32 %v1795, %v1797
        %v1799 = vrot.slane %v1785, %v1798
        %v1800 = vcombine.high %v1776, 0.0
        %v1801 = vcombine.high %v1783, 0.0
        %v1802 = vcombine.high %v1792, 0.0
        %v1803 = vcombine.high %v1799, 0.0
        %v1804 = vcombine.low %v933, %v1583
        %v1805 = vcombine.high %v933, %v1583
        %v1807 = vunpack.c.l.s4 1983009808
        %v1808 = vunpack.c.0.s8 %v1807
        %v1809 = vlaneseq
        %v1810 = vshrl.u32 %v1809, 7
        %v1811 = vsub.s32 %v1808, %v1810
        %v1812 = vrot.slane %v1804, %v1811
        %v1814 = vunpack.c.l.s4 1983009808
        %v1815 = vunpack.c.0.s8 %v1814
        %v1816 = vlaneseq
        %v1817 = vshrl.u32 %v1816, 7
        %v1818 = vsub.s32 %v1815, %v1817
        %v1819 = vrot.slane %v1805, %v1818
        %v1820 = vcombine.low %v1571, %v1595
        %v1821 = vcombine.high %v1571, %v1595
        %v1823 = vunpack.c.l.s4 1983009808
        %v1824 = vunpack.c.0.s8 %v1823
        %v1825 = vlaneseq
        %v1826 = vshrl.u32 %v1825, 7
        %v1827 = vsub.s32 %v1824, %v1826
        %v1828 = vrot.slane %v1820, %v1827
        %v1830 = vunpack.c.l.s4 1983009808
        %v1831 = vunpack.c.0.s8 %v1830
        %v1832 = vlaneseq
        %v1833 = vshrl.u32 %v1832, 7
        %v1834 = vsub.s32 %v1831, %v1833
        %v1835 = vrot.slane %v1821, %v1834
        %v1836 = vcombine.low %v1812, %v1828
        %v1837 = vcombine.high %v1812, %v1828
        %v1839 = vunpack.c.l.s4 1934713408
        %v1840 = vunpack.c.0.s8 %v1839
        %v1841 = vlaneseq
        %v1842 = vshrl.u32 %v1841, 7
        %v1843 = vsub.s32 %v1840, %v1842
        %v1844 = vrot.slane %v1836, %v1843
        %v1846 = vunpack.c.l.s4 1934713408
        %v1847 = vunpack.c.0.s8 %v1846
        %v1848 = vlaneseq
        %v1849 = vshrl.u32 %v1848, 7
        %v1850 = vsub.s32 %v1847, %v1849
        %v1851 = vrot.slane %v1837, %v1850
        %v1852 = vcombine.low %v1819, %v1835
        %v1853 = vcombine.high %v1819, %v1835
        %v1855 = vunpack.c.l.s4 1934713408
        %v1856 = vunpack.c.0.s8 %v1855
        %v1857 = vlaneseq
        %v1858 = vshrl.u32 %v1857, 7
        %v1859 = vsub.s32 %v1856, %v1858
        %v1860 = vrot.slane %v1852, %v1859
        %v1862 = vunpack.c.l.s4 1934713408
        %v1863 = vunpack.c.0.s8 %v1862
        %v1864 = vlaneseq
        %v1865 = vshrl.u32 %v1864, 7
        %v1866 = vsub.s32 %v1863, %v1865
        %v1867 = vrot.slane %v1853, %v1866
        %v1868 = vcombine.high %v1844, 0.0
        %v1869 = vcombine.high %v1851, 0.0
        %v1870 = vcombine.high %v1860, 0.0
        %v1871 = vcombine.high %v1867, 0.0
        %v1872 = vcombine.low %v1016, %v1023
        %v1874 = vunpack.c.l.s4 1983009808
        %v1875 = vunpack.c.0.s8 %v1874
        %v1876 = vlaneseq
        %v1877 = vshrl.u32 %v1876, 7
        %v1878 = vsub.s32 %v1875, %v1877
        %v1879 = vrot.slane %v1872, %v1878
        %v1880 = vcombine.low %v1040, %v1041
        %v1882 = vunpack.c.l.s4 1983009808
        %v1883 = vunpack.c.0.s8 %v1882
        %v1884 = vlaneseq
        %v1885 = vshrl.u32 %v1884, 7
        %v1886 = vsub.s32 %v1883, %v1885
        %v1887 = vrot.slane %v1880, %v1886
        %v1888 = vcombine.low %v1032, %v1039
        %v1890 = vunpack.c.l.s4 1983009808
        %v1891 = vunpack.c.0.s8 %v1890
        %v1892 = vlaneseq
        %v1893 = vshrl.u32 %v1892, 7
        %v1894 = vsub.s32 %v1891, %v1893
        %v1895 = vrot.slane %v1888, %v1894
        %v1896 = vcombine.low %v1042, %v1043
        %v1898 = vunpack.c.l.s4 1983009808
        %v1899 = vunpack.c.0.s8 %v1898
        %v1900 = vlaneseq
        %v1901 = vshrl.u32 %v1900, 7
        %v1902 = vsub.s32 %v1899, %v1901
        %v1903 = vrot.slane %v1896, %v1902
        %v1904 = vcombine.low %v1879, %v1887
        %v1905 = vcombine.high %v1879, %v1887
        %v1907 = vunpack.c.l.s4 1934713408
        %v1908 = vunpack.c.0.s8 %v1907
        %v1909 = vlaneseq
        %v1910 = vshrl.u32 %v1909, 7
        %v1911 = vsub.s32 %v1908, %v1910
        %v1912 = vrot.slane %v1904, %v1911
        %v1914 = vunpack.c.l.s4 1934713408
        %v1915 = vunpack.c.0.s8 %v1914
        %v1916 = vlaneseq
        %v1917 = vshrl.u32 %v1916, 7
        %v1918 = vsub.s32 %v1915, %v1917
        %v1919 = vrot.slane %v1905, %v1918
        %v1920 = vcombine.low %v1895, %v1903
        %v1921 = vcombine.high %v1895, %v1903
        %v1923 = vunpack.c.l.s4 1934713408
        %v1924 = vunpack.c.0.s8 %v1923
        %v1925 = vlaneseq
        %v1926 = vshrl.u32 %v1925, 7
        %v1927 = vsub.s32 %v1924, %v1926
        %v1928 = vrot.slane %v1920, %v1927
        %v1930 = vunpack.c.l.s4 1934713408
        %v1931 = vunpack.c.0.s8 %v1930
        %v1932 = vlaneseq
        %v1933 = vshrl.u32 %v1932, 7
        %v1934 = vsub.s32 %v1931, %v1933
        %v1935 = vrot.slane %v1921, %v1934
        %v1936 = vcombine.low %v1912, %v1928
        %v1937 = vcombine.high %v1912, %v1928
        %v1938 = vcombine.low %v1919, %v1935
        %v1939 = vcombine.high %v1919, %v1935
        %v1940 = vcombine.low %v1084, %v1091
        %v1942 = vunpack.c.l.s4 1983009808
        %v1943 = vunpack.c.0.s8 %v1942
        %v1944 = vlaneseq
        %v1945 = vshrl.u32 %v1944, 7
        %v1946 = vsub.s32 %v1943, %v1945
        %v1947 = vrot.slane %v1940, %v1946
        %v1948 = vcombine.low %v1108, %v1109
        %v1950 = vunpack.c.l.s4 1983009808
        %v1951 = vunpack.c.0.s8 %v1950
        %v1952 = vlaneseq
        %v1953 = vshrl.u32 %v1952, 7
        %v1954 = vsub.s32 %v1951, %v1953
        %v1955 = vrot.slane %v1948, %v1954
        %v1956 = vcombine.low %v1100, %v1107
        %v1958 = vunpack.c.l.s4 1983009808
        %v1959 = vunpack.c.0.s8 %v1958
        %v1960 = vlaneseq
        %v1961 = vshrl.u32 %v1960, 7
        %v1962 = vsub.s32 %v1959, %v1961
        %v1963 = vrot.slane %v1956, %v1962
        %v1964 = vcombine.low %v1110, %v1111
        %v1966 = vunpack.c.l.s4 1983009808
        %v1967 = vunpack.c.0.s8 %v1966
        %v1968 = vlaneseq
        %v1969 = vshrl.u32 %v1968, 7
        %v1970 = vsub.s32 %v1967, %v1969
        %v1971 = vrot.slane %v1964, %v1970
        %v1972 = vcombine.low %v1947, %v1955
        %v1973 = vcombine.high %v1947, %v1955
        %v1975 = vunpack.c.l.s4 1934713408
        %v1976 = vunpack.c.0.s8 %v1975
        %v1977 = vlaneseq
        %v1978 = vshrl.u32 %v1977, 7
        %v1979 = vsub.s32 %v1976, %v1978
        %v1980 = vrot.slane %v1972, %v1979
        %v1982 = vunpack.c.l.s4 1934713408
        %v1983 = vunpack.c.0.s8 %v1982
        %v1984 = vlaneseq
        %v1985 = vshrl.u32 %v1984, 7
        %v1986 = vsub.s32 %v1983, %v1985
        %v1987 = vrot.slane %v1973, %v1986
        %v1988 = vcombine.low %v1963, %v1971
        %v1989 = vcombine.high %v1963, %v1971
        %v1991 = vunpack.c.l.s4 1934713408
        %v1992 = vunpack.c.0.s8 %v1991
        %v1993 = vlaneseq
        %v1994 = vshrl.u32 %v1993, 7
        %v1995 = vsub.s32 %v1992, %v1994
        %v1996 = vrot.slane %v1988, %v1995
        %v1998 = vunpack.c.l.s4 1934713408
        %v1999 = vunpack.c.0.s8 %v1998
        %v2000 = vlaneseq
        %v2001 = vshrl.u32 %v2000, 7
        %v2002 = vsub.s32 %v1999, %v2001
        %v2003 = vrot.slane %v1989, %v2002
        %v2004 = vcombine.low %v1980, %v1996
        %v2005 = vcombine.high %v1980, %v1996
        %v2006 = vcombine.low %v1987, %v2003
        %v2007 = vcombine.high %v1987, %v2003
        %v2008 = vcombine.low %v1152, %v1159
        %v2010 = vunpack.c.l.s4 1983009808
        %v2011 = vunpack.c.0.s8 %v2010
        %v2012 = vlaneseq
        %v2013 = vshrl.u32 %v2012, 7
        %v2014 = vsub.s32 %v2011, %v2013
        %v2015 = vrot.slane %v2008, %v2014
        %v2016 = vcombine.low %v1176, %v1177
        %v2018 = vunpack.c.l.s4 1983009808
        %v2019 = vunpack.c.0.s8 %v2018
        %v2020 = vlaneseq
        %v2021 = vshrl.u32 %v2020, 7
        %v2022 = vsub.s32 %v2019, %v2021
        %v2023 = vrot.slane %v2016, %v2022
        %v2024 = vcombine.low %v1168, %v1175
        %v2026 = vunpack.c.l.s4 1983009808
        %v2027 = vunpack.c.0.s8 %v2026
        %v2028 = vlaneseq
        %v2029 = vshrl.u32 %v2028, 7
        %v2030 = vsub.s32 %v2027, %v2029
        %v2031 = vrot.slane %v2024, %v2030
        %v2032 = vcombine.low %v1178, %v1179
        %v2034 = vunpack.c.l.s4 1983009808
        %v2035 = vunpack.c.0.s8 %v2034
        %v2036 = vlaneseq
        %v2037 = vshrl.u32 %v2036, 7
        %v2038 = vsub.s32 %v2035, %v2037
        %v2039 = vrot.slane %v2032, %v2038
        %v2040 = vcombine.low %v2015, %v2023
        %v2041 = vcombine.high %v2015, %v2023
        %v2043 = vunpack.c.l.s4 1934713408
        %v2044 = vunpack.c.0.s8 %v2043
        %v2045 = vlaneseq
        %v2046 = vshrl.u32 %v2045, 7
        %v2047 = vsub.s32 %v2044, %v2046
        %v2048 = vrot.slane %v2040, %v2047
        %v2050 = vunpack.c.l.s4 1934713408
        %v2051 = vunpack.c.0.s8 %v2050
        %v2052 = vlaneseq
        %v2053 = vshrl.u32 %v2052, 7
        %v2054 = vsub.s32 %v2051, %v2053
        %v2055 = vrot.slane %v2041, %v2054
        %v2056 = vcombine.low %v2031, %v2039
        %v2057 = vcombine.high %v2031, %v2039
        %v2059 = vunpack.c.l.s4 1934713408
        %v2060 = vunpack.c.0.s8 %v2059
        %v2061 = vlaneseq
        %v2062 = vshrl.u32 %v2061, 7
        %v2063 = vsub.s32 %v2060, %v2062
        %v2064 = vrot.slane %v2056, %v2063
        %v2066 = vunpack.c.l.s4 1934713408
        %v2067 = vunpack.c.0.s8 %v2066
        %v2068 = vlaneseq
        %v2069 = vshrl.u32 %v2068, 7
        %v2070 = vsub.s32 %v2067, %v2069
        %v2071 = vrot.slane %v2057, %v2070
        %v2072 = vcombine.low %v2048, %v2064
        %v2073 = vcombine.high %v2048, %v2064
        %v2074 = vcombine.low %v2055, %v2071
        %v2075 = vcombine.high %v2055, %v2071
        %v2076 = vcombine.low %v1220, %v1227
        %v2078 = vunpack.c.l.s4 1983009808
        %v2079 = vunpack.c.0.s8 %v2078
        %v2080 = vlaneseq
        %v2081 = vshrl.u32 %v2080, 7
        %v2082 = vsub.s32 %v2079, %v2081
        %v2083 = vrot.slane %v2076, %v2082
        %v2084 = vcombine.low %v1244, %v1245
        %v2086 = vunpack.c.l.s4 1983009808
        %v2087 = vunpack.c.0.s8 %v2086
        %v2088 = vlaneseq
        %v2089 = vshrl.u32 %v2088, 7
        %v2090 = vsub.s32 %v2087, %v2089
        %v2091 = vrot.slane %v2084, %v2090
        %v2092 = vcombine.low %v1236, %v1243
        %v2094 = vunpack.c.l.s4 1983009808
        %v2095 = vunpack.c.0.s8 %v2094
        %v2096 = vlaneseq
        %v2097 = vshrl.u32 %v2096, 7
        %v2098 = vsub.s32 %v2095, %v2097
        %v2099 = vrot.slane %v2092, %v2098
        %v2100 = vcombine.low %v1246, %v1247
        %v2102 = vunpack.c.l.s4 1983009808
        %v2103 = vunpack.c.0.s8 %v2102
        %v2104 = vlaneseq
        %v2105 = vshrl.u32 %v2104, 7
        %v2106 = vsub.s32 %v2103, %v2105
        %v2107 = vrot.slane %v2100, %v2106
        %v2108 = vcombine.low %v2083, %v2091
        %v2109 = vcombine.high %v2083, %v2091
        %v2111 = vunpack.c.l.s4 1934713408
        %v2112 = vunpack.c.0.s8 %v2111
        %v2113 = vlaneseq
        %v2114 = vshrl.u32 %v2113, 7
        %v2115 = vsub.s32 %v2112, %v2114
        %v2116 = vrot.slane %v2108, %v2115
        %v2118 = vunpack.c.l.s4 1934713408
        %v2119 = vunpack.c.0.s8 %v2118
        %v2120 = vlaneseq
        %v2121 = vshrl.u32 %v2120, 7
        %v2122 = vsub.s32 %v2119, %v2121
        %v2123 = vrot.slane %v2109, %v2122
        %v2124 = vcombine.low %v2099, %v2107
        %v2125 = vcombine.high %v2099, %v2107
        %v2127 = vunpack.c.l.s4 1934713408
        %v2128 = vunpack.c.0.s8 %v2127
        %v2129 = vlaneseq
        %v2130 = vshrl.u32 %v2129, 7
        %v2131 = vsub.s32 %v2128, %v2130
        %v2132 = vrot.slane %v2124, %v2131
        %v2134 = vunpack.c.l.s4 1934713408
        %v2135 = vunpack.c.0.s8 %v2134
        %v2136 = vlaneseq
        %v2137 = vshrl.u32 %v2136, 7
        %v2138 = vsub.s32 %v2135, %v2137
        %v2139 = vrot.slane %v2125, %v2138
        %v2140 = vcombine.low %v2116, %v2132
        %v2141 = vcombine.high %v2116, %v2132
        %v2142 = vcombine.low %v2123, %v2139
        %v2143 = vcombine.high %v2123, %v2139
        %v2144 = vpack.c.bf16 %v2004, %v1936
        %v2145 = vpack.c.bf16 %v2140, %v2072
        %v2146 = vpack.c.bf16 %v2005, %v1937
        %v2147 = vpack.c.bf16 %v2141, %v2073
        %v2148 = vpack.c.bf16 %v2006, %v1938
        %v2149 = vpack.c.bf16 %v2142, %v2074
        %v2150 = vpack.c.bf16 %v2007, %v1939
        %v2151 = vpack.c.bf16 %v2143, %v2075
        %v2152 = vcombine.low %v1328, %v1335
        %v2154 = vunpack.c.l.s4 1983009808
        %v2155 = vunpack.c.0.s8 %v2154
        %v2156 = vlaneseq
        %v2157 = vshrl.u32 %v2156, 7
        %v2158 = vsub.s32 %v2155, %v2157
        %v2159 = vrot.slane %v2152, %v2158
        %v2160 = vcombine.low %v1352, %v1353
        %v2162 = vunpack.c.l.s4 1983009808
        %v2163 = vunpack.c.0.s8 %v2162
        %v2164 = vlaneseq
        %v2165 = vshrl.u32 %v2164, 7
        %v2166 = vsub.s32 %v2163, %v2165
        %v2167 = vrot.slane %v2160, %v2166
        %v2168 = vcombine.low %v1344, %v1351
        %v2170 = vunpack.c.l.s4 1983009808
        %v2171 = vunpack.c.0.s8 %v2170
        %v2172 = vlaneseq
        %v2173 = vshrl.u32 %v2172, 7
        %v2174 = vsub.s32 %v2171, %v2173
        %v2175 = vrot.slane %v2168, %v2174
        %v2176 = vcombine.low %v1354, %v1355
        %v2178 = vunpack.c.l.s4 1983009808
        %v2179 = vunpack.c.0.s8 %v2178
        %v2180 = vlaneseq
        %v2181 = vshrl.u32 %v2180, 7
        %v2182 = vsub.s32 %v2179, %v2181
        %v2183 = vrot.slane %v2176, %v2182
        %v2184 = vcombine.low %v2159, %v2167
        %v2185 = vcombine.high %v2159, %v2167
        %v2187 = vunpack.c.l.s4 1934713408
        %v2188 = vunpack.c.0.s8 %v2187
        %v2189 = vlaneseq
        %v2190 = vshrl.u32 %v2189, 7
        %v2191 = vsub.s32 %v2188, %v2190
        %v2192 = vrot.slane %v2184, %v2191
        %v2194 = vunpack.c.l.s4 1934713408
        %v2195 = vunpack.c.0.s8 %v2194
        %v2196 = vlaneseq
        %v2197 = vshrl.u32 %v2196, 7
        %v2198 = vsub.s32 %v2195, %v2197
        %v2199 = vrot.slane %v2185, %v2198
        %v2200 = vcombine.low %v2175, %v2183
        %v2201 = vcombine.high %v2175, %v2183
        %v2203 = vunpack.c.l.s4 1934713408
        %v2204 = vunpack.c.0.s8 %v2203
        %v2205 = vlaneseq
        %v2206 = vshrl.u32 %v2205, 7
        %v2207 = vsub.s32 %v2204, %v2206
        %v2208 = vrot.slane %v2200, %v2207
        %v2210 = vunpack.c.l.s4 1934713408
        %v2211 = vunpack.c.0.s8 %v2210
        %v2212 = vlaneseq
        %v2213 = vshrl.u32 %v2212, 7
        %v2214 = vsub.s32 %v2211, %v2213
        %v2215 = vrot.slane %v2201, %v2214
        %v2216 = vcombine.low %v2192, %v2208
        %v2217 = vcombine.high %v2192, %v2208
        %v2218 = vcombine.low %v2199, %v2215
        %v2219 = vcombine.high %v2199, %v2215
        %v2220 = vcombine.low %v1396, %v1403
        %v2222 = vunpack.c.l.s4 1983009808
        %v2223 = vunpack.c.0.s8 %v2222
        %v2224 = vlaneseq
        %v2225 = vshrl.u32 %v2224, 7
        %v2226 = vsub.s32 %v2223, %v2225
        %v2227 = vrot.slane %v2220, %v2226
        %v2228 = vcombine.low %v1420, %v1421
        %v2230 = vunpack.c.l.s4 1983009808
        %v2231 = vunpack.c.0.s8 %v2230
        %v2232 = vlaneseq
        %v2233 = vshrl.u32 %v2232, 7
        %v2234 = vsub.s32 %v2231, %v2233
        %v2235 = vrot.slane %v2228, %v2234
        %v2236 = vcombine.low %v1412, %v1419
        %v2238 = vunpack.c.l.s4 1983009808
        %v2239 = vunpack.c.0.s8 %v2238
        %v2240 = vlaneseq
        %v2241 = vshrl.u32 %v2240, 7
        %v2242 = vsub.s32 %v2239, %v2241
        %v2243 = vrot.slane %v2236, %v2242
        %v2244 = vcombine.low %v1422, %v1423
        %v2246 = vunpack.c.l.s4 1983009808
        %v2247 = vunpack.c.0.s8 %v2246
        %v2248 = vlaneseq
        %v2249 = vshrl.u32 %v2248, 7
        %v2250 = vsub.s32 %v2247, %v2249
        %v2251 = vrot.slane %v2244, %v2250
        %v2252 = vcombine.low %v2227, %v2235
        %v2253 = vcombine.high %v2227, %v2235
        %v2255 = vunpack.c.l.s4 1934713408
        %v2256 = vunpack.c.0.s8 %v2255
        %v2257 = vlaneseq
        %v2258 = vshrl.u32 %v2257, 7
        %v2259 = vsub.s32 %v2256, %v2258
        %v2260 = vrot.slane %v2252, %v2259
        %v2262 = vunpack.c.l.s4 1934713408
        %v2263 = vunpack.c.0.s8 %v2262
        %v2264 = vlaneseq
        %v2265 = vshrl.u32 %v2264, 7
        %v2266 = vsub.s32 %v2263, %v2265
        %v2267 = vrot.slane %v2253, %v2266
        %v2268 = vcombine.low %v2243, %v2251
        %v2269 = vcombine.high %v2243, %v2251
        %v2271 = vunpack.c.l.s4 1934713408
        %v2272 = vunpack.c.0.s8 %v2271
        %v2273 = vlaneseq
        %v2274 = vshrl.u32 %v2273, 7
        %v2275 = vsub.s32 %v2272, %v2274
        %v2276 = vrot.slane %v2268, %v2275
        %v2278 = vunpack.c.l.s4 1934713408
        %v2279 = vunpack.c.0.s8 %v2278
        %v2280 = vlaneseq
        %v2281 = vshrl.u32 %v2280, 7
        %v2282 = vsub.s32 %v2279, %v2281
        %v2283 = vrot.slane %v2269, %v2282
        %v2284 = vcombine.low %v2260, %v2276
        %v2285 = vcombine.high %v2260, %v2276
        %v2286 = vcombine.low %v2267, %v2283
        %v2287 = vcombine.high %v2267, %v2283
        %v2288 = vcombine.low %v1464, %v1471
        %v2290 = vunpack.c.l.s4 1983009808
        %v2291 = vunpack.c.0.s8 %v2290
        %v2292 = vlaneseq
        %v2293 = vshrl.u32 %v2292, 7
        %v2294 = vsub.s32 %v2291, %v2293
        %v2295 = vrot.slane %v2288, %v2294
        %v2296 = vcombine.low %v1488, %v1489
        %v2298 = vunpack.c.l.s4 1983009808
        %v2299 = vunpack.c.0.s8 %v2298
        %v2300 = vlaneseq
        %v2301 = vshrl.u32 %v2300, 7
        %v2302 = vsub.s32 %v2299, %v2301
        %v2303 = vrot.slane %v2296, %v2302
        %v2304 = vcombine.low %v1480, %v1487
        %v2306 = vunpack.c.l.s4 1983009808
        %v2307 = vunpack.c.0.s8 %v2306
        %v2308 = vlaneseq
        %v2309 = vshrl.u32 %v2308, 7
        %v2310 = vsub.s32 %v2307, %v2309
        %v2311 = vrot.slane %v2304, %v2310
        %v2312 = vcombine.low %v1490, %v1491
        %v2314 = vunpack.c.l.s4 1983009808
        %v2315 = vunpack.c.0.s8 %v2314
        %v2316 = vlaneseq
        %v2317 = vshrl.u32 %v2316, 7
        %v2318 = vsub.s32 %v2315, %v2317
        %v2319 = vrot.slane %v2312, %v2318
        %v2320 = vcombine.low %v2295, %v2303
        %v2321 = vcombine.high %v2295, %v2303
        %v2323 = vunpack.c.l.s4 1934713408
        %v2324 = vunpack.c.0.s8 %v2323
        %v2325 = vlaneseq
        %v2326 = vshrl.u32 %v2325, 7
        %v2327 = vsub.s32 %v2324, %v2326
        %v2328 = vrot.slane %v2320, %v2327
        %v2330 = vunpack.c.l.s4 1934713408
        %v2331 = vunpack.c.0.s8 %v2330
        %v2332 = vlaneseq
        %v2333 = vshrl.u32 %v2332, 7
        %v2334 = vsub.s32 %v2331, %v2333
        %v2335 = vrot.slane %v2321, %v2334
        %v2336 = vcombine.low %v2311, %v2319
        %v2337 = vcombine.high %v2311, %v2319
        %v2339 = vunpack.c.l.s4 1934713408
        %v2340 = vunpack.c.0.s8 %v2339
        %v2341 = vlaneseq
        %v2342 = vshrl.u32 %v2341, 7
        %v2343 = vsub.s32 %v2340, %v2342
        %v2344 = vrot.slane %v2336, %v2343
        %v2346 = vunpack.c.l.s4 1934713408
        %v2347 = vunpack.c.0.s8 %v2346
        %v2348 = vlaneseq
        %v2349 = vshrl.u32 %v2348, 7
        %v2350 = vsub.s32 %v2347, %v2349
        %v2351 = vrot.slane %v2337, %v2350
        %v2352 = vcombine.low %v2328, %v2344
        %v2353 = vcombine.high %v2328, %v2344
        %v2354 = vcombine.low %v2335, %v2351
        %v2355 = vcombine.high %v2335, %v2351
        %v2356 = vcombine.low %v1532, %v1539
        %v2358 = vunpack.c.l.s4 1983009808
        %v2359 = vunpack.c.0.s8 %v2358
        %v2360 = vlaneseq
        %v2361 = vshrl.u32 %v2360, 7
        %v2362 = vsub.s32 %v2359, %v2361
        %v2363 = vrot.slane %v2356, %v2362
        %v2364 = vcombine.low %v1556, %v1557
        %v2366 = vunpack.c.l.s4 1983009808
        %v2367 = vunpack.c.0.s8 %v2366
        %v2368 = vlaneseq
        %v2369 = vshrl.u32 %v2368, 7
        %v2370 = vsub.s32 %v2367, %v2369
        %v2371 = vrot.slane %v2364, %v2370
        %v2372 = vcombine.low %v1548, %v1555
        %v2374 = vunpack.c.l.s4 1983009808
        %v2375 = vunpack.c.0.s8 %v2374
        %v2376 = vlaneseq
        %v2377 = vshrl.u32 %v2376, 7
        %v2378 = vsub.s32 %v2375, %v2377
        %v2379 = vrot.slane %v2372, %v2378
        %v2380 = vcombine.low %v1558, %v1559
        %v2382 = vunpack.c.l.s4 1983009808
        %v2383 = vunpack.c.0.s8 %v2382
        %v2384 = vlaneseq
        %v2385 = vshrl.u32 %v2384, 7
        %v2386 = vsub.s32 %v2383, %v2385
        %v2387 = vrot.slane %v2380, %v2386
        %v2388 = vcombine.low %v2363, %v2371
        %v2389 = vcombine.high %v2363, %v2371
        %v2391 = vunpack.c.l.s4 1934713408
        %v2392 = vunpack.c.0.s8 %v2391
        %v2393 = vlaneseq
        %v2394 = vshrl.u32 %v2393, 7
        %v2395 = vsub.s32 %v2392, %v2394
        %v2396 = vrot.slane %v2388, %v2395
        %v2398 = vunpack.c.l.s4 1934713408
        %v2399 = vunpack.c.0.s8 %v2398
        %v2400 = vlaneseq
        %v2401 = vshrl.u32 %v2400, 7
        %v2402 = vsub.s32 %v2399, %v2401
        %v2403 = vrot.slane %v2389, %v2402
        %v2404 = vcombine.low %v2379, %v2387
        %v2405 = vcombine.high %v2379, %v2387
        %v2407 = vunpack.c.l.s4 1934713408
        %v2408 = vunpack.c.0.s8 %v2407
        %v2409 = vlaneseq
        %v2410 = vshrl.u32 %v2409, 7
        %v2411 = vsub.s32 %v2408, %v2410
        %v2412 = vrot.slane %v2404, %v2411
        %v2414 = vunpack.c.l.s4 1934713408
        %v2415 = vunpack.c.0.s8 %v2414
        %v2416 = vlaneseq
        %v2417 = vshrl.u32 %v2416, 7
        %v2418 = vsub.s32 %v2415, %v2417
        %v2419 = vrot.slane %v2405, %v2418
        %v2420 = vcombine.low %v2396, %v2412
        %v2421 = vcombine.high %v2396, %v2412
        %v2422 = vcombine.low %v2403, %v2419
        %v2423 = vcombine.high %v2403, %v2419
        %v2424 = vpack.c.bf16 %v2284, %v2216
        %v2425 = vpack.c.bf16 %v2420, %v2352
        %v2426 = vpack.c.bf16 %v2285, %v2217
        %v2427 = vpack.c.bf16 %v2421, %v2353
        %v2428 = vpack.c.bf16 %v2286, %v2218
        %v2429 = vpack.c.bf16 %v2422, %v2354
        %v2430 = vpack.c.bf16 %v2287, %v2219
        %v2431 = vpack.c.bf16 %v2423, %v2355
        %v2432 = vcombine.low %v1640, %v1647
        %v2434 = vunpack.c.l.s4 1983009808
        %v2435 = vunpack.c.0.s8 %v2434
        %v2436 = vlaneseq
        %v2437 = vshrl.u32 %v2436, 7
        %v2438 = vsub.s32 %v2435, %v2437
        %v2439 = vrot.slane %v2432, %v2438
        %v2440 = vcombine.low %v1664, %v1665
        %v2442 = vunpack.c.l.s4 1983009808
        %v2443 = vunpack.c.0.s8 %v2442
        %v2444 = vlaneseq
        %v2445 = vshrl.u32 %v2444, 7
        %v2446 = vsub.s32 %v2443, %v2445
        %v2447 = vrot.slane %v2440, %v2446
        %v2448 = vcombine.low %v1656, %v1663
        %v2450 = vunpack.c.l.s4 1983009808
        %v2451 = vunpack.c.0.s8 %v2450
        %v2452 = vlaneseq
        %v2453 = vshrl.u32 %v2452, 7
        %v2454 = vsub.s32 %v2451, %v2453
        %v2455 = vrot.slane %v2448, %v2454
        %v2456 = vcombine.low %v1666, %v1667
        %v2458 = vunpack.c.l.s4 1983009808
        %v2459 = vunpack.c.0.s8 %v2458
        %v2460 = vlaneseq
        %v2461 = vshrl.u32 %v2460, 7
        %v2462 = vsub.s32 %v2459, %v2461
        %v2463 = vrot.slane %v2456, %v2462
        %v2464 = vcombine.low %v2439, %v2447
        %v2465 = vcombine.high %v2439, %v2447
        %v2467 = vunpack.c.l.s4 1934713408
        %v2468 = vunpack.c.0.s8 %v2467
        %v2469 = vlaneseq
        %v2470 = vshrl.u32 %v2469, 7
        %v2471 = vsub.s32 %v2468, %v2470
        %v2472 = vrot.slane %v2464, %v2471
        %v2474 = vunpack.c.l.s4 1934713408
        %v2475 = vunpack.c.0.s8 %v2474
        %v2476 = vlaneseq
        %v2477 = vshrl.u32 %v2476, 7
        %v2478 = vsub.s32 %v2475, %v2477
        %v2479 = vrot.slane %v2465, %v2478
        %v2480 = vcombine.low %v2455, %v2463
        %v2481 = vcombine.high %v2455, %v2463
        %v2483 = vunpack.c.l.s4 1934713408
        %v2484 = vunpack.c.0.s8 %v2483
        %v2485 = vlaneseq
        %v2486 = vshrl.u32 %v2485, 7
        %v2487 = vsub.s32 %v2484, %v2486
        %v2488 = vrot.slane %v2480, %v2487
        %v2490 = vunpack.c.l.s4 1934713408
        %v2491 = vunpack.c.0.s8 %v2490
        %v2492 = vlaneseq
        %v2493 = vshrl.u32 %v2492, 7
        %v2494 = vsub.s32 %v2491, %v2493
        %v2495 = vrot.slane %v2481, %v2494
        %v2496 = vcombine.low %v2472, %v2488
        %v2497 = vcombine.high %v2472, %v2488
        %v2498 = vcombine.low %v2479, %v2495
        %v2499 = vcombine.high %v2479, %v2495
        %v2500 = vcombine.low %v1708, %v1715
        %v2502 = vunpack.c.l.s4 1983009808
        %v2503 = vunpack.c.0.s8 %v2502
        %v2504 = vlaneseq
        %v2505 = vshrl.u32 %v2504, 7
        %v2506 = vsub.s32 %v2503, %v2505
        %v2507 = vrot.slane %v2500, %v2506
        %v2508 = vcombine.low %v1732, %v1733
        %v2510 = vunpack.c.l.s4 1983009808
        %v2511 = vunpack.c.0.s8 %v2510
        %v2512 = vlaneseq
        %v2513 = vshrl.u32 %v2512, 7
        %v2514 = vsub.s32 %v2511, %v2513
        %v2515 = vrot.slane %v2508, %v2514
        %v2516 = vcombine.low %v1724, %v1731
        %v2518 = vunpack.c.l.s4 1983009808
        %v2519 = vunpack.c.0.s8 %v2518
        %v2520 = vlaneseq
        %v2521 = vshrl.u32 %v2520, 7
        %v2522 = vsub.s32 %v2519, %v2521
        %v2523 = vrot.slane %v2516, %v2522
        %v2524 = vcombine.low %v1734, %v1735
        %v2526 = vunpack.c.l.s4 1983009808
        %v2527 = vunpack.c.0.s8 %v2526
        %v2528 = vlaneseq
        %v2529 = vshrl.u32 %v2528, 7
        %v2530 = vsub.s32 %v2527, %v2529
        %v2531 = vrot.slane %v2524, %v2530
        %v2532 = vcombine.low %v2507, %v2515
        %v2533 = vcombine.high %v2507, %v2515
        %v2535 = vunpack.c.l.s4 1934713408
        %v2536 = vunpack.c.0.s8 %v2535
        %v2537 = vlaneseq
        %v2538 = vshrl.u32 %v2537, 7
        %v2539 = vsub.s32 %v2536, %v2538
        %v2540 = vrot.slane %v2532, %v2539
        %v2542 = vunpack.c.l.s4 1934713408
        %v2543 = vunpack.c.0.s8 %v2542
        %v2544 = vlaneseq
        %v2545 = vshrl.u32 %v2544, 7
        %v2546 = vsub.s32 %v2543, %v2545
        %v2547 = vrot.slane %v2533, %v2546
        %v2548 = vcombine.low %v2523, %v2531
        %v2549 = vcombine.high %v2523, %v2531
        %v2551 = vunpack.c.l.s4 1934713408
        %v2552 = vunpack.c.0.s8 %v2551
        %v2553 = vlaneseq
        %v2554 = vshrl.u32 %v2553, 7
        %v2555 = vsub.s32 %v2552, %v2554
        %v2556 = vrot.slane %v2548, %v2555
        %v2558 = vunpack.c.l.s4 1934713408
        %v2559 = vunpack.c.0.s8 %v2558
        %v2560 = vlaneseq
        %v2561 = vshrl.u32 %v2560, 7
        %v2562 = vsub.s32 %v2559, %v2561
        %v2563 = vrot.slane %v2549, %v2562
        %v2564 = vcombine.low %v2540, %v2556
        %v2565 = vcombine.high %v2540, %v2556
        %v2566 = vcombine.low %v2547, %v2563
        %v2567 = vcombine.high %v2547, %v2563
        %v2568 = vcombine.low %v1776, %v1783
        %v2570 = vunpack.c.l.s4 1983009808
        %v2571 = vunpack.c.0.s8 %v2570
        %v2572 = vlaneseq
        %v2573 = vshrl.u32 %v2572, 7
        %v2574 = vsub.s32 %v2571, %v2573
        %v2575 = vrot.slane %v2568, %v2574
        %v2576 = vcombine.low %v1800, %v1801
        %v2578 = vunpack.c.l.s4 1983009808
        %v2579 = vunpack.c.0.s8 %v2578
        %v2580 = vlaneseq
        %v2581 = vshrl.u32 %v2580, 7
        %v2582 = vsub.s32 %v2579, %v2581
        %v2583 = vrot.slane %v2576, %v2582
        %v2584 = vcombine.low %v1792, %v1799
        %v2586 = vunpack.c.l.s4 1983009808
        %v2587 = vunpack.c.0.s8 %v2586
        %v2588 = vlaneseq
        %v2589 = vshrl.u32 %v2588, 7
        %v2590 = vsub.s32 %v2587, %v2589
        %v2591 = vrot.slane %v2584, %v2590
        %v2592 = vcombine.low %v1802, %v1803
        %v2594 = vunpack.c.l.s4 1983009808
        %v2595 = vunpack.c.0.s8 %v2594
        %v2596 = vlaneseq
        %v2597 = vshrl.u32 %v2596, 7
        %v2598 = vsub.s32 %v2595, %v2597
        %v2599 = vrot.slane %v2592, %v2598
        %v2600 = vcombine.low %v2575, %v2583
        %v2601 = vcombine.high %v2575, %v2583
        %v2603 = vunpack.c.l.s4 1934713408
        %v2604 = vunpack.c.0.s8 %v2603
        %v2605 = vlaneseq
        %v2606 = vshrl.u32 %v2605, 7
        %v2607 = vsub.s32 %v2604, %v2606
        %v2608 = vrot.slane %v2600, %v2607
        %v2610 = vunpack.c.l.s4 1934713408
        %v2611 = vunpack.c.0.s8 %v2610
        %v2612 = vlaneseq
        %v2613 = vshrl.u32 %v2612, 7
        %v2614 = vsub.s32 %v2611, %v2613
        %v2615 = vrot.slane %v2601, %v2614
        %v2616 = vcombine.low %v2591, %v2599
        %v2617 = vcombine.high %v2591, %v2599
        %v2619 = vunpack.c.l.s4 1934713408
        %v2620 = vunpack.c.0.s8 %v2619
        %v2621 = vlaneseq
        %v2622 = vshrl.u32 %v2621, 7
        %v2623 = vsub.s32 %v2620, %v2622
        %v2624 = vrot.slane %v2616, %v2623
        %v2626 = vunpack.c.l.s4 1934713408
        %v2627 = vunpack.c.0.s8 %v2626
        %v2628 = vlaneseq
        %v2629 = vshrl.u32 %v2628, 7
        %v2630 = vsub.s32 %v2627, %v2629
        %v2631 = vrot.slane %v2617, %v2630
        %v2632 = vcombine.low %v2608, %v2624
        %v2633 = vcombine.high %v2608, %v2624
        %v2634 = vcombine.low %v2615, %v2631
        %v2635 = vcombine.high %v2615, %v2631
        %v2636 = vcombine.low %v1844, %v1851
        %v2638 = vunpack.c.l.s4 1983009808
        %v2639 = vunpack.c.0.s8 %v2638
        %v2640 = vlaneseq
        %v2641 = vshrl.u32 %v2640, 7
        %v2642 = vsub.s32 %v2639, %v2641
        %v2643 = vrot.slane %v2636, %v2642
        %v2644 = vcombine.low %v1868, %v1869
        %v2646 = vunpack.c.l.s4 1983009808
        %v2647 = vunpack.c.0.s8 %v2646
        %v2648 = vlaneseq
        %v2649 = vshrl.u32 %v2648, 7
        %v2650 = vsub.s32 %v2647, %v2649
        %v2651 = vrot.slane %v2644, %v2650
        %v2652 = vcombine.low %v1860, %v1867
        %v2654 = vunpack.c.l.s4 1983009808
        %v2655 = vunpack.c.0.s8 %v2654
        %v2656 = vlaneseq
        %v2657 = vshrl.u32 %v2656, 7
        %v2658 = vsub.s32 %v2655, %v2657
        %v2659 = vrot.slane %v2652, %v2658
        %v2660 = vcombine.low %v1870, %v1871
        %v2662 = vunpack.c.l.s4 1983009808
        %v2663 = vunpack.c.0.s8 %v2662
        %v2664 = vlaneseq
        %v2665 = vshrl.u32 %v2664, 7
        %v2666 = vsub.s32 %v2663, %v2665
        %v2667 = vrot.slane %v2660, %v2666
        %v2668 = vcombine.low %v2643, %v2651
        %v2669 = vcombine.high %v2643, %v2651
        %v2671 = vunpack.c.l.s4 1934713408
        %v2672 = vunpack.c.0.s8 %v2671
        %v2673 = vlaneseq
        %v2674 = vshrl.u32 %v2673, 7
        %v2675 = vsub.s32 %v2672, %v2674
        %v2676 = vrot.slane %v2668, %v2675
        %v2678 = vunpack.c.l.s4 1934713408
        %v2679 = vunpack.c.0.s8 %v2678
        %v2680 = vlaneseq
        %v2681 = vshrl.u32 %v2680, 7
        %v2682 = vsub.s32 %v2679, %v2681
        %v2683 = vrot.slane %v2669, %v2682
        %v2684 = vcombine.low %v2659, %v2667
        %v2685 = vcombine.high %v2659, %v2667
        %v2687 = vunpack.c.l.s4 1934713408
        %v2688 = vunpack.c.0.s8 %v2687
        %v2689 = vlaneseq
        %v2690 = vshrl.u32 %v2689, 7
        %v2691 = vsub.s32 %v2688, %v2690
        %v2692 = vrot.slane %v2684, %v2691
        %v2694 = vunpack.c.l.s4 1934713408
        %v2695 = vunpack.c.0.s8 %v2694
        %v2696 = vlaneseq
        %v2697 = vshrl.u32 %v2696, 7
        %v2698 = vsub.s32 %v2695, %v2697
        %v2699 = vrot.slane %v2685, %v2698
        %v2700 = vcombine.low %v2676, %v2692
        %v2701 = vcombine.high %v2676, %v2692
        %v2702 = vcombine.low %v2683, %v2699
        %v2703 = vcombine.high %v2683, %v2699
        %v2704 = vpack.c.bf16 %v2564, %v2496
        %v2705 = vpack.c.bf16 %v2700, %v2632
        %v2706 = vpack.c.bf16 %v2565, %v2497
        %v2707 = vpack.c.bf16 %v2701, %v2633
        %v2708 = vpack.c.bf16 %v2566, %v2498
        %v2709 = vpack.c.bf16 %v2702, %v2634
        %v2710 = vpack.c.bf16 %v2567, %v2499
        %v2711 = vpack.c.bf16 %v2703, %v2635
        %vm2712 = vcmask 261120
        %v2714 = vsel %vm2712, %v2144, 0
        %v2717 = vsel %vm2712, %v2145, 0
        %v2720 = vsel %vm2712, %v2424, 0
        %v2723 = vsel %vm2712, %v2425, 0
        %2725 = vmatprep.subr.bf16.mxu0 0
        %2726 = vmatpush1.bf16.xpose.msra.mxu0 0
        %2727 = vmatprep.subr.bf16.mxu0 0
        %2728 = vmatpush1.bf16.xpose.msra.mxu0 0
        %2729 = vmatprep.subr.bf16.mxu0 0
        %2730 = vmatpush1.bf16.xpose.msra.mxu0 0
        %2731 = vmatprep.subr.bf16.mxu0 0
        %2732 = vmatpush1.bf16.xpose.msra.mxu0 0
        %2733 = vmatprep.subr.bf16.mxu0 0
        %2734 = vmatpush1.bf16.xpose.msra.mxu0 0
        %2735 = vmatprep.subr.bf16.mxu0 0
        %2736 = vmatpush1.bf16.xpose.msra.mxu0 0
        %2737 = vmatprep.subr.bf16.mxu0 0
        %2738 = vmatpush1.bf16.xpose.msra.mxu0 %v2723
        %2739 = vmatprep.subr.bf16.mxu0 0
        %2740 = vmatpush1.bf16.xpose.msra.mxu0 %v2720
        %2741 = vmatprep.subr.bf16.mxu0 0
        %2742 = vmatpush2.bf16.xpose.msra.mxu0 0
        %2743 = vmatprep.subr.bf16.mxu0 0
        %2744 = vmatpush2.bf16.xpose.msra.mxu0 0
        %2745 = vmatprep.subr.bf16.mxu0 0
        %2746 = vmatpush2.bf16.xpose.msra.mxu0 0
        %2747 = vmatprep.subr.bf16.mxu0 0
        %2748 = vmatpush2.bf16.xpose.msra.mxu0 0
        %2749 = vmatprep.subr.bf16.mxu0 0
        %2750 = vmatpush2.bf16.xpose.msra.mxu0 0
        %2751 = vmatprep.subr.bf16.mxu0 0
        %2752 = vmatpush2.bf16.xpose.msra.mxu0 0
        %2753 = vmatprep.subr.bf16.mxu0 0
        %2754 = vmatpush2.bf16.xpose.msra.mxu0 0
        %2755 = vmatprep.subr.bf16.mxu0 0
        %2756 = vmatpush2.bf16.xpose.msra.mxu0 0
        %2757 = vmatprep.mubr.bf16.mxu0 0
        %2758 = vmatmul.mubr.bf16.gmra.mxu0 %v2714
        %v2759 = vpop.f32.mrf.mxu0
        %v2760 = vadd.f32 0.0, %v2759
        %v2761 = vpop.f32.mrf.mxu0
        %v2762 = vpop.f32.mrf.mxu0
        %v2763 = vadd.f32 0.0, %v2762
        %v2764 = vpop.f32.mrf.mxu0
        %2765 = vmatprep.mubr.bf16.mxu0 0
        %2766 = vmatmul.mubr.bf16.gmra.mxu0 %v2717
        %v2767 = vpop.f32.mrf.mxu0
        %v2768 = vadd.f32 0.0, %v2767
        %v2769 = vpop.f32.mrf.mxu0
        %v2770 = vpop.f32.mrf.mxu0
        %v2771 = vadd.f32 0.0, %v2770
        %v2772 = vpop.f32.mrf.mxu0
        %2773 = vdwg.mxu0
        %v2775 = vsel %vm2712, %v2146, 0
        %v2778 = vsel %vm2712, %v2147, 0
        %v2781 = vsel %vm2712, %v2426, 0
        %v2784 = vsel %vm2712, %v2427, 0
        %2786 = vmatprep.subr.bf16.mxu0 0
        %2787 = vmatpush1.bf16.xpose.msra.mxu0 0
        %2788 = vmatprep.subr.bf16.mxu0 0
        %2789 = vmatpush1.bf16.xpose.msra.mxu0 0
        %2790 = vmatprep.subr.bf16.mxu0 0
        %2791 = vmatpush1.bf16.xpose.msra.mxu0 0
        %2792 = vmatprep.subr.bf16.mxu0 0
        %2793 = vmatpush1.bf16.xpose.msra.mxu0 0
        %2794 = vmatprep.subr.bf16.mxu0 0
        %2795 = vmatpush1.bf16.xpose.msra.mxu0 0
        %2796 = vmatprep.subr.bf16.mxu0 0
        %2797 = vmatpush1.bf16.xpose.msra.mxu0 0
        %2798 = vmatprep.subr.bf16.mxu0 0
        %2799 = vmatpush1.bf16.xpose.msra.mxu0 %v2784
        %2800 = vmatprep.subr.bf16.mxu0 0
        %2801 = vmatpush1.bf16.xpose.msra.mxu0 %v2781
        %2802 = vmatprep.subr.bf16.mxu0 0
        %2803 = vmatpush2.bf16.xpose.msra.mxu0 0
        %2804 = vmatprep.subr.bf16.mxu0 0
        %2805 = vmatpush2.bf16.xpose.msra.mxu0 0
        %2806 = vmatprep.subr.bf16.mxu0 0
        %2807 = vmatpush2.bf16.xpose.msra.mxu0 0
        %2808 = vmatprep.subr.bf16.mxu0 0
        %2809 = vmatpush2.bf16.xpose.msra.mxu0 0
        %2810 = vmatprep.subr.bf16.mxu0 0
        %2811 = vmatpush2.bf16.xpose.msra.mxu0 0
        %2812 = vmatprep.subr.bf16.mxu0 0
        %2813 = vmatpush2.bf16.xpose.msra.mxu0 0
        %2814 = vmatprep.subr.bf16.mxu0 0
        %2815 = vmatpush2.bf16.xpose.msra.mxu0 0
        %2816 = vmatprep.subr.bf16.mxu0 0
        %2817 = vmatpush2.bf16.xpose.msra.mxu0 0
        %2818 = vmatprep.mubr.bf16.mxu0 0
        %2819 = vmatmul.mubr.bf16.gmra.mxu0 %v2775
        %v2820 = vpop.f32.mrf.mxu0
        %v2821 = vadd.f32 0.0, %v2820
        %v2822 = vpop.f32.mrf.mxu0
        %v2823 = vpop.f32.mrf.mxu0
        %v2824 = vadd.f32 0.0, %v2823
        %v2825 = vpop.f32.mrf.mxu0
        %2826 = vmatprep.mubr.bf16.mxu0 0
        %2827 = vmatmul.mubr.bf16.gmra.mxu0 %v2778
        %v2828 = vpop.f32.mrf.mxu0
        %v2829 = vadd.f32 0.0, %v2828
        %v2830 = vpop.f32.mrf.mxu0
        %v2831 = vpop.f32.mrf.mxu0
        %v2832 = vadd.f32 0.0, %v2831
        %v2833 = vpop.f32.mrf.mxu0
        %2834 = vdwg.mxu0
        %v2836 = vsel %vm2712, %v2148, 0
        %v2839 = vsel %vm2712, %v2149, 0
        %v2842 = vsel %vm2712, %v2428, 0
        %v2845 = vsel %vm2712, %v2429, 0
        %2847 = vmatprep.subr.bf16.mxu0 0
        %2848 = vmatpush1.bf16.xpose.msra.mxu0 0
        %2849 = vmatprep.subr.bf16.mxu0 0
        %2850 = vmatpush1.bf16.xpose.msra.mxu0 0
        %2851 = vmatprep.subr.bf16.mxu0 0
        %2852 = vmatpush1.bf16.xpose.msra.mxu0 0
        %2853 = vmatprep.subr.bf16.mxu0 0
        %2854 = vmatpush1.bf16.xpose.msra.mxu0 0
        %2855 = vmatprep.subr.bf16.mxu0 0
        %2856 = vmatpush1.bf16.xpose.msra.mxu0 0
        %2857 = vmatprep.subr.bf16.mxu0 0
        %2858 = vmatpush1.bf16.xpose.msra.mxu0 0
        %2859 = vmatprep.subr.bf16.mxu0 0
        %2860 = vmatpush1.bf16.xpose.msra.mxu0 %v2845
        %2861 = vmatprep.subr.bf16.mxu0 0
        %2862 = vmatpush1.bf16.xpose.msra.mxu0 %v2842
        %2863 = vmatprep.subr.bf16.mxu0 0
        %2864 = vmatpush2.bf16.xpose.msra.mxu0 0
        %2865 = vmatprep.subr.bf16.mxu0 0
        %2866 = vmatpush2.bf16.xpose.msra.mxu0 0
        %2867 = vmatprep.subr.bf16.mxu0 0
        %2868 = vmatpush2.bf16.xpose.msra.mxu0 0
        %2869 = vmatprep.subr.bf16.mxu0 0
        %2870 = vmatpush2.bf16.xpose.msra.mxu0 0
        %2871 = vmatprep.subr.bf16.mxu0 0
        %2872 = vmatpush2.bf16.xpose.msra.mxu0 0
        %2873 = vmatprep.subr.bf16.mxu0 0
        %2874 = vmatpush2.bf16.xpose.msra.mxu0 0
        %2875 = vmatprep.subr.bf16.mxu0 0
        %2876 = vmatpush2.bf16.xpose.msra.mxu0 0
        %2877 = vmatprep.subr.bf16.mxu0 0
        %2878 = vmatpush2.bf16.xpose.msra.mxu0 0
        %2879 = vmatprep.mubr.bf16.mxu0 0
        %2880 = vmatmul.mubr.bf16.gmra.mxu0 %v2836
        %v2881 = vpop.f32.mrf.mxu0
        %v2882 = vadd.f32 0.0, %v2881
        %v2883 = vpop.f32.mrf.mxu0
        %v2884 = vpop.f32.mrf.mxu0
        %v2885 = vadd.f32 0.0, %v2884
        %v2886 = vpop.f32.mrf.mxu0
        %2887 = vmatprep.mubr.bf16.mxu0 0
        %2888 = vmatmul.mubr.bf16.gmra.mxu0 %v2839
        %v2889 = vpop.f32.mrf.mxu0
        %v2890 = vadd.f32 0.0, %v2889
        %v2891 = vpop.f32.mrf.mxu0
        %v2892 = vpop.f32.mrf.mxu0
        %v2893 = vadd.f32 0.0, %v2892
        %v2894 = vpop.f32.mrf.mxu0
        %2895 = vdwg.mxu0
        %v2897 = vsel %vm2712, %v2150, 0
        %v2900 = vsel %vm2712, %v2151, 0
        %v2903 = vsel %vm2712, %v2430, 0
        %v2906 = vsel %vm2712, %v2431, 0
        %2908 = vmatprep.subr.bf16.mxu0 0
        %2909 = vmatpush1.bf16.xpose.msra.mxu0 0
        %2910 = vmatprep.subr.bf16.mxu0 0
        %2911 = vmatpush1.bf16.xpose.msra.mxu0 0
        %2912 = vmatprep.subr.bf16.mxu0 0
        %2913 = vmatpush1.bf16.xpose.msra.mxu0 0
        %2914 = vmatprep.subr.bf16.mxu0 0
        %2915 = vmatpush1.bf16.xpose.msra.mxu0 0
        %2916 = vmatprep.subr.bf16.mxu0 0
        %2917 = vmatpush1.bf16.xpose.msra.mxu0 0
        %2918 = vmatprep.subr.bf16.mxu0 0
        %2919 = vmatpush1.bf16.xpose.msra.mxu0 0
        %2920 = vmatprep.subr.bf16.mxu0 0
        %2921 = vmatpush1.bf16.xpose.msra.mxu0 %v2906
        %2922 = vmatprep.subr.bf16.mxu0 0
        %2923 = vmatpush1.bf16.xpose.msra.mxu0 %v2903
        %2924 = vmatprep.subr.bf16.mxu0 0
        %2925 = vmatpush2.bf16.xpose.msra.mxu0 0
        %2926 = vmatprep.subr.bf16.mxu0 0
        %2927 = vmatpush2.bf16.xpose.msra.mxu0 0
        %2928 = vmatprep.subr.bf16.mxu0 0
        %2929 = vmatpush2.bf16.xpose.msra.mxu0 0
        %2930 = vmatprep.subr.bf16.mxu0 0
        %2931 = vmatpush2.bf16.xpose.msra.mxu0 0
        %2932 = vmatprep.subr.bf16.mxu0 0
        %2933 = vmatpush2.bf16.xpose.msra.mxu0 0
        %2934 = vmatprep.subr.bf16.mxu0 0
        %2935 = vmatpush2.bf16.xpose.msra.mxu0 0
        %2936 = vmatprep.subr.bf16.mxu0 0
        %2937 = vmatpush2.bf16.xpose.msra.mxu0 0
        %2938 = vmatprep.subr.bf16.mxu0 0
        %2939 = vmatpush2.bf16.xpose.msra.mxu0 0
        %2940 = vmatprep.mubr.bf16.mxu0 0
        %2941 = vmatmul.mubr.bf16.gmra.mxu0 %v2897
        %v2942 = vpop.f32.mrf.mxu0
        %v2943 = vadd.f32 0.0, %v2942
        %v2944 = vpop.f32.mrf.mxu0
        %v2945 = vpop.f32.mrf.mxu0
        %v2946 = vadd.f32 0.0, %v2945
        %v2947 = vpop.f32.mrf.mxu0
        %2948 = vmatprep.mubr.bf16.mxu0 0
        %2949 = vmatmul.mubr.bf16.gmra.mxu0 %v2900
        %v2950 = vpop.f32.mrf.mxu0
        %v2951 = vadd.f32 0.0, %v2950
        %v2952 = vpop.f32.mrf.mxu0
        %v2953 = vpop.f32.mrf.mxu0
        %v2954 = vadd.f32 0.0, %v2953
        %v2955 = vpop.f32.mrf.mxu0
        %2956 = vdwg.mxu0
        %v2957 = vmul.f32 %v2760, 0.17677669
        %v2958 = vmul.f32 %v2763, 0.17677669
        %v2959 = vmul.f32 %v2768, 0.17677669
        %v2960 = vmul.f32 %v2771, 0.17677669
        %v2961 = vmul.f32 %v2821, 0.17677669
        %v2962 = vmul.f32 %v2824, 0.17677669
        %v2963 = vmul.f32 %v2829, 0.17677669
        %v2964 = vmul.f32 %v2832, 0.17677669
        %v2965 = vmul.f32 %v2882, 0.17677669
        %v2966 = vmul.f32 %v2885, 0.17677669
        %v2967 = vmul.f32 %v2890, 0.17677669
        %v2968 = vmul.f32 %v2893, 0.17677669
        %v2969 = vmul.f32 %v2943, 0.17677669
        %v2970 = vmul.f32 %v2946, 0.17677669
        %v2971 = vmul.f32 %v2951, 0.17677669
        %v2972 = vmul.f32 %v2954, 0.17677669
        %v2973 = vadd.f32 %v2957, %v592
        %v2974 = vadd.f32 %v2958, %v592
        %v2975 = vadd.f32 %v2959, %v592
        %v2976 = vadd.f32 %v2960, %v592
        %v2977 = vadd.f32 %v2961, %v592
        %v2978 = vadd.f32 %v2962, %v592
        %v2979 = vadd.f32 %v2963, %v592
        %v2980 = vadd.f32 %v2964, %v592
        %v2981 = vadd.f32 %v2965, %v592
        %v2982 = vadd.f32 %v2966, %v592
        %v2983 = vadd.f32 %v2967, %v592
        %v2984 = vadd.f32 %v2968, %v592
        %v2985 = vadd.f32 %v2969, %v592
        %v2986 = vadd.f32 %v2970, %v592
        %v2987 = vadd.f32 %v2971, %v592
        %v2988 = vadd.f32 %v2972, %v592
        %v2989 = vsel %vm2712, %v2973, -inf
        %2990 = vmax.xlane.f32.xlu0 %v2989
        %v2991 = vpop.xlane.xlu0 %2990
        %v2992 = vsel %vm2712, %v2974, -inf
        %2993 = vmax.xlane.f32.xlu0 %v2992
        %v2994 = vpop.xlane.xlu0 %2993
        %v2995 = vsel %vm2712, %v2975, -inf
        %2996 = vmax.xlane.f32.xlu0 %v2995
        %v2997 = vpop.xlane.xlu0 %2996
        %v2998 = vsel %vm2712, %v2976, -inf
        %2999 = vmax.xlane.f32.xlu0 %v2998
        %v3000 = vpop.xlane.xlu0 %2999
        %v3001 = vsel %vm2712, %v2977, -inf
        %3002 = vmax.xlane.f32.xlu0 %v3001
        %v3003 = vpop.xlane.xlu0 %3002
        %v3004 = vsel %vm2712, %v2978, -inf
        %3005 = vmax.xlane.f32.xlu0 %v3004
        %v3006 = vpop.xlane.xlu0 %3005
        %v3007 = vsel %vm2712, %v2979, -inf
        %3008 = vmax.xlane.f32.xlu0 %v3007
        %v3009 = vpop.xlane.xlu0 %3008
        %v3010 = vsel %vm2712, %v2980, -inf
        %3011 = vmax.xlane.f32.xlu0 %v3010
        %v3012 = vpop.xlane.xlu0 %3011
        %v3013 = vsel %vm2712, %v2981, -inf
        %3014 = vmax.xlane.f32.xlu0 %v3013
        %v3015 = vpop.xlane.xlu0 %3014
        %v3016 = vsel %vm2712, %v2982, -inf
        %3017 = vmax.xlane.f32.xlu0 %v3016
        %v3018 = vpop.xlane.xlu0 %3017
        %v3019 = vsel %vm2712, %v2983, -inf
        %3020 = vmax.xlane.f32.xlu0 %v3019
        %v3021 = vpop.xlane.xlu0 %3020
        %v3022 = vsel %vm2712, %v2984, -inf
        %3023 = vmax.xlane.f32.xlu0 %v3022
        %v3024 = vpop.xlane.xlu0 %3023
        %v3025 = vsel %vm2712, %v2985, -inf
        %3026 = vmax.xlane.f32.xlu0 %v3025
        %v3027 = vpop.xlane.xlu0 %3026
        %v3028 = vsel %vm2712, %v2986, -inf
        %3029 = vmax.xlane.f32.xlu0 %v3028
        %v3030 = vpop.xlane.xlu0 %3029
        %v3031 = vsel %vm2712, %v2987, -inf
        %3032 = vmax.xlane.f32.xlu0 %v3031
        %v3033 = vpop.xlane.xlu0 %3032
        %v3034 = vsel %vm2712, %v2988, -inf
        %3035 = vmax.xlane.f32.xlu0 %v3034
        %v3036 = vpop.xlane.xlu0 %3035
        %v3037 = vsub.f32 %v2973, %v2991
        %v3038 = vsub.f32 %v2974, %v2994
        %v3039 = vsub.f32 %v2975, %v2997
        %v3040 = vsub.f32 %v2976, %v3000
        %v3041 = vsub.f32 %v2977, %v3003
        %v3042 = vsub.f32 %v2978, %v3006
        %v3043 = vsub.f32 %v2979, %v3009
        %v3044 = vsub.f32 %v2980, %v3012
        %v3045 = vsub.f32 %v2981, %v3015
        %v3046 = vsub.f32 %v2982, %v3018
        %v3047 = vsub.f32 %v2983, %v3021
        %v3048 = vsub.f32 %v2984, %v3024
        %v3049 = vsub.f32 %v2985, %v3027
        %v3050 = vsub.f32 %v2986, %v3030
        %v3051 = vsub.f32 %v2987, %v3033
        %v3052 = vsub.f32 %v2988, %v3036
        %v3053 = vmul.f32 %v3037, 1.442695
        %v3054 = vpow.pop %v3053
        %v3055 = vmul.f32 %v3038, 1.442695
        %v3056 = vpow.pop %v3055
        %v3057 = vmul.f32 %v3039, 1.442695
        %v3058 = vpow.pop %v3057
        %v3059 = vmul.f32 %v3040, 1.442695
        %v3060 = vpow.pop %v3059
        %v3061 = vmul.f32 %v3041, 1.442695
        %v3062 = vpow.pop %v3061
        %v3063 = vmul.f32 %v3042, 1.442695
        %v3064 = vpow.pop %v3063
        %v3065 = vmul.f32 %v3043, 1.442695
        %v3066 = vpow.pop %v3065
        %v3067 = vmul.f32 %v3044, 1.442695
        %v3068 = vpow.pop %v3067
        %v3069 = vmul.f32 %v3045, 1.442695
        %v3070 = vpow.pop %v3069
        %v3071 = vmul.f32 %v3046, 1.442695
        %v3072 = vpow.pop %v3071
        %v3073 = vmul.f32 %v3047, 1.442695
        %v3074 = vpow.pop %v3073
        %v3075 = vmul.f32 %v3048, 1.442695
        %v3076 = vpow.pop %v3075
        %v3077 = vmul.f32 %v3049, 1.442695
        %v3078 = vpow.pop %v3077
        %v3079 = vmul.f32 %v3050, 1.442695
        %v3080 = vpow.pop %v3079
        %v3081 = vmul.f32 %v3051, 1.442695
        %v3082 = vpow.pop %v3081
        %v3083 = vmul.f32 %v3052, 1.442695
        %v3084 = vpow.pop %v3083
        %v3085 = vsel %vm2712, %v3054, 0.0
        %3086 = vadd.xlane.f32.xlu0 %v3085
        %v3087 = vpop.xlane.xlu0 %3086
        %v3088 = vsel %vm2712, %v3056, 0.0
        %3089 = vadd.xlane.f32.xlu0 %v3088
        %v3090 = vpop.xlane.xlu0 %3089
        %v3091 = vsel %vm2712, %v3058, 0.0
        %3092 = vadd.xlane.f32.xlu0 %v3091
        %v3093 = vpop.xlane.xlu0 %3092
        %v3094 = vsel %vm2712, %v3060, 0.0
        %3095 = vadd.xlane.f32.xlu0 %v3094
        %v3096 = vpop.xlane.xlu0 %3095
        %v3097 = vsel %vm2712, %v3062, 0.0
        %3098 = vadd.xlane.f32.xlu0 %v3097
        %v3099 = vpop.xlane.xlu0 %3098
        %v3100 = vsel %vm2712, %v3064, 0.0
        %3101 = vadd.xlane.f32.xlu0 %v3100
        %v3102 = vpop.xlane.xlu0 %3101
        %v3103 = vsel %vm2712, %v3066, 0.0
        %3104 = vadd.xlane.f32.xlu0 %v3103
        %v3105 = vpop.xlane.xlu0 %3104
        %v3106 = vsel %vm2712, %v3068, 0.0
        %3107 = vadd.xlane.f32.xlu0 %v3106
        %v3108 = vpop.xlane.xlu0 %3107
        %v3109 = vsel %vm2712, %v3070, 0.0
        %3110 = vadd.xlane.f32.xlu0 %v3109
        %v3111 = vpop.xlane.xlu0 %3110
        %v3112 = vsel %vm2712, %v3072, 0.0
        %3113 = vadd.xlane.f32.xlu0 %v3112
        %v3114 = vpop.xlane.xlu0 %3113
        %v3115 = vsel %vm2712, %v3074, 0.0
        %3116 = vadd.xlane.f32.xlu0 %v3115
        %v3117 = vpop.xlane.xlu0 %3116
        %v3118 = vsel %vm2712, %v3076, 0.0
        %3119 = vadd.xlane.f32.xlu0 %v3118
        %v3120 = vpop.xlane.xlu0 %3119
        %v3121 = vsel %vm2712, %v3078, 0.0
        %3122 = vadd.xlane.f32.xlu0 %v3121
        %v3123 = vpop.xlane.xlu0 %3122
        %v3124 = vsel %vm2712, %v3080, 0.0
        %3125 = vadd.xlane.f32.xlu0 %v3124
        %v3126 = vpop.xlane.xlu0 %3125
        %v3127 = vsel %vm2712, %v3082, 0.0
        %3128 = vadd.xlane.f32.xlu0 %v3127
        %v3129 = vpop.xlane.xlu0 %3128
        %v3130 = vsel %vm2712, %v3084, 0.0
        %3131 = vadd.xlane.f32.xlu0 %v3130
        %v3132 = vpop.xlane.xlu0 %3131
        %v3133 = vrcp.pop %v3087
        %v3134 = vrcp.pop %v3090
        %v3135 = vrcp.pop %v3093
        %v3136 = vrcp.pop %v3096
        %v3137 = vrcp.pop %v3099
        %v3138 = vrcp.pop %v3102
        %v3139 = vrcp.pop %v3105
        %v3140 = vrcp.pop %v3108
        %v3141 = vrcp.pop %v3111
        %v3142 = vrcp.pop %v3114
        %v3143 = vrcp.pop %v3117
        %v3144 = vrcp.pop %v3120
        %v3145 = vrcp.pop %v3123
        %v3146 = vrcp.pop %v3126
        %v3147 = vrcp.pop %v3129
        %v3148 = vrcp.pop %v3132
        %v3149 = vmul.f32 %v3054, %v3133
        %v3150 = vmul.f32 %v3056, %v3134
        %v3151 = vmul.f32 %v3058, %v3135
        %v3152 = vmul.f32 %v3060, %v3136
        %v3153 = vmul.f32 %v3062, %v3137
        %v3154 = vmul.f32 %v3064, %v3138
        %v3155 = vmul.f32 %v3066, %v3139
        %v3156 = vmul.f32 %v3068, %v3140
        %v3157 = vmul.f32 %v3070, %v3141
        %v3158 = vmul.f32 %v3072, %v3142
        %v3159 = vmul.f32 %v3074, %v3143
        %v3160 = vmul.f32 %v3076, %v3144
        %v3161 = vmul.f32 %v3078, %v3145
        %v3162 = vmul.f32 %v3080, %v3146
        %v3163 = vmul.f32 %v3082, %v3147
        %v3164 = vmul.f32 %v3084, %v3148
        %v3165 = vpack.c.bf16 %v3150, %v3149
        %v3166 = vpack.c.bf16 %v3152, %v3151
        %v3167 = vpack.c.bf16 %v3154, %v3153
        %v3168 = vpack.c.bf16 %v3156, %v3155
        %v3169 = vpack.c.bf16 %v3158, %v3157
        %v3170 = vpack.c.bf16 %v3160, %v3159
        %v3171 = vpack.c.bf16 %v3162, %v3161
        %v3172 = vpack.c.bf16 %v3164, %v3163
        %v3174 = vsel %vm2712, %v3165, 0
        %v3177 = vsel %vm2712, %v3166, 0
        %3179 = vmatprep.subr.bf16.mxu0 0
        %3180 = vmatpush1.bf16.msra.mxu0 0
        %3181 = vmatprep.subr.bf16.mxu0 0
        %3182 = vmatpush1.bf16.msra.mxu0 0
        %3183 = vmatprep.subr.bf16.mxu0 0
        %3184 = vmatpush1.bf16.msra.mxu0 0
        %3185 = vmatprep.subr.bf16.mxu0 0
        %3186 = vmatpush1.bf16.msra.mxu0 0
        %3187 = vmatprep.subr.bf16.mxu0 0
        %3188 = vmatpush1.bf16.msra.mxu0 0
        %3189 = vmatprep.subr.bf16.mxu0 0
        %3190 = vmatpush1.bf16.msra.mxu0 0
        %3191 = vmatprep.subr.bf16.mxu0 0
        %3192 = vmatpush1.bf16.msra.mxu0 %v2705
        %3193 = vmatprep.subr.bf16.mxu0 0
        %3194 = vmatpush1.bf16.msra.mxu0 %v2704
        %3195 = vmatprep.subr.bf16.mxu0 0
        %3196 = vmatpush2.bf16.msra.mxu0 0
        %3197 = vmatprep.subr.bf16.mxu0 0
        %3198 = vmatpush2.bf16.msra.mxu0 0
        %3199 = vmatprep.subr.bf16.mxu0 0
        %3200 = vmatpush2.bf16.msra.mxu0 0
        %3201 = vmatprep.subr.bf16.mxu0 0
        %3202 = vmatpush2.bf16.msra.mxu0 0
        %3203 = vmatprep.subr.bf16.mxu0 0
        %3204 = vmatpush2.bf16.msra.mxu0 0
        %3205 = vmatprep.subr.bf16.mxu0 0
        %3206 = vmatpush2.bf16.msra.mxu0 0
        %3207 = vmatprep.subr.bf16.mxu0 0
        %3208 = vmatpush2.bf16.msra.mxu0 0
        %3209 = vmatprep.subr.bf16.mxu0 0
        %3210 = vmatpush2.bf16.msra.mxu0 0
        %3211 = vmatprep.mubr.bf16.mxu0 0
        %3212 = vmatmul.mubr.bf16.gmra.mxu0 %v3174
        %v3213 = vpop.f32.mrf.mxu0
        %v3214 = vadd.f32 0.0, %v3213
        %v3215 = vpop.f32.mrf.mxu0
        %v3216 = vpop.f32.mrf.mxu0
        %v3217 = vadd.f32 0.0, %v3216
        %v3218 = vpop.f32.mrf.mxu0
        %3219 = vmatprep.mubr.bf16.mxu0 0
        %3220 = vmatmul.mubr.bf16.gmra.mxu0 %v3177
        %v3221 = vpop.f32.mrf.mxu0
        %v3222 = vadd.f32 0.0, %v3221
        %v3223 = vpop.f32.mrf.mxu0
        %v3224 = vpop.f32.mrf.mxu0
        %v3225 = vadd.f32 0.0, %v3224
        %v3226 = vpop.f32.mrf.mxu0
        %3227 = vdwg.mxu0
        %v3229 = vsel %vm2712, %v3167, 0
        %v3232 = vsel %vm2712, %v3168, 0
        %3234 = vmatprep.subr.bf16.mxu0 0
        %3235 = vmatpush1.bf16.msra.mxu0 0
        %3236 = vmatprep.subr.bf16.mxu0 0
        %3237 = vmatpush1.bf16.msra.mxu0 0
        %3238 = vmatprep.subr.bf16.mxu0 0
        %3239 = vmatpush1.bf16.msra.mxu0 0
        %3240 = vmatprep.subr.bf16.mxu0 0
        %3241 = vmatpush1.bf16.msra.mxu0 0
        %3242 = vmatprep.subr.bf16.mxu0 0
        %3243 = vmatpush1.bf16.msra.mxu0 0
        %3244 = vmatprep.subr.bf16.mxu0 0
        %3245 = vmatpush1.bf16.msra.mxu0 0
        %3246 = vmatprep.subr.bf16.mxu0 0
        %3247 = vmatpush1.bf16.msra.mxu0 %v2707
        %3248 = vmatprep.subr.bf16.mxu0 0
        %3249 = vmatpush1.bf16.msra.mxu0 %v2706
        %3250 = vmatprep.subr.bf16.mxu0 0
        %3251 = vmatpush2.bf16.msra.mxu0 0
        %3252 = vmatprep.subr.bf16.mxu0 0
        %3253 = vmatpush2.bf16.msra.mxu0 0
        %3254 = vmatprep.subr.bf16.mxu0 0
        %3255 = vmatpush2.bf16.msra.mxu0 0
        %3256 = vmatprep.subr.bf16.mxu0 0
        %3257 = vmatpush2.bf16.msra.mxu0 0
        %3258 = vmatprep.subr.bf16.mxu0 0
        %3259 = vmatpush2.bf16.msra.mxu0 0
        %3260 = vmatprep.subr.bf16.mxu0 0
        %3261 = vmatpush2.bf16.msra.mxu0 0
        %3262 = vmatprep.subr.bf16.mxu0 0
        %3263 = vmatpush2.bf16.msra.mxu0 0
        %3264 = vmatprep.subr.bf16.mxu0 0
        %3265 = vmatpush2.bf16.msra.mxu0 0
        %3266 = vmatprep.mubr.bf16.mxu0 0
        %3267 = vmatmul.mubr.bf16.gmra.mxu0 %v3229
        %v3268 = vpop.f32.mrf.mxu0
        %v3269 = vadd.f32 0.0, %v3268
        %v3270 = vpop.f32.mrf.mxu0
        %v3271 = vpop.f32.mrf.mxu0
        %v3272 = vadd.f32 0.0, %v3271
        %v3273 = vpop.f32.mrf.mxu0
        %3274 = vmatprep.mubr.bf16.mxu0 0
        %3275 = vmatmul.mubr.bf16.gmra.mxu0 %v3232
        %v3276 = vpop.f32.mrf.mxu0
        %v3277 = vadd.f32 0.0, %v3276
        %v3278 = vpop.f32.mrf.mxu0
        %v3279 = vpop.f32.mrf.mxu0
        %v3280 = vadd.f32 0.0, %v3279
        %v3281 = vpop.f32.mrf.mxu0
        %3282 = vdwg.mxu0
        %v3284 = vsel %vm2712, %v3169, 0
        %v3287 = vsel %vm2712, %v3170, 0
        %3289 = vmatprep.subr.bf16.mxu0 0
        %3290 = vmatpush1.bf16.msra.mxu0 0
        %3291 = vmatprep.subr.bf16.mxu0 0
        %3292 = vmatpush1.bf16.msra.mxu0 0
        %3293 = vmatprep.subr.bf16.mxu0 0
        %3294 = vmatpush1.bf16.msra.mxu0 0
        %3295 = vmatprep.subr.bf16.mxu0 0
        %3296 = vmatpush1.bf16.msra.mxu0 0
        %3297 = vmatprep.subr.bf16.mxu0 0
        %3298 = vmatpush1.bf16.msra.mxu0 0
        %3299 = vmatprep.subr.bf16.mxu0 0
        %3300 = vmatpush1.bf16.msra.mxu0 0
        %3301 = vmatprep.subr.bf16.mxu0 0
        %3302 = vmatpush1.bf16.msra.mxu0 %v2709
        %3303 = vmatprep.subr.bf16.mxu0 0
        %3304 = vmatpush1.bf16.msra.mxu0 %v2708
        %3305 = vmatprep.subr.bf16.mxu0 0
        %3306 = vmatpush2.bf16.msra.mxu0 0
        %3307 = vmatprep.subr.bf16.mxu0 0
        %3308 = vmatpush2.bf16.msra.mxu0 0
        %3309 = vmatprep.subr.bf16.mxu0 0
        %3310 = vmatpush2.bf16.msra.mxu0 0
        %3311 = vmatprep.subr.bf16.mxu0 0
        %3312 = vmatpush2.bf16.msra.mxu0 0
        %3313 = vmatprep.subr.bf16.mxu0 0
        %3314 = vmatpush2.bf16.msra.mxu0 0
        %3315 = vmatprep.subr.bf16.mxu0 0
        %3316 = vmatpush2.bf16.msra.mxu0 0
        %3317 = vmatprep.subr.bf16.mxu0 0
        %3318 = vmatpush2.bf16.msra.mxu0 0
        %3319 = vmatprep.subr.bf16.mxu0 0
        %3320 = vmatpush2.bf16.msra.mxu0 0
        %3321 = vmatprep.mubr.bf16.mxu0 0
        %3322 = vmatmul.mubr.bf16.gmra.mxu0 %v3284
        %v3323 = vpop.f32.mrf.mxu0
        %v3324 = vadd.f32 0.0, %v3323
        %v3325 = vpop.f32.mrf.mxu0
        %v3326 = vpop.f32.mrf.mxu0
        %v3327 = vadd.f32 0.0, %v3326
        %v3328 = vpop.f32.mrf.mxu0
        %3329 = vmatprep.mubr.bf16.mxu0 0
        %3330 = vmatmul.mubr.bf16.gmra.mxu0 %v3287
        %v3331 = vpop.f32.mrf.mxu0
        %v3332 = vadd.f32 0.0, %v3331
        %v3333 = vpop.f32.mrf.mxu0
        %v3334 = vpop.f32.mrf.mxu0
        %v3335 = vadd.f32 0.0, %v3334
        %v3336 = vpop.f32.mrf.mxu0
        %3337 = vdwg.mxu0
        %v3339 = vsel %vm2712, %v3171, 0
        %v3342 = vsel %vm2712, %v3172, 0
        %3344 = vmatprep.subr.bf16.mxu0 0
        %3345 = vmatpush1.bf16.msra.mxu0 0
        %3346 = vmatprep.subr.bf16.mxu0 0
        %3347 = vmatpush1.bf16.msra.mxu0 0
        %3348 = vmatprep.subr.bf16.mxu0 0
        %3349 = vmatpush1.bf16.msra.mxu0 0
        %3350 = vmatprep.subr.bf16.mxu0 0
        %3351 = vmatpush1.bf16.msra.mxu0 0
        %3352 = vmatprep.subr.bf16.mxu0 0
        %3353 = vmatpush1.bf16.msra.mxu0 0
        %3354 = vmatprep.subr.bf16.mxu0 0
        %3355 = vmatpush1.bf16.msra.mxu0 0
        %3356 = vmatprep.subr.bf16.mxu0 0
        %3357 = vmatpush1.bf16.msra.mxu0 %v2711
        %3358 = vmatprep.subr.bf16.mxu0 0
        %3359 = vmatpush1.bf16.msra.mxu0 %v2710
        %3360 = vmatprep.subr.bf16.mxu0 0
        %3361 = vmatpush2.bf16.msra.mxu0 0
        %3362 = vmatprep.subr.bf16.mxu0 0
        %3363 = vmatpush2.bf16.msra.mxu0 0
        %3364 = vmatprep.subr.bf16.mxu0 0
        %3365 = vmatpush2.bf16.msra.mxu0 0
        %3366 = vmatprep.subr.bf16.mxu0 0
        %3367 = vmatpush2.bf16.msra.mxu0 0
        %3368 = vmatprep.subr.bf16.mxu0 0
        %3369 = vmatpush2.bf16.msra.mxu0 0
        %3370 = vmatprep.subr.bf16.mxu0 0
        %3371 = vmatpush2.bf16.msra.mxu0 0
        %3372 = vmatprep.subr.bf16.mxu0 0
        %3373 = vmatpush2.bf16.msra.mxu0 0
        %3374 = vmatprep.subr.bf16.mxu0 0
        %3375 = vmatpush2.bf16.msra.mxu0 0
        %3376 = vmatprep.mubr.bf16.mxu0 0
        %3377 = vmatmul.mubr.bf16.gmra.mxu0 %v3339
        %v3378 = vpop.f32.mrf.mxu0
        %v3379 = vadd.f32 0.0, %v3378
        %v3380 = vpop.f32.mrf.mxu0
        %v3381 = vpop.f32.mrf.mxu0
        %v3382 = vadd.f32 0.0, %v3381
        %v3383 = vpop.f32.mrf.mxu0
        %3384 = vmatprep.mubr.bf16.mxu0 0
        %3385 = vmatmul.mubr.bf16.gmra.mxu0 %v3342
        %v3386 = vpop.f32.mrf.mxu0
        %v3387 = vadd.f32 0.0, %v3386
        %v3388 = vpop.f32.mrf.mxu0
        %v3389 = vpop.f32.mrf.mxu0
        %v3390 = vadd.f32 0.0, %v3389
        %v3391 = vpop.f32.mrf.mxu0
        %3392 = vdwg.mxu0
        %v3393 = vcombine.low %v3214, %v3324
        %v3394 = vcombine.high %v3214, %v3324
        %v3396 = vunpack.c.l.s4 1983009808
        %v3397 = vunpack.c.0.s8 %v3396
        %v3398 = vlaneseq
        %v3399 = vshrl.u32 %v3398, 7
        %v3400 = vsub.s32 %v3397, %v3399
        %v3401 = vrot.slane %v3393, %v3400
        %v3403 = vunpack.c.l.s4 1983009808
        %v3404 = vunpack.c.0.s8 %v3403
        %v3405 = vlaneseq
        %v3406 = vshrl.u32 %v3405, 7
        %v3407 = vsub.s32 %v3404, %v3406
        %v3408 = vrot.slane %v3394, %v3407
        %v3409 = vcombine.low %v3269, %v3379
        %v3410 = vcombine.high %v3269, %v3379
        %v3412 = vunpack.c.l.s4 1983009808
        %v3413 = vunpack.c.0.s8 %v3412
        %v3414 = vlaneseq
        %v3415 = vshrl.u32 %v3414, 7
        %v3416 = vsub.s32 %v3413, %v3415
        %v3417 = vrot.slane %v3409, %v3416
        %v3419 = vunpack.c.l.s4 1983009808
        %v3420 = vunpack.c.0.s8 %v3419
        %v3421 = vlaneseq
        %v3422 = vshrl.u32 %v3421, 7
        %v3423 = vsub.s32 %v3420, %v3422
        %v3424 = vrot.slane %v3410, %v3423
        %v3425 = vcombine.low %v3401, %v3417
        %v3426 = vcombine.high %v3401, %v3417
        %v3428 = vunpack.c.l.s4 1934713408
        %v3429 = vunpack.c.0.s8 %v3428
        %v3430 = vlaneseq
        %v3431 = vshrl.u32 %v3430, 7
        %v3432 = vsub.s32 %v3429, %v3431
        %v3433 = vrot.slane %v3425, %v3432
        %v3435 = vunpack.c.l.s4 1934713408
        %v3436 = vunpack.c.0.s8 %v3435
        %v3437 = vlaneseq
        %v3438 = vshrl.u32 %v3437, 7
        %v3439 = vsub.s32 %v3436, %v3438
        %v3440 = vrot.slane %v3426, %v3439
        %v3441 = vcombine.low %v3408, %v3424
        %v3442 = vcombine.high %v3408, %v3424
        %v3444 = vunpack.c.l.s4 1934713408
        %v3445 = vunpack.c.0.s8 %v3444
        %v3446 = vlaneseq
        %v3447 = vshrl.u32 %v3446, 7
        %v3448 = vsub.s32 %v3445, %v3447
        %v3449 = vrot.slane %v3441, %v3448
        %v3451 = vunpack.c.l.s4 1934713408
        %v3452 = vunpack.c.0.s8 %v3451
        %v3453 = vlaneseq
        %v3454 = vshrl.u32 %v3453, 7
        %v3455 = vsub.s32 %v3452, %v3454
        %v3456 = vrot.slane %v3442, %v3455
        %v3457 = vcombine.high %v3433, 0.0
        %v3458 = vcombine.high %v3440, 0.0
        %v3459 = vcombine.high %v3449, 0.0
        %v3460 = vcombine.high %v3456, 0.0
        %v3461 = vcombine.low %v3217, %v3327
        %v3462 = vcombine.high %v3217, %v3327
        %v3464 = vunpack.c.l.s4 1983009808
        %v3465 = vunpack.c.0.s8 %v3464
        %v3466 = vlaneseq
        %v3467 = vshrl.u32 %v3466, 7
        %v3468 = vsub.s32 %v3465, %v3467
        %v3469 = vrot.slane %v3461, %v3468
        %v3471 = vunpack.c.l.s4 1983009808
        %v3472 = vunpack.c.0.s8 %v3471
        %v3473 = vlaneseq
        %v3474 = vshrl.u32 %v3473, 7
        %v3475 = vsub.s32 %v3472, %v3474
        %v3476 = vrot.slane %v3462, %v3475
        %v3477 = vcombine.low %v3272, %v3382
        %v3478 = vcombine.high %v3272, %v3382
        %v3480 = vunpack.c.l.s4 1983009808
        %v3481 = vunpack.c.0.s8 %v3480
        %v3482 = vlaneseq
        %v3483 = vshrl.u32 %v3482, 7
        %v3484 = vsub.s32 %v3481, %v3483
        %v3485 = vrot.slane %v3477, %v3484
        %v3487 = vunpack.c.l.s4 1983009808
        %v3488 = vunpack.c.0.s8 %v3487
        %v3489 = vlaneseq
        %v3490 = vshrl.u32 %v3489, 7
        %v3491 = vsub.s32 %v3488, %v3490
        %v3492 = vrot.slane %v3478, %v3491
        %v3493 = vcombine.low %v3469, %v3485
        %v3494 = vcombine.high %v3469, %v3485
        %v3496 = vunpack.c.l.s4 1934713408
        %v3497 = vunpack.c.0.s8 %v3496
        %v3498 = vlaneseq
        %v3499 = vshrl.u32 %v3498, 7
        %v3500 = vsub.s32 %v3497, %v3499
        %v3501 = vrot.slane %v3493, %v3500
        %v3503 = vunpack.c.l.s4 1934713408
        %v3504 = vunpack.c.0.s8 %v3503
        %v3505 = vlaneseq
        %v3506 = vshrl.u32 %v3505, 7
        %v3507 = vsub.s32 %v3504, %v3506
        %v3508 = vrot.slane %v3494, %v3507
        %v3509 = vcombine.low %v3476, %v3492
        %v3510 = vcombine.high %v3476, %v3492
        %v3512 = vunpack.c.l.s4 1934713408
        %v3513 = vunpack.c.0.s8 %v3512
        %v3514 = vlaneseq
        %v3515 = vshrl.u32 %v3514, 7
        %v3516 = vsub.s32 %v3513, %v3515
        %v3517 = vrot.slane %v3509, %v3516
        %v3519 = vunpack.c.l.s4 1934713408
        %v3520 = vunpack.c.0.s8 %v3519
        %v3521 = vlaneseq
        %v3522 = vshrl.u32 %v3521, 7
        %v3523 = vsub.s32 %v3520, %v3522
        %v3524 = vrot.slane %v3510, %v3523
        %v3525 = vcombine.high %v3501, 0.0
        %v3526 = vcombine.high %v3508, 0.0
        %v3527 = vcombine.high %v3517, 0.0
        %v3528 = vcombine.high %v3524, 0.0
        %v3529 = vcombine.low %v3222, %v3332
        %v3530 = vcombine.high %v3222, %v3332
        %v3532 = vunpack.c.l.s4 1983009808
        %v3533 = vunpack.c.0.s8 %v3532
        %v3534 = vlaneseq
        %v3535 = vshrl.u32 %v3534, 7
        %v3536 = vsub.s32 %v3533, %v3535
        %v3537 = vrot.slane %v3529, %v3536
        %v3539 = vunpack.c.l.s4 1983009808
        %v3540 = vunpack.c.0.s8 %v3539
        %v3541 = vlaneseq
        %v3542 = vshrl.u32 %v3541, 7
        %v3543 = vsub.s32 %v3540, %v3542
        %v3544 = vrot.slane %v3530, %v3543
        %v3545 = vcombine.low %v3277, %v3387
        %v3546 = vcombine.high %v3277, %v3387
        %v3548 = vunpack.c.l.s4 1983009808
        %v3549 = vunpack.c.0.s8 %v3548
        %v3550 = vlaneseq
        %v3551 = vshrl.u32 %v3550, 7
        %v3552 = vsub.s32 %v3549, %v3551
        %v3553 = vrot.slane %v3545, %v3552
        %v3555 = vunpack.c.l.s4 1983009808
        %v3556 = vunpack.c.0.s8 %v3555
        %v3557 = vlaneseq
        %v3558 = vshrl.u32 %v3557, 7
        %v3559 = vsub.s32 %v3556, %v3558
        %v3560 = vrot.slane %v3546, %v3559
        %v3561 = vcombine.low %v3537, %v3553
        %v3562 = vcombine.high %v3537, %v3553
        %v3564 = vunpack.c.l.s4 1934713408
        %v3565 = vunpack.c.0.s8 %v3564
        %v3566 = vlaneseq
        %v3567 = vshrl.u32 %v3566, 7
        %v3568 = vsub.s32 %v3565, %v3567
        %v3569 = vrot.slane %v3561, %v3568
        %v3571 = vunpack.c.l.s4 1934713408
        %v3572 = vunpack.c.0.s8 %v3571
        %v3573 = vlaneseq
        %v3574 = vshrl.u32 %v3573, 7
        %v3575 = vsub.s32 %v3572, %v3574
        %v3576 = vrot.slane %v3562, %v3575
        %v3577 = vcombine.low %v3544, %v3560
        %v3578 = vcombine.high %v3544, %v3560
        %v3580 = vunpack.c.l.s4 1934713408
        %v3581 = vunpack.c.0.s8 %v3580
        %v3582 = vlaneseq
        %v3583 = vshrl.u32 %v3582, 7
        %v3584 = vsub.s32 %v3581, %v3583
        %v3585 = vrot.slane %v3577, %v3584
        %v3587 = vunpack.c.l.s4 1934713408
        %v3588 = vunpack.c.0.s8 %v3587
        %v3589 = vlaneseq
        %v3590 = vshrl.u32 %v3589, 7
        %v3591 = vsub.s32 %v3588, %v3590
        %v3592 = vrot.slane %v3578, %v3591
        %v3593 = vcombine.high %v3569, 0.0
        %v3594 = vcombine.high %v3576, 0.0
        %v3595 = vcombine.high %v3585, 0.0
        %v3596 = vcombine.high %v3592, 0.0
        %v3597 = vcombine.low %v3225, %v3335
        %v3598 = vcombine.high %v3225, %v3335
        %v3600 = vunpack.c.l.s4 1983009808
        %v3601 = vunpack.c.0.s8 %v3600
        %v3602 = vlaneseq
        %v3603 = vshrl.u32 %v3602, 7
        %v3604 = vsub.s32 %v3601, %v3603
        %v3605 = vrot.slane %v3597, %v3604
        %v3607 = vunpack.c.l.s4 1983009808
        %v3608 = vunpack.c.0.s8 %v3607
        %v3609 = vlaneseq
        %v3610 = vshrl.u32 %v3609, 7
        %v3611 = vsub.s32 %v3608, %v3610
        %v3612 = vrot.slane %v3598, %v3611
        %v3613 = vcombine.low %v3280, %v3390
        %v3614 = vcombine.high %v3280, %v3390
        %v3616 = vunpack.c.l.s4 1983009808
        %v3617 = vunpack.c.0.s8 %v3616
        %v3618 = vlaneseq
        %v3619 = vshrl.u32 %v3618, 7
        %v3620 = vsub.s32 %v3617, %v3619
        %v3621 = vrot.slane %v3613, %v3620
        %v3623 = vunpack.c.l.s4 1983009808
        %v3624 = vunpack.c.0.s8 %v3623
        %v3625 = vlaneseq
        %v3626 = vshrl.u32 %v3625, 7
        %v3627 = vsub.s32 %v3624, %v3626
        %v3628 = vrot.slane %v3614, %v3627
        %v3629 = vcombine.low %v3605, %v3621
        %v3630 = vcombine.high %v3605, %v3621
        %v3632 = vunpack.c.l.s4 1934713408
        %v3633 = vunpack.c.0.s8 %v3632
        %v3634 = vlaneseq
        %v3635 = vshrl.u32 %v3634, 7
        %v3636 = vsub.s32 %v3633, %v3635
        %v3637 = vrot.slane %v3629, %v3636
        %v3639 = vunpack.c.l.s4 1934713408
        %v3640 = vunpack.c.0.s8 %v3639
        %v3641 = vlaneseq
        %v3642 = vshrl.u32 %v3641, 7
        %v3643 = vsub.s32 %v3640, %v3642
        %v3644 = vrot.slane %v3630, %v3643
        %v3645 = vcombine.low %v3612, %v3628
        %v3646 = vcombine.high %v3612, %v3628
        %v3648 = vunpack.c.l.s4 1934713408
        %v3649 = vunpack.c.0.s8 %v3648
        %v3650 = vlaneseq
        %v3651 = vshrl.u32 %v3650, 7
        %v3652 = vsub.s32 %v3649, %v3651
        %v3653 = vrot.slane %v3645, %v3652
        %v3655 = vunpack.c.l.s4 1934713408
        %v3656 = vunpack.c.0.s8 %v3655
        %v3657 = vlaneseq
        %v3658 = vshrl.u32 %v3657, 7
        %v3659 = vsub.s32 %v3656, %v3658
        %v3660 = vrot.slane %v3646, %v3659
        %v3661 = vcombine.high %v3637, 0.0
        %v3662 = vcombine.high %v3644, 0.0
        %v3663 = vcombine.high %v3653, 0.0
        %v3664 = vcombine.high %v3660, 0.0
        %v3665 = vcombine.low %v3433, %v3440
        %v3667 = vunpack.c.l.s4 1983009808
        %v3668 = vunpack.c.0.s8 %v3667
        %v3669 = vlaneseq
        %v3670 = vshrl.u32 %v3669, 7
        %v3671 = vsub.s32 %v3668, %v3670
        %v3672 = vrot.slane %v3665, %v3671
        %v3673 = vcombine.low %v3457, %v3458
        %v3675 = vunpack.c.l.s4 1983009808
        %v3676 = vunpack.c.0.s8 %v3675
        %v3677 = vlaneseq
        %v3678 = vshrl.u32 %v3677, 7
        %v3679 = vsub.s32 %v3676, %v3678
        %v3680 = vrot.slane %v3673, %v3679
        %v3681 = vcombine.low %v3449, %v3456
        %v3683 = vunpack.c.l.s4 1983009808
        %v3684 = vunpack.c.0.s8 %v3683
        %v3685 = vlaneseq
        %v3686 = vshrl.u32 %v3685, 7
        %v3687 = vsub.s32 %v3684, %v3686
        %v3688 = vrot.slane %v3681, %v3687
        %v3689 = vcombine.low %v3459, %v3460
        %v3691 = vunpack.c.l.s4 1983009808
        %v3692 = vunpack.c.0.s8 %v3691
        %v3693 = vlaneseq
        %v3694 = vshrl.u32 %v3693, 7
        %v3695 = vsub.s32 %v3692, %v3694
        %v3696 = vrot.slane %v3689, %v3695
        %v3697 = vcombine.low %v3672, %v3680
        %v3698 = vcombine.high %v3672, %v3680
        %v3700 = vunpack.c.l.s4 1934713408
        %v3701 = vunpack.c.0.s8 %v3700
        %v3702 = vlaneseq
        %v3703 = vshrl.u32 %v3702, 7
        %v3704 = vsub.s32 %v3701, %v3703
        %v3705 = vrot.slane %v3697, %v3704
        %v3707 = vunpack.c.l.s4 1934713408
        %v3708 = vunpack.c.0.s8 %v3707
        %v3709 = vlaneseq
        %v3710 = vshrl.u32 %v3709, 7
        %v3711 = vsub.s32 %v3708, %v3710
        %v3712 = vrot.slane %v3698, %v3711
        %v3713 = vcombine.low %v3688, %v3696
        %v3714 = vcombine.high %v3688, %v3696
        %v3716 = vunpack.c.l.s4 1934713408
        %v3717 = vunpack.c.0.s8 %v3716
        %v3718 = vlaneseq
        %v3719 = vshrl.u32 %v3718, 7
        %v3720 = vsub.s32 %v3717, %v3719
        %v3721 = vrot.slane %v3713, %v3720
        %v3723 = vunpack.c.l.s4 1934713408
        %v3724 = vunpack.c.0.s8 %v3723
        %v3725 = vlaneseq
        %v3726 = vshrl.u32 %v3725, 7
        %v3727 = vsub.s32 %v3724, %v3726
        %v3728 = vrot.slane %v3714, %v3727
        %v3729 = vcombine.low %v3705, %v3721
        %v3730 = vcombine.high %v3705, %v3721
        %v3731 = vcombine.low %v3712, %v3728
        %v3732 = vcombine.high %v3712, %v3728
        %v3733 = vcombine.low %v3501, %v3508
        %v3735 = vunpack.c.l.s4 1983009808
        %v3736 = vunpack.c.0.s8 %v3735
        %v3737 = vlaneseq
        %v3738 = vshrl.u32 %v3737, 7
        %v3739 = vsub.s32 %v3736, %v3738
        %v3740 = vrot.slane %v3733, %v3739
        %v3741 = vcombine.low %v3525, %v3526
        %v3743 = vunpack.c.l.s4 1983009808
        %v3744 = vunpack.c.0.s8 %v3743
        %v3745 = vlaneseq
        %v3746 = vshrl.u32 %v3745, 7
        %v3747 = vsub.s32 %v3744, %v3746
        %v3748 = vrot.slane %v3741, %v3747
        %v3749 = vcombine.low %v3517, %v3524
        %v3751 = vunpack.c.l.s4 1983009808
        %v3752 = vunpack.c.0.s8 %v3751
        %v3753 = vlaneseq
        %v3754 = vshrl.u32 %v3753, 7
        %v3755 = vsub.s32 %v3752, %v3754
        %v3756 = vrot.slane %v3749, %v3755
        %v3757 = vcombine.low %v3527, %v3528
        %v3759 = vunpack.c.l.s4 1983009808
        %v3760 = vunpack.c.0.s8 %v3759
        %v3761 = vlaneseq
        %v3762 = vshrl.u32 %v3761, 7
        %v3763 = vsub.s32 %v3760, %v3762
        %v3764 = vrot.slane %v3757, %v3763
        %v3765 = vcombine.low %v3740, %v3748
        %v3766 = vcombine.high %v3740, %v3748
        %v3768 = vunpack.c.l.s4 1934713408
        %v3769 = vunpack.c.0.s8 %v3768
        %v3770 = vlaneseq
        %v3771 = vshrl.u32 %v3770, 7
        %v3772 = vsub.s32 %v3769, %v3771
        %v3773 = vrot.slane %v3765, %v3772
        %v3775 = vunpack.c.l.s4 1934713408
        %v3776 = vunpack.c.0.s8 %v3775
        %v3777 = vlaneseq
        %v3778 = vshrl.u32 %v3777, 7
        %v3779 = vsub.s32 %v3776, %v3778
        %v3780 = vrot.slane %v3766, %v3779
        %v3781 = vcombine.low %v3756, %v3764
        %v3782 = vcombine.high %v3756, %v3764
        %v3784 = vunpack.c.l.s4 1934713408
        %v3785 = vunpack.c.0.s8 %v3784
        %v3786 = vlaneseq
        %v3787 = vshrl.u32 %v3786, 7
        %v3788 = vsub.s32 %v3785, %v3787
        %v3789 = vrot.slane %v3781, %v3788
        %v3791 = vunpack.c.l.s4 1934713408
        %v3792 = vunpack.c.0.s8 %v3791
        %v3793 = vlaneseq
        %v3794 = vshrl.u32 %v3793, 7
        %v3795 = vsub.s32 %v3792, %v3794
        %v3796 = vrot.slane %v3782, %v3795
        %v3797 = vcombine.low %v3773, %v3789
        %v3798 = vcombine.high %v3773, %v3789
        %v3799 = vcombine.low %v3780, %v3796
        %v3800 = vcombine.high %v3780, %v3796
        %v3801 = vcombine.low %v3569, %v3576
        %v3803 = vunpack.c.l.s4 1983009808
        %v3804 = vunpack.c.0.s8 %v3803
        %v3805 = vlaneseq
        %v3806 = vshrl.u32 %v3805, 7
        %v3807 = vsub.s32 %v3804, %v3806
        %v3808 = vrot.slane %v3801, %v3807
        %v3809 = vcombine.low %v3593, %v3594
        %v3811 = vunpack.c.l.s4 1983009808
        %v3812 = vunpack.c.0.s8 %v3811
        %v3813 = vlaneseq
        %v3814 = vshrl.u32 %v3813, 7
        %v3815 = vsub.s32 %v3812, %v3814
        %v3816 = vrot.slane %v3809, %v3815
        %v3817 = vcombine.low %v3585, %v3592
        %v3819 = vunpack.c.l.s4 1983009808
        %v3820 = vunpack.c.0.s8 %v3819
        %v3821 = vlaneseq
        %v3822 = vshrl.u32 %v3821, 7
        %v3823 = vsub.s32 %v3820, %v3822
        %v3824 = vrot.slane %v3817, %v3823
        %v3825 = vcombine.low %v3595, %v3596
        %v3827 = vunpack.c.l.s4 1983009808
        %v3828 = vunpack.c.0.s8 %v3827
        %v3829 = vlaneseq
        %v3830 = vshrl.u32 %v3829, 7
        %v3831 = vsub.s32 %v3828, %v3830
        %v3832 = vrot.slane %v3825, %v3831
        %v3833 = vcombine.low %v3808, %v3816
        %v3834 = vcombine.high %v3808, %v3816
        %v3836 = vunpack.c.l.s4 1934713408
        %v3837 = vunpack.c.0.s8 %v3836
        %v3838 = vlaneseq
        %v3839 = vshrl.u32 %v3838, 7
        %v3840 = vsub.s32 %v3837, %v3839
        %v3841 = vrot.slane %v3833, %v3840
        %v3843 = vunpack.c.l.s4 1934713408
        %v3844 = vunpack.c.0.s8 %v3843
        %v3845 = vlaneseq
        %v3846 = vshrl.u32 %v3845, 7
        %v3847 = vsub.s32 %v3844, %v3846
        %v3848 = vrot.slane %v3834, %v3847
        %v3849 = vcombine.low %v3824, %v3832
        %v3850 = vcombine.high %v3824, %v3832
        %v3852 = vunpack.c.l.s4 1934713408
        %v3853 = vunpack.c.0.s8 %v3852
        %v3854 = vlaneseq
        %v3855 = vshrl.u32 %v3854, 7
        %v3856 = vsub.s32 %v3853, %v3855
        %v3857 = vrot.slane %v3849, %v3856
        %v3859 = vunpack.c.l.s4 1934713408
        %v3860 = vunpack.c.0.s8 %v3859
        %v3861 = vlaneseq
        %v3862 = vshrl.u32 %v3861, 7
        %v3863 = vsub.s32 %v3860, %v3862
        %v3864 = vrot.slane %v3850, %v3863
        %v3865 = vcombine.low %v3841, %v3857
        %v3866 = vcombine.high %v3841, %v3857
        %v3867 = vcombine.low %v3848, %v3864
        %v3868 = vcombine.high %v3848, %v3864
        %v3869 = vcombine.low %v3637, %v3644
        %v3871 = vunpack.c.l.s4 1983009808
        %v3872 = vunpack.c.0.s8 %v3871
        %v3873 = vlaneseq
        %v3874 = vshrl.u32 %v3873, 7
        %v3875 = vsub.s32 %v3872, %v3874
        %v3876 = vrot.slane %v3869, %v3875
        %v3877 = vcombine.low %v3661, %v3662
        %v3879 = vunpack.c.l.s4 1983009808
        %v3880 = vunpack.c.0.s8 %v3879
        %v3881 = vlaneseq
        %v3882 = vshrl.u32 %v3881, 7
        %v3883 = vsub.s32 %v3880, %v3882
        %v3884 = vrot.slane %v3877, %v3883
        %v3885 = vcombine.low %v3653, %v3660
        %v3887 = vunpack.c.l.s4 1983009808
        %v3888 = vunpack.c.0.s8 %v3887
        %v3889 = vlaneseq
        %v3890 = vshrl.u32 %v3889, 7
        %v3891 = vsub.s32 %v3888, %v3890
        %v3892 = vrot.slane %v3885, %v3891
        %v3893 = vcombine.low %v3663, %v3664
        %v3895 = vunpack.c.l.s4 1983009808
        %v3896 = vunpack.c.0.s8 %v3895
        %v3897 = vlaneseq
        %v3898 = vshrl.u32 %v3897, 7
        %v3899 = vsub.s32 %v3896, %v3898
        %v3900 = vrot.slane %v3893, %v3899
        %v3901 = vcombine.low %v3876, %v3884
        %v3902 = vcombine.high %v3876, %v3884
        %v3904 = vunpack.c.l.s4 1934713408
        %v3905 = vunpack.c.0.s8 %v3904
        %v3906 = vlaneseq
        %v3907 = vshrl.u32 %v3906, 7
        %v3908 = vsub.s32 %v3905, %v3907
        %v3909 = vrot.slane %v3901, %v3908
        %v3911 = vunpack.c.l.s4 1934713408
        %v3912 = vunpack.c.0.s8 %v3911
        %v3913 = vlaneseq
        %v3914 = vshrl.u32 %v3913, 7
        %v3915 = vsub.s32 %v3912, %v3914
        %v3916 = vrot.slane %v3902, %v3915
        %v3917 = vcombine.low %v3892, %v3900
        %v3918 = vcombine.high %v3892, %v3900
        %v3920 = vunpack.c.l.s4 1934713408
        %v3921 = vunpack.c.0.s8 %v3920
        %v3922 = vlaneseq
        %v3923 = vshrl.u32 %v3922, 7
        %v3924 = vsub.s32 %v3921, %v3923
        %v3925 = vrot.slane %v3917, %v3924
        %v3927 = vunpack.c.l.s4 1934713408
        %v3928 = vunpack.c.0.s8 %v3927
        %v3929 = vlaneseq
        %v3930 = vshrl.u32 %v3929, 7
        %v3931 = vsub.s32 %v3928, %v3930
        %v3932 = vrot.slane %v3918, %v3931
        %v3933 = vcombine.low %v3909, %v3925
        %v3934 = vcombine.high %v3909, %v3925
        %v3935 = vcombine.low %v3916, %v3932
        %v3936 = vcombine.high %v3916, %v3932
        %3941 = vrot.lane.b32.xlu0 %v3730, 32
        %v3942 = vpop.permute.xlu0 %3941
        %3943 = vrot.lane.b32.xlu0 %v3798, 32
        %v3944 = vpop.permute.xlu0 %3943
        %3945 = vrot.lane.b32.xlu0 %v3866, 32
        %v3946 = vpop.permute.xlu0 %3945
        %3947 = vrot.lane.b32.xlu0 %v3934, 32
        %v3948 = vpop.permute.xlu0 %3947
        %3957 = vrot.lane.b32.xlu0 %v3731, 64
        %v3958 = vpop.permute.xlu0 %3957
        %3959 = vrot.lane.b32.xlu0 %v3799, 64
        %v3960 = vpop.permute.xlu0 %3959
        %3961 = vrot.lane.b32.xlu0 %v3867, 64
        %v3962 = vpop.permute.xlu0 %3961
        %3963 = vrot.lane.b32.xlu0 %v3935, 64
        %v3964 = vpop.permute.xlu0 %3963
        %3973 = vrot.lane.b32.xlu0 %v3732, 96
        %v3974 = vpop.permute.xlu0 %3973
        %3975 = vrot.lane.b32.xlu0 %v3800, 96
        %v3976 = vpop.permute.xlu0 %3975
        %3977 = vrot.lane.b32.xlu0 %v3868, 96
        %v3978 = vpop.permute.xlu0 %3977
        %3979 = vrot.lane.b32.xlu0 %v3936, 96
        %v3980 = vpop.permute.xlu0 %3979
        %v3985 = vsel %vm2712, %v3729, %v3942
        %v3986 = vsel %vm2712, %v3797, %v3944
        %v3987 = vsel %vm2712, %v3865, %v3946
        %v3988 = vsel %vm2712, %v3933, %v3948
        %vm3989 = vcmask 523264
        %v3990 = vsel %vm3989, %v3985, %v3958
        %v3991 = vsel %vm3989, %v3986, %v3960
        %v3992 = vsel %vm3989, %v3987, %v3962
        %v3993 = vsel %vm3989, %v3988, %v3964
        %vm3994 = vcmask 785408
        %v3995 = vsel %vm3994, %v3990, %v3974
        %v3996 = vsel %vm3994, %v3991, %v3976
        %v3997 = vsel %vm3994, %v3992, %v3978
        %v3998 = vsel %vm3994, %v3993, %v3980
        %v3999 = vpack.c.bf16 %v3996, %v3995
        %v4000 = vpack.c.bf16 %v3998, %v3997
        %v4001 = vld [vmem:[%s6] sm:$0xf]
        %v4002 = vld [vmem:[%s6 + $0x4] sm:$0xf]
        %v4003 = vld [vmem:[%s6 + $0x8] sm:$0xf]
        %v4004 = vld [vmem:[%s6 + $0xc] sm:$0xf]
        %v4005 = vld [vmem:[%s6 + $0x10] sm:$0xf]
        %v4006 = vld [vmem:[%s6 + $0x14] sm:$0xf]
        %v4007 = vld [vmem:[%s6 + $0x18] sm:$0xf]
        %v4008 = vld [vmem:[%s6 + $0x1c] sm:$0xf]
        %v4009 = vld [vmem:[%s6 + $0x20] sm:$0xf]
        %v4010 = vld [vmem:[%s6 + $0x24] sm:$0xf]
        %v4011 = vld [vmem:[%s6 + $0x28] sm:$0xf]
        %v4012 = vld [vmem:[%s6 + $0x2c] sm:$0xf]
        %v4013 = vld [vmem:[%s6 + $0x30] sm:$0xf]
        %v4014 = vld [vmem:[%s6 + $0x34] sm:$0xf]
        %v4015 = vld [vmem:[%s6 + $0x38] sm:$0xf]
        %v4016 = vld [vmem:[%s6 + $0x3c] sm:$0xf]
        %v4017 = vld [vmem:[%s7] sm:$0x1]
        %v4019 = vlaneseq
        %v4020 = vshrl.u32 %v4019, 7
        %v4021 = vsub.s32 0, %v4020
        %v4022 = vrot.slane %v4017, %v4021
        %v4040 = vunpack.c.l.b16 %v4001
        %v4041 = vunpack.c.l.b16 %v4002
        %v4042 = vunpack.c.l.b16 %v4003
        %v4043 = vunpack.c.l.b16 %v4004
        %v4044 = vunpack.c.l.b16 %v4005
        %v4045 = vunpack.c.l.b16 %v4006
        %v4046 = vunpack.c.l.b16 %v4007
        %v4047 = vunpack.c.l.b16 %v4008
        %v4048 = vunpack.c.l.b16 %v4009
        %v4049 = vunpack.c.l.b16 %v4010
        %v4050 = vunpack.c.l.b16 %v4011
        %v4051 = vunpack.c.l.b16 %v4012
        %v4052 = vunpack.c.l.b16 %v4013
        %v4053 = vunpack.c.l.b16 %v4014
        %v4054 = vunpack.c.l.b16 %v4015
        %v4055 = vunpack.c.l.b16 %v4016
        %v4056 = vpack.c.b16 %v4041, %v4040
        %v4057 = vpack.c.b16 %v4043, %v4042
        %v4058 = vpack.c.b16 %v4045, %v4044
        %v4059 = vpack.c.b16 %v4047, %v4046
        %v4060 = vpack.c.b16 %v4049, %v4048
        %v4061 = vpack.c.b16 %v4051, %v4050
        %v4062 = vpack.c.b16 %v4053, %v4052
        %v4063 = vpack.c.b16 %v4055, %v4054
        %4072 = vmatprep.subr.bf16.mxu0 0
        %4073 = vmatpush1.bf16.msra.mxu0 %v4063
        %4074 = vmatprep.subr.bf16.mxu0 0
        %4075 = vmatpush1.bf16.msra.mxu0 %v4062
        %4076 = vmatprep.subr.bf16.mxu0 0
        %4077 = vmatpush1.bf16.msra.mxu0 %v4061
        %4078 = vmatprep.subr.bf16.mxu0 0
        %4079 = vmatpush1.bf16.msra.mxu0 %v4060
        %4080 = vmatprep.subr.bf16.mxu0 0
        %4081 = vmatpush1.bf16.msra.mxu0 %v4059
        %4082 = vmatprep.subr.bf16.mxu0 0
        %4083 = vmatpush1.bf16.msra.mxu0 %v4058
        %4084 = vmatprep.subr.bf16.mxu0 0
        %4085 = vmatpush1.bf16.msra.mxu0 %v4057
        %4086 = vmatprep.subr.bf16.mxu0 0
        %4087 = vmatpush1.bf16.msra.mxu0 %v4056
        %4088 = vmatprep.subr.bf16.mxu0 0
        %4089 = vmatpush2.bf16.msra.mxu0 0
        %4090 = vmatprep.subr.bf16.mxu0 0
        %4091 = vmatpush2.bf16.msra.mxu0 0
        %4092 = vmatprep.subr.bf16.mxu0 0
        %4093 = vmatpush2.bf16.msra.mxu0 0
        %4094 = vmatprep.subr.bf16.mxu0 0
        %4095 = vmatpush2.bf16.msra.mxu0 0
        %4096 = vmatprep.subr.bf16.mxu0 0
        %4097 = vmatpush2.bf16.msra.mxu0 0
        %4098 = vmatprep.subr.bf16.mxu0 0
        %4099 = vmatpush2.bf16.msra.mxu0 0
        %4100 = vmatprep.subr.bf16.mxu0 0
        %4101 = vmatpush2.bf16.msra.mxu0 0
        %4102 = vmatprep.subr.bf16.mxu0 0
        %4103 = vmatpush2.bf16.msra.mxu0 0
        %4104 = vmatprep.mubr.bf16.mxu0 0
        %4105 = vmatmul.mubr.bf16.gmra.mxu0 %v3999
        %v4106 = vpop.f32.mrf.mxu0
        %v4107 = vadd.f32 %v4022, %v4106
        %v4108 = vpop.f32.mrf.mxu0
        %v4109 = vpop.f32.mrf.mxu0
        %v4110 = vadd.f32 %v4022, %v4109
        %v4111 = vpop.f32.mrf.mxu0
        %4112 = vmatprep.mubr.bf16.mxu0 0
        %4113 = vmatmul.mubr.bf16.gmra.mxu0 %v4000
        %v4114 = vpop.f32.mrf.mxu0
        %v4115 = vadd.f32 %v4022, %v4114
        %v4116 = vpop.f32.mrf.mxu0
        %v4117 = vpop.f32.mrf.mxu0
        %v4118 = vadd.f32 %v4022, %v4117
        %v4119 = vpop.f32.mrf.mxu0
        %4120 = vdwg.mxu0
        %v4121 = vadd.f32 %v575, %v4107
        %v4122 = vadd.f32 %v578, %v4110
        %v4123 = vadd.f32 %v583, %v4115
        %v4124 = vadd.f32 %v586, %v4118
        %4125 = vadd.xlane.f32.xlu0 %v4121
        %v4126 = vpop.xlane.xlu0 %4125
        %4127 = vadd.xlane.f32.xlu0 %v4122
        %v4128 = vpop.xlane.xlu0 %4127
        %4129 = vadd.xlane.f32.xlu0 %v4123
        %v4130 = vpop.xlane.xlu0 %4129
        %4131 = vadd.xlane.f32.xlu0 %v4124
        %v4132 = vpop.xlane.xlu0 %4131
        %v4133 = vmul.f32 %v4126, %v602
        %v4134 = vmul.f32 %v4128, %v602
        %v4135 = vmul.f32 %v4130, %v602
        %v4136 = vmul.f32 %v4132, %v602
        %v4137 = vsub.f32 %v4121, %v4133
        %v4138 = vsub.f32 %v4122, %v4134
        %v4139 = vsub.f32 %v4123, %v4135
        %v4140 = vsub.f32 %v4124, %v4136
        %v4141 = vmul.f32 %v4137, %v4137
        %v4142 = vmul.f32 %v4138, %v4138
        %v4143 = vmul.f32 %v4139, %v4139
        %v4144 = vmul.f32 %v4140, %v4140
        %4145 = vadd.xlane.f32.xlu0 %v4141
        %v4146 = vpop.xlane.xlu0 %4145
        %4147 = vadd.xlane.f32.xlu0 %v4142
        %v4148 = vpop.xlane.xlu0 %4147
        %4149 = vadd.xlane.f32.xlu0 %v4143
        %v4150 = vpop.xlane.xlu0 %4149
        %4151 = vadd.xlane.f32.xlu0 %v4144
        %v4152 = vpop.xlane.xlu0 %4151
        %v4153 = vmul.f32 %v4146, %v602
        %v4154 = vmul.f32 %v4148, %v602
        %v4155 = vmul.f32 %v4150, %v602
        %v4156 = vmul.f32 %v4152, %v602
        %v4157 = vadd.f32 %v4153, 1e-05
        %v4158 = vadd.f32 %v4154, 1e-05
        %v4159 = vadd.f32 %v4155, 1e-05
        %v4160 = vadd.f32 %v4156, 1e-05
        %v4161 = vrsqrt.pop %v4157
        %v4162 = vrsqrt.pop %v4158
        %v4163 = vrsqrt.pop %v4159
        %v4164 = vrsqrt.pop %v4160
        %v4165 = vmul.f32 %v4137, %v4161
        %v4166 = vmul.f32 %v4138, %v4162
        %v4167 = vmul.f32 %v4139, %v4163
        %v4168 = vmul.f32 %v4140, %v4164
        %v4169 = vlaneseq
        %v4170 = vshrl.u32 %v4169, 7
        %v4171 = vsub.s32 2, %v4170
        %v4172 = vrot.slane %v593, %v4171
        %v4173 = vmul.f32 %v4165, %v4172
        %v4174 = vmul.f32 %v4166, %v4172
        %v4175 = vmul.f32 %v4167, %v4172
        %v4176 = vmul.f32 %v4168, %v4172
        %v4177 = vlaneseq
        %v4178 = vshrl.u32 %v4177, 7
        %v4179 = vsub.s32 3, %v4178
        %v4180 = vrot.slane %v593, %v4179
        %v4181 = vadd.f32 %v4173, %v4180
        %v4182 = vadd.f32 %v4174, %v4180
        %v4183 = vadd.f32 %v4175, %v4180
        %v4184 = vadd.f32 %v4176, %v4180
        %v4185 = vpack.c.bf16 %v4182, %v4181
        %v4186 = vpack.c.bf16 %v4184, %v4183
        %v4187 = vld [vmem:[%s8] sm:$0xff]
        %v4188 = vld [vmem:[%s8 + $0x8] sm:$0xff]
        %v4189 = vld [vmem:[%s8 + $0x10] sm:$0xff]
        %v4190 = vld [vmem:[%s8 + $0x18] sm:$0xff]
        %v4191 = vld [vmem:[%s8 + $0x20] sm:$0xff]
        %v4192 = vld [vmem:[%s8 + $0x28] sm:$0xff]
        %v4193 = vld [vmem:[%s8 + $0x30] sm:$0xff]
        %v4194 = vld [vmem:[%s8 + $0x38] sm:$0xff]
        %v4195 = vld [vmem:[%s8 + $0x40] sm:$0xff]
        %v4196 = vld [vmem:[%s8 + $0x48] sm:$0xff]
        %v4197 = vld [vmem:[%s8 + $0x50] sm:$0xff]
        %v4198 = vld [vmem:[%s8 + $0x58] sm:$0xff]
        %v4199 = vld [vmem:[%s8 + $0x60] sm:$0xff]
        %v4200 = vld [vmem:[%s8 + $0x68] sm:$0xff]
        %v4201 = vld [vmem:[%s8 + $0x70] sm:$0xff]
        %v4202 = vld [vmem:[%s8 + $0x78] sm:$0xff]
        %v4203 = vld [vmem:[%s9] sm:$0x3]
        %v4205 = vlaneseq
        %v4206 = vshrl.u32 %v4205, 7
        %v4207 = vsub.s32 0, %v4206
        %v4208 = vrot.slane %v4203, %v4207
        %v4209 = vlaneseq
        %v4210 = vshrl.u32 %v4209, 7
        %v4211 = vsub.s32 1, %v4210
        %v4212 = vrot.slane %v4203, %v4211
        %v4231 = vunpack.c.l.b16 %v4187
        %v4232 = vunpack.c.h.b16 %v4187
        %v4233 = vunpack.c.l.b16 %v4188
        %v4234 = vunpack.c.h.b16 %v4188
        %v4235 = vunpack.c.l.b16 %v4189
        %v4236 = vunpack.c.h.b16 %v4189
        %v4237 = vunpack.c.l.b16 %v4190
        %v4238 = vunpack.c.h.b16 %v4190
        %v4239 = vunpack.c.l.b16 %v4191
        %v4240 = vunpack.c.h.b16 %v4191
        %v4241 = vunpack.c.l.b16 %v4192
        %v4242 = vunpack.c.h.b16 %v4192
        %v4243 = vunpack.c.l.b16 %v4193
        %v4244 = vunpack.c.h.b16 %v4193
        %v4245 = vunpack.c.l.b16 %v4194
        %v4246 = vunpack.c.h.b16 %v4194
        %v4247 = vunpack.c.l.b16 %v4195
        %v4248 = vunpack.c.h.b16 %v4195
        %v4249 = vunpack.c.l.b16 %v4196
        %v4250 = vunpack.c.h.b16 %v4196
        %v4251 = vunpack.c.l.b16 %v4197
        %v4252 = vunpack.c.h.b16 %v4197
        %v4253 = vunpack.c.l.b16 %v4198
        %v4254 = vunpack.c.h.b16 %v4198
        %v4255 = vunpack.c.l.b16 %v4199
        %v4256 = vunpack.c.h.b16 %v4199
        %v4257 = vunpack.c.l.b16 %v4200
        %v4258 = vunpack.c.h.b16 %v4200
        %v4259 = vunpack.c.l.b16 %v4201
        %v4260 = vunpack.c.h.b16 %v4201
        %v4261 = vunpack.c.l.b16 %v4202
        %v4262 = vunpack.c.h.b16 %v4202
        %v4263 = vpack.c.b16 %v4233, %v4231
        %v4264 = vpack.c.b16 %v4234, %v4232
        %v4265 = vpack.c.b16 %v4237, %v4235
        %v4266 = vpack.c.b16 %v4238, %v4236
        %v4267 = vpack.c.b16 %v4241, %v4239
        %v4268 = vpack.c.b16 %v4242, %v4240
        %v4269 = vpack.c.b16 %v4245, %v4243
        %v4270 = vpack.c.b16 %v4246, %v4244
        %v4271 = vpack.c.b16 %v4249, %v4247
        %v4272 = vpack.c.b16 %v4250, %v4248
        %v4273 = vpack.c.b16 %v4253, %v4251
        %v4274 = vpack.c.b16 %v4254, %v4252
        %v4275 = vpack.c.b16 %v4257, %v4255
        %v4276 = vpack.c.b16 %v4258, %v4256
        %v4277 = vpack.c.b16 %v4261, %v4259
        %v4278 = vpack.c.b16 %v4262, %v4260
        %4295 = vmatprep.subr.bf16.mxu0 %v4278
        %4296 = vmatpush1.bf16.msra.mxu0 %v4277
        %4297 = vmatprep.subr.bf16.mxu0 %v4276
        %4298 = vmatpush1.bf16.msra.mxu0 %v4275
        %4299 = vmatprep.subr.bf16.mxu0 %v4274
        %4300 = vmatpush1.bf16.msra.mxu0 %v4273
        %4301 = vmatprep.subr.bf16.mxu0 %v4272
        %4302 = vmatpush1.bf16.msra.mxu0 %v4271
        %4303 = vmatprep.subr.bf16.mxu0 %v4270
        %4304 = vmatpush1.bf16.msra.mxu0 %v4269
        %4305 = vmatprep.subr.bf16.mxu0 %v4268
        %4306 = vmatpush1.bf16.msra.mxu0 %v4267
        %4307 = vmatprep.subr.bf16.mxu0 %v4266
        %4308 = vmatpush1.bf16.msra.mxu0 %v4265
        %4309 = vmatprep.subr.bf16.mxu0 %v4264
        %4310 = vmatpush1.bf16.msra.mxu0 %v4263
        %4311 = vmatprep.subr.bf16.mxu0 0
        %4312 = vmatpush2.bf16.msra.mxu0 0
        %4313 = vmatprep.subr.bf16.mxu0 0
        %4314 = vmatpush2.bf16.msra.mxu0 0
        %4315 = vmatprep.subr.bf16.mxu0 0
        %4316 = vmatpush2.bf16.msra.mxu0 0
        %4317 = vmatprep.subr.bf16.mxu0 0
        %4318 = vmatpush2.bf16.msra.mxu0 0
        %4319 = vmatprep.subr.bf16.mxu0 0
        %4320 = vmatpush2.bf16.msra.mxu0 0
        %4321 = vmatprep.subr.bf16.mxu0 0
        %4322 = vmatpush2.bf16.msra.mxu0 0
        %4323 = vmatprep.subr.bf16.mxu0 0
        %4324 = vmatpush2.bf16.msra.mxu0 0
        %4325 = vmatprep.subr.bf16.mxu0 0
        %4326 = vmatpush2.bf16.msra.mxu0 0
        %4327 = vmatprep.mubr.bf16.mxu0 0
        %4328 = vmatmul.mubr.bf16.gmra.mxu0 %v4185
        %v4329 = vpop.f32.mrf.mxu0
        %v4330 = vadd.f32 %v4208, %v4329
        %v4331 = vpop.f32.mrf.mxu0
        %v4332 = vadd.f32 %v4212, %v4331
        %v4333 = vpop.f32.mrf.mxu0
        %v4334 = vadd.f32 %v4208, %v4333
        %v4335 = vpop.f32.mrf.mxu0
        %v4336 = vadd.f32 %v4212, %v4335
        %4337 = vmatprep.mubr.bf16.mxu0 0
        %4338 = vmatmul.mubr.bf16.gmra.mxu0 %v4186
        %v4339 = vpop.f32.mrf.mxu0
        %v4340 = vadd.f32 %v4208, %v4339
        %v4341 = vpop.f32.mrf.mxu0
        %v4342 = vadd.f32 %v4212, %v4341
        %v4343 = vpop.f32.mrf.mxu0
        %v4344 = vadd.f32 %v4208, %v4343
        %v4345 = vpop.f32.mrf.mxu0
        %v4346 = vadd.f32 %v4212, %v4345
        %4347 = vdwg.mxu0
        %v4348 = vmul.f32 %v4330, %v4330
        %v4349 = vmul.f32 %v4332, %v4332
        %v4350 = vmul.f32 %v4334, %v4334
        %v4351 = vmul.f32 %v4336, %v4336
        %v4352 = vmul.f32 %v4340, %v4340
        %v4353 = vmul.f32 %v4342, %v4342
        %v4354 = vmul.f32 %v4344, %v4344
        %v4355 = vmul.f32 %v4346, %v4346
        %v4356 = vmul.f32 %v4330, %v4348
        %v4357 = vmul.f32 %v4332, %v4349
        %v4358 = vmul.f32 %v4334, %v4350
        %v4359 = vmul.f32 %v4336, %v4351
        %v4360 = vmul.f32 %v4340, %v4352
        %v4361 = vmul.f32 %v4342, %v4353
        %v4362 = vmul.f32 %v4344, %v4354
        %v4363 = vmul.f32 %v4346, %v4355
        %v4364 = vmul.f32 %v4356, 0.044715
        %v4365 = vmul.f32 %v4357, 0.044715
        %v4366 = vmul.f32 %v4358, 0.044715
        %v4367 = vmul.f32 %v4359, 0.044715
        %v4368 = vmul.f32 %v4360, 0.044715
        %v4369 = vmul.f32 %v4361, 0.044715
        %v4370 = vmul.f32 %v4362, 0.044715
        %v4371 = vmul.f32 %v4363, 0.044715
        %v4372 = vadd.f32 %v4330, %v4364
        %v4373 = vadd.f32 %v4332, %v4365
        %v4374 = vadd.f32 %v4334, %v4366
        %v4375 = vadd.f32 %v4336, %v4367
        %v4376 = vadd.f32 %v4340, %v4368
        %v4377 = vadd.f32 %v4342, %v4369
        %v4378 = vadd.f32 %v4344, %v4370
        %v4379 = vadd.f32 %v4346, %v4371
        %v4380 = vmul.f32 %v4372, 0.7978846
        %v4381 = vmul.f32 %v4373, 0.7978846
        %v4382 = vmul.f32 %v4374, 0.7978846
        %v4383 = vmul.f32 %v4375, 0.7978846
        %v4384 = vmul.f32 %v4376, 0.7978846
        %v4385 = vmul.f32 %v4377, 0.7978846
        %v4386 = vmul.f32 %v4378, 0.7978846
        %v4387 = vmul.f32 %v4379, 0.7978846
        %v4388 = vtanh.pop %v4380
        %v4389 = vtanh.pop %v4381
        %v4390 = vtanh.pop %v4382
        %v4391 = vtanh.pop %v4383
        %v4392 = vtanh.pop %v4384
        %v4393 = vtanh.pop %v4385
        %v4394 = vtanh.pop %v4386
        %v4395 = vtanh.pop %v4387
        %v4396 = vadd.f32 %v4388, 1.0
        %v4397 = vadd.f32 %v4389, 1.0
        %v4398 = vadd.f32 %v4390, 1.0
        %v4399 = vadd.f32 %v4391, 1.0
        %v4400 = vadd.f32 %v4392, 1.0
        %v4401 = vadd.f32 %v4393, 1.0
        %v4402 = vadd.f32 %v4394, 1.0
        %v4403 = vadd.f32 %v4395, 1.0
        %v4404 = vmul.f32 %v4396, 0.5
        %v4405 = vmul.f32 %v4397, 0.5
        %v4406 = vmul.f32 %v4398, 0.5
        %v4407 = vmul.f32 %v4399, 0.5
        %v4408 = vmul.f32 %v4400, 0.5
        %v4409 = vmul.f32 %v4401, 0.5
        %v4410 = vmul.f32 %v4402, 0.5
        %v4411 = vmul.f32 %v4403, 0.5
        %v4412 = vmul.f32 %v4330, %v4404
        %v4413 = vmul.f32 %v4332, %v4405
        %v4414 = vmul.f32 %v4334, %v4406
        %v4415 = vmul.f32 %v4336, %v4407
        %v4416 = vmul.f32 %v4340, %v4408
        %v4417 = vmul.f32 %v4342, %v4409
        %v4418 = vmul.f32 %v4344, %v4410
        %v4419 = vmul.f32 %v4346, %v4411
        %v4420 = vpack.c.bf16 %v4414, %v4412
        %v4421 = vpack.c.bf16 %v4415, %v4413
        %v4422 = vpack.c.bf16 %v4418, %v4416
        %v4423 = vpack.c.bf16 %v4419, %v4417
        %v4424 = vld [vmem:[%s10] sm:$0xf]
        %v4425 = vld [vmem:[%s10 + $0x4] sm:$0xf]
        %v4426 = vld [vmem:[%s10 + $0x8] sm:$0xf]
        %v4427 = vld [vmem:[%s10 + $0xc] sm:$0xf]
        %v4428 = vld [vmem:[%s10 + $0x10] sm:$0xf]
        %v4429 = vld [vmem:[%s10 + $0x14] sm:$0xf]
        %v4430 = vld [vmem:[%s10 + $0x18] sm:$0xf]
        %v4431 = vld [vmem:[%s10 + $0x1c] sm:$0xf]
        %v4432 = vld [vmem:[%s10 + $0x20] sm:$0xf]
        %v4433 = vld [vmem:[%s10 + $0x24] sm:$0xf]
        %v4434 = vld [vmem:[%s10 + $0x28] sm:$0xf]
        %v4435 = vld [vmem:[%s10 + $0x2c] sm:$0xf]
        %v4436 = vld [vmem:[%s10 + $0x30] sm:$0xf]
        %v4437 = vld [vmem:[%s10 + $0x34] sm:$0xf]
        %v4438 = vld [vmem:[%s10 + $0x38] sm:$0xf]
        %v4439 = vld [vmem:[%s10 + $0x3c] sm:$0xf]
        %v4440 = vld [vmem:[%s10 + $0x40] sm:$0xf]
        %v4441 = vld [vmem:[%s10 + $0x44] sm:$0xf]
        %v4442 = vld [vmem:[%s10 + $0x48] sm:$0xf]
        %v4443 = vld [vmem:[%s10 + $0x4c] sm:$0xf]
        %v4444 = vld [vmem:[%s10 + $0x50] sm:$0xf]
        %v4445 = vld [vmem:[%s10 + $0x54] sm:$0xf]
        %v4446 = vld [vmem:[%s10 + $0x58] sm:$0xf]
        %v4447 = vld [vmem:[%s10 + $0x5c] sm:$0xf]
        %v4448 = vld [vmem:[%s10 + $0x60] sm:$0xf]
        %v4449 = vld [vmem:[%s10 + $0x64] sm:$0xf]
        %v4450 = vld [vmem:[%s10 + $0x68] sm:$0xf]
        %v4451 = vld [vmem:[%s10 + $0x6c] sm:$0xf]
        %v4452 = vld [vmem:[%s10 + $0x70] sm:$0xf]
        %v4453 = vld [vmem:[%s10 + $0x74] sm:$0xf]
        %v4454 = vld [vmem:[%s10 + $0x78] sm:$0xf]
        %v4455 = vld [vmem:[%s10 + $0x7c] sm:$0xf]
        %v4456 = vld [vmem:[%s11] sm:$0x1]
        %v4458 = vlaneseq
        %v4459 = vshrl.u32 %v4458, 7
        %v4460 = vsub.s32 0, %v4459
        %v4461 = vrot.slane %v4456, %v4460
        %v4495 = vunpack.c.l.b16 %v4424
        %v4496 = vunpack.c.l.b16 %v4425
        %v4497 = vunpack.c.l.b16 %v4426
        %v4498 = vunpack.c.l.b16 %v4427
        %v4499 = vunpack.c.l.b16 %v4428
        %v4500 = vunpack.c.l.b16 %v4429
        %v4501 = vunpack.c.l.b16 %v4430
        %v4502 = vunpack.c.l.b16 %v4431
        %v4503 = vunpack.c.l.b16 %v4432
        %v4504 = vunpack.c.l.b16 %v4433
        %v4505 = vunpack.c.l.b16 %v4434
        %v4506 = vunpack.c.l.b16 %v4435
        %v4507 = vunpack.c.l.b16 %v4436
        %v4508 = vunpack.c.l.b16 %v4437
        %v4509 = vunpack.c.l.b16 %v4438
        %v4510 = vunpack.c.l.b16 %v4439
        %v4511 = vunpack.c.l.b16 %v4440
        %v4512 = vunpack.c.l.b16 %v4441
        %v4513 = vunpack.c.l.b16 %v4442
        %v4514 = vunpack.c.l.b16 %v4443
        %v4515 = vunpack.c.l.b16 %v4444
        %v4516 = vunpack.c.l.b16 %v4445
        %v4517 = vunpack.c.l.b16 %v4446
        %v4518 = vunpack.c.l.b16 %v4447
        %v4519 = vunpack.c.l.b16 %v4448
        %v4520 = vunpack.c.l.b16 %v4449
        %v4521 = vunpack.c.l.b16 %v4450
        %v4522 = vunpack.c.l.b16 %v4451
        %v4523 = vunpack.c.l.b16 %v4452
        %v4524 = vunpack.c.l.b16 %v4453
        %v4525 = vunpack.c.l.b16 %v4454
        %v4526 = vunpack.c.l.b16 %v4455
        %v4527 = vpack.c.b16 %v4496, %v4495
        %v4528 = vpack.c.b16 %v4498, %v4497
        %v4529 = vpack.c.b16 %v4500, %v4499
        %v4530 = vpack.c.b16 %v4502, %v4501
        %v4531 = vpack.c.b16 %v4504, %v4503
        %v4532 = vpack.c.b16 %v4506, %v4505
        %v4533 = vpack.c.b16 %v4508, %v4507
        %v4534 = vpack.c.b16 %v4510, %v4509
        %v4535 = vpack.c.b16 %v4512, %v4511
        %v4536 = vpack.c.b16 %v4514, %v4513
        %v4537 = vpack.c.b16 %v4516, %v4515
        %v4538 = vpack.c.b16 %v4518, %v4517
        %v4539 = vpack.c.b16 %v4520, %v4519
        %v4540 = vpack.c.b16 %v4522, %v4521
        %v4541 = vpack.c.b16 %v4524, %v4523
        %v4542 = vpack.c.b16 %v4526, %v4525
        %4559 = vmatprep.subr.bf16.mxu0 0
        %4560 = vmatpush1.bf16.msra.mxu0 %v4534
        %4561 = vmatprep.subr.bf16.mxu0 0
        %4562 = vmatpush1.bf16.msra.mxu0 %v4533
        %4563 = vmatprep.subr.bf16.mxu0 0
        %4564 = vmatpush1.bf16.msra.mxu0 %v4532
        %4565 = vmatprep.subr.bf16.mxu0 0
        %4566 = vmatpush1.bf16.msra.mxu0 %v4531
        %4567 = vmatprep.subr.bf16.mxu0 0
        %4568 = vmatpush1.bf16.msra.mxu0 %v4530
        %4569 = vmatprep.subr.bf16.mxu0 0
        %4570 = vmatpush1.bf16.msra.mxu0 %v4529
        %4571 = vmatprep.subr.bf16.mxu0 0
        %4572 = vmatpush1.bf16.msra.mxu0 %v4528
        %4573 = vmatprep.subr.bf16.mxu0 0
        %4574 = vmatpush1.bf16.msra.mxu0 %v4527
        %4575 = vmatprep.subr.bf16.mxu0 0
        %4576 = vmatpush2.bf16.msra.mxu0 %v4542
        %4577 = vmatprep.subr.bf16.mxu0 0
        %4578 = vmatpush2.bf16.msra.mxu0 %v4541
        %4579 = vmatprep.subr.bf16.mxu0 0
        %4580 = vmatpush2.bf16.msra.mxu0 %v4540
        %4581 = vmatprep.subr.bf16.mxu0 0
        %4582 = vmatpush2.bf16.msra.mxu0 %v4539
        %4583 = vmatprep.subr.bf16.mxu0 0
        %4584 = vmatpush2.bf16.msra.mxu0 %v4538
        %4585 = vmatprep.subr.bf16.mxu0 0
        %4586 = vmatpush2.bf16.msra.mxu0 %v4537
        %4587 = vmatprep.subr.bf16.mxu0 0
        %4588 = vmatpush2.bf16.msra.mxu0 %v4536
        %4589 = vmatprep.subr.bf16.mxu0 0
        %4590 = vmatpush2.bf16.msra.mxu0 %v4535
        %4591 = vmatprep.mubr.bf16.mxu0 %v4421
        %4592 = vmatmul.mubr.bf16.gmra.mxu0 %v4420
        %v4593 = vpop.f32.mrf.mxu0
        %v4594 = vadd.f32 %v4461, %v4593
        %v4595 = vpop.f32.mrf.mxu0
        %v4596 = vpop.f32.mrf.mxu0
        %v4597 = vadd.f32 %v4461, %v4596
        %v4598 = vpop.f32.mrf.mxu0
        %4599 = vmatprep.mubr.bf16.mxu0 %v4423
        %4600 = vmatmul.mubr.bf16.gmra.mxu0 %v4422
        %v4601 = vpop.f32.mrf.mxu0
        %v4602 = vadd.f32 %v4461, %v4601
        %v4603 = vpop.f32.mrf.mxu0
        %v4604 = vpop.f32.mrf.mxu0
        %v4605 = vadd.f32 %v4461, %v4604
        %v4606 = vpop.f32.mrf.mxu0
        %4607 = vdwg.mxu0
        %v4608 = vadd.f32 %v4121, %v4594
        %v4609 = vadd.f32 %v4122, %v4597
        %v4610 = vadd.f32 %v4123, %v4602
        %v4611 = vadd.f32 %v4124, %v4605
        %s4612 = scalar_lea.vmem %s3, 4
        %v4613 = vld [vmem:[%s4612] sm:$0xf]
        %4614 = vadd.xlane.f32.xlu0 %v4608
        %v4615 = vpop.xlane.xlu0 %4614
        %4616 = vadd.xlane.f32.xlu0 %v4609
        %v4617 = vpop.xlane.xlu0 %4616
        %4618 = vadd.xlane.f32.xlu0 %v4610
        %v4619 = vpop.xlane.xlu0 %4618
        %4620 = vadd.xlane.f32.xlu0 %v4611
        %v4621 = vpop.xlane.xlu0 %4620
        %v4622 = vmul.f32 %v4615, %v602
        %v4623 = vmul.f32 %v4617, %v602
        %v4624 = vmul.f32 %v4619, %v602
        %v4625 = vmul.f32 %v4621, %v602
        %v4626 = vsub.f32 %v4608, %v4622
        %v4627 = vsub.f32 %v4609, %v4623
        %v4628 = vsub.f32 %v4610, %v4624
        %v4629 = vsub.f32 %v4611, %v4625
        %v4630 = vmul.f32 %v4626, %v4626
        %v4631 = vmul.f32 %v4627, %v4627
        %v4632 = vmul.f32 %v4628, %v4628
        %v4633 = vmul.f32 %v4629, %v4629
        %4634 = vadd.xlane.f32.xlu0 %v4630
        %v4635 = vpop.xlane.xlu0 %4634
        %4636 = vadd.xlane.f32.xlu0 %v4631
        %v4637 = vpop.xlane.xlu0 %4636
        %4638 = vadd.xlane.f32.xlu0 %v4632
        %v4639 = vpop.xlane.xlu0 %4638
        %4640 = vadd.xlane.f32.xlu0 %v4633
        %v4641 = vpop.xlane.xlu0 %4640
        %v4642 = vmul.f32 %v4635, %v602
        %v4643 = vmul.f32 %v4637, %v602
        %v4644 = vmul.f32 %v4639, %v602
        %v4645 = vmul.f32 %v4641, %v602
        %v4646 = vadd.f32 %v4642, 1e-05
        %v4647 = vadd.f32 %v4643, 1e-05
        %v4648 = vadd.f32 %v4644, 1e-05
        %v4649 = vadd.f32 %v4645, 1e-05
        %v4650 = vrsqrt.pop %v4646
        %v4651 = vrsqrt.pop %v4647
        %v4652 = vrsqrt.pop %v4648
        %v4653 = vrsqrt.pop %v4649
        %v4654 = vmul.f32 %v4626, %v4650
        %v4655 = vmul.f32 %v4627, %v4651
        %v4656 = vmul.f32 %v4628, %v4652
        %v4657 = vmul.f32 %v4629, %v4653
        %v4658 = vlaneseq
        %v4659 = vshrl.u32 %v4658, 7
        %v4660 = vsub.s32 0, %v4659
        %v4661 = vrot.slane %v4613, %v4660
        %v4662 = vmul.f32 %v4654, %v4661
        %v4663 = vmul.f32 %v4655, %v4661
        %v4664 = vmul.f32 %v4656, %v4661
        %v4665 = vmul.f32 %v4657, %v4661
        %v4666 = vlaneseq
        %v4667 = vshrl.u32 %v4666, 7
        %v4668 = vsub.s32 1, %v4667
        %v4669 = vrot.slane %v4613, %v4668
        %v4670 = vadd.f32 %v4662, %v4669
        %v4671 = vadd.f32 %v4663, %v4669
        %v4672 = vadd.f32 %v4664, %v4669
        %v4673 = vadd.f32 %v4665, %v4669
        %v4674 = vpack.c.bf16 %v4671, %v4670
        %v4675 = vpack.c.bf16 %v4673, %v4672
        %s4676 = scalar_lea.vmem %s4, 192
        %v4677 = vld [vmem:[%s4676] sm:$0xff]
        %v4678 = vld [vmem:[%s4676 + $0x8] sm:$0xf]
        %v4679 = vld [vmem:[%s4676 + $0xc] sm:$0xff]
        %v4680 = vld [vmem:[%s4676 + $0x14] sm:$0xf]
        %v4681 = vld [vmem:[%s4676 + $0x18] sm:$0xff]
        %v4682 = vld [vmem:[%s4676 + $0x20] sm:$0xf]
        %v4683 = vld [vmem:[%s4676 + $0x24] sm:$0xff]
        %v4684 = vld [vmem:[%s4676 + $0x2c] sm:$0xf]
        %v4685 = vld [vmem:[%s4676 + $0x30] sm:$0xff]
        %v4686 = vld [vmem:[%s4676 + $0x38] sm:$0xf]
        %v4687 = vld [vmem:[%s4676 + $0x3c] sm:$0xff]
        %v4688 = vld [vmem:[%s4676 + $0x44] sm:$0xf]
        %v4689 = vld [vmem:[%s4676 + $0x48] sm:$0xff]
        %v4690 = vld [vmem:[%s4676 + $0x50] sm:$0xf]
        %v4691 = vld [vmem:[%s4676 + $0x54] sm:$0xff]
        %v4692 = vld [vmem:[%s4676 + $0x5c] sm:$0xf]
        %v4693 = vld [vmem:[%s4676 + $0x60] sm:$0xff]
        %v4694 = vld [vmem:[%s4676 + $0x68] sm:$0xf]
        %v4695 = vld [vmem:[%s4676 + $0x6c] sm:$0xff]
        %v4696 = vld [vmem:[%s4676 + $0x74] sm:$0xf]
        %v4697 = vld [vmem:[%s4676 + $0x78] sm:$0xff]
        %v4698 = vld [vmem:[%s4676 + $0x80] sm:$0xf]
        %v4699 = vld [vmem:[%s4676 + $0x84] sm:$0xff]
        %v4700 = vld [vmem:[%s4676 + $0x8c] sm:$0xf]
        %v4701 = vld [vmem:[%s4676 + $0x90] sm:$0xff]
        %v4702 = vld [vmem:[%s4676 + $0x98] sm:$0xf]
        %v4703 = vld [vmem:[%s4676 + $0x9c] sm:$0xff]
        %v4704 = vld [vmem:[%s4676 + $0xa4] sm:$0xf]
        %v4705 = vld [vmem:[%s4676 + $0xa8] sm:$0xff]
        %v4706 = vld [vmem:[%s4676 + $0xb0] sm:$0xf]
        %v4707 = vld [vmem:[%s4676 + $0xb4] sm:$0xff]
        %v4708 = vld [vmem:[%s4676 + $0xbc] sm:$0xf]
        %s4709 = scalar_lea.vmem %s5, 3
        %v4710 = vld [vmem:[%s4709] sm:$0x7]
        %v4712 = vlaneseq
        %v4713 = vshrl.u32 %v4712, 7
        %v4714 = vsub.s32 0, %v4713
        %v4715 = vrot.slane %v4710, %v4714
        %v4716 = vlaneseq
        %v4717 = vshrl.u32 %v4716, 7
        %v4718 = vsub.s32 1, %v4717
        %v4719 = vrot.slane %v4710, %v4718
        %v4720 = vlaneseq
        %v4721 = vshrl.u32 %v4720, 7
        %v4722 = vsub.s32 2, %v4721
        %v4723 = vrot.slane %v4710, %v4722
        %v4759 = vunpack.c.l.b16 %v4677
        %v4760 = vunpack.c.h.b16 %v4677
        %v4761 = vunpack.c.l.b16 %v4678
        %v4762 = vunpack.c.l.b16 %v4679
        %v4763 = vunpack.c.h.b16 %v4679
        %v4764 = vunpack.c.l.b16 %v4680
        %v4765 = vunpack.c.l.b16 %v4681
        %v4766 = vunpack.c.h.b16 %v4681
        %v4767 = vunpack.c.l.b16 %v4682
        %v4768 = vunpack.c.l.b16 %v4683
        %v4769 = vunpack.c.h.b16 %v4683
        %v4770 = vunpack.c.l.b16 %v4684
        %v4771 = vunpack.c.l.b16 %v4685
        %v4772 = vunpack.c.h.b16 %v4685
        %v4773 = vunpack.c.l.b16 %v4686
        %v4774 = vunpack.c.l.b16 %v4687
        %v4775 = vunpack.c.h.b16 %v4687
        %v4776 = vunpack.c.l.b16 %v4688
        %v4777 = vunpack.c.l.b16 %v4689
        %v4778 = vunpack.c.h.b16 %v4689
        %v4779 = vunpack.c.l.b16 %v4690
        %v4780 = vunpack.c.l.b16 %v4691
        %v4781 = vunpack.c.h.b16 %v4691
        %v4782 = vunpack.c.l.b16 %v4692
        %v4783 = vunpack.c.l.b16 %v4693
        %v4784 = vunpack.c.h.b16 %v4693
        %v4785 = vunpack.c.l.b16 %v4694
        %v4786 = vunpack.c.l.b16 %v4695
        %v4787 = vunpack.c.h.b16 %v4695
        %v4788 = vunpack.c.l.b16 %v4696
        %v4789 = vunpack.c.l.b16 %v4697
        %v4790 = vunpack.c.h.b16 %v4697
        %v4791 = vunpack.c.l.b16 %v4698
        %v4792 = vunpack.c.l.b16 %v4699
        %v4793 = vunpack.c.h.b16 %v4699
        %v4794 = vunpack.c.l.b16 %v4700
        %v4795 = vunpack.c.l.b16 %v4701
        %v4796 = vunpack.c.h.b16 %v4701
        %v4797 = vunpack.c.l.b16 %v4702
        %v4798 = vunpack.c.l.b16 %v4703
        %v4799 = vunpack.c.h.b16 %v4703
        %v4800 = vunpack.c.l.b16 %v4704
        %v4801 = vunpack.c.l.b16 %v4705
        %v4802 = vunpack.c.h.b16 %v4705
        %v4803 = vunpack.c.l.b16 %v4706
        %v4804 = vunpack.c.l.b16 %v4707
        %v4805 = vunpack.c.h.b16 %v4707
        %v4806 = vunpack.c.l.b16 %v4708
        %v4807 = vpack.c.b16 %v4762, %v4759
        %v4808 = vpack.c.b16 %v4763, %v4760
        %v4809 = vpack.c.b16 %v4764, %v4761
        %v4810 = vpack.c.b16 %v4768, %v4765
        %v4811 = vpack.c.b16 %v4769, %v4766
        %v4812 = vpack.c.b16 %v4770, %v4767
        %v4813 = vpack.c.b16 %v4774, %v4771
        %v4814 = vpack.c.b16 %v4775, %v4772
        %v4815 = vpack.c.b16 %v4776, %v4773
        %v4816 = vpack.c.b16 %v4780, %v4777
        %v4817 = vpack.c.b16 %v4781, %v4778
        %v4818 = vpack.c.b16 %v4782, %v4779
        %v4819 = vpack.c.b16 %v4786, %v4783
        %v4820 = vpack.c.b16 %v4787, %v4784
        %v4821 = vpack.c.b16 %v4788, %v4785
        %v4822 = vpack.c.b16 %v4792, %v4789
        %v4823 = vpack.c.b16 %v4793, %v4790
        %v4824 = vpack.c.b16 %v4794, %v4791
        %v4825 = vpack.c.b16 %v4798, %v4795
        %v4826 = vpack.c.b16 %v4799, %v4796
        %v4827 = vpack.c.b16 %v4800, %v4797
        %v4828 = vpack.c.b16 %v4804, %v4801
        %v4829 = vpack.c.b16 %v4805, %v4802
        %v4830 = vpack.c.b16 %v4806, %v4803
        %4855 = vmatprep.subr.bf16.mxu0 %v4829
        %4856 = vmatpush1.bf16.msra.mxu0 %v4828
        %4857 = vmatprep.subr.bf16.mxu0 %v4826
        %4858 = vmatpush1.bf16.msra.mxu0 %v4825
        %4859 = vmatprep.subr.bf16.mxu0 %v4823
        %4860 = vmatpush1.bf16.msra.mxu0 %v4822
        %4861 = vmatprep.subr.bf16.mxu0 %v4820
        %4862 = vmatpush1.bf16.msra.mxu0 %v4819
        %4863 = vmatprep.subr.bf16.mxu0 %v4817
        %4864 = vmatpush1.bf16.msra.mxu0 %v4816
        %4865 = vmatprep.subr.bf16.mxu0 %v4814
        %4866 = vmatpush1.bf16.msra.mxu0 %v4813
        %4867 = vmatprep.subr.bf16.mxu0 %v4811
        %4868 = vmatpush1.bf16.msra.mxu0 %v4810
        %4869 = vmatprep.subr.bf16.mxu0 %v4808
        %4870 = vmatpush1.bf16.msra.mxu0 %v4807
        %4871 = vmatprep.subr.bf16.mxu0 0
        %4872 = vmatpush2.bf16.msra.mxu0 0
        %4873 = vmatprep.subr.bf16.mxu0 0
        %4874 = vmatpush2.bf16.msra.mxu0 0
        %4875 = vmatprep.subr.bf16.mxu0 0
        %4876 = vmatpush2.bf16.msra.mxu0 0
        %4877 = vmatprep.subr.bf16.mxu0 0
        %4878 = vmatpush2.bf16.msra.mxu0 0
        %4879 = vmatprep.subr.bf16.mxu0 0
        %4880 = vmatpush2.bf16.msra.mxu0 0
        %4881 = vmatprep.subr.bf16.mxu0 0
        %4882 = vmatpush2.bf16.msra.mxu0 0
        %4883 = vmatprep.subr.bf16.mxu0 0
        %4884 = vmatpush2.bf16.msra.mxu0 0
        %4885 = vmatprep.subr.bf16.mxu0 0
        %4886 = vmatpush2.bf16.msra.mxu0 0
        %4887 = vmatprep.mubr.bf16.mxu0 0
        %4888 = vmatmul.mubr.bf16.gmra.mxu0 %v4674
        %v4889 = vpop.f32.mrf.mxu0
        %v4890 = vadd.f32 %v4715, %v4889
        %v4891 = vpop.f32.mrf.mxu0
        %v4892 = vadd.f32 %v4719, %v4891
        %v4893 = vpop.f32.mrf.mxu0
        %v4894 = vadd.f32 %v4715, %v4893
        %v4895 = vpop.f32.mrf.mxu0
        %v4896 = vadd.f32 %v4719, %v4895
        %4897 = vmatprep.mubr.bf16.mxu0 0
        %4898 = vmatmul.mubr.bf16.gmra.mxu0 %v4675
        %v4899 = vpop.f32.mrf.mxu0
        %v4900 = vadd.f32 %v4715, %v4899
        %v4901 = vpop.f32.mrf.mxu0
        %v4902 = vadd.f32 %v4719, %v4901
        %v4903 = vpop.f32.mrf.mxu0
        %v4904 = vadd.f32 %v4715, %v4903
        %v4905 = vpop.f32.mrf.mxu0
        %v4906 = vadd.f32 %v4719, %v4905
        %4907 = vdwg.mxu0
        %4908 = vmatprep.subr.bf16.mxu0 0
        %4909 = vmatpush1.bf16.msra.mxu0 %v4830
        %4910 = vmatprep.subr.bf16.mxu0 0
        %4911 = vmatpush1.bf16.msra.mxu0 %v4827
        %4912 = vmatprep.subr.bf16.mxu0 0
        %4913 = vmatpush1.bf16.msra.mxu0 %v4824
        %4914 = vmatprep.subr.bf16.mxu0 0
        %4915 = vmatpush1.bf16.msra.mxu0 %v4821
        %4916 = vmatprep.subr.bf16.mxu0 0
        %4917 = vmatpush1.bf16.msra.mxu0 %v4818
        %4918 = vmatprep.subr.bf16.mxu0 0
        %4919 = vmatpush1.bf16.msra.mxu0 %v4815
        %4920 = vmatprep.subr.bf16.mxu0 0
        %4921 = vmatpush1.bf16.msra.mxu0 %v4812
        %4922 = vmatprep.subr.bf16.mxu0 0
        %4923 = vmatpush1.bf16.msra.mxu0 %v4809
        %4924 = vmatprep.subr.bf16.mxu0 0
        %4925 = vmatpush2.bf16.msra.mxu0 0
        %4926 = vmatprep.subr.bf16.mxu0 0
        %4927 = vmatpush2.bf16.msra.mxu0 0
        %4928 = vmatprep.subr.bf16.mxu0 0
        %4929 = vmatpush2.bf16.msra.mxu0 0
        %4930 = vmatprep.subr.bf16.mxu0 0
        %4931 = vmatpush2.bf16.msra.mxu0 0
        %4932 = vmatprep.subr.bf16.mxu0 0
        %4933 = vmatpush2.bf16.msra.mxu0 0
        %4934 = vmatprep.subr.bf16.mxu0 0
        %4935 = vmatpush2.bf16.msra.mxu0 0
        %4936 = vmatprep.subr.bf16.mxu0 0
        %4937 = vmatpush2.bf16.msra.mxu0 0
        %4938 = vmatprep.subr.bf16.mxu0 0
        %4939 = vmatpush2.bf16.msra.mxu0 0
        %4940 = vmatprep.mubr.bf16.mxu0 0
        %4941 = vmatmul.mubr.bf16.gmra.mxu0 %v4674
        %v4942 = vpop.f32.mrf.mxu0
        %v4943 = vadd.f32 %v4723, %v4942
        %v4944 = vpop.f32.mrf.mxu0
        %v4945 = vpop.f32.mrf.mxu0
        %v4946 = vadd.f32 %v4723, %v4945
        %v4947 = vpop.f32.mrf.mxu0
        %4948 = vmatprep.mubr.bf16.mxu0 0
        %4949 = vmatmul.mubr.bf16.gmra.mxu0 %v4675
        %v4950 = vpop.f32.mrf.mxu0
        %v4951 = vadd.f32 %v4723, %v4950
        %v4952 = vpop.f32.mrf.mxu0
        %v4953 = vpop.f32.mrf.mxu0
        %v4954 = vadd.f32 %v4723, %v4953
        %v4955 = vpop.f32.mrf.mxu0
        %4956 = vdwg.mxu0
        %4961 = vrot.lane.b32.xlu0 %v4890, 96
        %v4962 = vpop.permute.xlu0 %4961
        %4963 = vrot.lane.b32.xlu0 %v4894, 96
        %v4964 = vpop.permute.xlu0 %4963
        %4965 = vrot.lane.b32.xlu0 %v4900, 96
        %v4966 = vpop.permute.xlu0 %4965
        %4967 = vrot.lane.b32.xlu0 %v4904, 96
        %v4968 = vpop.permute.xlu0 %4967
        %4973 = vrot.lane.b32.xlu0 %v4890, 64
        %v4974 = vpop.permute.xlu0 %4973
        %4975 = vrot.lane.b32.xlu0 %v4894, 64
        %v4976 = vpop.permute.xlu0 %4975
        %4977 = vrot.lane.b32.xlu0 %v4900, 64
        %v4978 = vpop.permute.xlu0 %4977
        %4979 = vrot.lane.b32.xlu0 %v4904, 64
        %v4980 = vpop.permute.xlu0 %4979
        %4985 = vrot.lane.b32.xlu0 %v4890, 32
        %v4986 = vpop.permute.xlu0 %4985
        %4987 = vrot.lane.b32.xlu0 %v4894, 32
        %v4988 = vpop.permute.xlu0 %4987
        %4989 = vrot.lane.b32.xlu0 %v4900, 32
        %v4990 = vpop.permute.xlu0 %4989
        %4991 = vrot.lane.b32.xlu0 %v4904, 32
        %v4992 = vpop.permute.xlu0 %4991
        %v4997 = vcombine.low %v4890, %v4974
        %v4998 = vcombine.high %v4890, %v4974
        %v5000 = vunpack.c.l.s4 1983009808
        %v5001 = vunpack.c.0.s8 %v5000
        %v5002 = vlaneseq
        %v5003 = vshrl.u32 %v5002, 7
        %v5004 = vsub.s32 %v5001, %v5003
        %v5005 = vrot.slane %v4997, %v5004
        %v5007 = vunpack.c.l.s4 1983009808
        %v5008 = vunpack.c.0.s8 %v5007
        %v5009 = vlaneseq
        %v5010 = vshrl.u32 %v5009, 7
        %v5011 = vsub.s32 %v5008, %v5010
        %v5012 = vrot.slane %v4998, %v5011
        %v5013 = vcombine.low %v4962, %v4986
        %v5014 = vcombine.high %v4962, %v4986
        %v5016 = vunpack.c.l.s4 1983009808
        %v5017 = vunpack.c.0.s8 %v5016
        %v5018 = vlaneseq
        %v5019 = vshrl.u32 %v5018, 7
        %v5020 = vsub.s32 %v5017, %v5019
        %v5021 = vrot.slane %v5013, %v5020
        %v5023 = vunpack.c.l.s4 1983009808
        %v5024 = vunpack.c.0.s8 %v5023
        %v5025 = vlaneseq
        %v5026 = vshrl.u32 %v5025, 7
        %v5027 = vsub.s32 %v5024, %v5026
        %v5028 = vrot.slane %v5014, %v5027
        %v5029 = vcombine.low %v5005, %v5021
        %v5030 = vcombine.high %v5005, %v5021
        %v5032 = vunpack.c.l.s4 1934713408
        %v5033 = vunpack.c.0.s8 %v5032
        %v5034 = vlaneseq
        %v5035 = vshrl.u32 %v5034, 7
        %v5036 = vsub.s32 %v5033, %v5035
        %v5037 = vrot.slane %v5029, %v5036
        %v5039 = vunpack.c.l.s4 1934713408
        %v5040 = vunpack.c.0.s8 %v5039
        %v5041 = vlaneseq
        %v5042 = vshrl.u32 %v5041, 7
        %v5043 = vsub.s32 %v5040, %v5042
        %v5044 = vrot.slane %v5030, %v5043
        %v5045 = vcombine.low %v5012, %v5028
        %v5046 = vcombine.high %v5012, %v5028
        %v5048 = vunpack.c.l.s4 1934713408
        %v5049 = vunpack.c.0.s8 %v5048
        %v5050 = vlaneseq
        %v5051 = vshrl.u32 %v5050, 7
        %v5052 = vsub.s32 %v5049, %v5051
        %v5053 = vrot.slane %v5045, %v5052
        %v5055 = vunpack.c.l.s4 1934713408
        %v5056 = vunpack.c.0.s8 %v5055
        %v5057 = vlaneseq
        %v5058 = vshrl.u32 %v5057, 7
        %v5059 = vsub.s32 %v5056, %v5058
        %v5060 = vrot.slane %v5046, %v5059
        %v5061 = vcombine.high %v5037, 0.0
        %v5062 = vcombine.high %v5044, 0.0
        %v5063 = vcombine.high %v5053, 0.0
        %v5064 = vcombine.high %v5060, 0.0
        %v5065 = vcombine.low %v4894, %v4976
        %v5066 = vcombine.high %v4894, %v4976
        %v5068 = vunpack.c.l.s4 1983009808
        %v5069 = vunpack.c.0.s8 %v5068
        %v5070 = vlaneseq
        %v5071 = vshrl.u32 %v5070, 7
        %v5072 = vsub.s32 %v5069, %v5071
        %v5073 = vrot.slane %v5065, %v5072
        %v5075 = vunpack.c.l.s4 1983009808
        %v5076 = vunpack.c.0.s8 %v5075
        %v5077 = vlaneseq
        %v5078 = vshrl.u32 %v5077, 7
        %v5079 = vsub.s32 %v5076, %v5078
        %v5080 = vrot.slane %v5066, %v5079
        %v5081 = vcombine.low %v4964, %v4988
        %v5082 = vcombine.high %v4964, %v4988
        %v5084 = vunpack.c.l.s4 1983009808
        %v5085 = vunpack.c.0.s8 %v5084
        %v5086 = vlaneseq
        %v5087 = vshrl.u32 %v5086, 7
        %v5088 = vsub.s32 %v5085, %v5087
        %v5089 = vrot.slane %v5081, %v5088
        %v5091 = vunpack.c.l.s4 1983009808
        %v5092 = vunpack.c.0.s8 %v5091
        %v5093 = vlaneseq
        %v5094 = vshrl.u32 %v5093, 7
        %v5095 = vsub.s32 %v5092, %v5094
        %v5096 = vrot.slane %v5082, %v5095
        %v5097 = vcombine.low %v5073, %v5089
        %v5098 = vcombine.high %v5073, %v5089
        %v5100 = vunpack.c.l.s4 1934713408
        %v5101 = vunpack.c.0.s8 %v5100
        %v5102 = vlaneseq
        %v5103 = vshrl.u32 %v5102, 7
        %v5104 = vsub.s32 %v5101, %v5103
        %v5105 = vrot.slane %v5097, %v5104
        %v5107 = vunpack.c.l.s4 1934713408
        %v5108 = vunpack.c.0.s8 %v5107
        %v5109 = vlaneseq
        %v5110 = vshrl.u32 %v5109, 7
        %v5111 = vsub.s32 %v5108, %v5110
        %v5112 = vrot.slane %v5098, %v5111
        %v5113 = vcombine.low %v5080, %v5096
        %v5114 = vcombine.high %v5080, %v5096
        %v5116 = vunpack.c.l.s4 1934713408
        %v5117 = vunpack.c.0.s8 %v5116
        %v5118 = vlaneseq
        %v5119 = vshrl.u32 %v5118, 7
        %v5120 = vsub.s32 %v5117, %v5119
        %v5121 = vrot.slane %v5113, %v5120
        %v5123 = vunpack.c.l.s4 1934713408
        %v5124 = vunpack.c.0.s8 %v5123
        %v5125 = vlaneseq
        %v5126 = vshrl.u32 %v5125, 7
        %v5127 = vsub.s32 %v5124, %v5126
        %v5128 = vrot.slane %v5114, %v5127
        %v5129 = vcombine.high %v5105, 0.0
        %v5130 = vcombine.high %v5112, 0.0
        %v5131 = vcombine.high %v5121, 0.0
        %v5132 = vcombine.high %v5128, 0.0
        %v5133 = vcombine.low %v4900, %v4978
        %v5134 = vcombine.high %v4900, %v4978
        %v5136 = vunpack.c.l.s4 1983009808
        %v5137 = vunpack.c.0.s8 %v5136
        %v5138 = vlaneseq
        %v5139 = vshrl.u32 %v5138, 7
        %v5140 = vsub.s32 %v5137, %v5139
        %v5141 = vrot.slane %v5133, %v5140
        %v5143 = vunpack.c.l.s4 1983009808
        %v5144 = vunpack.c.0.s8 %v5143
        %v5145 = vlaneseq
        %v5146 = vshrl.u32 %v5145, 7
        %v5147 = vsub.s32 %v5144, %v5146
        %v5148 = vrot.slane %v5134, %v5147
        %v5149 = vcombine.low %v4966, %v4990
        %v5150 = vcombine.high %v4966, %v4990
        %v5152 = vunpack.c.l.s4 1983009808
        %v5153 = vunpack.c.0.s8 %v5152
        %v5154 = vlaneseq
        %v5155 = vshrl.u32 %v5154, 7
        %v5156 = vsub.s32 %v5153, %v5155
        %v5157 = vrot.slane %v5149, %v5156
        %v5159 = vunpack.c.l.s4 1983009808
        %v5160 = vunpack.c.0.s8 %v5159
        %v5161 = vlaneseq
        %v5162 = vshrl.u32 %v5161, 7
        %v5163 = vsub.s32 %v5160, %v5162
        %v5164 = vrot.slane %v5150, %v5163
        %v5165 = vcombine.low %v5141, %v5157
        %v5166 = vcombine.high %v5141, %v5157
        %v5168 = vunpack.c.l.s4 1934713408
        %v5169 = vunpack.c.0.s8 %v5168
        %v5170 = vlaneseq
        %v5171 = vshrl.u32 %v5170, 7
        %v5172 = vsub.s32 %v5169, %v5171
        %v5173 = vrot.slane %v5165, %v5172
        %v5175 = vunpack.c.l.s4 1934713408
        %v5176 = vunpack.c.0.s8 %v5175
        %v5177 = vlaneseq
        %v5178 = vshrl.u32 %v5177, 7
        %v5179 = vsub.s32 %v5176, %v5178
        %v5180 = vrot.slane %v5166, %v5179
        %v5181 = vcombine.low %v5148, %v5164
        %v5182 = vcombine.high %v5148, %v5164
        %v5184 = vunpack.c.l.s4 1934713408
        %v5185 = vunpack.c.0.s8 %v5184
        %v5186 = vlaneseq
        %v5187 = vshrl.u32 %v5186, 7
        %v5188 = vsub.s32 %v5185, %v5187
        %v5189 = vrot.slane %v5181, %v5188
        %v5191 = vunpack.c.l.s4 1934713408
        %v5192 = vunpack.c.0.s8 %v5191
        %v5193 = vlaneseq
        %v5194 = vshrl.u32 %v5193, 7
        %v5195 = vsub.s32 %v5192, %v5194
        %v5196 = vrot.slane %v5182, %v5195
        %v5197 = vcombine.high %v5173, 0.0
        %v5198 = vcombine.high %v5180, 0.0
        %v5199 = vcombine.high %v5189, 0.0
        %v5200 = vcombine.high %v5196, 0.0
        %v5201 = vcombine.low %v4904, %v4980
        %v5202 = vcombine.high %v4904, %v4980
        %v5204 = vunpack.c.l.s4 1983009808
        %v5205 = vunpack.c.0.s8 %v5204
        %v5206 = vlaneseq
        %v5207 = vshrl.u32 %v5206, 7
        %v5208 = vsub.s32 %v5205, %v5207
        %v5209 = vrot.slane %v5201, %v5208
        %v5211 = vunpack.c.l.s4 1983009808
        %v5212 = vunpack.c.0.s8 %v5211
        %v5213 = vlaneseq
        %v5214 = vshrl.u32 %v5213, 7
        %v5215 = vsub.s32 %v5212, %v5214
        %v5216 = vrot.slane %v5202, %v5215
        %v5217 = vcombine.low %v4968, %v4992
        %v5218 = vcombine.high %v4968, %v4992
        %v5220 = vunpack.c.l.s4 1983009808
        %v5221 = vunpack.c.0.s8 %v5220
        %v5222 = vlaneseq
        %v5223 = vshrl.u32 %v5222, 7
        %v5224 = vsub.s32 %v5221, %v5223
        %v5225 = vrot.slane %v5217, %v5224
        %v5227 = vunpack.c.l.s4 1983009808
        %v5228 = vunpack.c.0.s8 %v5227
        %v5229 = vlaneseq
        %v5230 = vshrl.u32 %v5229, 7
        %v5231 = vsub.s32 %v5228, %v5230
        %v5232 = vrot.slane %v5218, %v5231
        %v5233 = vcombine.low %v5209, %v5225
        %v5234 = vcombine.high %v5209, %v5225
        %v5236 = vunpack.c.l.s4 1934713408
        %v5237 = vunpack.c.0.s8 %v5236
        %v5238 = vlaneseq
        %v5239 = vshrl.u32 %v5238, 7
        %v5240 = vsub.s32 %v5237, %v5239
        %v5241 = vrot.slane %v5233, %v5240
        %v5243 = vunpack.c.l.s4 1934713408
        %v5244 = vunpack.c.0.s8 %v5243
        %v5245 = vlaneseq
        %v5246 = vshrl.u32 %v5245, 7
        %v5247 = vsub.s32 %v5244, %v5246
        %v5248 = vrot.slane %v5234, %v5247
        %v5249 = vcombine.low %v5216, %v5232
        %v5250 = vcombine.high %v5216, %v5232
        %v5252 = vunpack.c.l.s4 1934713408
        %v5253 = vunpack.c.0.s8 %v5252
        %v5254 = vlaneseq
        %v5255 = vshrl.u32 %v5254, 7
        %v5256 = vsub.s32 %v5253, %v5255
        %v5257 = vrot.slane %v5249, %v5256
        %v5259 = vunpack.c.l.s4 1934713408
        %v5260 = vunpack.c.0.s8 %v5259
        %v5261 = vlaneseq
        %v5262 = vshrl.u32 %v5261, 7
        %v5263 = vsub.s32 %v5260, %v5262
        %v5264 = vrot.slane %v5250, %v5263
        %v5265 = vcombine.high %v5241, 0.0
        %v5266 = vcombine.high %v5248, 0.0
        %v5267 = vcombine.high %v5257, 0.0
        %v5268 = vcombine.high %v5264, 0.0
        %5273 = vrot.lane.b32.xlu0 %v4892, 96
        %v5274 = vpop.permute.xlu0 %5273
        %5275 = vrot.lane.b32.xlu0 %v4896, 96
        %v5276 = vpop.permute.xlu0 %5275
        %5277 = vrot.lane.b32.xlu0 %v4902, 96
        %v5278 = vpop.permute.xlu0 %5277
        %5279 = vrot.lane.b32.xlu0 %v4906, 96
        %v5280 = vpop.permute.xlu0 %5279
        %5285 = vrot.lane.b32.xlu0 %v4892, 64
        %v5286 = vpop.permute.xlu0 %5285
        %5287 = vrot.lane.b32.xlu0 %v4896, 64
        %v5288 = vpop.permute.xlu0 %5287
        %5289 = vrot.lane.b32.xlu0 %v4902, 64
        %v5290 = vpop.permute.xlu0 %5289
        %5291 = vrot.lane.b32.xlu0 %v4906, 64
        %v5292 = vpop.permute.xlu0 %5291
        %5297 = vrot.lane.b32.xlu0 %v4892, 32
        %v5298 = vpop.permute.xlu0 %5297
        %5299 = vrot.lane.b32.xlu0 %v4896, 32
        %v5300 = vpop.permute.xlu0 %5299
        %5301 = vrot.lane.b32.xlu0 %v4902, 32
        %v5302 = vpop.permute.xlu0 %5301
        %5303 = vrot.lane.b32.xlu0 %v4906, 32
        %v5304 = vpop.permute.xlu0 %5303
        %v5309 = vcombine.low %v4892, %v5286
        %v5310 = vcombine.high %v4892, %v5286
        %v5312 = vunpack.c.l.s4 1983009808
        %v5313 = vunpack.c.0.s8 %v5312
        %v5314 = vlaneseq
        %v5315 = vshrl.u32 %v5314, 7
        %v5316 = vsub.s32 %v5313, %v5315
        %v5317 = vrot.slane %v5309, %v5316
        %v5319 = vunpack.c.l.s4 1983009808
        %v5320 = vunpack.c.0.s8 %v5319
        %v5321 = vlaneseq
        %v5322 = vshrl.u32 %v5321, 7
        %v5323 = vsub.s32 %v5320, %v5322
        %v5324 = vrot.slane %v5310, %v5323
        %v5325 = vcombine.low %v5274, %v5298
        %v5326 = vcombine.high %v5274, %v5298
        %v5328 = vunpack.c.l.s4 1983009808
        %v5329 = vunpack.c.0.s8 %v5328
        %v5330 = vlaneseq
        %v5331 = vshrl.u32 %v5330, 7
        %v5332 = vsub.s32 %v5329, %v5331
        %v5333 = vrot.slane %v5325, %v5332
        %v5335 = vunpack.c.l.s4 1983009808
        %v5336 = vunpack.c.0.s8 %v5335
        %v5337 = vlaneseq
        %v5338 = vshrl.u32 %v5337, 7
        %v5339 = vsub.s32 %v5336, %v5338
        %v5340 = vrot.slane %v5326, %v5339
        %v5341 = vcombine.low %v5317, %v5333
        %v5342 = vcombine.high %v5317, %v5333
        %v5344 = vunpack.c.l.s4 1934713408
        %v5345 = vunpack.c.0.s8 %v5344
        %v5346 = vlaneseq
        %v5347 = vshrl.u32 %v5346, 7
        %v5348 = vsub.s32 %v5345, %v5347
        %v5349 = vrot.slane %v5341, %v5348
        %v5351 = vunpack.c.l.s4 1934713408
        %v5352 = vunpack.c.0.s8 %v5351
        %v5353 = vlaneseq
        %v5354 = vshrl.u32 %v5353, 7
        %v5355 = vsub.s32 %v5352, %v5354
        %v5356 = vrot.slane %v5342, %v5355
        %v5357 = vcombine.low %v5324, %v5340
        %v5358 = vcombine.high %v5324, %v5340
        %v5360 = vunpack.c.l.s4 1934713408
        %v5361 = vunpack.c.0.s8 %v5360
        %v5362 = vlaneseq
        %v5363 = vshrl.u32 %v5362, 7
        %v5364 = vsub.s32 %v5361, %v5363
        %v5365 = vrot.slane %v5357, %v5364
        %v5367 = vunpack.c.l.s4 1934713408
        %v5368 = vunpack.c.0.s8 %v5367
        %v5369 = vlaneseq
        %v5370 = vshrl.u32 %v5369, 7
        %v5371 = vsub.s32 %v5368, %v5370
        %v5372 = vrot.slane %v5358, %v5371
        %v5373 = vcombine.high %v5349, 0.0
        %v5374 = vcombine.high %v5356, 0.0
        %v5375 = vcombine.high %v5365, 0.0
        %v5376 = vcombine.high %v5372, 0.0
        %v5377 = vcombine.low %v4896, %v5288
        %v5378 = vcombine.high %v4896, %v5288
        %v5380 = vunpack.c.l.s4 1983009808
        %v5381 = vunpack.c.0.s8 %v5380
        %v5382 = vlaneseq
        %v5383 = vshrl.u32 %v5382, 7
        %v5384 = vsub.s32 %v5381, %v5383
        %v5385 = vrot.slane %v5377, %v5384
        %v5387 = vunpack.c.l.s4 1983009808
        %v5388 = vunpack.c.0.s8 %v5387
        %v5389 = vlaneseq
        %v5390 = vshrl.u32 %v5389, 7
        %v5391 = vsub.s32 %v5388, %v5390
        %v5392 = vrot.slane %v5378, %v5391
        %v5393 = vcombine.low %v5276, %v5300
        %v5394 = vcombine.high %v5276, %v5300
        %v5396 = vunpack.c.l.s4 1983009808
        %v5397 = vunpack.c.0.s8 %v5396
        %v5398 = vlaneseq
        %v5399 = vshrl.u32 %v5398, 7
        %v5400 = vsub.s32 %v5397, %v5399
        %v5401 = vrot.slane %v5393, %v5400
        %v5403 = vunpack.c.l.s4 1983009808
        %v5404 = vunpack.c.0.s8 %v5403
        %v5405 = vlaneseq
        %v5406 = vshrl.u32 %v5405, 7
        %v5407 = vsub.s32 %v5404, %v5406
        %v5408 = vrot.slane %v5394, %v5407
        %v5409 = vcombine.low %v5385, %v5401
        %v5410 = vcombine.high %v5385, %v5401
        %v5412 = vunpack.c.l.s4 1934713408
        %v5413 = vunpack.c.0.s8 %v5412
        %v5414 = vlaneseq
        %v5415 = vshrl.u32 %v5414, 7
        %v5416 = vsub.s32 %v5413, %v5415
        %v5417 = vrot.slane %v5409, %v5416
        %v5419 = vunpack.c.l.s4 1934713408
        %v5420 = vunpack.c.0.s8 %v5419
        %v5421 = vlaneseq
        %v5422 = vshrl.u32 %v5421, 7
        %v5423 = vsub.s32 %v5420, %v5422
        %v5424 = vrot.slane %v5410, %v5423
        %v5425 = vcombine.low %v5392, %v5408
        %v5426 = vcombine.high %v5392, %v5408
        %v5428 = vunpack.c.l.s4 1934713408
        %v5429 = vunpack.c.0.s8 %v5428
        %v5430 = vlaneseq
        %v5431 = vshrl.u32 %v5430, 7
        %v5432 = vsub.s32 %v5429, %v5431
        %v5433 = vrot.slane %v5425, %v5432
        %v5435 = vunpack.c.l.s4 1934713408
        %v5436 = vunpack.c.0.s8 %v5435
        %v5437 = vlaneseq
        %v5438 = vshrl.u32 %v5437, 7
        %v5439 = vsub.s32 %v5436, %v5438
        %v5440 = vrot.slane %v5426, %v5439
        %v5441 = vcombine.high %v5417, 0.0
        %v5442 = vcombine.high %v5424, 0.0
        %v5443 = vcombine.high %v5433, 0.0
        %v5444 = vcombine.high %v5440, 0.0
        %v5445 = vcombine.low %v4902, %v5290
        %v5446 = vcombine.high %v4902, %v5290
        %v5448 = vunpack.c.l.s4 1983009808
        %v5449 = vunpack.c.0.s8 %v5448
        %v5450 = vlaneseq
        %v5451 = vshrl.u32 %v5450, 7
        %v5452 = vsub.s32 %v5449, %v5451
        %v5453 = vrot.slane %v5445, %v5452
        %v5455 = vunpack.c.l.s4 1983009808
        %v5456 = vunpack.c.0.s8 %v5455
        %v5457 = vlaneseq
        %v5458 = vshrl.u32 %v5457, 7
        %v5459 = vsub.s32 %v5456, %v5458
        %v5460 = vrot.slane %v5446, %v5459
        %v5461 = vcombine.low %v5278, %v5302
        %v5462 = vcombine.high %v5278, %v5302
        %v5464 = vunpack.c.l.s4 1983009808
        %v5465 = vunpack.c.0.s8 %v5464
        %v5466 = vlaneseq
        %v5467 = vshrl.u32 %v5466, 7
        %v5468 = vsub.s32 %v5465, %v5467
        %v5469 = vrot.slane %v5461, %v5468
        %v5471 = vunpack.c.l.s4 1983009808
        %v5472 = vunpack.c.0.s8 %v5471
        %v5473 = vlaneseq
        %v5474 = vshrl.u32 %v5473, 7
        %v5475 = vsub.s32 %v5472, %v5474
        %v5476 = vrot.slane %v5462, %v5475
        %v5477 = vcombine.low %v5453, %v5469
        %v5478 = vcombine.high %v5453, %v5469
        %v5480 = vunpack.c.l.s4 1934713408
        %v5481 = vunpack.c.0.s8 %v5480
        %v5482 = vlaneseq
        %v5483 = vshrl.u32 %v5482, 7
        %v5484 = vsub.s32 %v5481, %v5483
        %v5485 = vrot.slane %v5477, %v5484
        %v5487 = vunpack.c.l.s4 1934713408
        %v5488 = vunpack.c.0.s8 %v5487
        %v5489 = vlaneseq
        %v5490 = vshrl.u32 %v5489, 7
        %v5491 = vsub.s32 %v5488, %v5490
        %v5492 = vrot.slane %v5478, %v5491
        %v5493 = vcombine.low %v5460, %v5476
        %v5494 = vcombine.high %v5460, %v5476
        %v5496 = vunpack.c.l.s4 1934713408
        %v5497 = vunpack.c.0.s8 %v5496
        %v5498 = vlaneseq
        %v5499 = vshrl.u32 %v5498, 7
        %v5500 = vsub.s32 %v5497, %v5499
        %v5501 = vrot.slane %v5493, %v5500
        %v5503 = vunpack.c.l.s4 1934713408
        %v5504 = vunpack.c.0.s8 %v5503
        %v5505 = vlaneseq
        %v5506 = vshrl.u32 %v5505, 7
        %v5507 = vsub.s32 %v5504, %v5506
        %v5508 = vrot.slane %v5494, %v5507
        %v5509 = vcombine.high %v5485, 0.0
        %v5510 = vcombine.high %v5492, 0.0
        %v5511 = vcombine.high %v5501, 0.0
        %v5512 = vcombine.high %v5508, 0.0
        %v5513 = vcombine.low %v4906, %v5292
        %v5514 = vcombine.high %v4906, %v5292
        %v5516 = vunpack.c.l.s4 1983009808
        %v5517 = vunpack.c.0.s8 %v5516
        %v5518 = vlaneseq
        %v5519 = vshrl.u32 %v5518, 7
        %v5520 = vsub.s32 %v5517, %v5519
        %v5521 = vrot.slane %v5513, %v5520
        %v5523 = vunpack.c.l.s4 1983009808
        %v5524 = vunpack.c.0.s8 %v5523
        %v5525 = vlaneseq
        %v5526 = vshrl.u32 %v5525, 7
        %v5527 = vsub.s32 %v5524, %v5526
        %v5528 = vrot.slane %v5514, %v5527
        %v5529 = vcombine.low %v5280, %v5304
        %v5530 = vcombine.high %v5280, %v5304
        %v5532 = vunpack.c.l.s4 1983009808
        %v5533 = vunpack.c.0.s8 %v5532
        %v5534 = vlaneseq
        %v5535 = vshrl.u32 %v5534, 7
        %v5536 = vsub.s32 %v5533, %v5535
        %v5537 = vrot.slane %v5529, %v5536
        %v5539 = vunpack.c.l.s4 1983009808
        %v5540 = vunpack.c.0.s8 %v5539
        %v5541 = vlaneseq
        %v5542 = vshrl.u32 %v5541, 7
        %v5543 = vsub.s32 %v5540, %v5542
        %v5544 = vrot.slane %v5530, %v5543
        %v5545 = vcombine.low %v5521, %v5537
        %v5546 = vcombine.high %v5521, %v5537
        %v5548 = vunpack.c.l.s4 1934713408
        %v5549 = vunpack.c.0.s8 %v5548
        %v5550 = vlaneseq
        %v5551 = vshrl.u32 %v5550, 7
        %v5552 = vsub.s32 %v5549, %v5551
        %v5553 = vrot.slane %v5545, %v5552
        %v5555 = vunpack.c.l.s4 1934713408
        %v5556 = vunpack.c.0.s8 %v5555
        %v5557 = vlaneseq
        %v5558 = vshrl.u32 %v5557, 7
        %v5559 = vsub.s32 %v5556, %v5558
        %v5560 = vrot.slane %v5546, %v5559
        %v5561 = vcombine.low %v5528, %v5544
        %v5562 = vcombine.high %v5528, %v5544
        %v5564 = vunpack.c.l.s4 1934713408
        %v5565 = vunpack.c.0.s8 %v5564
        %v5566 = vlaneseq
        %v5567 = vshrl.u32 %v5566, 7
        %v5568 = vsub.s32 %v5565, %v5567
        %v5569 = vrot.slane %v5561, %v5568
        %v5571 = vunpack.c.l.s4 1934713408
        %v5572 = vunpack.c.0.s8 %v5571
        %v5573 = vlaneseq
        %v5574 = vshrl.u32 %v5573, 7
        %v5575 = vsub.s32 %v5572, %v5574
        %v5576 = vrot.slane %v5562, %v5575
        %v5577 = vcombine.high %v5553, 0.0
        %v5578 = vcombine.high %v5560, 0.0
        %v5579 = vcombine.high %v5569, 0.0
        %v5580 = vcombine.high %v5576, 0.0
        %5585 = vrot.lane.b32.xlu0 %v4943, 96
        %v5586 = vpop.permute.xlu0 %5585
        %5587 = vrot.lane.b32.xlu0 %v4946, 96
        %v5588 = vpop.permute.xlu0 %5587
        %5589 = vrot.lane.b32.xlu0 %v4951, 96
        %v5590 = vpop.permute.xlu0 %5589
        %5591 = vrot.lane.b32.xlu0 %v4954, 96
        %v5592 = vpop.permute.xlu0 %5591
        %5597 = vrot.lane.b32.xlu0 %v4943, 64
        %v5598 = vpop.permute.xlu0 %5597
        %5599 = vrot.lane.b32.xlu0 %v4946, 64
        %v5600 = vpop.permute.xlu0 %5599
        %5601 = vrot.lane.b32.xlu0 %v4951, 64
        %v5602 = vpop.permute.xlu0 %5601
        %5603 = vrot.lane.b32.xlu0 %v4954, 64
        %v5604 = vpop.permute.xlu0 %5603
        %5609 = vrot.lane.b32.xlu0 %v4943, 32
        %v5610 = vpop.permute.xlu0 %5609
        %5611 = vrot.lane.b32.xlu0 %v4946, 32
        %v5612 = vpop.permute.xlu0 %5611
        %5613 = vrot.lane.b32.xlu0 %v4951, 32
        %v5614 = vpop.permute.xlu0 %5613
        %5615 = vrot.lane.b32.xlu0 %v4954, 32
        %v5616 = vpop.permute.xlu0 %5615
        %v5621 = vcombine.low %v4943, %v5598
        %v5622 = vcombine.high %v4943, %v5598
        %v5624 = vunpack.c.l.s4 1983009808
        %v5625 = vunpack.c.0.s8 %v5624
        %v5626 = vlaneseq
        %v5627 = vshrl.u32 %v5626, 7
        %v5628 = vsub.s32 %v5625, %v5627
        %v5629 = vrot.slane %v5621, %v5628
        %v5631 = vunpack.c.l.s4 1983009808
        %v5632 = vunpack.c.0.s8 %v5631
        %v5633 = vlaneseq
        %v5634 = vshrl.u32 %v5633, 7
        %v5635 = vsub.s32 %v5632, %v5634
        %v5636 = vrot.slane %v5622, %v5635
        %v5637 = vcombine.low %v5586, %v5610
        %v5638 = vcombine.high %v5586, %v5610
        %v5640 = vunpack.c.l.s4 1983009808
        %v5641 = vunpack.c.0.s8 %v5640
        %v5642 = vlaneseq
        %v5643 = vshrl.u32 %v5642, 7
        %v5644 = vsub.s32 %v5641, %v5643
        %v5645 = vrot.slane %v5637, %v5644
        %v5647 = vunpack.c.l.s4 1983009808
        %v5648 = vunpack.c.0.s8 %v5647
        %v5649 = vlaneseq
        %v5650 = vshrl.u32 %v5649, 7
        %v5651 = vsub.s32 %v5648, %v5650
        %v5652 = vrot.slane %v5638, %v5651
        %v5653 = vcombine.low %v5629, %v5645
        %v5654 = vcombine.high %v5629, %v5645
        %v5656 = vunpack.c.l.s4 1934713408
        %v5657 = vunpack.c.0.s8 %v5656
        %v5658 = vlaneseq
        %v5659 = vshrl.u32 %v5658, 7
        %v5660 = vsub.s32 %v5657, %v5659
        %v5661 = vrot.slane %v5653, %v5660
        %v5663 = vunpack.c.l.s4 1934713408
        %v5664 = vunpack.c.0.s8 %v5663
        %v5665 = vlaneseq
        %v5666 = vshrl.u32 %v5665, 7
        %v5667 = vsub.s32 %v5664, %v5666
        %v5668 = vrot.slane %v5654, %v5667
        %v5669 = vcombine.low %v5636, %v5652
        %v5670 = vcombine.high %v5636, %v5652
        %v5672 = vunpack.c.l.s4 1934713408
        %v5673 = vunpack.c.0.s8 %v5672
        %v5674 = vlaneseq
        %v5675 = vshrl.u32 %v5674, 7
        %v5676 = vsub.s32 %v5673, %v5675
        %v5677 = vrot.slane %v5669, %v5676
        %v5679 = vunpack.c.l.s4 1934713408
        %v5680 = vunpack.c.0.s8 %v5679
        %v5681 = vlaneseq
        %v5682 = vshrl.u32 %v5681, 7
        %v5683 = vsub.s32 %v5680, %v5682
        %v5684 = vrot.slane %v5670, %v5683
        %v5685 = vcombine.high %v5661, 0.0
        %v5686 = vcombine.high %v5668, 0.0
        %v5687 = vcombine.high %v5677, 0.0
        %v5688 = vcombine.high %v5684, 0.0
        %v5689 = vcombine.low %v4946, %v5600
        %v5690 = vcombine.high %v4946, %v5600
        %v5692 = vunpack.c.l.s4 1983009808
        %v5693 = vunpack.c.0.s8 %v5692
        %v5694 = vlaneseq
        %v5695 = vshrl.u32 %v5694, 7
        %v5696 = vsub.s32 %v5693, %v5695
        %v5697 = vrot.slane %v5689, %v5696
        %v5699 = vunpack.c.l.s4 1983009808
        %v5700 = vunpack.c.0.s8 %v5699
        %v5701 = vlaneseq
        %v5702 = vshrl.u32 %v5701, 7
        %v5703 = vsub.s32 %v5700, %v5702
        %v5704 = vrot.slane %v5690, %v5703
        %v5705 = vcombine.low %v5588, %v5612
        %v5706 = vcombine.high %v5588, %v5612
        %v5708 = vunpack.c.l.s4 1983009808
        %v5709 = vunpack.c.0.s8 %v5708
        %v5710 = vlaneseq
        %v5711 = vshrl.u32 %v5710, 7
        %v5712 = vsub.s32 %v5709, %v5711
        %v5713 = vrot.slane %v5705, %v5712
        %v5715 = vunpack.c.l.s4 1983009808
        %v5716 = vunpack.c.0.s8 %v5715
        %v5717 = vlaneseq
        %v5718 = vshrl.u32 %v5717, 7
        %v5719 = vsub.s32 %v5716, %v5718
        %v5720 = vrot.slane %v5706, %v5719
        %v5721 = vcombine.low %v5697, %v5713
        %v5722 = vcombine.high %v5697, %v5713
        %v5724 = vunpack.c.l.s4 1934713408
        %v5725 = vunpack.c.0.s8 %v5724
        %v5726 = vlaneseq
        %v5727 = vshrl.u32 %v5726, 7
        %v5728 = vsub.s32 %v5725, %v5727
        %v5729 = vrot.slane %v5721, %v5728
        %v5731 = vunpack.c.l.s4 1934713408
        %v5732 = vunpack.c.0.s8 %v5731
        %v5733 = vlaneseq
        %v5734 = vshrl.u32 %v5733, 7
        %v5735 = vsub.s32 %v5732, %v5734
        %v5736 = vrot.slane %v5722, %v5735
        %v5737 = vcombine.low %v5704, %v5720
        %v5738 = vcombine.high %v5704, %v5720
        %v5740 = vunpack.c.l.s4 1934713408
        %v5741 = vunpack.c.0.s8 %v5740
        %v5742 = vlaneseq
        %v5743 = vshrl.u32 %v5742, 7
        %v5744 = vsub.s32 %v5741, %v5743
        %v5745 = vrot.slane %v5737, %v5744
        %v5747 = vunpack.c.l.s4 1934713408
        %v5748 = vunpack.c.0.s8 %v5747
        %v5749 = vlaneseq
        %v5750 = vshrl.u32 %v5749, 7
        %v5751 = vsub.s32 %v5748, %v5750
        %v5752 = vrot.slane %v5738, %v5751
        %v5753 = vcombine.high %v5729, 0.0
        %v5754 = vcombine.high %v5736, 0.0
        %v5755 = vcombine.high %v5745, 0.0
        %v5756 = vcombine.high %v5752, 0.0
        %v5757 = vcombine.low %v4951, %v5602
        %v5758 = vcombine.high %v4951, %v5602
        %v5760 = vunpack.c.l.s4 1983009808
        %v5761 = vunpack.c.0.s8 %v5760
        %v5762 = vlaneseq
        %v5763 = vshrl.u32 %v5762, 7
        %v5764 = vsub.s32 %v5761, %v5763
        %v5765 = vrot.slane %v5757, %v5764
        %v5767 = vunpack.c.l.s4 1983009808
        %v5768 = vunpack.c.0.s8 %v5767
        %v5769 = vlaneseq
        %v5770 = vshrl.u32 %v5769, 7
        %v5771 = vsub.s32 %v5768, %v5770
        %v5772 = vrot.slane %v5758, %v5771
        %v5773 = vcombine.low %v5590, %v5614
        %v5774 = vcombine.high %v5590, %v5614
        %v5776 = vunpack.c.l.s4 1983009808
        %v5777 = vunpack.c.0.s8 %v5776
        %v5778 = vlaneseq
        %v5779 = vshrl.u32 %v5778, 7
        %v5780 = vsub.s32 %v5777, %v5779
        %v5781 = vrot.slane %v5773, %v5780
        %v5783 = vunpack.c.l.s4 1983009808
        %v5784 = vunpack.c.0.s8 %v5783
        %v5785 = vlaneseq
        %v5786 = vshrl.u32 %v5785, 7
        %v5787 = vsub.s32 %v5784, %v5786
        %v5788 = vrot.slane %v5774, %v5787
        %v5789 = vcombine.low %v5765, %v5781
        %v5790 = vcombine.high %v5765, %v5781
        %v5792 = vunpack.c.l.s4 1934713408
        %v5793 = vunpack.c.0.s8 %v5792
        %v5794 = vlaneseq
        %v5795 = vshrl.u32 %v5794, 7
        %v5796 = vsub.s32 %v5793, %v5795
        %v5797 = vrot.slane %v5789, %v5796
        %v5799 = vunpack.c.l.s4 1934713408
        %v5800 = vunpack.c.0.s8 %v5799
        %v5801 = vlaneseq
        %v5802 = vshrl.u32 %v5801, 7
        %v5803 = vsub.s32 %v5800, %v5802
        %v5804 = vrot.slane %v5790, %v5803
        %v5805 = vcombine.low %v5772, %v5788
        %v5806 = vcombine.high %v5772, %v5788
        %v5808 = vunpack.c.l.s4 1934713408
        %v5809 = vunpack.c.0.s8 %v5808
        %v5810 = vlaneseq
        %v5811 = vshrl.u32 %v5810, 7
        %v5812 = vsub.s32 %v5809, %v5811
        %v5813 = vrot.slane %v5805, %v5812
        %v5815 = vunpack.c.l.s4 1934713408
        %v5816 = vunpack.c.0.s8 %v5815
        %v5817 = vlaneseq
        %v5818 = vshrl.u32 %v5817, 7
        %v5819 = vsub.s32 %v5816, %v5818
        %v5820 = vrot.slane %v5806, %v5819
        %v5821 = vcombine.high %v5797, 0.0
        %v5822 = vcombine.high %v5804, 0.0
        %v5823 = vcombine.high %v5813, 0.0
        %v5824 = vcombine.high %v5820, 0.0
        %v5825 = vcombine.low %v4954, %v5604
        %v5826 = vcombine.high %v4954, %v5604
        %v5828 = vunpack.c.l.s4 1983009808
        %v5829 = vunpack.c.0.s8 %v5828
        %v5830 = vlaneseq
        %v5831 = vshrl.u32 %v5830, 7
        %v5832 = vsub.s32 %v5829, %v5831
        %v5833 = vrot.slane %v5825, %v5832
        %v5835 = vunpack.c.l.s4 1983009808
        %v5836 = vunpack.c.0.s8 %v5835
        %v5837 = vlaneseq
        %v5838 = vshrl.u32 %v5837, 7
        %v5839 = vsub.s32 %v5836, %v5838
        %v5840 = vrot.slane %v5826, %v5839
        %v5841 = vcombine.low %v5592, %v5616
        %v5842 = vcombine.high %v5592, %v5616
        %v5844 = vunpack.c.l.s4 1983009808
        %v5845 = vunpack.c.0.s8 %v5844
        %v5846 = vlaneseq
        %v5847 = vshrl.u32 %v5846, 7
        %v5848 = vsub.s32 %v5845, %v5847
        %v5849 = vrot.slane %v5841, %v5848
        %v5851 = vunpack.c.l.s4 1983009808
        %v5852 = vunpack.c.0.s8 %v5851
        %v5853 = vlaneseq
        %v5854 = vshrl.u32 %v5853, 7
        %v5855 = vsub.s32 %v5852, %v5854
        %v5856 = vrot.slane %v5842, %v5855
        %v5857 = vcombine.low %v5833, %v5849
        %v5858 = vcombine.high %v5833, %v5849
        %v5860 = vunpack.c.l.s4 1934713408
        %v5861 = vunpack.c.0.s8 %v5860
        %v5862 = vlaneseq
        %v5863 = vshrl.u32 %v5862, 7
        %v5864 = vsub.s32 %v5861, %v5863
        %v5865 = vrot.slane %v5857, %v5864
        %v5867 = vunpack.c.l.s4 1934713408
        %v5868 = vunpack.c.0.s8 %v5867
        %v5869 = vlaneseq
        %v5870 = vshrl.u32 %v5869, 7
        %v5871 = vsub.s32 %v5868, %v5870
        %v5872 = vrot.slane %v5858, %v5871
        %v5873 = vcombine.low %v5840, %v5856
        %v5874 = vcombine.high %v5840, %v5856
        %v5876 = vunpack.c.l.s4 1934713408
        %v5877 = vunpack.c.0.s8 %v5876
        %v5878 = vlaneseq
        %v5879 = vshrl.u32 %v5878, 7
        %v5880 = vsub.s32 %v5877, %v5879
        %v5881 = vrot.slane %v5873, %v5880
        %v5883 = vunpack.c.l.s4 1934713408
        %v5884 = vunpack.c.0.s8 %v5883
        %v5885 = vlaneseq
        %v5886 = vshrl.u32 %v5885, 7
        %v5887 = vsub.s32 %v5884, %v5886
        %v5888 = vrot.slane %v5874, %v5887
        %v5889 = vcombine.high %v5865, 0.0
        %v5890 = vcombine.high %v5872, 0.0
        %v5891 = vcombine.high %v5881, 0.0
        %v5892 = vcombine.high %v5888, 0.0
        %v5893 = vcombine.low %v5037, %v5044
        %v5895 = vunpack.c.l.s4 1983009808
        %v5896 = vunpack.c.0.s8 %v5895
        %v5897 = vlaneseq
        %v5898 = vshrl.u32 %v5897, 7
        %v5899 = vsub.s32 %v5896, %v5898
        %v5900 = vrot.slane %v5893, %v5899
        %v5901 = vcombine.low %v5061, %v5062
        %v5903 = vunpack.c.l.s4 1983009808
        %v5904 = vunpack.c.0.s8 %v5903
        %v5905 = vlaneseq
        %v5906 = vshrl.u32 %v5905, 7
        %v5907 = vsub.s32 %v5904, %v5906
        %v5908 = vrot.slane %v5901, %v5907
        %v5909 = vcombine.low %v5053, %v5060
        %v5911 = vunpack.c.l.s4 1983009808
        %v5912 = vunpack.c.0.s8 %v5911
        %v5913 = vlaneseq
        %v5914 = vshrl.u32 %v5913, 7
        %v5915 = vsub.s32 %v5912, %v5914
        %v5916 = vrot.slane %v5909, %v5915
        %v5917 = vcombine.low %v5063, %v5064
        %v5919 = vunpack.c.l.s4 1983009808
        %v5920 = vunpack.c.0.s8 %v5919
        %v5921 = vlaneseq
        %v5922 = vshrl.u32 %v5921, 7
        %v5923 = vsub.s32 %v5920, %v5922
        %v5924 = vrot.slane %v5917, %v5923
        %v5925 = vcombine.low %v5900, %v5908
        %v5926 = vcombine.high %v5900, %v5908
        %v5928 = vunpack.c.l.s4 1934713408
        %v5929 = vunpack.c.0.s8 %v5928
        %v5930 = vlaneseq
        %v5931 = vshrl.u32 %v5930, 7
        %v5932 = vsub.s32 %v5929, %v5931
        %v5933 = vrot.slane %v5925, %v5932
        %v5935 = vunpack.c.l.s4 1934713408
        %v5936 = vunpack.c.0.s8 %v5935
        %v5937 = vlaneseq
        %v5938 = vshrl.u32 %v5937, 7
        %v5939 = vsub.s32 %v5936, %v5938
        %v5940 = vrot.slane %v5926, %v5939
        %v5941 = vcombine.low %v5916, %v5924
        %v5942 = vcombine.high %v5916, %v5924
        %v5944 = vunpack.c.l.s4 1934713408
        %v5945 = vunpack.c.0.s8 %v5944
        %v5946 = vlaneseq
        %v5947 = vshrl.u32 %v5946, 7
        %v5948 = vsub.s32 %v5945, %v5947
        %v5949 = vrot.slane %v5941, %v5948
        %v5951 = vunpack.c.l.s4 1934713408
        %v5952 = vunpack.c.0.s8 %v5951
        %v5953 = vlaneseq
        %v5954 = vshrl.u32 %v5953, 7
        %v5955 = vsub.s32 %v5952, %v5954
        %v5956 = vrot.slane %v5942, %v5955
        %v5957 = vcombine.low %v5933, %v5949
        %v5958 = vcombine.high %v5933, %v5949
        %v5959 = vcombine.low %v5940, %v5956
        %v5960 = vcombine.high %v5940, %v5956
        %v5961 = vcombine.low %v5105, %v5112
        %v5963 = vunpack.c.l.s4 1983009808
        %v5964 = vunpack.c.0.s8 %v5963
        %v5965 = vlaneseq
        %v5966 = vshrl.u32 %v5965, 7
        %v5967 = vsub.s32 %v5964, %v5966
        %v5968 = vrot.slane %v5961, %v5967
        %v5969 = vcombine.low %v5129, %v5130
        %v5971 = vunpack.c.l.s4 1983009808
        %v5972 = vunpack.c.0.s8 %v5971
        %v5973 = vlaneseq
        %v5974 = vshrl.u32 %v5973, 7
        %v5975 = vsub.s32 %v5972, %v5974
        %v5976 = vrot.slane %v5969, %v5975
        %v5977 = vcombine.low %v5121, %v5128
        %v5979 = vunpack.c.l.s4 1983009808
        %v5980 = vunpack.c.0.s8 %v5979
        %v5981 = vlaneseq
        %v5982 = vshrl.u32 %v5981, 7
        %v5983 = vsub.s32 %v5980, %v5982
        %v5984 = vrot.slane %v5977, %v5983
        %v5985 = vcombine.low %v5131, %v5132
        %v5987 = vunpack.c.l.s4 1983009808
        %v5988 = vunpack.c.0.s8 %v5987
        %v5989 = vlaneseq
        %v5990 = vshrl.u32 %v5989, 7
        %v5991 = vsub.s32 %v5988, %v5990
        %v5992 = vrot.slane %v5985, %v5991
        %v5993 = vcombine.low %v5968, %v5976
        %v5994 = vcombine.high %v5968, %v5976
        %v5996 = vunpack.c.l.s4 1934713408
        %v5997 = vunpack.c.0.s8 %v5996
        %v5998 = vlaneseq
        %v5999 = vshrl.u32 %v5998, 7
        %v6000 = vsub.s32 %v5997, %v5999
        %v6001 = vrot.slane %v5993, %v6000
        %v6003 = vunpack.c.l.s4 1934713408
        %v6004 = vunpack.c.0.s8 %v6003
        %v6005 = vlaneseq
        %v6006 = vshrl.u32 %v6005, 7
        %v6007 = vsub.s32 %v6004, %v6006
        %v6008 = vrot.slane %v5994, %v6007
        %v6009 = vcombine.low %v5984, %v5992
        %v6010 = vcombine.high %v5984, %v5992
        %v6012 = vunpack.c.l.s4 1934713408
        %v6013 = vunpack.c.0.s8 %v6012
        %v6014 = vlaneseq
        %v6015 = vshrl.u32 %v6014, 7
        %v6016 = vsub.s32 %v6013, %v6015
        %v6017 = vrot.slane %v6009, %v6016
        %v6019 = vunpack.c.l.s4 1934713408
        %v6020 = vunpack.c.0.s8 %v6019
        %v6021 = vlaneseq
        %v6022 = vshrl.u32 %v6021, 7
        %v6023 = vsub.s32 %v6020, %v6022
        %v6024 = vrot.slane %v6010, %v6023
        %v6025 = vcombine.low %v6001, %v6017
        %v6026 = vcombine.high %v6001, %v6017
        %v6027 = vcombine.low %v6008, %v6024
        %v6028 = vcombine.high %v6008, %v6024
        %v6029 = vcombine.low %v5173, %v5180
        %v6031 = vunpack.c.l.s4 1983009808
        %v6032 = vunpack.c.0.s8 %v6031
        %v6033 = vlaneseq
        %v6034 = vshrl.u32 %v6033, 7
        %v6035 = vsub.s32 %v6032, %v6034
        %v6036 = vrot.slane %v6029, %v6035
        %v6037 = vcombine.low %v5197, %v5198
        %v6039 = vunpack.c.l.s4 1983009808
        %v6040 = vunpack.c.0.s8 %v6039
        %v6041 = vlaneseq
        %v6042 = vshrl.u32 %v6041, 7
        %v6043 = vsub.s32 %v6040, %v6042
        %v6044 = vrot.slane %v6037, %v6043
        %v6045 = vcombine.low %v5189, %v5196
        %v6047 = vunpack.c.l.s4 1983009808
        %v6048 = vunpack.c.0.s8 %v6047
        %v6049 = vlaneseq
        %v6050 = vshrl.u32 %v6049, 7
        %v6051 = vsub.s32 %v6048, %v6050
        %v6052 = vrot.slane %v6045, %v6051
        %v6053 = vcombine.low %v5199, %v5200
        %v6055 = vunpack.c.l.s4 1983009808
        %v6056 = vunpack.c.0.s8 %v6055
        %v6057 = vlaneseq
        %v6058 = vshrl.u32 %v6057, 7
        %v6059 = vsub.s32 %v6056, %v6058
        %v6060 = vrot.slane %v6053, %v6059
        %v6061 = vcombine.low %v6036, %v6044
        %v6062 = vcombine.high %v6036, %v6044
        %v6064 = vunpack.c.l.s4 1934713408
        %v6065 = vunpack.c.0.s8 %v6064
        %v6066 = vlaneseq
        %v6067 = vshrl.u32 %v6066, 7
        %v6068 = vsub.s32 %v6065, %v6067
        %v6069 = vrot.slane %v6061, %v6068
        %v6071 = vunpack.c.l.s4 1934713408
        %v6072 = vunpack.c.0.s8 %v6071
        %v6073 = vlaneseq
        %v6074 = vshrl.u32 %v6073, 7
        %v6075 = vsub.s32 %v6072, %v6074
        %v6076 = vrot.slane %v6062, %v6075
        %v6077 = vcombine.low %v6052, %v6060
        %v6078 = vcombine.high %v6052, %v6060
        %v6080 = vunpack.c.l.s4 1934713408
        %v6081 = vunpack.c.0.s8 %v6080
        %v6082 = vlaneseq
        %v6083 = vshrl.u32 %v6082, 7
        %v6084 = vsub.s32 %v6081, %v6083
        %v6085 = vrot.slane %v6077, %v6084
        %v6087 = vunpack.c.l.s4 1934713408
        %v6088 = vunpack.c.0.s8 %v6087
        %v6089 = vlaneseq
        %v6090 = vshrl.u32 %v6089, 7
        %v6091 = vsub.s32 %v6088, %v6090
        %v6092 = vrot.slane %v6078, %v6091
        %v6093 = vcombine.low %v6069, %v6085
        %v6094 = vcombine.high %v6069, %v6085
        %v6095 = vcombine.low %v6076, %v6092
        %v6096 = vcombine.high %v6076, %v6092
        %v6097 = vcombine.low %v5241, %v5248
        %v6099 = vunpack.c.l.s4 1983009808
        %v6100 = vunpack.c.0.s8 %v6099
        %v6101 = vlaneseq
        %v6102 = vshrl.u32 %v6101, 7
        %v6103 = vsub.s32 %v6100, %v6102
        %v6104 = vrot.slane %v6097, %v6103
        %v6105 = vcombine.low %v5265, %v5266
        %v6107 = vunpack.c.l.s4 1983009808
        %v6108 = vunpack.c.0.s8 %v6107
        %v6109 = vlaneseq
        %v6110 = vshrl.u32 %v6109, 7
        %v6111 = vsub.s32 %v6108, %v6110
        %v6112 = vrot.slane %v6105, %v6111
        %v6113 = vcombine.low %v5257, %v5264
        %v6115 = vunpack.c.l.s4 1983009808
        %v6116 = vunpack.c.0.s8 %v6115
        %v6117 = vlaneseq
        %v6118 = vshrl.u32 %v6117, 7
        %v6119 = vsub.s32 %v6116, %v6118
        %v6120 = vrot.slane %v6113, %v6119
        %v6121 = vcombine.low %v5267, %v5268
        %v6123 = vunpack.c.l.s4 1983009808
        %v6124 = vunpack.c.0.s8 %v6123
        %v6125 = vlaneseq
        %v6126 = vshrl.u32 %v6125, 7
        %v6127 = vsub.s32 %v6124, %v6126
        %v6128 = vrot.slane %v6121, %v6127
        %v6129 = vcombine.low %v6104, %v6112
        %v6130 = vcombine.high %v6104, %v6112
        %v6132 = vunpack.c.l.s4 1934713408
        %v6133 = vunpack.c.0.s8 %v6132
        %v6134 = vlaneseq
        %v6135 = vshrl.u32 %v6134, 7
        %v6136 = vsub.s32 %v6133, %v6135
        %v6137 = vrot.slane %v6129, %v6136
        %v6139 = vunpack.c.l.s4 1934713408
        %v6140 = vunpack.c.0.s8 %v6139
        %v6141 = vlaneseq
        %v6142 = vshrl.u32 %v6141, 7
        %v6143 = vsub.s32 %v6140, %v6142
        %v6144 = vrot.slane %v6130, %v6143
        %v6145 = vcombine.low %v6120, %v6128
        %v6146 = vcombine.high %v6120, %v6128
        %v6148 = vunpack.c.l.s4 1934713408
        %v6149 = vunpack.c.0.s8 %v6148
        %v6150 = vlaneseq
        %v6151 = vshrl.u32 %v6150, 7
        %v6152 = vsub.s32 %v6149, %v6151
        %v6153 = vrot.slane %v6145, %v6152
        %v6155 = vunpack.c.l.s4 1934713408
        %v6156 = vunpack.c.0.s8 %v6155
        %v6157 = vlaneseq
        %v6158 = vshrl.u32 %v6157, 7
        %v6159 = vsub.s32 %v6156, %v6158
        %v6160 = vrot.slane %v6146, %v6159
        %v6161 = vcombine.low %v6137, %v6153
        %v6162 = vcombine.high %v6137, %v6153
        %v6163 = vcombine.low %v6144, %v6160
        %v6164 = vcombine.high %v6144, %v6160
        %v6165 = vpack.c.bf16 %v6025, %v5957
        %v6166 = vpack.c.bf16 %v6161, %v6093
        %v6167 = vpack.c.bf16 %v6026, %v5958
        %v6168 = vpack.c.bf16 %v6162, %v6094
        %v6169 = vpack.c.bf16 %v6027, %v5959
        %v6170 = vpack.c.bf16 %v6163, %v6095
        %v6171 = vpack.c.bf16 %v6028, %v5960
        %v6172 = vpack.c.bf16 %v6164, %v6096
        %v6173 = vcombine.low %v5349, %v5356
        %v6175 = vunpack.c.l.s4 1983009808
        %v6176 = vunpack.c.0.s8 %v6175
        %v6177 = vlaneseq
        %v6178 = vshrl.u32 %v6177, 7
        %v6179 = vsub.s32 %v6176, %v6178
        %v6180 = vrot.slane %v6173, %v6179
        %v6181 = vcombine.low %v5373, %v5374
        %v6183 = vunpack.c.l.s4 1983009808
        %v6184 = vunpack.c.0.s8 %v6183
        %v6185 = vlaneseq
        %v6186 = vshrl.u32 %v6185, 7
        %v6187 = vsub.s32 %v6184, %v6186
        %v6188 = vrot.slane %v6181, %v6187
        %v6189 = vcombine.low %v5365, %v5372
        %v6191 = vunpack.c.l.s4 1983009808
        %v6192 = vunpack.c.0.s8 %v6191
        %v6193 = vlaneseq
        %v6194 = vshrl.u32 %v6193, 7
        %v6195 = vsub.s32 %v6192, %v6194
        %v6196 = vrot.slane %v6189, %v6195
        %v6197 = vcombine.low %v5375, %v5376
        %v6199 = vunpack.c.l.s4 1983009808
        %v6200 = vunpack.c.0.s8 %v6199
        %v6201 = vlaneseq
        %v6202 = vshrl.u32 %v6201, 7
        %v6203 = vsub.s32 %v6200, %v6202
        %v6204 = vrot.slane %v6197, %v6203
        %v6205 = vcombine.low %v6180, %v6188
        %v6206 = vcombine.high %v6180, %v6188
        %v6208 = vunpack.c.l.s4 1934713408
        %v6209 = vunpack.c.0.s8 %v6208
        %v6210 = vlaneseq
        %v6211 = vshrl.u32 %v6210, 7
        %v6212 = vsub.s32 %v6209, %v6211
        %v6213 = vrot.slane %v6205, %v6212
        %v6215 = vunpack.c.l.s4 1934713408
        %v6216 = vunpack.c.0.s8 %v6215
        %v6217 = vlaneseq
        %v6218 = vshrl.u32 %v6217, 7
        %v6219 = vsub.s32 %v6216, %v6218
        %v6220 = vrot.slane %v6206, %v6219
        %v6221 = vcombine.low %v6196, %v6204
        %v6222 = vcombine.high %v6196, %v6204
        %v6224 = vunpack.c.l.s4 1934713408
        %v6225 = vunpack.c.0.s8 %v6224
        %v6226 = vlaneseq
        %v6227 = vshrl.u32 %v6226, 7
        %v6228 = vsub.s32 %v6225, %v6227
        %v6229 = vrot.slane %v6221, %v6228
        %v6231 = vunpack.c.l.s4 1934713408
        %v6232 = vunpack.c.0.s8 %v6231
        %v6233 = vlaneseq
        %v6234 = vshrl.u32 %v6233, 7
        %v6235 = vsub.s32 %v6232, %v6234
        %v6236 = vrot.slane %v6222, %v6235
        %v6237 = vcombine.low %v6213, %v6229
        %v6238 = vcombine.high %v6213, %v6229
        %v6239 = vcombine.low %v6220, %v6236
        %v6240 = vcombine.high %v6220, %v6236
        %v6241 = vcombine.low %v5417, %v5424
        %v6243 = vunpack.c.l.s4 1983009808
        %v6244 = vunpack.c.0.s8 %v6243
        %v6245 = vlaneseq
        %v6246 = vshrl.u32 %v6245, 7
        %v6247 = vsub.s32 %v6244, %v6246
        %v6248 = vrot.slane %v6241, %v6247
        %v6249 = vcombine.low %v5441, %v5442
        %v6251 = vunpack.c.l.s4 1983009808
        %v6252 = vunpack.c.0.s8 %v6251
        %v6253 = vlaneseq
        %v6254 = vshrl.u32 %v6253, 7
        %v6255 = vsub.s32 %v6252, %v6254
        %v6256 = vrot.slane %v6249, %v6255
        %v6257 = vcombine.low %v5433, %v5440
        %v6259 = vunpack.c.l.s4 1983009808
        %v6260 = vunpack.c.0.s8 %v6259
        %v6261 = vlaneseq
        %v6262 = vshrl.u32 %v6261, 7
        %v6263 = vsub.s32 %v6260, %v6262
        %v6264 = vrot.slane %v6257, %v6263
        %v6265 = vcombine.low %v5443, %v5444
        %v6267 = vunpack.c.l.s4 1983009808
        %v6268 = vunpack.c.0.s8 %v6267
        %v6269 = vlaneseq
        %v6270 = vshrl.u32 %v6269, 7
        %v6271 = vsub.s32 %v6268, %v6270
        %v6272 = vrot.slane %v6265, %v6271
        %v6273 = vcombine.low %v6248, %v6256
        %v6274 = vcombine.high %v6248, %v6256
        %v6276 = vunpack.c.l.s4 1934713408
        %v6277 = vunpack.c.0.s8 %v6276
        %v6278 = vlaneseq
        %v6279 = vshrl.u32 %v6278, 7
        %v6280 = vsub.s32 %v6277, %v6279
        %v6281 = vrot.slane %v6273, %v6280
        %v6283 = vunpack.c.l.s4 1934713408
        %v6284 = vunpack.c.0.s8 %v6283
        %v6285 = vlaneseq
        %v6286 = vshrl.u32 %v6285, 7
        %v6287 = vsub.s32 %v6284, %v6286
        %v6288 = vrot.slane %v6274, %v6287
        %v6289 = vcombine.low %v6264, %v6272
        %v6290 = vcombine.high %v6264, %v6272
        %v6292 = vunpack.c.l.s4 1934713408
        %v6293 = vunpack.c.0.s8 %v6292
        %v6294 = vlaneseq
        %v6295 = vshrl.u32 %v6294, 7
        %v6296 = vsub.s32 %v6293, %v6295
        %v6297 = vrot.slane %v6289, %v6296
        %v6299 = vunpack.c.l.s4 1934713408
        %v6300 = vunpack.c.0.s8 %v6299
        %v6301 = vlaneseq
        %v6302 = vshrl.u32 %v6301, 7
        %v6303 = vsub.s32 %v6300, %v6302
        %v6304 = vrot.slane %v6290, %v6303
        %v6305 = vcombine.low %v6281, %v6297
        %v6306 = vcombine.high %v6281, %v6297
        %v6307 = vcombine.low %v6288, %v6304
        %v6308 = vcombine.high %v6288, %v6304
        %v6309 = vcombine.low %v5485, %v5492
        %v6311 = vunpack.c.l.s4 1983009808
        %v6312 = vunpack.c.0.s8 %v6311
        %v6313 = vlaneseq
        %v6314 = vshrl.u32 %v6313, 7
        %v6315 = vsub.s32 %v6312, %v6314
        %v6316 = vrot.slane %v6309, %v6315
        %v6317 = vcombine.low %v5509, %v5510
        %v6319 = vunpack.c.l.s4 1983009808
        %v6320 = vunpack.c.0.s8 %v6319
        %v6321 = vlaneseq
        %v6322 = vshrl.u32 %v6321, 7
        %v6323 = vsub.s32 %v6320, %v6322
        %v6324 = vrot.slane %v6317, %v6323
        %v6325 = vcombine.low %v5501, %v5508
        %v6327 = vunpack.c.l.s4 1983009808
        %v6328 = vunpack.c.0.s8 %v6327
        %v6329 = vlaneseq
        %v6330 = vshrl.u32 %v6329, 7
        %v6331 = vsub.s32 %v6328, %v6330
        %v6332 = vrot.slane %v6325, %v6331
        %v6333 = vcombine.low %v5511, %v5512
        %v6335 = vunpack.c.l.s4 1983009808
        %v6336 = vunpack.c.0.s8 %v6335
        %v6337 = vlaneseq
        %v6338 = vshrl.u32 %v6337, 7
        %v6339 = vsub.s32 %v6336, %v6338
        %v6340 = vrot.slane %v6333, %v6339
        %v6341 = vcombine.low %v6316, %v6324
        %v6342 = vcombine.high %v6316, %v6324
        %v6344 = vunpack.c.l.s4 1934713408
        %v6345 = vunpack.c.0.s8 %v6344
        %v6346 = vlaneseq
        %v6347 = vshrl.u32 %v6346, 7
        %v6348 = vsub.s32 %v6345, %v6347
        %v6349 = vrot.slane %v6341, %v6348
        %v6351 = vunpack.c.l.s4 1934713408
        %v6352 = vunpack.c.0.s8 %v6351
        %v6353 = vlaneseq
        %v6354 = vshrl.u32 %v6353, 7
        %v6355 = vsub.s32 %v6352, %v6354
        %v6356 = vrot.slane %v6342, %v6355
        %v6357 = vcombine.low %v6332, %v6340
        %v6358 = vcombine.high %v6332, %v6340
        %v6360 = vunpack.c.l.s4 1934713408
        %v6361 = vunpack.c.0.s8 %v6360
        %v6362 = vlaneseq
        %v6363 = vshrl.u32 %v6362, 7
        %v6364 = vsub.s32 %v6361, %v6363
        %v6365 = vrot.slane %v6357, %v6364
        %v6367 = vunpack.c.l.s4 1934713408
        %v6368 = vunpack.c.0.s8 %v6367
        %v6369 = vlaneseq
        %v6370 = vshrl.u32 %v6369, 7
        %v6371 = vsub.s32 %v6368, %v6370
        %v6372 = vrot.slane %v6358, %v6371
        %v6373 = vcombine.low %v6349, %v6365
        %v6374 = vcombine.high %v6349, %v6365
        %v6375 = vcombine.low %v6356, %v6372
        %v6376 = vcombine.high %v6356, %v6372
        %v6377 = vcombine.low %v5553, %v5560
        %v6379 = vunpack.c.l.s4 1983009808
        %v6380 = vunpack.c.0.s8 %v6379
        %v6381 = vlaneseq
        %v6382 = vshrl.u32 %v6381, 7
        %v6383 = vsub.s32 %v6380, %v6382
        %v6384 = vrot.slane %v6377, %v6383
        %v6385 = vcombine.low %v5577, %v5578
        %v6387 = vunpack.c.l.s4 1983009808
        %v6388 = vunpack.c.0.s8 %v6387
        %v6389 = vlaneseq
        %v6390 = vshrl.u32 %v6389, 7
        %v6391 = vsub.s32 %v6388, %v6390
        %v6392 = vrot.slane %v6385, %v6391
        %v6393 = vcombine.low %v5569, %v5576
        %v6395 = vunpack.c.l.s4 1983009808
        %v6396 = vunpack.c.0.s8 %v6395
        %v6397 = vlaneseq
        %v6398 = vshrl.u32 %v6397, 7
        %v6399 = vsub.s32 %v6396, %v6398
        %v6400 = vrot.slane %v6393, %v6399
        %v6401 = vcombine.low %v5579, %v5580
        %v6403 = vunpack.c.l.s4 1983009808
        %v6404 = vunpack.c.0.s8 %v6403
        %v6405 = vlaneseq
        %v6406 = vshrl.u32 %v6405, 7
        %v6407 = vsub.s32 %v6404, %v6406
        %v6408 = vrot.slane %v6401, %v6407
        %v6409 = vcombine.low %v6384, %v6392
        %v6410 = vcombine.high %v6384, %v6392
        %v6412 = vunpack.c.l.s4 1934713408
        %v6413 = vunpack.c.0.s8 %v6412
        %v6414 = vlaneseq
        %v6415 = vshrl.u32 %v6414, 7
        %v6416 = vsub.s32 %v6413, %v6415
        %v6417 = vrot.slane %v6409, %v6416
        %v6419 = vunpack.c.l.s4 1934713408
        %v6420 = vunpack.c.0.s8 %v6419
        %v6421 = vlaneseq
        %v6422 = vshrl.u32 %v6421, 7
        %v6423 = vsub.s32 %v6420, %v6422
        %v6424 = vrot.slane %v6410, %v6423
        %v6425 = vcombine.low %v6400, %v6408
        %v6426 = vcombine.high %v6400, %v6408
        %v6428 = vunpack.c.l.s4 1934713408
        %v6429 = vunpack.c.0.s8 %v6428
        %v6430 = vlaneseq
        %v6431 = vshrl.u32 %v6430, 7
        %v6432 = vsub.s32 %v6429, %v6431
        %v6433 = vrot.slane %v6425, %v6432
        %v6435 = vunpack.c.l.s4 1934713408
        %v6436 = vunpack.c.0.s8 %v6435
        %v6437 = vlaneseq
        %v6438 = vshrl.u32 %v6437, 7
        %v6439 = vsub.s32 %v6436, %v6438
        %v6440 = vrot.slane %v6426, %v6439
        %v6441 = vcombine.low %v6417, %v6433
        %v6442 = vcombine.high %v6417, %v6433
        %v6443 = vcombine.low %v6424, %v6440
        %v6444 = vcombine.high %v6424, %v6440
        %v6445 = vpack.c.bf16 %v6305, %v6237
        %v6446 = vpack.c.bf16 %v6441, %v6373
        %v6447 = vpack.c.bf16 %v6306, %v6238
        %v6448 = vpack.c.bf16 %v6442, %v6374
        %v6449 = vpack.c.bf16 %v6307, %v6239
        %v6450 = vpack.c.bf16 %v6443, %v6375
        %v6451 = vpack.c.bf16 %v6308, %v6240
        %v6452 = vpack.c.bf16 %v6444, %v6376
        %v6453 = vcombine.low %v5661, %v5668
        %v6455 = vunpack.c.l.s4 1983009808
        %v6456 = vunpack.c.0.s8 %v6455
        %v6457 = vlaneseq
        %v6458 = vshrl.u32 %v6457, 7
        %v6459 = vsub.s32 %v6456, %v6458
        %v6460 = vrot.slane %v6453, %v6459
        %v6461 = vcombine.low %v5685, %v5686
        %v6463 = vunpack.c.l.s4 1983009808
        %v6464 = vunpack.c.0.s8 %v6463
        %v6465 = vlaneseq
        %v6466 = vshrl.u32 %v6465, 7
        %v6467 = vsub.s32 %v6464, %v6466
        %v6468 = vrot.slane %v6461, %v6467
        %v6469 = vcombine.low %v5677, %v5684
        %v6471 = vunpack.c.l.s4 1983009808
        %v6472 = vunpack.c.0.s8 %v6471
        %v6473 = vlaneseq
        %v6474 = vshrl.u32 %v6473, 7
        %v6475 = vsub.s32 %v6472, %v6474
        %v6476 = vrot.slane %v6469, %v6475
        %v6477 = vcombine.low %v5687, %v5688
        %v6479 = vunpack.c.l.s4 1983009808
        %v6480 = vunpack.c.0.s8 %v6479
        %v6481 = vlaneseq
        %v6482 = vshrl.u32 %v6481, 7
        %v6483 = vsub.s32 %v6480, %v6482
        %v6484 = vrot.slane %v6477, %v6483
        %v6485 = vcombine.low %v6460, %v6468
        %v6486 = vcombine.high %v6460, %v6468
        %v6488 = vunpack.c.l.s4 1934713408
        %v6489 = vunpack.c.0.s8 %v6488
        %v6490 = vlaneseq
        %v6491 = vshrl.u32 %v6490, 7
        %v6492 = vsub.s32 %v6489, %v6491
        %v6493 = vrot.slane %v6485, %v6492
        %v6495 = vunpack.c.l.s4 1934713408
        %v6496 = vunpack.c.0.s8 %v6495
        %v6497 = vlaneseq
        %v6498 = vshrl.u32 %v6497, 7
        %v6499 = vsub.s32 %v6496, %v6498
        %v6500 = vrot.slane %v6486, %v6499
        %v6501 = vcombine.low %v6476, %v6484
        %v6502 = vcombine.high %v6476, %v6484
        %v6504 = vunpack.c.l.s4 1934713408
        %v6505 = vunpack.c.0.s8 %v6504
        %v6506 = vlaneseq
        %v6507 = vshrl.u32 %v6506, 7
        %v6508 = vsub.s32 %v6505, %v6507
        %v6509 = vrot.slane %v6501, %v6508
        %v6511 = vunpack.c.l.s4 1934713408
        %v6512 = vunpack.c.0.s8 %v6511
        %v6513 = vlaneseq
        %v6514 = vshrl.u32 %v6513, 7
        %v6515 = vsub.s32 %v6512, %v6514
        %v6516 = vrot.slane %v6502, %v6515
        %v6517 = vcombine.low %v6493, %v6509
        %v6518 = vcombine.high %v6493, %v6509
        %v6519 = vcombine.low %v6500, %v6516
        %v6520 = vcombine.high %v6500, %v6516
        %v6521 = vcombine.low %v5729, %v5736
        %v6523 = vunpack.c.l.s4 1983009808
        %v6524 = vunpack.c.0.s8 %v6523
        %v6525 = vlaneseq
        %v6526 = vshrl.u32 %v6525, 7
        %v6527 = vsub.s32 %v6524, %v6526
        %v6528 = vrot.slane %v6521, %v6527
        %v6529 = vcombine.low %v5753, %v5754
        %v6531 = vunpack.c.l.s4 1983009808
        %v6532 = vunpack.c.0.s8 %v6531
        %v6533 = vlaneseq
        %v6534 = vshrl.u32 %v6533, 7
        %v6535 = vsub.s32 %v6532, %v6534
        %v6536 = vrot.slane %v6529, %v6535
        %v6537 = vcombine.low %v5745, %v5752
        %v6539 = vunpack.c.l.s4 1983009808
        %v6540 = vunpack.c.0.s8 %v6539
        %v6541 = vlaneseq
        %v6542 = vshrl.u32 %v6541, 7
        %v6543 = vsub.s32 %v6540, %v6542
        %v6544 = vrot.slane %v6537, %v6543
        %v6545 = vcombine.low %v5755, %v5756
        %v6547 = vunpack.c.l.s4 1983009808
        %v6548 = vunpack.c.0.s8 %v6547
        %v6549 = vlaneseq
        %v6550 = vshrl.u32 %v6549, 7
        %v6551 = vsub.s32 %v6548, %v6550
        %v6552 = vrot.slane %v6545, %v6551
        %v6553 = vcombine.low %v6528, %v6536
        %v6554 = vcombine.high %v6528, %v6536
        %v6556 = vunpack.c.l.s4 1934713408
        %v6557 = vunpack.c.0.s8 %v6556
        %v6558 = vlaneseq
        %v6559 = vshrl.u32 %v6558, 7
        %v6560 = vsub.s32 %v6557, %v6559
        %v6561 = vrot.slane %v6553, %v6560
        %v6563 = vunpack.c.l.s4 1934713408
        %v6564 = vunpack.c.0.s8 %v6563
        %v6565 = vlaneseq
        %v6566 = vshrl.u32 %v6565, 7
        %v6567 = vsub.s32 %v6564, %v6566
        %v6568 = vrot.slane %v6554, %v6567
        %v6569 = vcombine.low %v6544, %v6552
        %v6570 = vcombine.high %v6544, %v6552
        %v6572 = vunpack.c.l.s4 1934713408
        %v6573 = vunpack.c.0.s8 %v6572
        %v6574 = vlaneseq
        %v6575 = vshrl.u32 %v6574, 7
        %v6576 = vsub.s32 %v6573, %v6575
        %v6577 = vrot.slane %v6569, %v6576
        %v6579 = vunpack.c.l.s4 1934713408
        %v6580 = vunpack.c.0.s8 %v6579
        %v6581 = vlaneseq
        %v6582 = vshrl.u32 %v6581, 7
        %v6583 = vsub.s32 %v6580, %v6582
        %v6584 = vrot.slane %v6570, %v6583
        %v6585 = vcombine.low %v6561, %v6577
        %v6586 = vcombine.high %v6561, %v6577
        %v6587 = vcombine.low %v6568, %v6584
        %v6588 = vcombine.high %v6568, %v6584
        %v6589 = vcombine.low %v5797, %v5804
        %v6591 = vunpack.c.l.s4 1983009808
        %v6592 = vunpack.c.0.s8 %v6591
        %v6593 = vlaneseq
        %v6594 = vshrl.u32 %v6593, 7
        %v6595 = vsub.s32 %v6592, %v6594
        %v6596 = vrot.slane %v6589, %v6595
        %v6597 = vcombine.low %v5821, %v5822
        %v6599 = vunpack.c.l.s4 1983009808
        %v6600 = vunpack.c.0.s8 %v6599
        %v6601 = vlaneseq
        %v6602 = vshrl.u32 %v6601, 7
        %v6603 = vsub.s32 %v6600, %v6602
        %v6604 = vrot.slane %v6597, %v6603
        %v6605 = vcombine.low %v5813, %v5820
        %v6607 = vunpack.c.l.s4 1983009808
        %v6608 = vunpack.c.0.s8 %v6607
        %v6609 = vlaneseq
        %v6610 = vshrl.u32 %v6609, 7
        %v6611 = vsub.s32 %v6608, %v6610
        %v6612 = vrot.slane %v6605, %v6611
        %v6613 = vcombine.low %v5823, %v5824
        %v6615 = vunpack.c.l.s4 1983009808
        %v6616 = vunpack.c.0.s8 %v6615
        %v6617 = vlaneseq
        %v6618 = vshrl.u32 %v6617, 7
        %v6619 = vsub.s32 %v6616, %v6618
        %v6620 = vrot.slane %v6613, %v6619
        %v6621 = vcombine.low %v6596, %v6604
        %v6622 = vcombine.high %v6596, %v6604
        %v6624 = vunpack.c.l.s4 1934713408
        %v6625 = vunpack.c.0.s8 %v6624
        %v6626 = vlaneseq
        %v6627 = vshrl.u32 %v6626, 7
        %v6628 = vsub.s32 %v6625, %v6627
        %v6629 = vrot.slane %v6621, %v6628
        %v6631 = vunpack.c.l.s4 1934713408
        %v6632 = vunpack.c.0.s8 %v6631
        %v6633 = vlaneseq
        %v6634 = vshrl.u32 %v6633, 7
        %v6635 = vsub.s32 %v6632, %v6634
        %v6636 = vrot.slane %v6622, %v6635
        %v6637 = vcombine.low %v6612, %v6620
        %v6638 = vcombine.high %v6612, %v6620
        %v6640 = vunpack.c.l.s4 1934713408
        %v6641 = vunpack.c.0.s8 %v6640
        %v6642 = vlaneseq
        %v6643 = vshrl.u32 %v6642, 7
        %v6644 = vsub.s32 %v6641, %v6643
        %v6645 = vrot.slane %v6637, %v6644
        %v6647 = vunpack.c.l.s4 1934713408
        %v6648 = vunpack.c.0.s8 %v6647
        %v6649 = vlaneseq
        %v6650 = vshrl.u32 %v6649, 7
        %v6651 = vsub.s32 %v6648, %v6650
        %v6652 = vrot.slane %v6638, %v6651
        %v6653 = vcombine.low %v6629, %v6645
        %v6654 = vcombine.high %v6629, %v6645
        %v6655 = vcombine.low %v6636, %v6652
        %v6656 = vcombine.high %v6636, %v6652
        %v6657 = vcombine.low %v5865, %v5872
        %v6659 = vunpack.c.l.s4 1983009808
        %v6660 = vunpack.c.0.s8 %v6659
        %v6661 = vlaneseq
        %v6662 = vshrl.u32 %v6661, 7
        %v6663 = vsub.s32 %v6660, %v6662
        %v6664 = vrot.slane %v6657, %v6663
        %v6665 = vcombine.low %v5889, %v5890
        %v6667 = vunpack.c.l.s4 1983009808
        %v6668 = vunpack.c.0.s8 %v6667
        %v6669 = vlaneseq
        %v6670 = vshrl.u32 %v6669, 7
        %v6671 = vsub.s32 %v6668, %v6670
        %v6672 = vrot.slane %v6665, %v6671
        %v6673 = vcombine.low %v5881, %v5888
        %v6675 = vunpack.c.l.s4 1983009808
        %v6676 = vunpack.c.0.s8 %v6675
        %v6677 = vlaneseq
        %v6678 = vshrl.u32 %v6677, 7
        %v6679 = vsub.s32 %v6676, %v6678
        %v6680 = vrot.slane %v6673, %v6679
        %v6681 = vcombine.low %v5891, %v5892
        %v6683 = vunpack.c.l.s4 1983009808
        %v6684 = vunpack.c.0.s8 %v6683
        %v6685 = vlaneseq
        %v6686 = vshrl.u32 %v6685, 7
        %v6687 = vsub.s32 %v6684, %v6686
        %v6688 = vrot.slane %v6681, %v6687
        %v6689 = vcombine.low %v6664, %v6672
        %v6690 = vcombine.high %v6664, %v6672
        %v6692 = vunpack.c.l.s4 1934713408
        %v6693 = vunpack.c.0.s8 %v6692
        %v6694 = vlaneseq
        %v6695 = vshrl.u32 %v6694, 7
        %v6696 = vsub.s32 %v6693, %v6695
        %v6697 = vrot.slane %v6689, %v6696
        %v6699 = vunpack.c.l.s4 1934713408
        %v6700 = vunpack.c.0.s8 %v6699
        %v6701 = vlaneseq
        %v6702 = vshrl.u32 %v6701, 7
        %v6703 = vsub.s32 %v6700, %v6702
        %v6704 = vrot.slane %v6690, %v6703
        %v6705 = vcombine.low %v6680, %v6688
        %v6706 = vcombine.high %v6680, %v6688
        %v6708 = vunpack.c.l.s4 1934713408
        %v6709 = vunpack.c.0.s8 %v6708
        %v6710 = vlaneseq
        %v6711 = vshrl.u32 %v6710, 7
        %v6712 = vsub.s32 %v6709, %v6711
        %v6713 = vrot.slane %v6705, %v6712
        %v6715 = vunpack.c.l.s4 1934713408
        %v6716 = vunpack.c.0.s8 %v6715
        %v6717 = vlaneseq
        %v6718 = vshrl.u32 %v6717, 7
        %v6719 = vsub.s32 %v6716, %v6718
        %v6720 = vrot.slane %v6706, %v6719
        %v6721 = vcombine.low %v6697, %v6713
        %v6722 = vcombine.high %v6697, %v6713
        %v6723 = vcombine.low %v6704, %v6720
        %v6724 = vcombine.high %v6704, %v6720
        %v6725 = vpack.c.bf16 %v6585, %v6517
        %v6726 = vpack.c.bf16 %v6721, %v6653
        %v6727 = vpack.c.bf16 %v6586, %v6518
        %v6728 = vpack.c.bf16 %v6722, %v6654
        %v6729 = vpack.c.bf16 %v6587, %v6519
        %v6730 = vpack.c.bf16 %v6723, %v6655
        %v6731 = vpack.c.bf16 %v6588, %v6520
        %v6732 = vpack.c.bf16 %v6724, %v6656
        %v6734 = vsel %vm2712, %v6165, 0
        %v6737 = vsel %vm2712, %v6166, 0
        %v6740 = vsel %vm2712, %v6445, 0
        %v6743 = vsel %vm2712, %v6446, 0
        %6745 = vmatprep.subr.bf16.mxu0 0
        %6746 = vmatpush1.bf16.xpose.msra.mxu0 0
        %6747 = vmatprep.subr.bf16.mxu0 0
        %6748 = vmatpush1.bf16.xpose.msra.mxu0 0
        %6749 = vmatprep.subr.bf16.mxu0 0
        %6750 = vmatpush1.bf16.xpose.msra.mxu0 0
        %6751 = vmatprep.subr.bf16.mxu0 0
        %6752 = vmatpush1.bf16.xpose.msra.mxu0 0
        %6753 = vmatprep.subr.bf16.mxu0 0
        %6754 = vmatpush1.bf16.xpose.msra.mxu0 0
        %6755 = vmatprep.subr.bf16.mxu0 0
        %6756 = vmatpush1.bf16.xpose.msra.mxu0 0
        %6757 = vmatprep.subr.bf16.mxu0 0
        %6758 = vmatpush1.bf16.xpose.msra.mxu0 %v6743
        %6759 = vmatprep.subr.bf16.mxu0 0
        %6760 = vmatpush1.bf16.xpose.msra.mxu0 %v6740
        %6761 = vmatprep.subr.bf16.mxu0 0
        %6762 = vmatpush2.bf16.xpose.msra.mxu0 0
        %6763 = vmatprep.subr.bf16.mxu0 0
        %6764 = vmatpush2.bf16.xpose.msra.mxu0 0
        %6765 = vmatprep.subr.bf16.mxu0 0
        %6766 = vmatpush2.bf16.xpose.msra.mxu0 0
        %6767 = vmatprep.subr.bf16.mxu0 0
        %6768 = vmatpush2.bf16.xpose.msra.mxu0 0
        %6769 = vmatprep.subr.bf16.mxu0 0
        %6770 = vmatpush2.bf16.xpose.msra.mxu0 0
        %6771 = vmatprep.subr.bf16.mxu0 0
        %6772 = vmatpush2.bf16.xpose.msra.mxu0 0
        %6773 = vmatprep.subr.bf16.mxu0 0
        %6774 = vmatpush2.bf16.xpose.msra.mxu0 0
        %6775 = vmatprep.subr.bf16.mxu0 0
        %6776 = vmatpush2.bf16.xpose.msra.mxu0 0
        %6777 = vmatprep.mubr.bf16.mxu0 0
        %6778 = vmatmul.mubr.bf16.gmra.mxu0 %v6734
        %v6779 = vpop.f32.mrf.mxu0
        %v6780 = vadd.f32 0.0, %v6779
        %v6781 = vpop.f32.mrf.mxu0
        %v6782 = vpop.f32.mrf.mxu0
        %v6783 = vadd.f32 0.0, %v6782
        %v6784 = vpop.f32.mrf.mxu0
        %6785 = vmatprep.mubr.bf16.mxu0 0
        %6786 = vmatmul.mubr.bf16.gmra.mxu0 %v6737
        %v6787 = vpop.f32.mrf.mxu0
        %v6788 = vadd.f32 0.0, %v6787
        %v6789 = vpop.f32.mrf.mxu0
        %v6790 = vpop.f32.mrf.mxu0
        %v6791 = vadd.f32 0.0, %v6790
        %v6792 = vpop.f32.mrf.mxu0
        %6793 = vdwg.mxu0
        %v6795 = vsel %vm2712, %v6167, 0
        %v6798 = vsel %vm2712, %v6168, 0
        %v6801 = vsel %vm2712, %v6447, 0
        %v6804 = vsel %vm2712, %v6448, 0
        %6806 = vmatprep.subr.bf16.mxu0 0
        %6807 = vmatpush1.bf16.xpose.msra.mxu0 0
        %6808 = vmatprep.subr.bf16.mxu0 0
        %6809 = vmatpush1.bf16.xpose.msra.mxu0 0
        %6810 = vmatprep.subr.bf16.mxu0 0
        %6811 = vmatpush1.bf16.xpose.msra.mxu0 0
        %6812 = vmatprep.subr.bf16.mxu0 0
        %6813 = vmatpush1.bf16.xpose.msra.mxu0 0
        %6814 = vmatprep.subr.bf16.mxu0 0
        %6815 = vmatpush1.bf16.xpose.msra.mxu0 0
        %6816 = vmatprep.subr.bf16.mxu0 0
        %6817 = vmatpush1.bf16.xpose.msra.mxu0 0
        %6818 = vmatprep.subr.bf16.mxu0 0
        %6819 = vmatpush1.bf16.xpose.msra.mxu0 %v6804
        %6820 = vmatprep.subr.bf16.mxu0 0
        %6821 = vmatpush1.bf16.xpose.msra.mxu0 %v6801
        %6822 = vmatprep.subr.bf16.mxu0 0
        %6823 = vmatpush2.bf16.xpose.msra.mxu0 0
        %6824 = vmatprep.subr.bf16.mxu0 0
        %6825 = vmatpush2.bf16.xpose.msra.mxu0 0
        %6826 = vmatprep.subr.bf16.mxu0 0
        %6827 = vmatpush2.bf16.xpose.msra.mxu0 0
        %6828 = vmatprep.subr.bf16.mxu0 0
        %6829 = vmatpush2.bf16.xpose.msra.mxu0 0
        %6830 = vmatprep.subr.bf16.mxu0 0
        %6831 = vmatpush2.bf16.xpose.msra.mxu0 0
        %6832 = vmatprep.subr.bf16.mxu0 0
        %6833 = vmatpush2.bf16.xpose.msra.mxu0 0
        %6834 = vmatprep.subr.bf16.mxu0 0
        %6835 = vmatpush2.bf16.xpose.msra.mxu0 0
        %6836 = vmatprep.subr.bf16.mxu0 0
        %6837 = vmatpush2.bf16.xpose.msra.mxu0 0
        %6838 = vmatprep.mubr.bf16.mxu0 0
        %6839 = vmatmul.mubr.bf16.gmra.mxu0 %v6795
        %v6840 = vpop.f32.mrf.mxu0
        %v6841 = vadd.f32 0.0, %v6840
        %v6842 = vpop.f32.mrf.mxu0
        %v6843 = vpop.f32.mrf.mxu0
        %v6844 = vadd.f32 0.0, %v6843
        %v6845 = vpop.f32.mrf.mxu0
        %6846 = vmatprep.mubr.bf16.mxu0 0
        %6847 = vmatmul.mubr.bf16.gmra.mxu0 %v6798
        %v6848 = vpop.f32.mrf.mxu0
        %v6849 = vadd.f32 0.0, %v6848
        %v6850 = vpop.f32.mrf.mxu0
        %v6851 = vpop.f32.mrf.mxu0
        %v6852 = vadd.f32 0.0, %v6851
        %v6853 = vpop.f32.mrf.mxu0
        %6854 = vdwg.mxu0
        %v6856 = vsel %vm2712, %v6169, 0
        %v6859 = vsel %vm2712, %v6170, 0
        %v6862 = vsel %vm2712, %v6449, 0
        %v6865 = vsel %vm2712, %v6450, 0
        %6867 = vmatprep.subr.bf16.mxu0 0
        %6868 = vmatpush1.bf16.xpose.msra.mxu0 0
        %6869 = vmatprep.subr.bf16.mxu0 0
        %6870 = vmatpush1.bf16.xpose.msra.mxu0 0
        %6871 = vmatprep.subr.bf16.mxu0 0
        %6872 = vmatpush1.bf16.xpose.msra.mxu0 0
        %6873 = vmatprep.subr.bf16.mxu0 0
        %6874 = vmatpush1.bf16.xpose.msra.mxu0 0
        %6875 = vmatprep.subr.bf16.mxu0 0
        %6876 = vmatpush1.bf16.xpose.msra.mxu0 0
        %6877 = vmatprep.subr.bf16.mxu0 0
        %6878 = vmatpush1.bf16.xpose.msra.mxu0 0
        %6879 = vmatprep.subr.bf16.mxu0 0
        %6880 = vmatpush1.bf16.xpose.msra.mxu0 %v6865
        %6881 = vmatprep.subr.bf16.mxu0 0
        %6882 = vmatpush1.bf16.xpose.msra.mxu0 %v6862
        %6883 = vmatprep.subr.bf16.mxu0 0
        %6884 = vmatpush2.bf16.xpose.msra.mxu0 0
        %6885 = vmatprep.subr.bf16.mxu0 0
        %6886 = vmatpush2.bf16.xpose.msra.mxu0 0
        %6887 = vmatprep.subr.bf16.mxu0 0
        %6888 = vmatpush2.bf16.xpose.msra.mxu0 0
        %6889 = vmatprep.subr.bf16.mxu0 0
        %6890 = vmatpush2.bf16.xpose.msra.mxu0 0
        %6891 = vmatprep.subr.bf16.mxu0 0
        %6892 = vmatpush2.bf16.xpose.msra.mxu0 0
        %6893 = vmatprep.subr.bf16.mxu0 0
        %6894 = vmatpush2.bf16.xpose.msra.mxu0 0
        %6895 = vmatprep.subr.bf16.mxu0 0
        %6896 = vmatpush2.bf16.xpose.msra.mxu0 0
        %6897 = vmatprep.subr.bf16.mxu0 0
        %6898 = vmatpush2.bf16.xpose.msra.mxu0 0
        %6899 = vmatprep.mubr.bf16.mxu0 0
        %6900 = vmatmul.mubr.bf16.gmra.mxu0 %v6856
        %v6901 = vpop.f32.mrf.mxu0
        %v6902 = vadd.f32 0.0, %v6901
        %v6903 = vpop.f32.mrf.mxu0
        %v6904 = vpop.f32.mrf.mxu0
        %v6905 = vadd.f32 0.0, %v6904
        %v6906 = vpop.f32.mrf.mxu0
        %6907 = vmatprep.mubr.bf16.mxu0 0
        %6908 = vmatmul.mubr.bf16.gmra.mxu0 %v6859
        %v6909 = vpop.f32.mrf.mxu0
        %v6910 = vadd.f32 0.0, %v6909
        %v6911 = vpop.f32.mrf.mxu0
        %v6912 = vpop.f32.mrf.mxu0
        %v6913 = vadd.f32 0.0, %v6912
        %v6914 = vpop.f32.mrf.mxu0
        %6915 = vdwg.mxu0
        %v6917 = vsel %vm2712, %v6171, 0
        %v6920 = vsel %vm2712, %v6172, 0
        %v6923 = vsel %vm2712, %v6451, 0
        %v6926 = vsel %vm2712, %v6452, 0
        %6928 = vmatprep.subr.bf16.mxu0 0
        %6929 = vmatpush1.bf16.xpose.msra.mxu0 0
        %6930 = vmatprep.subr.bf16.mxu0 0
        %6931 = vmatpush1.bf16.xpose.msra.mxu0 0
        %6932 = vmatprep.subr.bf16.mxu0 0
        %6933 = vmatpush1.bf16.xpose.msra.mxu0 0
        %6934 = vmatprep.subr.bf16.mxu0 0
        %6935 = vmatpush1.bf16.xpose.msra.mxu0 0
        %6936 = vmatprep.subr.bf16.mxu0 0
        %6937 = vmatpush1.bf16.xpose.msra.mxu0 0
        %6938 = vmatprep.subr.bf16.mxu0 0
        %6939 = vmatpush1.bf16.xpose.msra.mxu0 0
        %6940 = vmatprep.subr.bf16.mxu0 0
        %6941 = vmatpush1.bf16.xpose.msra.mxu0 %v6926
        %6942 = vmatprep.subr.bf16.mxu0 0
        %6943 = vmatpush1.bf16.xpose.msra.mxu0 %v6923
        %6944 = vmatprep.subr.bf16.mxu0 0
        %6945 = vmatpush2.bf16.xpose.msra.mxu0 0
        %6946 = vmatprep.subr.bf16.mxu0 0
        %6947 = vmatpush2.bf16.xpose.msra.mxu0 0
        %6948 = vmatprep.subr.bf16.mxu0 0
        %6949 = vmatpush2.bf16.xpose.msra.mxu0 0
        %6950 = vmatprep.subr.bf16.mxu0 0
        %6951 = vmatpush2.bf16.xpose.msra.mxu0 0
        %6952 = vmatprep.subr.bf16.mxu0 0
        %6953 = vmatpush2.bf16.xpose.msra.mxu0 0
        %6954 = vmatprep.subr.bf16.mxu0 0
        %6955 = vmatpush2.bf16.xpose.msra.mxu0 0
        %6956 = vmatprep.subr.bf16.mxu0 0
        %6957 = vmatpush2.bf16.xpose.msra.mxu0 0
        %6958 = vmatprep.subr.bf16.mxu0 0
        %6959 = vmatpush2.bf16.xpose.msra.mxu0 0
        %6960 = vmatprep.mubr.bf16.mxu0 0
        %6961 = vmatmul.mubr.bf16.gmra.mxu0 %v6917
        %v6962 = vpop.f32.mrf.mxu0
        %v6963 = vadd.f32 0.0, %v6962
        %v6964 = vpop.f32.mrf.mxu0
        %v6965 = vpop.f32.mrf.mxu0
        %v6966 = vadd.f32 0.0, %v6965
        %v6967 = vpop.f32.mrf.mxu0
        %6968 = vmatprep.mubr.bf16.mxu0 0
        %6969 = vmatmul.mubr.bf16.gmra.mxu0 %v6920
        %v6970 = vpop.f32.mrf.mxu0
        %v6971 = vadd.f32 0.0, %v6970
        %v6972 = vpop.f32.mrf.mxu0
        %v6973 = vpop.f32.mrf.mxu0
        %v6974 = vadd.f32 0.0, %v6973
        %v6975 = vpop.f32.mrf.mxu0
        %6976 = vdwg.mxu0
        %v6977 = vmul.f32 %v6780, 0.17677669
        %v6978 = vmul.f32 %v6783, 0.17677669
        %v6979 = vmul.f32 %v6788, 0.17677669
        %v6980 = vmul.f32 %v6791, 0.17677669
        %v6981 = vmul.f32 %v6841, 0.17677669
        %v6982 = vmul.f32 %v6844, 0.17677669
        %v6983 = vmul.f32 %v6849, 0.17677669
        %v6984 = vmul.f32 %v6852, 0.17677669
        %v6985 = vmul.f32 %v6902, 0.17677669
        %v6986 = vmul.f32 %v6905, 0.17677669
        %v6987 = vmul.f32 %v6910, 0.17677669
        %v6988 = vmul.f32 %v6913, 0.17677669
        %v6989 = vmul.f32 %v6963, 0.17677669
        %v6990 = vmul.f32 %v6966, 0.17677669
        %v6991 = vmul.f32 %v6971, 0.17677669
        %v6992 = vmul.f32 %v6974, 0.17677669
        %v6993 = vadd.f32 %v6977, %v592
        %v6994 = vadd.f32 %v6978, %v592
        %v6995 = vadd.f32 %v6979, %v592
        %v6996 = vadd.f32 %v6980, %v592
        %v6997 = vadd.f32 %v6981, %v592
        %v6998 = vadd.f32 %v6982, %v592
        %v6999 = vadd.f32 %v6983, %v592
        %v7000 = vadd.f32 %v6984, %v592
        %v7001 = vadd.f32 %v6985, %v592
        %v7002 = vadd.f32 %v6986, %v592
        %v7003 = vadd.f32 %v6987, %v592
        %v7004 = vadd.f32 %v6988, %v592
        %v7005 = vadd.f32 %v6989, %v592
        %v7006 = vadd.f32 %v6990, %v592
        %v7007 = vadd.f32 %v6991, %v592
        %v7008 = vadd.f32 %v6992, %v592
        %v7009 = vsel %vm2712, %v6993, -inf
        %7010 = vmax.xlane.f32.xlu0 %v7009
        %v7011 = vpop.xlane.xlu0 %7010
        %v7012 = vsel %vm2712, %v6994, -inf
        %7013 = vmax.xlane.f32.xlu0 %v7012
        %v7014 = vpop.xlane.xlu0 %7013
        %v7015 = vsel %vm2712, %v6995, -inf
        %7016 = vmax.xlane.f32.xlu0 %v7015
        %v7017 = vpop.xlane.xlu0 %7016
        %v7018 = vsel %vm2712, %v6996, -inf
        %7019 = vmax.xlane.f32.xlu0 %v7018
        %v7020 = vpop.xlane.xlu0 %7019
        %v7021 = vsel %vm2712, %v6997, -inf
        %7022 = vmax.xlane.f32.xlu0 %v7021
        %v7023 = vpop.xlane.xlu0 %7022
        %v7024 = vsel %vm2712, %v6998, -inf
        %7025 = vmax.xlane.f32.xlu0 %v7024
        %v7026 = vpop.xlane.xlu0 %7025
        %v7027 = vsel %vm2712, %v6999, -inf
        %7028 = vmax.xlane.f32.xlu0 %v7027
        %v7029 = vpop.xlane.xlu0 %7028
        %v7030 = vsel %vm2712, %v7000, -inf
        %7031 = vmax.xlane.f32.xlu0 %v7030
        %v7032 = vpop.xlane.xlu0 %7031
        %v7033 = vsel %vm2712, %v7001, -inf
        %7034 = vmax.xlane.f32.xlu0 %v7033
        %v7035 = vpop.xlane.xlu0 %7034
        %v7036 = vsel %vm2712, %v7002, -inf
        %7037 = vmax.xlane.f32.xlu0 %v7036
        %v7038 = vpop.xlane.xlu0 %7037
        %v7039 = vsel %vm2712, %v7003, -inf
        %7040 = vmax.xlane.f32.xlu0 %v7039
        %v7041 = vpop.xlane.xlu0 %7040
        %v7042 = vsel %vm2712, %v7004, -inf
        %7043 = vmax.xlane.f32.xlu0 %v7042
        %v7044 = vpop.xlane.xlu0 %7043
        %v7045 = vsel %vm2712, %v7005, -inf
        %7046 = vmax.xlane.f32.xlu0 %v7045
        %v7047 = vpop.xlane.xlu0 %7046
        %v7048 = vsel %vm2712, %v7006, -inf
        %7049 = vmax.xlane.f32.xlu0 %v7048
        %v7050 = vpop.xlane.xlu0 %7049
        %v7051 = vsel %vm2712, %v7007, -inf
        %7052 = vmax.xlane.f32.xlu0 %v7051
        %v7053 = vpop.xlane.xlu0 %7052
        %v7054 = vsel %vm2712, %v7008, -inf
        %7055 = vmax.xlane.f32.xlu0 %v7054
        %v7056 = vpop.xlane.xlu0 %7055
        %v7057 = vsub.f32 %v6993, %v7011
        %v7058 = vsub.f32 %v6994, %v7014
        %v7059 = vsub.f32 %v6995, %v7017
        %v7060 = vsub.f32 %v6996, %v7020
        %v7061 = vsub.f32 %v6997, %v7023
        %v7062 = vsub.f32 %v6998, %v7026
        %v7063 = vsub.f32 %v6999, %v7029
        %v7064 = vsub.f32 %v7000, %v7032
        %v7065 = vsub.f32 %v7001, %v7035
        %v7066 = vsub.f32 %v7002, %v7038
        %v7067 = vsub.f32 %v7003, %v7041
        %v7068 = vsub.f32 %v7004, %v7044
        %v7069 = vsub.f32 %v7005, %v7047
        %v7070 = vsub.f32 %v7006, %v7050
        %v7071 = vsub.f32 %v7007, %v7053
        %v7072 = vsub.f32 %v7008, %v7056
        %v7073 = vmul.f32 %v7057, 1.442695
        %v7074 = vpow.pop %v7073
        %v7075 = vmul.f32 %v7058, 1.442695
        %v7076 = vpow.pop %v7075
        %v7077 = vmul.f32 %v7059, 1.442695
        %v7078 = vpow.pop %v7077
        %v7079 = vmul.f32 %v7060, 1.442695
        %v7080 = vpow.pop %v7079
        %v7081 = vmul.f32 %v7061, 1.442695
        %v7082 = vpow.pop %v7081
        %v7083 = vmul.f32 %v7062, 1.442695
        %v7084 = vpow.pop %v7083
        %v7085 = vmul.f32 %v7063, 1.442695
        %v7086 = vpow.pop %v7085
        %v7087 = vmul.f32 %v7064, 1.442695
        %v7088 = vpow.pop %v7087
        %v7089 = vmul.f32 %v7065, 1.442695
        %v7090 = vpow.pop %v7089
        %v7091 = vmul.f32 %v7066, 1.442695
        %v7092 = vpow.pop %v7091
        %v7093 = vmul.f32 %v7067, 1.442695
        %v7094 = vpow.pop %v7093
        %v7095 = vmul.f32 %v7068, 1.442695
        %v7096 = vpow.pop %v7095
        %v7097 = vmul.f32 %v7069, 1.442695
        %v7098 = vpow.pop %v7097
        %v7099 = vmul.f32 %v7070, 1.442695
        %v7100 = vpow.pop %v7099
        %v7101 = vmul.f32 %v7071, 1.442695
        %v7102 = vpow.pop %v7101
        %v7103 = vmul.f32 %v7072, 1.442695
        %v7104 = vpow.pop %v7103
        %v7105 = vsel %vm2712, %v7074, 0.0
        %7106 = vadd.xlane.f32.xlu0 %v7105
        %v7107 = vpop.xlane.xlu0 %7106
        %v7108 = vsel %vm2712, %v7076, 0.0
        %7109 = vadd.xlane.f32.xlu0 %v7108
        %v7110 = vpop.xlane.xlu0 %7109
        %v7111 = vsel %vm2712, %v7078, 0.0
        %7112 = vadd.xlane.f32.xlu0 %v7111
        %v7113 = vpop.xlane.xlu0 %7112
        %v7114 = vsel %vm2712, %v7080, 0.0
        %7115 = vadd.xlane.f32.xlu0 %v7114
        %v7116 = vpop.xlane.xlu0 %7115
        %v7117 = vsel %vm2712, %v7082, 0.0
        %7118 = vadd.xlane.f32.xlu0 %v7117
        %v7119 = vpop.xlane.xlu0 %7118
        %v7120 = vsel %vm2712, %v7084, 0.0
        %7121 = vadd.xlane.f32.xlu0 %v7120
        %v7122 = vpop.xlane.xlu0 %7121
        %v7123 = vsel %vm2712, %v7086, 0.0
        %7124 = vadd.xlane.f32.xlu0 %v7123
        %v7125 = vpop.xlane.xlu0 %7124
        %v7126 = vsel %vm2712, %v7088, 0.0
        %7127 = vadd.xlane.f32.xlu0 %v7126
        %v7128 = vpop.xlane.xlu0 %7127
        %v7129 = vsel %vm2712, %v7090, 0.0
        %7130 = vadd.xlane.f32.xlu0 %v7129
        %v7131 = vpop.xlane.xlu0 %7130
        %v7132 = vsel %vm2712, %v7092, 0.0
        %7133 = vadd.xlane.f32.xlu0 %v7132
        %v7134 = vpop.xlane.xlu0 %7133
        %v7135 = vsel %vm2712, %v7094, 0.0
        %7136 = vadd.xlane.f32.xlu0 %v7135
        %v7137 = vpop.xlane.xlu0 %7136
        %v7138 = vsel %vm2712, %v7096, 0.0
        %7139 = vadd.xlane.f32.xlu0 %v7138
        %v7140 = vpop.xlane.xlu0 %7139
        %v7141 = vsel %vm2712, %v7098, 0.0
        %7142 = vadd.xlane.f32.xlu0 %v7141
        %v7143 = vpop.xlane.xlu0 %7142
        %v7144 = vsel %vm2712, %v7100, 0.0
        %7145 = vadd.xlane.f32.xlu0 %v7144
        %v7146 = vpop.xlane.xlu0 %7145
        %v7147 = vsel %vm2712, %v7102, 0.0
        %7148 = vadd.xlane.f32.xlu0 %v7147
        %v7149 = vpop.xlane.xlu0 %7148
        %v7150 = vsel %vm2712, %v7104, 0.0
        %7151 = vadd.xlane.f32.xlu0 %v7150
        %v7152 = vpop.xlane.xlu0 %7151
        %v7153 = vrcp.pop %v7107
        %v7154 = vrcp.pop %v7110
        %v7155 = vrcp.pop %v7113
        %v7156 = vrcp.pop %v7116
        %v7157 = vrcp.pop %v7119
        %v7158 = vrcp.pop %v7122
        %v7159 = vrcp.pop %v7125
        %v7160 = vrcp.pop %v7128
        %v7161 = vrcp.pop %v7131
        %v7162 = vrcp.pop %v7134
        %v7163 = vrcp.pop %v7137
        %v7164 = vrcp.pop %v7140
        %v7165 = vrcp.pop %v7143
        %v7166 = vrcp.pop %v7146
        %v7167 = vrcp.pop %v7149
        %v7168 = vrcp.pop %v7152
        %v7169 = vmul.f32 %v7074, %v7153
        %v7170 = vmul.f32 %v7076, %v7154
        %v7171 = vmul.f32 %v7078, %v7155
        %v7172 = vmul.f32 %v7080, %v7156
        %v7173 = vmul.f32 %v7082, %v7157
        %v7174 = vmul.f32 %v7084, %v7158
        %v7175 = vmul.f32 %v7086, %v7159
        %v7176 = vmul.f32 %v7088, %v7160
        %v7177 = vmul.f32 %v7090, %v7161
        %v7178 = vmul.f32 %v7092, %v7162
        %v7179 = vmul.f32 %v7094, %v7163
        %v7180 = vmul.f32 %v7096, %v7164
        %v7181 = vmul.f32 %v7098, %v7165
        %v7182 = vmul.f32 %v7100, %v7166
        %v7183 = vmul.f32 %v7102, %v7167
        %v7184 = vmul.f32 %v7104, %v7168
        %v7185 = vpack.c.bf16 %v7170, %v7169
        %v7186 = vpack.c.bf16 %v7172, %v7171
        %v7187 = vpack.c.bf16 %v7174, %v7173
        %v7188 = vpack.c.bf16 %v7176, %v7175
        %v7189 = vpack.c.bf16 %v7178, %v7177
        %v7190 = vpack.c.bf16 %v7180, %v7179
        %v7191 = vpack.c.bf16 %v7182, %v7181
        %v7192 = vpack.c.bf16 %v7184, %v7183
        %v7194 = vsel %vm2712, %v7185, 0
        %v7197 = vsel %vm2712, %v7186, 0
        %7199 = vmatprep.subr.bf16.mxu0 0
        %7200 = vmatpush1.bf16.msra.mxu0 0
        %7201 = vmatprep.subr.bf16.mxu0 0
        %7202 = vmatpush1.bf16.msra.mxu0 0
        %7203 = vmatprep.subr.bf16.mxu0 0
        %7204 = vmatpush1.bf16.msra.mxu0 0
        %7205 = vmatprep.subr.bf16.mxu0 0
        %7206 = vmatpush1.bf16.msra.mxu0 0
        %7207 = vmatprep.subr.bf16.mxu0 0
        %7208 = vmatpush1.bf16.msra.mxu0 0
        %7209 = vmatprep.subr.bf16.mxu0 0
        %7210 = vmatpush1.bf16.msra.mxu0 0
        %7211 = vmatprep.subr.bf16.mxu0 0
        %7212 = vmatpush1.bf16.msra.mxu0 %v6726
        %7213 = vmatprep.subr.bf16.mxu0 0
        %7214 = vmatpush1.bf16.msra.mxu0 %v6725
        %7215 = vmatprep.subr.bf16.mxu0 0
        %7216 = vmatpush2.bf16.msra.mxu0 0
        %7217 = vmatprep.subr.bf16.mxu0 0
        %7218 = vmatpush2.bf16.msra.mxu0 0
        %7219 = vmatprep.subr.bf16.mxu0 0
        %7220 = vmatpush2.bf16.msra.mxu0 0
        %7221 = vmatprep.subr.bf16.mxu0 0
        %7222 = vmatpush2.bf16.msra.mxu0 0
        %7223 = vmatprep.subr.bf16.mxu0 0
        %7224 = vmatpush2.bf16.msra.mxu0 0
        %7225 = vmatprep.subr.bf16.mxu0 0
        %7226 = vmatpush2.bf16.msra.mxu0 0
        %7227 = vmatprep.subr.bf16.mxu0 0
        %7228 = vmatpush2.bf16.msra.mxu0 0
        %7229 = vmatprep.subr.bf16.mxu0 0
        %7230 = vmatpush2.bf16.msra.mxu0 0
        %7231 = vmatprep.mubr.bf16.mxu0 0
        %7232 = vmatmul.mubr.bf16.gmra.mxu0 %v7194
        %v7233 = vpop.f32.mrf.mxu0
        %v7234 = vadd.f32 0.0, %v7233
        %v7235 = vpop.f32.mrf.mxu0
        %v7236 = vpop.f32.mrf.mxu0
        %v7237 = vadd.f32 0.0, %v7236
        %v7238 = vpop.f32.mrf.mxu0
        %7239 = vmatprep.mubr.bf16.mxu0 0
        %7240 = vmatmul.mubr.bf16.gmra.mxu0 %v7197
        %v7241 = vpop.f32.mrf.mxu0
        %v7242 = vadd.f32 0.0, %v7241
        %v7243 = vpop.f32.mrf.mxu0
        %v7244 = vpop.f32.mrf.mxu0
        %v7245 = vadd.f32 0.0, %v7244
        %v7246 = vpop.f32.mrf.mxu0
        %7247 = vdwg.mxu0
        %v7249 = vsel %vm2712, %v7187, 0
        %v7252 = vsel %vm2712, %v7188, 0
        %7254 = vmatprep.subr.bf16.mxu0 0
        %7255 = vmatpush1.bf16.msra.mxu0 0
        %7256 = vmatprep.subr.bf16.mxu0 0
        %7257 = vmatpush1.bf16.msra.mxu0 0
        %7258 = vmatprep.subr.bf16.mxu0 0
        %7259 = vmatpush1.bf16.msra.mxu0 0
        %7260 = vmatprep.subr.bf16.mxu0 0
        %7261 = vmatpush1.bf16.msra.mxu0 0
        %7262 = vmatprep.subr.bf16.mxu0 0
        %7263 = vmatpush1.bf16.msra.mxu0 0
        %7264 = vmatprep.subr.bf16.mxu0 0
        %7265 = vmatpush1.bf16.msra.mxu0 0
        %7266 = vmatprep.subr.bf16.mxu0 0
        %7267 = vmatpush1.bf16.msra.mxu0 %v6728
        %7268 = vmatprep.subr.bf16.mxu0 0
        %7269 = vmatpush1.bf16.msra.mxu0 %v6727
        %7270 = vmatprep.subr.bf16.mxu0 0
        %7271 = vmatpush2.bf16.msra.mxu0 0
        %7272 = vmatprep.subr.bf16.mxu0 0
        %7273 = vmatpush2.bf16.msra.mxu0 0
        %7274 = vmatprep.subr.bf16.mxu0 0
        %7275 = vmatpush2.bf16.msra.mxu0 0
        %7276 = vmatprep.subr.bf16.mxu0 0
        %7277 = vmatpush2.bf16.msra.mxu0 0
        %7278 = vmatprep.subr.bf16.mxu0 0
        %7279 = vmatpush2.bf16.msra.mxu0 0
        %7280 = vmatprep.subr.bf16.mxu0 0
        %7281 = vmatpush2.bf16.msra.mxu0 0
        %7282 = vmatprep.subr.bf16.mxu0 0
        %7283 = vmatpush2.bf16.msra.mxu0 0
        %7284 = vmatprep.subr.bf16.mxu0 0
        %7285 = vmatpush2.bf16.msra.mxu0 0
        %7286 = vmatprep.mubr.bf16.mxu0 0
        %7287 = vmatmul.mubr.bf16.gmra.mxu0 %v7249
        %v7288 = vpop.f32.mrf.mxu0
        %v7289 = vadd.f32 0.0, %v7288
        %v7290 = vpop.f32.mrf.mxu0
        %v7291 = vpop.f32.mrf.mxu0
        %v7292 = vadd.f32 0.0, %v7291
        %v7293 = vpop.f32.mrf.mxu0
        %7294 = vmatprep.mubr.bf16.mxu0 0
        %7295 = vmatmul.mubr.bf16.gmra.mxu0 %v7252
        %v7296 = vpop.f32.mrf.mxu0
        %v7297 = vadd.f32 0.0, %v7296
        %v7298 = vpop.f32.mrf.mxu0
        %v7299 = vpop.f32.mrf.mxu0
        %v7300 = vadd.f32 0.0, %v7299
        %v7301 = vpop.f32.mrf.mxu0
        %7302 = vdwg.mxu0
        %v7304 = vsel %vm2712, %v7189, 0
        %v7307 = vsel %vm2712, %v7190, 0
        %7309 = vmatprep.subr.bf16.mxu0 0
        %7310 = vmatpush1.bf16.msra.mxu0 0
        %7311 = vmatprep.subr.bf16.mxu0 0
        %7312 = vmatpush1.bf16.msra.mxu0 0
        %7313 = vmatprep.subr.bf16.mxu0 0
        %7314 = vmatpush1.bf16.msra.mxu0 0
        %7315 = vmatprep.subr.bf16.mxu0 0
        %7316 = vmatpush1.bf16.msra.mxu0 0
        %7317 = vmatprep.subr.bf16.mxu0 0
        %7318 = vmatpush1.bf16.msra.mxu0 0
        %7319 = vmatprep.subr.bf16.mxu0 0
        %7320 = vmatpush1.bf16.msra.mxu0 0
        %7321 = vmatprep.subr.bf16.mxu0 0
        %7322 = vmatpush1.bf16.msra.mxu0 %v6730
        %7323 = vmatprep.subr.bf16.mxu0 0
        %7324 = vmatpush1.bf16.msra.mxu0 %v6729
        %7325 = vmatprep.subr.bf16.mxu0 0
        %7326 = vmatpush2.bf16.msra.mxu0 0
        %7327 = vmatprep.subr.bf16.mxu0 0
        %7328 = vmatpush2.bf16.msra.mxu0 0
        %7329 = vmatprep.subr.bf16.mxu0 0
        %7330 = vmatpush2.bf16.msra.mxu0 0
        %7331 = vmatprep.subr.bf16.mxu0 0
        %7332 = vmatpush2.bf16.msra.mxu0 0
        %7333 = vmatprep.subr.bf16.mxu0 0
        %7334 = vmatpush2.bf16.msra.mxu0 0
        %7335 = vmatprep.subr.bf16.mxu0 0
        %7336 = vmatpush2.bf16.msra.mxu0 0
        %7337 = vmatprep.subr.bf16.mxu0 0
        %7338 = vmatpush2.bf16.msra.mxu0 0
        %7339 = vmatprep.subr.bf16.mxu0 0
        %7340 = vmatpush2.bf16.msra.mxu0 0
        %7341 = vmatprep.mubr.bf16.mxu0 0
        %7342 = vmatmul.mubr.bf16.gmra.mxu0 %v7304
        %v7343 = vpop.f32.mrf.mxu0
        %v7344 = vadd.f32 0.0, %v7343
        %v7345 = vpop.f32.mrf.mxu0
        %v7346 = vpop.f32.mrf.mxu0
        %v7347 = vadd.f32 0.0, %v7346
        %v7348 = vpop.f32.mrf.mxu0
        %7349 = vmatprep.mubr.bf16.mxu0 0
        %7350 = vmatmul.mubr.bf16.gmra.mxu0 %v7307
        %v7351 = vpop.f32.mrf.mxu0
        %v7352 = vadd.f32 0.0, %v7351
        %v7353 = vpop.f32.mrf.mxu0
        %v7354 = vpop.f32.mrf.mxu0
        %v7355 = vadd.f32 0.0, %v7354
        %v7356 = vpop.f32.mrf.mxu0
        %7357 = vdwg.mxu0
        %v7359 = vsel %vm2712, %v7191, 0
        %v7362 = vsel %vm2712, %v7192, 0
        %7364 = vmatprep.subr.bf16.mxu0 0
        %7365 = vmatpush1.bf16.msra.mxu0 0
        %7366 = vmatprep.subr.bf16.mxu0 0
        %7367 = vmatpush1.bf16.msra.mxu0 0
        %7368 = vmatprep.subr.bf16.mxu0 0
        %7369 = vmatpush1.bf16.msra.mxu0 0
        %7370 = vmatprep.subr.bf16.mxu0 0
        %7371 = vmatpush1.bf16.msra.mxu0 0
        %7372 = vmatprep.subr.bf16.mxu0 0
        %7373 = vmatpush1.bf16.msra.mxu0 0
        %7374 = vmatprep.subr.bf16.mxu0 0
        %7375 = vmatpush1.bf16.msra.mxu0 0
        %7376 = vmatprep.subr.bf16.mxu0 0
        %7377 = vmatpush1.bf16.msra.mxu0 %v6732
        %7378 = vmatprep.subr.bf16.mxu0 0
        %7379 = vmatpush1.bf16.msra.mxu0 %v6731
        %7380 = vmatprep.subr.bf16.mxu0 0
        %7381 = vmatpush2.bf16.msra.mxu0 0
        %7382 = vmatprep.subr.bf16.mxu0 0
        %7383 = vmatpush2.bf16.msra.mxu0 0
        %7384 = vmatprep.subr.bf16.mxu0 0
        %7385 = vmatpush2.bf16.msra.mxu0 0
        %7386 = vmatprep.subr.bf16.mxu0 0
        %7387 = vmatpush2.bf16.msra.mxu0 0
        %7388 = vmatprep.subr.bf16.mxu0 0
        %7389 = vmatpush2.bf16.msra.mxu0 0
        %7390 = vmatprep.subr.bf16.mxu0 0
        %7391 = vmatpush2.bf16.msra.mxu0 0
        %7392 = vmatprep.subr.bf16.mxu0 0
        %7393 = vmatpush2.bf16.msra.mxu0 0
        %7394 = vmatprep.subr.bf16.mxu0 0
        %7395 = vmatpush2.bf16.msra.mxu0 0
        %7396 = vmatprep.mubr.bf16.mxu0 0
        %7397 = vmatmul.mubr.bf16.gmra.mxu0 %v7359
        %v7398 = vpop.f32.mrf.mxu0
        %v7399 = vadd.f32 0.0, %v7398
        %v7400 = vpop.f32.mrf.mxu0
        %v7401 = vpop.f32.mrf.mxu0
        %v7402 = vadd.f32 0.0, %v7401
        %v7403 = vpop.f32.mrf.mxu0
        %7404 = vmatprep.mubr.bf16.mxu0 0
        %7405 = vmatmul.mubr.bf16.gmra.mxu0 %v7362
        %v7406 = vpop.f32.mrf.mxu0
        %v7407 = vadd.f32 0.0, %v7406
        %v7408 = vpop.f32.mrf.mxu0
        %v7409 = vpop.f32.mrf.mxu0
        %v7410 = vadd.f32 0.0, %v7409
        %v7411 = vpop.f32.mrf.mxu0
        %7412 = vdwg.mxu0
        %v7413 = vcombine.low %v7234, %v7344
        %v7414 = vcombine.high %v7234, %v7344
        %v7416 = vunpack.c.l.s4 1983009808
        %v7417 = vunpack.c.0.s8 %v7416
        %v7418 = vlaneseq
        %v7419 = vshrl.u32 %v7418, 7
        %v7420 = vsub.s32 %v7417, %v7419
        %v7421 = vrot.slane %v7413, %v7420
        %v7423 = vunpack.c.l.s4 1983009808
        %v7424 = vunpack.c.0.s8 %v7423
        %v7425 = vlaneseq
        %v7426 = vshrl.u32 %v7425, 7
        %v7427 = vsub.s32 %v7424, %v7426
        %v7428 = vrot.slane %v7414, %v7427
        %v7429 = vcombine.low %v7289, %v7399
        %v7430 = vcombine.high %v7289, %v7399
        %v7432 = vunpack.c.l.s4 1983009808
        %v7433 = vunpack.c.0.s8 %v7432
        %v7434 = vlaneseq
        %v7435 = vshrl.u32 %v7434, 7
        %v7436 = vsub.s32 %v7433, %v7435
        %v7437 = vrot.slane %v7429, %v7436
        %v7439 = vunpack.c.l.s4 1983009808
        %v7440 = vunpack.c.0.s8 %v7439
        %v7441 = vlaneseq
        %v7442 = vshrl.u32 %v7441, 7
        %v7443 = vsub.s32 %v7440, %v7442
        %v7444 = vrot.slane %v7430, %v7443
        %v7445 = vcombine.low %v7421, %v7437
        %v7446 = vcombine.high %v7421, %v7437
        %v7448 = vunpack.c.l.s4 1934713408
        %v7449 = vunpack.c.0.s8 %v7448
        %v7450 = vlaneseq
        %v7451 = vshrl.u32 %v7450, 7
        %v7452 = vsub.s32 %v7449, %v7451
        %v7453 = vrot.slane %v7445, %v7452
        %v7455 = vunpack.c.l.s4 1934713408
        %v7456 = vunpack.c.0.s8 %v7455
        %v7457 = vlaneseq
        %v7458 = vshrl.u32 %v7457, 7
        %v7459 = vsub.s32 %v7456, %v7458
        %v7460 = vrot.slane %v7446, %v7459
        %v7461 = vcombine.low %v7428, %v7444
        %v7462 = vcombine.high %v7428, %v7444
        %v7464 = vunpack.c.l.s4 1934713408
        %v7465 = vunpack.c.0.s8 %v7464
        %v7466 = vlaneseq
        %v7467 = vshrl.u32 %v7466, 7
        %v7468 = vsub.s32 %v7465, %v7467
        %v7469 = vrot.slane %v7461, %v7468
        %v7471 = vunpack.c.l.s4 1934713408
        %v7472 = vunpack.c.0.s8 %v7471
        %v7473 = vlaneseq
        %v7474 = vshrl.u32 %v7473, 7
        %v7475 = vsub.s32 %v7472, %v7474
        %v7476 = vrot.slane %v7462, %v7475
        %v7477 = vcombine.high %v7453, 0.0
        %v7478 = vcombine.high %v7460, 0.0
        %v7479 = vcombine.high %v7469, 0.0
        %v7480 = vcombine.high %v7476, 0.0
        %v7481 = vcombine.low %v7237, %v7347
        %v7482 = vcombine.high %v7237, %v7347
        %v7484 = vunpack.c.l.s4 1983009808
        %v7485 = vunpack.c.0.s8 %v7484
        %v7486 = vlaneseq
        %v7487 = vshrl.u32 %v7486, 7
        %v7488 = vsub.s32 %v7485, %v7487
        %v7489 = vrot.slane %v7481, %v7488
        %v7491 = vunpack.c.l.s4 1983009808
        %v7492 = vunpack.c.0.s8 %v7491
        %v7493 = vlaneseq
        %v7494 = vshrl.u32 %v7493, 7
        %v7495 = vsub.s32 %v7492, %v7494
        %v7496 = vrot.slane %v7482, %v7495
        %v7497 = vcombine.low %v7292, %v7402
        %v7498 = vcombine.high %v7292, %v7402
        %v7500 = vunpack.c.l.s4 1983009808
        %v7501 = vunpack.c.0.s8 %v7500
        %v7502 = vlaneseq
        %v7503 = vshrl.u32 %v7502, 7
        %v7504 = vsub.s32 %v7501, %v7503
        %v7505 = vrot.slane %v7497, %v7504
        %v7507 = vunpack.c.l.s4 1983009808
        %v7508 = vunpack.c.0.s8 %v7507
        %v7509 = vlaneseq
        %v7510 = vshrl.u32 %v7509, 7
        %v7511 = vsub.s32 %v7508, %v7510
        %v7512 = vrot.slane %v7498, %v7511
        %v7513 = vcombine.low %v7489, %v7505
        %v7514 = vcombine.high %v7489, %v7505
        %v7516 = vunpack.c.l.s4 1934713408
        %v7517 = vunpack.c.0.s8 %v7516
        %v7518 = vlaneseq
        %v7519 = vshrl.u32 %v7518, 7
        %v7520 = vsub.s32 %v7517, %v7519
        %v7521 = vrot.slane %v7513, %v7520
        %v7523 = vunpack.c.l.s4 1934713408
        %v7524 = vunpack.c.0.s8 %v7523
        %v7525 = vlaneseq
        %v7526 = vshrl.u32 %v7525, 7
        %v7527 = vsub.s32 %v7524, %v7526
        %v7528 = vrot.slane %v7514, %v7527
        %v7529 = vcombine.low %v7496, %v7512
        %v7530 = vcombine.high %v7496, %v7512
        %v7532 = vunpack.c.l.s4 1934713408
        %v7533 = vunpack.c.0.s8 %v7532
        %v7534 = vlaneseq
        %v7535 = vshrl.u32 %v7534, 7
        %v7536 = vsub.s32 %v7533, %v7535
        %v7537 = vrot.slane %v7529, %v7536
        %v7539 = vunpack.c.l.s4 1934713408
        %v7540 = vunpack.c.0.s8 %v7539
        %v7541 = vlaneseq
        %v7542 = vshrl.u32 %v7541, 7
        %v7543 = vsub.s32 %v7540, %v7542
        %v7544 = vrot.slane %v7530, %v7543
        %v7545 = vcombine.high %v7521, 0.0
        %v7546 = vcombine.high %v7528, 0.0
        %v7547 = vcombine.high %v7537, 0.0
        %v7548 = vcombine.high %v7544, 0.0
        %v7549 = vcombine.low %v7242, %v7352
        %v7550 = vcombine.high %v7242, %v7352
        %v7552 = vunpack.c.l.s4 1983009808
        %v7553 = vunpack.c.0.s8 %v7552
        %v7554 = vlaneseq
        %v7555 = vshrl.u32 %v7554, 7
        %v7556 = vsub.s32 %v7553, %v7555
        %v7557 = vrot.slane %v7549, %v7556
        %v7559 = vunpack.c.l.s4 1983009808
        %v7560 = vunpack.c.0.s8 %v7559
        %v7561 = vlaneseq
        %v7562 = vshrl.u32 %v7561, 7
        %v7563 = vsub.s32 %v7560, %v7562
        %v7564 = vrot.slane %v7550, %v7563
        %v7565 = vcombine.low %v7297, %v7407
        %v7566 = vcombine.high %v7297, %v7407
        %v7568 = vunpack.c.l.s4 1983009808
        %v7569 = vunpack.c.0.s8 %v7568
        %v7570 = vlaneseq
        %v7571 = vshrl.u32 %v7570, 7
        %v7572 = vsub.s32 %v7569, %v7571
        %v7573 = vrot.slane %v7565, %v7572
        %v7575 = vunpack.c.l.s4 1983009808
        %v7576 = vunpack.c.0.s8 %v7575
        %v7577 = vlaneseq
        %v7578 = vshrl.u32 %v7577, 7
        %v7579 = vsub.s32 %v7576, %v7578
        %v7580 = vrot.slane %v7566, %v7579
        %v7581 = vcombine.low %v7557, %v7573
        %v7582 = vcombine.high %v7557, %v7573
        %v7584 = vunpack.c.l.s4 1934713408
        %v7585 = vunpack.c.0.s8 %v7584
        %v7586 = vlaneseq
        %v7587 = vshrl.u32 %v7586, 7
        %v7588 = vsub.s32 %v7585, %v7587
        %v7589 = vrot.slane %v7581, %v7588
        %v7591 = vunpack.c.l.s4 1934713408
        %v7592 = vunpack.c.0.s8 %v7591
        %v7593 = vlaneseq
        %v7594 = vshrl.u32 %v7593, 7
        %v7595 = vsub.s32 %v7592, %v7594
        %v7596 = vrot.slane %v7582, %v7595
        %v7597 = vcombine.low %v7564, %v7580
        %v7598 = vcombine.high %v7564, %v7580
        %v7600 = vunpack.c.l.s4 1934713408
        %v7601 = vunpack.c.0.s8 %v7600
        %v7602 = vlaneseq
        %v7603 = vshrl.u32 %v7602, 7
        %v7604 = vsub.s32 %v7601, %v7603
        %v7605 = vrot.slane %v7597, %v7604
        %v7607 = vunpack.c.l.s4 1934713408
        %v7608 = vunpack.c.0.s8 %v7607
        %v7609 = vlaneseq
        %v7610 = vshrl.u32 %v7609, 7
        %v7611 = vsub.s32 %v7608, %v7610
        %v7612 = vrot.slane %v7598, %v7611
        %v7613 = vcombine.high %v7589, 0.0
        %v7614 = vcombine.high %v7596, 0.0
        %v7615 = vcombine.high %v7605, 0.0
        %v7616 = vcombine.high %v7612, 0.0
        %v7617 = vcombine.low %v7245, %v7355
        %v7618 = vcombine.high %v7245, %v7355
        %v7620 = vunpack.c.l.s4 1983009808
        %v7621 = vunpack.c.0.s8 %v7620
        %v7622 = vlaneseq
        %v7623 = vshrl.u32 %v7622, 7
        %v7624 = vsub.s32 %v7621, %v7623
        %v7625 = vrot.slane %v7617, %v7624
        %v7627 = vunpack.c.l.s4 1983009808
        %v7628 = vunpack.c.0.s8 %v7627
        %v7629 = vlaneseq
        %v7630 = vshrl.u32 %v7629, 7
        %v7631 = vsub.s32 %v7628, %v7630
        %v7632 = vrot.slane %v7618, %v7631
        %v7633 = vcombine.low %v7300, %v7410
        %v7634 = vcombine.high %v7300, %v7410
        %v7636 = vunpack.c.l.s4 1983009808
        %v7637 = vunpack.c.0.s8 %v7636
        %v7638 = vlaneseq
        %v7639 = vshrl.u32 %v7638, 7
        %v7640 = vsub.s32 %v7637, %v7639
        %v7641 = vrot.slane %v7633, %v7640
        %v7643 = vunpack.c.l.s4 1983009808
        %v7644 = vunpack.c.0.s8 %v7643
        %v7645 = vlaneseq
        %v7646 = vshrl.u32 %v7645, 7
        %v7647 = vsub.s32 %v7644, %v7646
        %v7648 = vrot.slane %v7634, %v7647
        %v7649 = vcombine.low %v7625, %v7641
        %v7650 = vcombine.high %v7625, %v7641
        %v7652 = vunpack.c.l.s4 1934713408
        %v7653 = vunpack.c.0.s8 %v7652
        %v7654 = vlaneseq
        %v7655 = vshrl.u32 %v7654, 7
        %v7656 = vsub.s32 %v7653, %v7655
        %v7657 = vrot.slane %v7649, %v7656
        %v7659 = vunpack.c.l.s4 1934713408
        %v7660 = vunpack.c.0.s8 %v7659
        %v7661 = vlaneseq
        %v7662 = vshrl.u32 %v7661, 7
        %v7663 = vsub.s32 %v7660, %v7662
        %v7664 = vrot.slane %v7650, %v7663
        %v7665 = vcombine.low %v7632, %v7648
        %v7666 = vcombine.high %v7632, %v7648
        %v7668 = vunpack.c.l.s4 1934713408
        %v7669 = vunpack.c.0.s8 %v7668
        %v7670 = vlaneseq
        %v7671 = vshrl.u32 %v7670, 7
        %v7672 = vsub.s32 %v7669, %v7671
        %v7673 = vrot.slane %v7665, %v7672
        %v7675 = vunpack.c.l.s4 1934713408
        %v7676 = vunpack.c.0.s8 %v7675
        %v7677 = vlaneseq
        %v7678 = vshrl.u32 %v7677, 7
        %v7679 = vsub.s32 %v7676, %v7678
        %v7680 = vrot.slane %v7666, %v7679
        %v7681 = vcombine.high %v7657, 0.0
        %v7682 = vcombine.high %v7664, 0.0
        %v7683 = vcombine.high %v7673, 0.0
        %v7684 = vcombine.high %v7680, 0.0
        %v7685 = vcombine.low %v7453, %v7460
        %v7687 = vunpack.c.l.s4 1983009808
        %v7688 = vunpack.c.0.s8 %v7687
        %v7689 = vlaneseq
        %v7690 = vshrl.u32 %v7689, 7
        %v7691 = vsub.s32 %v7688, %v7690
        %v7692 = vrot.slane %v7685, %v7691
        %v7693 = vcombine.low %v7477, %v7478
        %v7695 = vunpack.c.l.s4 1983009808
        %v7696 = vunpack.c.0.s8 %v7695
        %v7697 = vlaneseq
        %v7698 = vshrl.u32 %v7697, 7
        %v7699 = vsub.s32 %v7696, %v7698
        %v7700 = vrot.slane %v7693, %v7699
        %v7701 = vcombine.low %v7469, %v7476
        %v7703 = vunpack.c.l.s4 1983009808
        %v7704 = vunpack.c.0.s8 %v7703
        %v7705 = vlaneseq
        %v7706 = vshrl.u32 %v7705, 7
        %v7707 = vsub.s32 %v7704, %v7706
        %v7708 = vrot.slane %v7701, %v7707
        %v7709 = vcombine.low %v7479, %v7480
        %v7711 = vunpack.c.l.s4 1983009808
        %v7712 = vunpack.c.0.s8 %v7711
        %v7713 = vlaneseq
        %v7714 = vshrl.u32 %v7713, 7
        %v7715 = vsub.s32 %v7712, %v7714
        %v7716 = vrot.slane %v7709, %v7715
        %v7717 = vcombine.low %v7692, %v7700
        %v7718 = vcombine.high %v7692, %v7700
        %v7720 = vunpack.c.l.s4 1934713408
        %v7721 = vunpack.c.0.s8 %v7720
        %v7722 = vlaneseq
        %v7723 = vshrl.u32 %v7722, 7
        %v7724 = vsub.s32 %v7721, %v7723
        %v7725 = vrot.slane %v7717, %v7724
        %v7727 = vunpack.c.l.s4 1934713408
        %v7728 = vunpack.c.0.s8 %v7727
        %v7729 = vlaneseq
        %v7730 = vshrl.u32 %v7729, 7
        %v7731 = vsub.s32 %v7728, %v7730
        %v7732 = vrot.slane %v7718, %v7731
        %v7733 = vcombine.low %v7708, %v7716
        %v7734 = vcombine.high %v7708, %v7716
        %v7736 = vunpack.c.l.s4 1934713408
        %v7737 = vunpack.c.0.s8 %v7736
        %v7738 = vlaneseq
        %v7739 = vshrl.u32 %v7738, 7
        %v7740 = vsub.s32 %v7737, %v7739
        %v7741 = vrot.slane %v7733, %v7740
        %v7743 = vunpack.c.l.s4 1934713408
        %v7744 = vunpack.c.0.s8 %v7743
        %v7745 = vlaneseq
        %v7746 = vshrl.u32 %v7745, 7
        %v7747 = vsub.s32 %v7744, %v7746
        %v7748 = vrot.slane %v7734, %v7747
        %v7749 = vcombine.low %v7725, %v7741
        %v7750 = vcombine.high %v7725, %v7741
        %v7751 = vcombine.low %v7732, %v7748
        %v7752 = vcombine.high %v7732, %v7748
        %v7753 = vcombine.low %v7521, %v7528
        %v7755 = vunpack.c.l.s4 1983009808
        %v7756 = vunpack.c.0.s8 %v7755
        %v7757 = vlaneseq
        %v7758 = vshrl.u32 %v7757, 7
        %v7759 = vsub.s32 %v7756, %v7758
        %v7760 = vrot.slane %v7753, %v7759
        %v7761 = vcombine.low %v7545, %v7546
        %v7763 = vunpack.c.l.s4 1983009808
        %v7764 = vunpack.c.0.s8 %v7763
        %v7765 = vlaneseq
        %v7766 = vshrl.u32 %v7765, 7
        %v7767 = vsub.s32 %v7764, %v7766
        %v7768 = vrot.slane %v7761, %v7767
        %v7769 = vcombine.low %v7537, %v7544
        %v7771 = vunpack.c.l.s4 1983009808
        %v7772 = vunpack.c.0.s8 %v7771
        %v7773 = vlaneseq
        %v7774 = vshrl.u32 %v7773, 7
        %v7775 = vsub.s32 %v7772, %v7774
        %v7776 = vrot.slane %v7769, %v7775
        %v7777 = vcombine.low %v7547, %v7548
        %v7779 = vunpack.c.l.s4 1983009808
        %v7780 = vunpack.c.0.s8 %v7779
        %v7781 = vlaneseq
        %v7782 = vshrl.u32 %v7781, 7
        %v7783 = vsub.s32 %v7780, %v7782
        %v7784 = vrot.slane %v7777, %v7783
        %v7785 = vcombine.low %v7760, %v7768
        %v7786 = vcombine.high %v7760, %v7768
        %v7788 = vunpack.c.l.s4 1934713408
        %v7789 = vunpack.c.0.s8 %v7788
        %v7790 = vlaneseq
        %v7791 = vshrl.u32 %v7790, 7
        %v7792 = vsub.s32 %v7789, %v7791
        %v7793 = vrot.slane %v7785, %v7792
        %v7795 = vunpack.c.l.s4 1934713408
        %v7796 = vunpack.c.0.s8 %v7795
        %v7797 = vlaneseq
        %v7798 = vshrl.u32 %v7797, 7
        %v7799 = vsub.s32 %v7796, %v7798
        %v7800 = vrot.slane %v7786, %v7799
        %v7801 = vcombine.low %v7776, %v7784
        %v7802 = vcombine.high %v7776, %v7784
        %v7804 = vunpack.c.l.s4 1934713408
        %v7805 = vunpack.c.0.s8 %v7804
        %v7806 = vlaneseq
        %v7807 = vshrl.u32 %v7806, 7
        %v7808 = vsub.s32 %v7805, %v7807
        %v7809 = vrot.slane %v7801, %v7808
        %v7811 = vunpack.c.l.s4 1934713408
        %v7812 = vunpack.c.0.s8 %v7811
        %v7813 = vlaneseq
        %v7814 = vshrl.u32 %v7813, 7
        %v7815 = vsub.s32 %v7812, %v7814
        %v7816 = vrot.slane %v7802, %v7815
        %v7817 = vcombine.low %v7793, %v7809
        %v7818 = vcombine.high %v7793, %v7809
        %v7819 = vcombine.low %v7800, %v7816
        %v7820 = vcombine.high %v7800, %v7816
        %v7821 = vcombine.low %v7589, %v7596
        %v7823 = vunpack.c.l.s4 1983009808
        %v7824 = vunpack.c.0.s8 %v7823
        %v7825 = vlaneseq
        %v7826 = vshrl.u32 %v7825, 7
        %v7827 = vsub.s32 %v7824, %v7826
        %v7828 = vrot.slane %v7821, %v7827
        %v7829 = vcombine.low %v7613, %v7614
        %v7831 = vunpack.c.l.s4 1983009808
        %v7832 = vunpack.c.0.s8 %v7831
        %v7833 = vlaneseq
        %v7834 = vshrl.u32 %v7833, 7
        %v7835 = vsub.s32 %v7832, %v7834
        %v7836 = vrot.slane %v7829, %v7835
        %v7837 = vcombine.low %v7605, %v7612
        %v7839 = vunpack.c.l.s4 1983009808
        %v7840 = vunpack.c.0.s8 %v7839
        %v7841 = vlaneseq
        %v7842 = vshrl.u32 %v7841, 7
        %v7843 = vsub.s32 %v7840, %v7842
        %v7844 = vrot.slane %v7837, %v7843
        %v7845 = vcombine.low %v7615, %v7616
        %v7847 = vunpack.c.l.s4 1983009808
        %v7848 = vunpack.c.0.s8 %v7847
        %v7849 = vlaneseq
        %v7850 = vshrl.u32 %v7849, 7
        %v7851 = vsub.s32 %v7848, %v7850
        %v7852 = vrot.slane %v7845, %v7851
        %v7853 = vcombine.low %v7828, %v7836
        %v7854 = vcombine.high %v7828, %v7836
        %v7856 = vunpack.c.l.s4 1934713408
        %v7857 = vunpack.c.0.s8 %v7856
        %v7858 = vlaneseq
        %v7859 = vshrl.u32 %v7858, 7
        %v7860 = vsub.s32 %v7857, %v7859
        %v7861 = vrot.slane %v7853, %v7860
        %v7863 = vunpack.c.l.s4 1934713408
        %v7864 = vunpack.c.0.s8 %v7863
        %v7865 = vlaneseq
        %v7866 = vshrl.u32 %v7865, 7
        %v7867 = vsub.s32 %v7864, %v7866
        %v7868 = vrot.slane %v7854, %v7867
        %v7869 = vcombine.low %v7844, %v7852
        %v7870 = vcombine.high %v7844, %v7852
        %v7872 = vunpack.c.l.s4 1934713408
        %v7873 = vunpack.c.0.s8 %v7872
        %v7874 = vlaneseq
        %v7875 = vshrl.u32 %v7874, 7
        %v7876 = vsub.s32 %v7873, %v7875
        %v7877 = vrot.slane %v7869, %v7876
        %v7879 = vunpack.c.l.s4 1934713408
        %v7880 = vunpack.c.0.s8 %v7879
        %v7881 = vlaneseq
        %v7882 = vshrl.u32 %v7881, 7
        %v7883 = vsub.s32 %v7880, %v7882
        %v7884 = vrot.slane %v7870, %v7883
        %v7885 = vcombine.low %v7861, %v7877
        %v7886 = vcombine.high %v7861, %v7877
        %v7887 = vcombine.low %v7868, %v7884
        %v7888 = vcombine.high %v7868, %v7884
        %v7889 = vcombine.low %v7657, %v7664
        %v7891 = vunpack.c.l.s4 1983009808
        %v7892 = vunpack.c.0.s8 %v7891
        %v7893 = vlaneseq
        %v7894 = vshrl.u32 %v7893, 7
        %v7895 = vsub.s32 %v7892, %v7894
        %v7896 = vrot.slane %v7889, %v7895
        %v7897 = vcombine.low %v7681, %v7682
        %v7899 = vunpack.c.l.s4 1983009808
        %v7900 = vunpack.c.0.s8 %v7899
        %v7901 = vlaneseq
        %v7902 = vshrl.u32 %v7901, 7
        %v7903 = vsub.s32 %v7900, %v7902
        %v7904 = vrot.slane %v7897, %v7903
        %v7905 = vcombine.low %v7673, %v7680
        %v7907 = vunpack.c.l.s4 1983009808
        %v7908 = vunpack.c.0.s8 %v7907
        %v7909 = vlaneseq
        %v7910 = vshrl.u32 %v7909, 7
        %v7911 = vsub.s32 %v7908, %v7910
        %v7912 = vrot.slane %v7905, %v7911
        %v7913 = vcombine.low %v7683, %v7684
        %v7915 = vunpack.c.l.s4 1983009808
        %v7916 = vunpack.c.0.s8 %v7915
        %v7917 = vlaneseq
        %v7918 = vshrl.u32 %v7917, 7
        %v7919 = vsub.s32 %v7916, %v7918
        %v7920 = vrot.slane %v7913, %v7919
        %v7921 = vcombine.low %v7896, %v7904
        %v7922 = vcombine.high %v7896, %v7904
        %v7924 = vunpack.c.l.s4 1934713408
        %v7925 = vunpack.c.0.s8 %v7924
        %v7926 = vlaneseq
        %v7927 = vshrl.u32 %v7926, 7
        %v7928 = vsub.s32 %v7925, %v7927
        %v7929 = vrot.slane %v7921, %v7928
        %v7931 = vunpack.c.l.s4 1934713408
        %v7932 = vunpack.c.0.s8 %v7931
        %v7933 = vlaneseq
        %v7934 = vshrl.u32 %v7933, 7
        %v7935 = vsub.s32 %v7932, %v7934
        %v7936 = vrot.slane %v7922, %v7935
        %v7937 = vcombine.low %v7912, %v7920
        %v7938 = vcombine.high %v7912, %v7920
        %v7940 = vunpack.c.l.s4 1934713408
        %v7941 = vunpack.c.0.s8 %v7940
        %v7942 = vlaneseq
        %v7943 = vshrl.u32 %v7942, 7
        %v7944 = vsub.s32 %v7941, %v7943
        %v7945 = vrot.slane %v7937, %v7944
        %v7947 = vunpack.c.l.s4 1934713408
        %v7948 = vunpack.c.0.s8 %v7947
        %v7949 = vlaneseq
        %v7950 = vshrl.u32 %v7949, 7
        %v7951 = vsub.s32 %v7948, %v7950
        %v7952 = vrot.slane %v7938, %v7951
        %v7953 = vcombine.low %v7929, %v7945
        %v7954 = vcombine.high %v7929, %v7945
        %v7955 = vcombine.low %v7936, %v7952
        %v7956 = vcombine.high %v7936, %v7952
        %7961 = vrot.lane.b32.xlu0 %v7750, 32
        %v7962 = vpop.permute.xlu0 %7961
        %7963 = vrot.lane.b32.xlu0 %v7818, 32
        %v7964 = vpop.permute.xlu0 %7963
        %7965 = vrot.lane.b32.xlu0 %v7886, 32
        %v7966 = vpop.permute.xlu0 %7965
        %7967 = vrot.lane.b32.xlu0 %v7954, 32
        %v7968 = vpop.permute.xlu0 %7967
        %7977 = vrot.lane.b32.xlu0 %v7751, 64
        %v7978 = vpop.permute.xlu0 %7977
        %7979 = vrot.lane.b32.xlu0 %v7819, 64
        %v7980 = vpop.permute.xlu0 %7979
        %7981 = vrot.lane.b32.xlu0 %v7887, 64
        %v7982 = vpop.permute.xlu0 %7981
        %7983 = vrot.lane.b32.xlu0 %v7955, 64
        %v7984 = vpop.permute.xlu0 %7983
        %7993 = vrot.lane.b32.xlu0 %v7752, 96
        %v7994 = vpop.permute.xlu0 %7993
        %7995 = vrot.lane.b32.xlu0 %v7820, 96
        %v7996 = vpop.permute.xlu0 %7995
        %7997 = vrot.lane.b32.xlu0 %v7888, 96
        %v7998 = vpop.permute.xlu0 %7997
        %7999 = vrot.lane.b32.xlu0 %v7956, 96
        %v8000 = vpop.permute.xlu0 %7999
        %v8005 = vsel %vm2712, %v7749, %v7962
        %v8006 = vsel %vm2712, %v7817, %v7964
        %v8007 = vsel %vm2712, %v7885, %v7966
        %v8008 = vsel %vm2712, %v7953, %v7968
        %v8009 = vsel %vm3989, %v8005, %v7978
        %v8010 = vsel %vm3989, %v8006, %v7980
        %v8011 = vsel %vm3989, %v8007, %v7982
        %v8012 = vsel %vm3989, %v8008, %v7984
        %v8013 = vsel %vm3994, %v8009, %v7994
        %v8014 = vsel %vm3994, %v8010, %v7996
        %v8015 = vsel %vm3994, %v8011, %v7998
        %v8016 = vsel %vm3994, %v8012, %v8000
        %v8017 = vpack.c.bf16 %v8014, %v8013
        %v8018 = vpack.c.bf16 %v8016, %v8015
        %s8019 = scalar_lea.vmem %s6, 64
        %v8020 = vld [vmem:[%s8019] sm:$0xf]
        %v8021 = vld [vmem:[%s8019 + $0x4] sm:$0xf]
        %v8022 = vld [vmem:[%s8019 + $0x8] sm:$0xf]
        %v8023 = vld [vmem:[%s8019 + $0xc] sm:$0xf]
        %v8024 = vld [vmem:[%s8019 + $0x10] sm:$0xf]
        %v8025 = vld [vmem:[%s8019 + $0x14] sm:$0xf]
        %v8026 = vld [vmem:[%s8019 + $0x18] sm:$0xf]
        %v8027 = vld [vmem:[%s8019 + $0x1c] sm:$0xf]
        %v8028 = vld [vmem:[%s8019 + $0x20] sm:$0xf]
        %v8029 = vld [vmem:[%s8019 + $0x24] sm:$0xf]
        %v8030 = vld [vmem:[%s8019 + $0x28] sm:$0xf]
        %v8031 = vld [vmem:[%s8019 + $0x2c] sm:$0xf]
        %v8032 = vld [vmem:[%s8019 + $0x30] sm:$0xf]
        %v8033 = vld [vmem:[%s8019 + $0x34] sm:$0xf]
        %v8034 = vld [vmem:[%s8019 + $0x38] sm:$0xf]
        %v8035 = vld [vmem:[%s8019 + $0x3c] sm:$0xf]
        %s8036 = scalar_lea.vmem %s7, 1
        %v8037 = vld [vmem:[%s8036] sm:$0x1]
        %v8039 = vlaneseq
        %v8040 = vshrl.u32 %v8039, 7
        %v8041 = vsub.s32 0, %v8040
        %v8042 = vrot.slane %v8037, %v8041
        %v8060 = vunpack.c.l.b16 %v8020
        %v8061 = vunpack.c.l.b16 %v8021
        %v8062 = vunpack.c.l.b16 %v8022
        %v8063 = vunpack.c.l.b16 %v8023
        %v8064 = vunpack.c.l.b16 %v8024
        %v8065 = vunpack.c.l.b16 %v8025
        %v8066 = vunpack.c.l.b16 %v8026
        %v8067 = vunpack.c.l.b16 %v8027
        %v8068 = vunpack.c.l.b16 %v8028
        %v8069 = vunpack.c.l.b16 %v8029
        %v8070 = vunpack.c.l.b16 %v8030
        %v8071 = vunpack.c.l.b16 %v8031
        %v8072 = vunpack.c.l.b16 %v8032
        %v8073 = vunpack.c.l.b16 %v8033
        %v8074 = vunpack.c.l.b16 %v8034
        %v8075 = vunpack.c.l.b16 %v8035
        %v8076 = vpack.c.b16 %v8061, %v8060
        %v8077 = vpack.c.b16 %v8063, %v8062
        %v8078 = vpack.c.b16 %v8065, %v8064
        %v8079 = vpack.c.b16 %v8067, %v8066
        %v8080 = vpack.c.b16 %v8069, %v8068
        %v8081 = vpack.c.b16 %v8071, %v8070
        %v8082 = vpack.c.b16 %v8073, %v8072
        %v8083 = vpack.c.b16 %v8075, %v8074
        %8092 = vmatprep.subr.bf16.mxu0 0
        %8093 = vmatpush1.bf16.msra.mxu0 %v8083
        %8094 = vmatprep.subr.bf16.mxu0 0
        %8095 = vmatpush1.bf16.msra.mxu0 %v8082
        %8096 = vmatprep.subr.bf16.mxu0 0
        %8097 = vmatpush1.bf16.msra.mxu0 %v8081
        %8098 = vmatprep.subr.bf16.mxu0 0
        %8099 = vmatpush1.bf16.msra.mxu0 %v8080
        %8100 = vmatprep.subr.bf16.mxu0 0
        %8101 = vmatpush1.bf16.msra.mxu0 %v8079
        %8102 = vmatprep.subr.bf16.mxu0 0
        %8103 = vmatpush1.bf16.msra.mxu0 %v8078
        %8104 = vmatprep.subr.bf16.mxu0 0
        %8105 = vmatpush1.bf16.msra.mxu0 %v8077
        %8106 = vmatprep.subr.bf16.mxu0 0
        %8107 = vmatpush1.bf16.msra.mxu0 %v8076
        %8108 = vmatprep.subr.bf16.mxu0 0
        %8109 = vmatpush2.bf16.msra.mxu0 0
        %8110 = vmatprep.subr.bf16.mxu0 0
        %8111 = vmatpush2.bf16.msra.mxu0 0
        %8112 = vmatprep.subr.bf16.mxu0 0
        %8113 = vmatpush2.bf16.msra.mxu0 0
        %8114 = vmatprep.subr.bf16.mxu0 0
        %8115 = vmatpush2.bf16.msra.mxu0 0
        %8116 = vmatprep.subr.bf16.mxu0 0
        %8117 = vmatpush2.bf16.msra.mxu0 0
        %8118 = vmatprep.subr.bf16.mxu0 0
        %8119 = vmatpush2.bf16.msra.mxu0 0
        %8120 = vmatprep.subr.bf16.mxu0 0
        %8121 = vmatpush2.bf16.msra.mxu0 0
        %8122 = vmatprep.subr.bf16.mxu0 0
        %8123 = vmatpush2.bf16.msra.mxu0 0
        %8124 = vmatprep.mubr.bf16.mxu0 0
        %8125 = vmatmul.mubr.bf16.gmra.mxu0 %v8017
        %v8126 = vpop.f32.mrf.mxu0
        %v8127 = vadd.f32 %v8042, %v8126
        %v8128 = vpop.f32.mrf.mxu0
        %v8129 = vpop.f32.mrf.mxu0
        %v8130 = vadd.f32 %v8042, %v8129
        %v8131 = vpop.f32.mrf.mxu0
        %8132 = vmatprep.mubr.bf16.mxu0 0
        %8133 = vmatmul.mubr.bf16.gmra.mxu0 %v8018
        %v8134 = vpop.f32.mrf.mxu0
        %v8135 = vadd.f32 %v8042, %v8134
        %v8136 = vpop.f32.mrf.mxu0
        %v8137 = vpop.f32.mrf.mxu0
        %v8138 = vadd.f32 %v8042, %v8137
        %v8139 = vpop.f32.mrf.mxu0
        %8140 = vdwg.mxu0
        %v8141 = vadd.f32 %v4608, %v8127
        %v8142 = vadd.f32 %v4609, %v8130
        %v8143 = vadd.f32 %v4610, %v8135
        %v8144 = vadd.f32 %v4611, %v8138
        %8145 = vadd.xlane.f32.xlu0 %v8141
        %v8146 = vpop.xlane.xlu0 %8145
        %8147 = vadd.xlane.f32.xlu0 %v8142
        %v8148 = vpop.xlane.xlu0 %8147
        %8149 = vadd.xlane.f32.xlu0 %v8143
        %v8150 = vpop.xlane.xlu0 %8149
        %8151 = vadd.xlane.f32.xlu0 %v8144
        %v8152 = vpop.xlane.xlu0 %8151
        %v8153 = vmul.f32 %v8146, %v602
        %v8154 = vmul.f32 %v8148, %v602
        %v8155 = vmul.f32 %v8150, %v602
        %v8156 = vmul.f32 %v8152, %v602
        %v8157 = vsub.f32 %v8141, %v8153
        %v8158 = vsub.f32 %v8142, %v8154
        %v8159 = vsub.f32 %v8143, %v8155
        %v8160 = vsub.f32 %v8144, %v8156
        %v8161 = vmul.f32 %v8157, %v8157
        %v8162 = vmul.f32 %v8158, %v8158
        %v8163 = vmul.f32 %v8159, %v8159
        %v8164 = vmul.f32 %v8160, %v8160
        %8165 = vadd.xlane.f32.xlu0 %v8161
        %v8166 = vpop.xlane.xlu0 %8165
        %8167 = vadd.xlane.f32.xlu0 %v8162
        %v8168 = vpop.xlane.xlu0 %8167
        %8169 = vadd.xlane.f32.xlu0 %v8163
        %v8170 = vpop.xlane.xlu0 %8169
        %8171 = vadd.xlane.f32.xlu0 %v8164
        %v8172 = vpop.xlane.xlu0 %8171
        %v8173 = vmul.f32 %v8166, %v602
        %v8174 = vmul.f32 %v8168, %v602
        %v8175 = vmul.f32 %v8170, %v602
        %v8176 = vmul.f32 %v8172, %v602
        %v8177 = vadd.f32 %v8173, 1e-05
        %v8178 = vadd.f32 %v8174, 1e-05
        %v8179 = vadd.f32 %v8175, 1e-05
        %v8180 = vadd.f32 %v8176, 1e-05
        %v8181 = vrsqrt.pop %v8177
        %v8182 = vrsqrt.pop %v8178
        %v8183 = vrsqrt.pop %v8179
        %v8184 = vrsqrt.pop %v8180
        %v8185 = vmul.f32 %v8157, %v8181
        %v8186 = vmul.f32 %v8158, %v8182
        %v8187 = vmul.f32 %v8159, %v8183
        %v8188 = vmul.f32 %v8160, %v8184
        %v8189 = vlaneseq
        %v8190 = vshrl.u32 %v8189, 7
        %v8191 = vsub.s32 2, %v8190
        %v8192 = vrot.slane %v4613, %v8191
        %v8193 = vmul.f32 %v8185, %v8192
        %v8194 = vmul.f32 %v8186, %v8192
        %v8195 = vmul.f32 %v8187, %v8192
        %v8196 = vmul.f32 %v8188, %v8192
        %v8197 = vlaneseq
        %v8198 = vshrl.u32 %v8197, 7
        %v8199 = vsub.s32 3, %v8198
        %v8200 = vrot.slane %v4613, %v8199
        %v8201 = vadd.f32 %v8193, %v8200
        %v8202 = vadd.f32 %v8194, %v8200
        %v8203 = vadd.f32 %v8195, %v8200
        %v8204 = vadd.f32 %v8196, %v8200
        %v8205 = vpack.c.bf16 %v8202, %v8201
        %v8206 = vpack.c.bf16 %v8204, %v8203
        %s8207 = scalar_lea.vmem %s8, 128
        %v8208 = vld [vmem:[%s8207] sm:$0xff]
        %v8209 = vld [vmem:[%s8207 + $0x8] sm:$0xff]
        %v8210 = vld [vmem:[%s8207 + $0x10] sm:$0xff]
        %v8211 = vld [vmem:[%s8207 + $0x18] sm:$0xff]
        %v8212 = vld [vmem:[%s8207 + $0x20] sm:$0xff]
        %v8213 = vld [vmem:[%s8207 + $0x28] sm:$0xff]
        %v8214 = vld [vmem:[%s8207 + $0x30] sm:$0xff]
        %v8215 = vld [vmem:[%s8207 + $0x38] sm:$0xff]
        %v8216 = vld [vmem:[%s8207 + $0x40] sm:$0xff]
        %v8217 = vld [vmem:[%s8207 + $0x48] sm:$0xff]
        %v8218 = vld [vmem:[%s8207 + $0x50] sm:$0xff]
        %v8219 = vld [vmem:[%s8207 + $0x58] sm:$0xff]
        %v8220 = vld [vmem:[%s8207 + $0x60] sm:$0xff]
        %v8221 = vld [vmem:[%s8207 + $0x68] sm:$0xff]
        %v8222 = vld [vmem:[%s8207 + $0x70] sm:$0xff]
        %v8223 = vld [vmem:[%s8207 + $0x78] sm:$0xff]
        %s8224 = scalar_lea.vmem %s9, 2
        %v8225 = vld [vmem:[%s8224] sm:$0x3]
        %v8227 = vlaneseq
        %v8228 = vshrl.u32 %v8227, 7
        %v8229 = vsub.s32 0, %v8228
        %v8230 = vrot.slane %v8225, %v8229
        %v8231 = vlaneseq
        %v8232 = vshrl.u32 %v8231, 7
        %v8233 = vsub.s32 1, %v8232
        %v8234 = vrot.slane %v8225, %v8233
        %v8253 = vunpack.c.l.b16 %v8208
        %v8254 = vunpack.c.h.b16 %v8208
        %v8255 = vunpack.c.l.b16 %v8209
        %v8256 = vunpack.c.h.b16 %v8209
        %v8257 = vunpack.c.l.b16 %v8210
        %v8258 = vunpack.c.h.b16 %v8210
        %v8259 = vunpack.c.l.b16 %v8211
        %v8260 = vunpack.c.h.b16 %v8211
        %v8261 = vunpack.c.l.b16 %v8212
        %v8262 = vunpack.c.h.b16 %v8212
        %v8263 = vunpack.c.l.b16 %v8213
        %v8264 = vunpack.c.h.b16 %v8213
        %v8265 = vunpack.c.l.b16 %v8214
        %v8266 = vunpack.c.h.b16 %v8214
        %v8267 = vunpack.c.l.b16 %v8215
        %v8268 = vunpack.c.h.b16 %v8215
        %v8269 = vunpack.c.l.b16 %v8216
        %v8270 = vunpack.c.h.b16 %v8216
        %v8271 = vunpack.c.l.b16 %v8217
        %v8272 = vunpack.c.h.b16 %v8217
        %v8273 = vunpack.c.l.b16 %v8218
        %v8274 = vunpack.c.h.b16 %v8218
        %v8275 = vunpack.c.l.b16 %v8219
        %v8276 = vunpack.c.h.b16 %v8219
        %v8277 = vunpack.c.l.b16 %v8220
        %v8278 = vunpack.c.h.b16 %v8220
        %v8279 = vunpack.c.l.b16 %v8221
        %v8280 = vunpack.c.h.b16 %v8221
        %v8281 = vunpack.c.l.b16 %v8222
        %v8282 = vunpack.c.h.b16 %v8222
        %v8283 = vunpack.c.l.b16 %v8223
        %v8284 = vunpack.c.h.b16 %v8223
        %v8285 = vpack.c.b16 %v8255, %v8253
        %v8286 = vpack.c.b16 %v8256, %v8254
        %v8287 = vpack.c.b16 %v8259, %v8257
        %v8288 = vpack.c.b16 %v8260, %v8258
        %v8289 = vpack.c.b16 %v8263, %v8261
        %v8290 = vpack.c.b16 %v8264, %v8262
        %v8291 = vpack.c.b16 %v8267, %v8265
        %v8292 = vpack.c.b16 %v8268, %v8266
        %v8293 = vpack.c.b16 %v8271, %v8269
        %v8294 = vpack.c.b16 %v8272, %v8270
        %v8295 = vpack.c.b16 %v8275, %v8273
        %v8296 = vpack.c.b16 %v8276, %v8274
        %v8297 = vpack.c.b16 %v8279, %v8277
        %v8298 = vpack.c.b16 %v8280, %v8278
        %v8299 = vpack.c.b16 %v8283, %v8281
        %v8300 = vpack.c.b16 %v8284, %v8282
        %8317 = vmatprep.subr.bf16.mxu0 %v8300
        %8318 = vmatpush1.bf16.msra.mxu0 %v8299
        %8319 = vmatprep.subr.bf16.mxu0 %v8298
        %8320 = vmatpush1.bf16.msra.mxu0 %v8297
        %8321 = vmatprep.subr.bf16.mxu0 %v8296
        %8322 = vmatpush1.bf16.msra.mxu0 %v8295
        %8323 = vmatprep.subr.bf16.mxu0 %v8294
        %8324 = vmatpush1.bf16.msra.mxu0 %v8293
        %8325 = vmatprep.subr.bf16.mxu0 %v8292
        %8326 = vmatpush1.bf16.msra.mxu0 %v8291
        %8327 = vmatprep.subr.bf16.mxu0 %v8290
        %8328 = vmatpush1.bf16.msra.mxu0 %v8289
        %8329 = vmatprep.subr.bf16.mxu0 %v8288
        %8330 = vmatpush1.bf16.msra.mxu0 %v8287
        %8331 = vmatprep.subr.bf16.mxu0 %v8286
        %8332 = vmatpush1.bf16.msra.mxu0 %v8285
        %8333 = vmatprep.subr.bf16.mxu0 0
        %8334 = vmatpush2.bf16.msra.mxu0 0
        %8335 = vmatprep.subr.bf16.mxu0 0
        %8336 = vmatpush2.bf16.msra.mxu0 0
        %8337 = vmatprep.subr.bf16.mxu0 0
        %8338 = vmatpush2.bf16.msra.mxu0 0
        %8339 = vmatprep.subr.bf16.mxu0 0
        %8340 = vmatpush2.bf16.msra.mxu0 0
        %8341 = vmatprep.subr.bf16.mxu0 0
        %8342 = vmatpush2.bf16.msra.mxu0 0
        %8343 = vmatprep.subr.bf16.mxu0 0
        %8344 = vmatpush2.bf16.msra.mxu0 0
        %8345 = vmatprep.subr.bf16.mxu0 0
        %8346 = vmatpush2.bf16.msra.mxu0 0
        %8347 = vmatprep.subr.bf16.mxu0 0
        %8348 = vmatpush2.bf16.msra.mxu0 0
        %8349 = vmatprep.mubr.bf16.mxu0 0
        %8350 = vmatmul.mubr.bf16.gmra.mxu0 %v8205
        %v8351 = vpop.f32.mrf.mxu0
        %v8352 = vadd.f32 %v8230, %v8351
        %v8353 = vpop.f32.mrf.mxu0
        %v8354 = vadd.f32 %v8234, %v8353
        %v8355 = vpop.f32.mrf.mxu0
        %v8356 = vadd.f32 %v8230, %v8355
        %v8357 = vpop.f32.mrf.mxu0
        %v8358 = vadd.f32 %v8234, %v8357
        %8359 = vmatprep.mubr.bf16.mxu0 0
        %8360 = vmatmul.mubr.bf16.gmra.mxu0 %v8206
        %v8361 = vpop.f32.mrf.mxu0
        %v8362 = vadd.f32 %v8230, %v8361
        %v8363 = vpop.f32.mrf.mxu0
        %v8364 = vadd.f32 %v8234, %v8363
        %v8365 = vpop.f32.mrf.mxu0
        %v8366 = vadd.f32 %v8230, %v8365
        %v8367 = vpop.f32.mrf.mxu0
        %v8368 = vadd.f32 %v8234, %v8367
        %8369 = vdwg.mxu0
        %v8370 = vmul.f32 %v8352, %v8352
        %v8371 = vmul.f32 %v8354, %v8354
        %v8372 = vmul.f32 %v8356, %v8356
        %v8373 = vmul.f32 %v8358, %v8358
        %v8374 = vmul.f32 %v8362, %v8362
        %v8375 = vmul.f32 %v8364, %v8364
        %v8376 = vmul.f32 %v8366, %v8366
        %v8377 = vmul.f32 %v8368, %v8368
        %v8378 = vmul.f32 %v8352, %v8370
        %v8379 = vmul.f32 %v8354, %v8371
        %v8380 = vmul.f32 %v8356, %v8372
        %v8381 = vmul.f32 %v8358, %v8373
        %v8382 = vmul.f32 %v8362, %v8374
        %v8383 = vmul.f32 %v8364, %v8375
        %v8384 = vmul.f32 %v8366, %v8376
        %v8385 = vmul.f32 %v8368, %v8377
        %v8386 = vmul.f32 %v8378, 0.044715
        %v8387 = vmul.f32 %v8379, 0.044715
        %v8388 = vmul.f32 %v8380, 0.044715
        %v8389 = vmul.f32 %v8381, 0.044715
        %v8390 = vmul.f32 %v8382, 0.044715
        %v8391 = vmul.f32 %v8383, 0.044715
        %v8392 = vmul.f32 %v8384, 0.044715
        %v8393 = vmul.f32 %v8385, 0.044715
        %v8394 = vadd.f32 %v8352, %v8386
        %v8395 = vadd.f32 %v8354, %v8387
        %v8396 = vadd.f32 %v8356, %v8388
        %v8397 = vadd.f32 %v8358, %v8389
        %v8398 = vadd.f32 %v8362, %v8390
        %v8399 = vadd.f32 %v8364, %v8391
        %v8400 = vadd.f32 %v8366, %v8392
        %v8401 = vadd.f32 %v8368, %v8393
        %v8402 = vmul.f32 %v8394, 0.7978846
        %v8403 = vmul.f32 %v8395, 0.7978846
        %v8404 = vmul.f32 %v8396, 0.7978846
        %v8405 = vmul.f32 %v8397, 0.7978846
        %v8406 = vmul.f32 %v8398, 0.7978846
        %v8407 = vmul.f32 %v8399, 0.7978846
        %v8408 = vmul.f32 %v8400, 0.7978846
        %v8409 = vmul.f32 %v8401, 0.7978846
        %v8410 = vtanh.pop %v8402
        %v8411 = vtanh.pop %v8403
        %v8412 = vtanh.pop %v8404
        %v8413 = vtanh.pop %v8405
        %v8414 = vtanh.pop %v8406
        %v8415 = vtanh.pop %v8407
        %v8416 = vtanh.pop %v8408
        %v8417 = vtanh.pop %v8409
        %v8418 = vadd.f32 %v8410, 1.0
        %v8419 = vadd.f32 %v8411, 1.0
        %v8420 = vadd.f32 %v8412, 1.0
        %v8421 = vadd.f32 %v8413, 1.0
        %v8422 = vadd.f32 %v8414, 1.0
        %v8423 = vadd.f32 %v8415, 1.0
        %v8424 = vadd.f32 %v8416, 1.0
        %v8425 = vadd.f32 %v8417, 1.0
        %v8426 = vmul.f32 %v8418, 0.5
        %v8427 = vmul.f32 %v8419, 0.5
        %v8428 = vmul.f32 %v8420, 0.5
        %v8429 = vmul.f32 %v8421, 0.5
        %v8430 = vmul.f32 %v8422, 0.5
        %v8431 = vmul.f32 %v8423, 0.5
        %v8432 = vmul.f32 %v8424, 0.5
        %v8433 = vmul.f32 %v8425, 0.5
        %v8434 = vmul.f32 %v8352, %v8426
        %v8435 = vmul.f32 %v8354, %v8427
        %v8436 = vmul.f32 %v8356, %v8428
        %v8437 = vmul.f32 %v8358, %v8429
        %v8438 = vmul.f32 %v8362, %v8430
        %v8439 = vmul.f32 %v8364, %v8431
        %v8440 = vmul.f32 %v8366, %v8432
        %v8441 = vmul.f32 %v8368, %v8433
        %v8442 = vpack.c.bf16 %v8436, %v8434
        %v8443 = vpack.c.bf16 %v8437, %v8435
        %v8444 = vpack.c.bf16 %v8440, %v8438
        %v8445 = vpack.c.bf16 %v8441, %v8439
        %s8446 = scalar_lea.vmem %s10, 128
        %v8447 = vld [vmem:[%s8446] sm:$0xf]
        %v8448 = vld [vmem:[%s8446 + $0x4] sm:$0xf]
        %v8449 = vld [vmem:[%s8446 + $0x8] sm:$0xf]
        %v8450 = vld [vmem:[%s8446 + $0xc] sm:$0xf]
        %v8451 = vld [vmem:[%s8446 + $0x10] sm:$0xf]
        %v8452 = vld [vmem:[%s8446 + $0x14] sm:$0xf]
        %v8453 = vld [vmem:[%s8446 + $0x18] sm:$0xf]
        %v8454 = vld [vmem:[%s8446 + $0x1c] sm:$0xf]
        %v8455 = vld [vmem:[%s8446 + $0x20] sm:$0xf]
        %v8456 = vld [vmem:[%s8446 + $0x24] sm:$0xf]
        %v8457 = vld [vmem:[%s8446 + $0x28] sm:$0xf]
        %v8458 = vld [vmem:[%s8446 + $0x2c] sm:$0xf]
        %v8459 = vld [vmem:[%s8446 + $0x30] sm:$0xf]
        %v8460 = vld [vmem:[%s8446 + $0x34] sm:$0xf]
        %v8461 = vld [vmem:[%s8446 + $0x38] sm:$0xf]
        %v8462 = vld [vmem:[%s8446 + $0x3c] sm:$0xf]
        %v8463 = vld [vmem:[%s8446 + $0x40] sm:$0xf]
        %v8464 = vld [vmem:[%s8446 + $0x44] sm:$0xf]
        %v8465 = vld [vmem:[%s8446 + $0x48] sm:$0xf]
        %v8466 = vld [vmem:[%s8446 + $0x4c] sm:$0xf]
        %v8467 = vld [vmem:[%s8446 + $0x50] sm:$0xf]
        %v8468 = vld [vmem:[%s8446 + $0x54] sm:$0xf]
        %v8469 = vld [vmem:[%s8446 + $0x58] sm:$0xf]
        %v8470 = vld [vmem:[%s8446 + $0x5c] sm:$0xf]
        %v8471 = vld [vmem:[%s8446 + $0x60] sm:$0xf]
        %v8472 = vld [vmem:[%s8446 + $0x64] sm:$0xf]
        %v8473 = vld [vmem:[%s8446 + $0x68] sm:$0xf]
        %v8474 = vld [vmem:[%s8446 + $0x6c] sm:$0xf]
        %v8475 = vld [vmem:[%s8446 + $0x70] sm:$0xf]
        %v8476 = vld [vmem:[%s8446 + $0x74] sm:$0xf]
        %v8477 = vld [vmem:[%s8446 + $0x78] sm:$0xf]
        %v8478 = vld [vmem:[%s8446 + $0x7c] sm:$0xf]
        %s8479 = scalar_lea.vmem %s11, 1
        %v8480 = vld [vmem:[%s8479] sm:$0x1]
        %v8482 = vlaneseq
        %v8483 = vshrl.u32 %v8482, 7
        %v8484 = vsub.s32 0, %v8483
        %v8485 = vrot.slane %v8480, %v8484
        %v8519 = vunpack.c.l.b16 %v8447
        %v8520 = vunpack.c.l.b16 %v8448
        %v8521 = vunpack.c.l.b16 %v8449
        %v8522 = vunpack.c.l.b16 %v8450
        %v8523 = vunpack.c.l.b16 %v8451
        %v8524 = vunpack.c.l.b16 %v8452
        %v8525 = vunpack.c.l.b16 %v8453
        %v8526 = vunpack.c.l.b16 %v8454
        %v8527 = vunpack.c.l.b16 %v8455
        %v8528 = vunpack.c.l.b16 %v8456
        %v8529 = vunpack.c.l.b16 %v8457
        %v8530 = vunpack.c.l.b16 %v8458
        %v8531 = vunpack.c.l.b16 %v8459
        %v8532 = vunpack.c.l.b16 %v8460
        %v8533 = vunpack.c.l.b16 %v8461
        %v8534 = vunpack.c.l.b16 %v8462
        %v8535 = vunpack.c.l.b16 %v8463
        %v8536 = vunpack.c.l.b16 %v8464
        %v8537 = vunpack.c.l.b16 %v8465
        %v8538 = vunpack.c.l.b16 %v8466
        %v8539 = vunpack.c.l.b16 %v8467
        %v8540 = vunpack.c.l.b16 %v8468
        %v8541 = vunpack.c.l.b16 %v8469
        %v8542 = vunpack.c.l.b16 %v8470
        %v8543 = vunpack.c.l.b16 %v8471
        %v8544 = vunpack.c.l.b16 %v8472
        %v8545 = vunpack.c.l.b16 %v8473
        %v8546 = vunpack.c.l.b16 %v8474
        %v8547 = vunpack.c.l.b16 %v8475
        %v8548 = vunpack.c.l.b16 %v8476
        %v8549 = vunpack.c.l.b16 %v8477
        %v8550 = vunpack.c.l.b16 %v8478
        %v8551 = vpack.c.b16 %v8520, %v8519
        %v8552 = vpack.c.b16 %v8522, %v8521
        %v8553 = vpack.c.b16 %v8524, %v8523
        %v8554 = vpack.c.b16 %v8526, %v8525
        %v8555 = vpack.c.b16 %v8528, %v8527
        %v8556 = vpack.c.b16 %v8530, %v8529
        %v8557 = vpack.c.b16 %v8532, %v8531
        %v8558 = vpack.c.b16 %v8534, %v8533
        %v8559 = vpack.c.b16 %v8536, %v8535
        %v8560 = vpack.c.b16 %v8538, %v8537
        %v8561 = vpack.c.b16 %v8540, %v8539
        %v8562 = vpack.c.b16 %v8542, %v8541
        %v8563 = vpack.c.b16 %v8544, %v8543
        %v8564 = vpack.c.b16 %v8546, %v8545
        %v8565 = vpack.c.b16 %v8548, %v8547
        %v8566 = vpack.c.b16 %v8550, %v8549
        %8583 = vmatprep.subr.bf16.mxu0 0
        %8584 = vmatpush1.bf16.msra.mxu0 %v8558
        %8585 = vmatprep.subr.bf16.mxu0 0
        %8586 = vmatpush1.bf16.msra.mxu0 %v8557
        %8587 = vmatprep.subr.bf16.mxu0 0
        %8588 = vmatpush1.bf16.msra.mxu0 %v8556
        %8589 = vmatprep.subr.bf16.mxu0 0
        %8590 = vmatpush1.bf16.msra.mxu0 %v8555
        %8591 = vmatprep.subr.bf16.mxu0 0
        %8592 = vmatpush1.bf16.msra.mxu0 %v8554
        %8593 = vmatprep.subr.bf16.mxu0 0
        %8594 = vmatpush1.bf16.msra.mxu0 %v8553
        %8595 = vmatprep.subr.bf16.mxu0 0
        %8596 = vmatpush1.bf16.msra.mxu0 %v8552
        %8597 = vmatprep.subr.bf16.mxu0 0
        %8598 = vmatpush1.bf16.msra.mxu0 %v8551
        %8599 = vmatprep.subr.bf16.mxu0 0
        %8600 = vmatpush2.bf16.msra.mxu0 %v8566
        %8601 = vmatprep.subr.bf16.mxu0 0
        %8602 = vmatpush2.bf16.msra.mxu0 %v8565
        %8603 = vmatprep.subr.bf16.mxu0 0
        %8604 = vmatpush2.bf16.msra.mxu0 %v8564
        %8605 = vmatprep.subr.bf16.mxu0 0
        %8606 = vmatpush2.bf16.msra.mxu0 %v8563
        %8607 = vmatprep.subr.bf16.mxu0 0
        %8608 = vmatpush2.bf16.msra.mxu0 %v8562
        %8609 = vmatprep.subr.bf16.mxu0 0
        %8610 = vmatpush2.bf16.msra.mxu0 %v8561
        %8611 = vmatprep.subr.bf16.mxu0 0
        %8612 = vmatpush2.bf16.msra.mxu0 %v8560
        %8613 = vmatprep.subr.bf16.mxu0 0
        %8614 = vmatpush2.bf16.msra.mxu0 %v8559
        %8615 = vmatprep.mubr.bf16.mxu0 %v8443
        %8616 = vmatmul.mubr.bf16.gmra.mxu0 %v8442
        %v8617 = vpop.f32.mrf.mxu0
        %v8618 = vadd.f32 %v8485, %v8617
        %v8619 = vpop.f32.mrf.mxu0
        %v8620 = vpop.f32.mrf.mxu0
        %v8621 = vpop.f32.mrf.mxu0
        %8622 = vmatprep.mubr.bf16.mxu0 %v8445
        %8623 = vmatmul.mubr.bf16.gmra.mxu0 %v8444
        %v8624 = vpop.f32.mrf.mxu0
        %v8625 = vpop.f32.mrf.mxu0
        %v8626 = vpop.f32.mrf.mxu0
        %v8627 = vpop.f32.mrf.mxu0
        %8628 = vdwg.mxu0
        %v8629 = vadd.f32 %v8141, %v8618
        %v8630 = vpack.c.bf16 %v8629, %v8629
        %v8631 = vld [vmem:[%s12] sm:$0xf]
        %v8632 = vld [vmem:[%s12 + $0x4] sm:$0xf]
        %v8633 = vld [vmem:[%s12 + $0x8] sm:$0xf]
        %v8634 = vld [vmem:[%s12 + $0xc] sm:$0xf]
        %v8635 = vld [vmem:[%s12 + $0x10] sm:$0xf]
        %v8636 = vld [vmem:[%s12 + $0x14] sm:$0xf]
        %v8637 = vld [vmem:[%s12 + $0x18] sm:$0xf]
        %v8638 = vld [vmem:[%s12 + $0x1c] sm:$0xf]
        %v8639 = vld [vmem:[%s12 + $0x20] sm:$0xf]
        %v8640 = vld [vmem:[%s12 + $0x24] sm:$0xf]
        %v8641 = vld [vmem:[%s12 + $0x28] sm:$0xf]
        %v8642 = vld [vmem:[%s12 + $0x2c] sm:$0xf]
        %v8643 = vld [vmem:[%s12 + $0x30] sm:$0xf]
        %v8644 = vld [vmem:[%s12 + $0x34] sm:$0xf]
        %v8645 = vld [vmem:[%s12 + $0x38] sm:$0xf]
        %v8646 = vld [vmem:[%s12 + $0x3c] sm:$0xf]
        %v8647 = vld [vmem:[%s13] sm:$0x1]
        %v8664 = vunpack.c.l.b16 %v8631
        %v8665 = vunpack.c.l.b16 %v8632
        %v8666 = vunpack.c.l.b16 %v8633
        %v8667 = vunpack.c.l.b16 %v8634
        %v8668 = vunpack.c.l.b16 %v8635
        %v8669 = vunpack.c.l.b16 %v8636
        %v8670 = vunpack.c.l.b16 %v8637
        %v8671 = vunpack.c.l.b16 %v8638
        %v8672 = vunpack.c.l.b16 %v8639
        %v8673 = vunpack.c.l.b16 %v8640
        %v8674 = vunpack.c.l.b16 %v8641
        %v8675 = vunpack.c.l.b16 %v8642
        %v8676 = vunpack.c.l.b16 %v8643
        %v8677 = vunpack.c.l.b16 %v8644
        %v8678 = vunpack.c.l.b16 %v8645
        %v8679 = vunpack.c.l.b16 %v8646
        %v8680 = vpack.c.b16 %v8665, %v8664
        %v8681 = vpack.c.b16 %v8667, %v8666
        %v8682 = vpack.c.b16 %v8669, %v8668
        %v8683 = vpack.c.b16 %v8671, %v8670
        %v8684 = vpack.c.b16 %v8673, %v8672
        %v8685 = vpack.c.b16 %v8675, %v8674
        %v8686 = vpack.c.b16 %v8677, %v8676
        %v8687 = vpack.c.b16 %v8679, %v8678
        %8696 = vmatprep.subr.bf16.mxu0 0
        %8697 = vmatpush1.bf16.msra.mxu0 %v8687
        %8698 = vmatprep.subr.bf16.mxu0 0
        %8699 = vmatpush1.bf16.msra.mxu0 %v8686
        %8700 = vmatprep.subr.bf16.mxu0 0
        %8701 = vmatpush1.bf16.msra.mxu0 %v8685
        %8702 = vmatprep.subr.bf16.mxu0 0
        %8703 = vmatpush1.bf16.msra.mxu0 %v8684
        %8704 = vmatprep.subr.bf16.mxu0 0
        %8705 = vmatpush1.bf16.msra.mxu0 %v8683
        %8706 = vmatprep.subr.bf16.mxu0 0
        %8707 = vmatpush1.bf16.msra.mxu0 %v8682
        %8708 = vmatprep.subr.bf16.mxu0 0
        %8709 = vmatpush1.bf16.msra.mxu0 %v8681
        %8710 = vmatprep.subr.bf16.mxu0 0
        %8711 = vmatpush1.bf16.msra.mxu0 %v8680
        %8712 = vmatprep.subr.bf16.mxu0 0
        %8713 = vmatpush2.bf16.msra.mxu0 0
        %8714 = vmatprep.subr.bf16.mxu0 0
        %8715 = vmatpush2.bf16.msra.mxu0 0
        %8716 = vmatprep.subr.bf16.mxu0 0
        %8717 = vmatpush2.bf16.msra.mxu0 0
        %8718 = vmatprep.subr.bf16.mxu0 0
        %8719 = vmatpush2.bf16.msra.mxu0 0
        %8720 = vmatprep.subr.bf16.mxu0 0
        %8721 = vmatpush2.bf16.msra.mxu0 0
        %8722 = vmatprep.subr.bf16.mxu0 0
        %8723 = vmatpush2.bf16.msra.mxu0 0
        %8724 = vmatprep.subr.bf16.mxu0 0
        %8725 = vmatpush2.bf16.msra.mxu0 0
        %8726 = vmatprep.subr.bf16.mxu0 0
        %8727 = vmatpush2.bf16.msra.mxu0 0
        %8728 = vmatprep.mubr.bf16.mxu0 0
        %8729 = vmatmul.mubr.bf16.gmra.mxu0 %v8630
        %v8730 = vpop.f32.mrf.mxu0
        %v8731 = vadd.f32 %v8647, %v8730
        %v8732 = vpop.f32.mrf.mxu0
        %v8733 = vpop.f32.mrf.mxu0
        %v8734 = vpop.f32.mrf.mxu0
        %8735 = vdwg.mxu0
        %8736 = vst [vmem:[%s459] sm:$0x1] %v8731
        %s8737 = sand.u32 %s335, 1
        %s8738 = scalar_lea.sflag [#allocation3], %s8737
        %s8739 = sand.u32 %s335, 1
        %s8740 = scalar_lea.vmem [#allocation2], %s8739
        // Predicated region
        $region77: #{vit_forward.1} parent=75 // pred_check
          %p8741 = pneg %p345
        $region78: #{vit_forward.1} parent=75 // pred_check_branch
          %8743 = sbr.rel (%p8741) target = $region80
        $region79: #{vit_forward.1} parent=75 // pred_region
          %s8745 = ssub.s32 16, 16
          %8746 = vsyncadd %s8738, %s8745
          %s8747 = smul.addr %s28, 16
          %s8748 = scalar_lea.hbm %s14, %s8747
          %s8750 = sshll.u32 %s8740, 4
          %s8751 = int_to_ptr.vmem [resolvable:$true] %s8750
          %8753 = dma.vmem_to_hbm [thread:$0]  %s8751, 16, %s8748, %s8738
        $region80: #{vit_forward.1} parent=75 // pred_fallthru
          _
      $region76: #{vit_forward.1} parent=5 // pred_fallthru
        _
      %p8754 = scmp.le.s32.totalorder 2, %s23
      // Predicated region
      $region81: #{vit_forward.1} parent=5 // pred_check
        %p8755 = pneg %p8754
      $region82: #{vit_forward.1} parent=5 // pred_check_branch
        %8757 = sbr.rel (%p8755) target = $region84
      $region83: #{vit_forward.1} parent=5 // pred_region
        %s8758 = ssub.s32 %s23, 2
        // Predicated region
        $region85: #{vit_forward.1} parent=83 // pred_check
          %p8759 = pneg %p351
        $region86: #{vit_forward.1} parent=83 // pred_check_branch
          %8761 = sbr.rel (%p8759) target = $region88
        $region87: #{vit_forward.1} parent=83 // pred_region
          %s8762 = sand.u32 %s336, 1
          %s8763 = scalar_lea.sflag [#allocation3], %s8762
          %s8764 = sand.u32 %s336, 1
          %s8765 = scalar_lea.vmem [#allocation2], %s8764
          %8766 = dma.done %s8763, 16
        $region88: #{vit_forward.1} parent=83 // pred_fallthru
          _
      $region84: #{vit_forward.1} parent=5 // pred_fallthru
        _
    $region6: #{vit_forward.1} parent=1 // loop_footer
      %s27 = sadd.s32 1, %s23
    $region7: #{vit_forward.1} parent=1 // loop_footer_branch
      %22 = sbr.rel target = $region3
    $region8: #{vit_forward.1} parent=1 // loop_exit
      _
    %8767 = vsyncpa [#allocation3], 1
    %s8768 = scalar_lea.sflag [#allocation3], 1
    %8769 = vsyncpa %s8768, 1

</llo_original>
